<compile_context>
chip_gen: v7x
topology: tpu7x:2x2x1
jax: 0.10.0
libtpu: 0.0.40
codegen_flags: <defaults>
</compile_context>

<pallas_src>
import math
from functools import partial

import jax
import jax.numpy as jnp
from jax.experimental import pallas as pl
from jax.experimental.pallas import tpu as pltpu

N_LABELS = 12
OUT_PAD = 128          # lane-dense logits block (>= N_LABELS, multiple of 128)


# --------------------------- helpers ------------------------------------------

def _act_dtype():
    """bf16 intermediates on v6e/v7x (native bf16 VPU); f32 on v5-class chips."""
    try:
        kind = jax.devices()[0].device_kind.lower()
    except Exception:
        kind = ""
    return jnp.float32 if "v5" in kind else jnp.bfloat16


def _pick_bb(B):
    """Batch-tile size: as large as VMEM comfortably allows (<= 64), preferring a
    multiple of 4 (conv2's matmul M = 64*bb then matches the 256-row MXU), and
    giving the parallel grid axis >= 2 steps for B >= 4 so both v7x TensorCores
    get work (no effect on v5e/v6e)."""
    cap = 64
    if B <= 2:
        return B
    upper = min(B // 2, cap)                      # >= 2 grid steps
    for bb in range(upper - upper % 4, 0, -4):    # multiples of 4 first
        if bb > 0 and B % bb == 0:
            return bb
    for bb in range(upper, 0, -1):
        if B % bb == 0:
            return bb
    return 1


def _im2col_3x3(x):
    """(B, H, W, C) -> (B, H*W, 9*C) patches for a 3x3 pad=1 conv.
    Column ordering is (kh, kw, c), matching the (3,3,cin,cout)->(9*cin,cout)
    weight reshape.  Done outside the kernel (plain XLA) — it is tiny."""
    B, H, W, C = x.shape
    xp = jnp.pad(x, ((0, 0), (1, 1), (1, 1), (0, 0)))
    taps = [xp[:, kh:kh + H, kw:kw + W, :] for kh in range(3) for kw in range(3)]
    return jnp.concatenate(taps, axis=-1).reshape(B, H * W, 9 * C)


def _vmem_limit_bytes(bb, H, W, Cin, C1, C2, wp2):
    """Scoped-VMEM request: 2x input tile + (double-buffered) weights + scratch
    + live activation temps + headroom, clamped to [16 MiB, 40 MiB]."""
    bf16, f32 = 2, 4
    hw, h2w2 = H * W, (H // 2) * (W // 2)
    pat1_tile = bb * hw * 9 * Cin * bf16
    weight_elems = (9 * Cin * C1 + 9 * C1 * C2 + 2 * C2 * 1024
                    + 1024 * 256 + 256 * OUT_PAD)
    weights = 2 * weight_elems * bf16                       # double-buffered
    scratch = bb * (H // 2 + 2) * wp2 * C1 * bf16
    live = bb * (hw * C1 * (f32 + bf16)                     # a1 (f32 + act copy)
                 + h2w2 * 9 * C1 * bf16                     # conv2 im2col patches
                 + 2 * h2w2 * C2 * f32)                     # a2 + pool temps
    out_tile = 2 * bb * OUT_PAD * f32
    est = 2 * pat1_tile + weights + scratch + live + out_tile + (8 << 20)
    return int(min(max(est, 16 << 20), 40 << 20))


# --------------------------- fused Pallas kernel -------------------------------

def vgg_fused_kernel(pat1_ref, wc1_ref, bc1_ref, wc2_ref, bc2_ref,
                     w1_ref, b1_ref, w2_ref, b2_ref, w3_ref, b3_ref,
                     o_ref, xp2_ref, *, H, W, act_dtype):
    """Fused VGG forward for one batch tile.

    pat1_ref : (BB, H*W, 9*Cin) bf16   conv1 im2col patches (precomputed outside)
    wc1_ref  : (9*Cin, C1) bf16        conv1 weights, taps flattened (kh,kw,cin)
    wc2_ref  : (9*C1,  C2) bf16        conv2 weights
    w*_ref   : classifier weights bf16; b*_ref biases f32 of shape (1, fout)
    o_ref    : (BB, OUT_PAD) f32       lane-dense padded logits
    xp2_ref  : (BB, H/2+2, Wp2, C1)    VMEM scratch (padded conv2 input, act dtype)
    """
    BB = pat1_ref.shape[0]
    K1 = pat1_ref.shape[2]
    C1 = wc1_ref.shape[1]
    C2 = wc2_ref.shape[1]
    H2, W2 = H // 2, W // 2

    def maxpool2(y, h, w, c):
        # y: (BB*h*w, c) rows ordered (b, h, w) -> (BB, h//2, w//2, c).
        # Split H first (layout-free), then W: integer-indexed slices + VPU max.
        y = y.reshape(BB, h // 2, 2, w, c)
        y = jnp.maximum(y[:, :, 0, :, :], y[:, :, 1, :, :])
        y = y.reshape(BB, h // 2, w // 2, 2, c)
        return jnp.maximum(y[:, :, :, 0, :], y[:, :, :, 1, :])

    # ---- block 1: Conv3x3(pad=1) + ReLU + MaxPool2 ----------------------------
    # im2col patches arrive precomputed and lane-dense -> a single MXU matmul
    # with no in-kernel shuffle work for conv1.
    pat1 = pat1_ref[...].reshape(BB * H * W, K1)
    a1 = jnp.dot(pat1, wc1_ref[...], preferred_element_type=jnp.float32)
    a1 = jnp.maximum(a1 + bc1_ref[...], 0.0).astype(act_dtype)      # (BB*H*W, C1)
    p1 = maxpool2(a1, H, W, C1)                                     # (BB,H2,W2,C1)

    # ---- block 2: Conv3x3(pad=1) + ReLU + MaxPool2 ----------------------------
    # Zero only the border ring of the padded scratch (interior is fully
    # rewritten each step).  Re-zeroed every step for megacore safety: with a
    # "parallel" grid axis, each TensorCore owns its own scratch copy and a
    # program_id==0 guard would leave one core's border uninitialized.
    Wp2 = xp2_ref.shape[2]
    zrow = jnp.zeros((BB, 1, Wp2, C1), act_dtype)
    xp2_ref[:, 0:1, :, :] = zrow
    xp2_ref[:, H2 + 1:H2 + 2, :, :] = zrow
    zcol = jnp.zeros((BB, H2, 1, C1), act_dtype)
    xp2_ref[:, 1:H2 + 1, 0:1, :] = zcol
    xp2_ref[:, 1:H2 + 1, W2 + 1:W2 + 2, :] = zcol
    xp2_ref[:, 1:H2 + 1, 1:W2 + 1, :] = p1

    # im2col: 9 shifted windows concatenated along lanes -> one MXU matmul.
    taps = [xp2_ref[:, kh:kh + H2, kw:kw + W2, :].reshape(BB * H2 * W2, C1)
            for kh in range(3) for kw in range(3)]
    pat2 = jnp.concatenate(taps, axis=1).astype(jnp.bfloat16)       # (BB*H2*W2, 9*C1)
    a2 = jnp.dot(pat2, wc2_ref[...], preferred_element_type=jnp.float32)
    a2 = jnp.maximum(a2 + bc2_ref[...], 0.0)                        # (BB*H2*W2, C2) f32
    p2 = maxpool2(a2, H2, W2, C2)                                   # (BB,H2/2,W2/2,C2)

    # ---- head: adaptive max+avg pool -> concat -> 3-layer MLP -----------------
    mx = jnp.max(jnp.max(p2, axis=2), axis=1)                       # (BB, C2)
    av = jnp.mean(jnp.mean(p2, axis=2), axis=1)                     # (BB, C2)
    z = jnp.concatenate([mx, av], axis=1).astype(jnp.bfloat16)      # (BB, 2*C2)

    h1 = jnp.dot(z, w1_ref[...], preferred_element_type=jnp.float32) + b1_ref[...]
    h1 = jnp.maximum(h1, 0.0).astype(jnp.bfloat16)
    # Dropout() -> identity (inference)
    h2 = jnp.dot(h1, w2_ref[...], preferred_element_type=jnp.float32) + b2_ref[...]
    h2 = jnp.maximum(h2, 0.0).astype(jnp.bfloat16)
    # Dropout(0.25) -> identity (inference)
    o_ref[...] = jnp.dot(h2, w3_ref[...], preferred_element_type=jnp.float32) + b3_ref[...]


# --------------------------- wrappers -------------------------------------------

def vgg_forward_pallas(params, x_nhwc, bb):
    """x_nhwc: (B, H, W, Cin) f32 -> logits (B, N_LABELS). One fused pallas_call."""
    B, H, W, Cin = x_nhwc.shape
    assert H % 4 == 0 and W % 4 == 0, "two 2x2 max-pools require H, W divisible by 4"
    assert B % bb == 0
    C1 = params["b_c1"].shape[-1]
    C2 = params["b_c2"].shape[-1]
    act_dtype = _act_dtype()

    # conv weights flattened for im2col matmuls: rows ordered (kh, kw, cin)
    wc1 = params["w_c1"].reshape(9 * Cin, C1)
    wc2 = params["w_c2"].reshape(9 * C1, C2)

    # conv1 im2col patches precomputed outside the kernel (tiny, bf16)
    pat1 = _im2col_3x3(x_nhwc).astype(jnp.bfloat16)          # (B, H*W, 9*Cin)

    # lane-dense logits: pad the last linear layer to OUT_PAD lanes (zero cols)
    w3p = jnp.pad(params["w3"], ((0, 0), (0, OUT_PAD - N_LABELS)))
    b3p = jnp.pad(params["b3"], ((0, 0), (0, OUT_PAD - N_LABELS)))

    # sublane-aligned padded width for the conv2 scratch
    Wp2 = ((W // 2 + 2 + 7) // 8) * 8

    def const_spec(a):
        # grid-invariant block (constant index_map): Pallas only copies it once.
        return pl.BlockSpec(a.shape, lambda i, _nd=a.ndim: (0,) * _nd)

    kernel = partial(vgg_fused_kernel, H=H, W=W, act_dtype=act_dtype)

    out = pl.pallas_call(
        kernel,
        out_shape=jax.ShapeDtypeStruct((B, OUT_PAD), jnp.float32),
        grid=(B // bb,),
        in_specs=[
            pl.BlockSpec((bb, H * W, 9 * Cin), lambda i: (i, 0, 0)),
            const_spec(wc1), const_spec(params["b_c1"]),
            const_spec(wc2), const_spec(params["b_c2"]),
            const_spec(params["w1"]), const_spec(params["b1"]),
            const_spec(params["w2"]), const_spec(params["b2"]),
            const_spec(w3p), const_spec(b3p),
        ],
        out_specs=pl.BlockSpec((bb, OUT_PAD), lambda i: (i, 0)),
        scratch_shapes=[
            pltpu.VMEM((bb, H // 2 + 2, Wp2, C1), act_dtype),
        ],
        compiler_params=pltpu.CompilerParams(
            dimension_semantics=("parallel",),
            vmem_limit_bytes=_vmem_limit_bytes(bb, H, W, Cin, C1, C2, Wp2)),
    )(pat1, wc1, params["b_c1"], wc2, params["b_c2"],
      params["w1"], params["b1"], params["w2"], params["b2"], w3p, b3p)

    return out[:, :N_LABELS]


def init_params(key, cin):
    ks = jax.random.split(key, 10)

    def lin(kw, kb, fin, fout):
        w = (jax.random.normal(kw, (fin, fout), jnp.float32)
             / jnp.sqrt(float(fin))).astype(jnp.bfloat16)
        b = 0.01 * jax.random.normal(kb, (1, fout), jnp.float32)
        return w, b

    # features: two VGG blocks ending in 256 channels (classifier expects 256*2)
    w_c1 = (jax.random.normal(ks[0], (3, 3, cin, 32), jnp.float32)
            / jnp.sqrt(9.0 * cin)).astype(jnp.bfloat16)
    b_c1 = 0.01 * jax.random.normal(ks[1], (1, 32), jnp.float32)
    w_c2 = (jax.random.normal(ks[2], (3, 3, 32, 256), jnp.float32)
            / jnp.sqrt(9.0 * 32)).astype(jnp.bfloat16)
    b_c2 = 0.01 * jax.random.normal(ks[3], (1, 256), jnp.float32)

    w1, b1 = lin(ks[4], ks[5], 256 * 2, 1024)   # Linear(512, 1024)
    w2, b2 = lin(ks[6], ks[7], 1024, 256)       # Linear(1024, 256)
    w3, b3 = lin(ks[8], ks[9], 256, N_LABELS)   # Linear(256, 12)
    return dict(w_c1=w_c1, b_c1=b_c1, w_c2=w_c2, b_c2=b_c2,
                w1=w1, b1=b1, w2=w2, b2=b2, w3=w3, b3=b3)


@jax.jit
def vgg_forward(params, x_nchw):
    # NCHW (PyTorch) -> NHWC (channels map to TPU lanes)
    x = jnp.transpose(x_nchw, (0, 2, 3, 1)).astype(jnp.float32)
    bb = _pick_bb(x.shape[0])
    return vgg_forward_pallas(params, x, bb)


if __name__ == "__main__":
    key = jax.random.PRNGKey(0)
    k_param, k_x = jax.random.split(key)
    # small input consistent with the module: batch=2, channels=4, spatial=16
    x = jax.random.normal(k_x, (2, 4, 16, 16), jnp.float32)   # NCHW, like PyTorch
    params = init_params(k_param, cin=4)

    logits = vgg_forward(params, x)
    jax.block_until_ready(logits)
    assert logits.shape == (2, N_LABELS)
    print("KERNEL_OK")
</pallas_src>

<mosaic_0001>
module attributes {stable_mosaic.version = 11 : i64} {
  func.func @vgg_fused_kernel(%arg0: i32, %arg1: memref<2x256x36xbf16, #tpu.memory_space<vmem>>, %arg2: memref<36x32xbf16, #tpu.memory_space<vmem>>, %arg3: memref<1x32xf32, #tpu.memory_space<vmem>>, %arg4: memref<288x256xbf16, #tpu.memory_space<vmem>>, %arg5: memref<1x256xf32, #tpu.memory_space<vmem>>, %arg6: memref<512x1024xbf16, #tpu.memory_space<vmem>>, %arg7: memref<1x1024xf32, #tpu.memory_space<vmem>>, %arg8: memref<1024x256xbf16, #tpu.memory_space<vmem>>, %arg9: memref<1x256xf32, #tpu.memory_space<vmem>>, %arg10: memref<256x128xbf16, #tpu.memory_space<vmem>>, %arg11: memref<1x128xf32, #tpu.memory_space<vmem>>, %arg12: memref<2x128xf32, #tpu.memory_space<vmem>>, %arg13: memref<2x10x16x32xbf16, #tpu.memory_space<vmem>>) attributes {dimension_semantics = [#tpu.dimension_semantics<parallel>], iteration_bounds = array<i64: 1>, scalar_prefetch = 0 : i64, scratch_operands = 1 : i64, tpu.core_type = #tpu.core_type<tc>, window_params = [{transform_indices = @transform_0, window_bounds = array<i64: 2, 256, 36>}, {pipeline_mode = #tpu.pipeline_mode<synchronous>, transform_indices = @transform_1, window_bounds = array<i64: 36, 32>}, {pipeline_mode = #tpu.pipeline_mode<synchronous>, transform_indices = @transform_2, window_bounds = array<i64: 1, 32>}, {pipeline_mode = #tpu.pipeline_mode<synchronous>, transform_indices = @transform_3, window_bounds = array<i64: 288, 256>}, {pipeline_mode = #tpu.pipeline_mode<synchronous>, transform_indices = @transform_4, window_bounds = array<i64: 1, 256>}, {pipeline_mode = #tpu.pipeline_mode<synchronous>, transform_indices = @transform_5, window_bounds = array<i64: 512, 1024>}, {pipeline_mode = #tpu.pipeline_mode<synchronous>, transform_indices = @transform_6, window_bounds = array<i64: 1, 1024>}, {pipeline_mode = #tpu.pipeline_mode<synchronous>, transform_indices = @transform_7, window_bounds = array<i64: 1024, 256>}, {pipeline_mode = #tpu.pipeline_mode<synchronous>, transform_indices = @transform_8, window_bounds = array<i64: 1, 256>}, {pipeline_mode = #tpu.pipeline_mode<synchronous>, transform_indices = @transform_9, window_bounds = array<i64: 256, 128>}, {pipeline_mode = #tpu.pipeline_mode<synchronous>, transform_indices = @transform_10, window_bounds = array<i64: 1, 128>}, {transform_indices = @transform_11, window_bounds = array<i64: 2, 128>}]} {
    %c0 = arith.constant 0 : index
    %c0_0 = arith.constant 0 : index
    %c0_1 = arith.constant 0 : index
    %0 = vector.load %arg1[%c0, %c0_0, %c0_1] : memref<2x256x36xbf16, #tpu.memory_space<vmem>>, vector<2x256x36xbf16>
    %1 = vector.shape_cast %0 : vector<2x256x36xbf16> to vector<512x36xbf16>
    %c0_2 = arith.constant 0 : index
    %c0_3 = arith.constant 0 : index
    %2 = vector.load %arg2[%c0_2, %c0_3] : memref<36x32xbf16, #tpu.memory_space<vmem>>, vector<36x32xbf16>
    %cst = arith.constant dense<0.000000e+00> : vector<512x32xf32>
    %3 = tpu.matmul %1, %2, %cst {dimension_numbers = #tpu.dot_dimension_numbers<[1], [0], [0], [1], [0, 0, 1, 1], [], []>} : vector<512x36xbf16>, vector<36x32xbf16>, vector<512x32xf32> -> vector<512x32xf32>
    %c0_4 = arith.constant 0 : index
    %c0_5 = arith.constant 0 : index
    %4 = vector.load %arg3[%c0_4, %c0_5] : memref<1x32xf32, #tpu.memory_space<vmem>>, vector<1x32xf32>
    %5 = vector.broadcast %4 : vector<1x32xf32> to vector<512x32xf32>
    %6 = arith.addf %3, %5 : vector<512x32xf32>
    %cst_6 = arith.constant 0.000000e+00 : f32
    %7 = vector.broadcast %cst_6 : f32 to vector<512x32xf32>
    %8 = arith.maximumf %6, %7 : vector<512x32xf32>
    %9 = arith.truncf %8 : vector<512x32xf32> to vector<512x32xbf16>
    %10 = vector.shape_cast %9 : vector<512x32xbf16> to vector<2x8x2x16x32xbf16>
    %11 = vector.extract_strided_slice %10 {offsets = [0, 0, 0, 0, 0], sizes = [2, 8, 1, 16, 32], strides = [1, 1, 1, 1, 1]} : vector<2x8x2x16x32xbf16> to vector<2x8x1x16x32xbf16>
    %12 = vector.shape_cast %11 : vector<2x8x1x16x32xbf16> to vector<2x8x16x32xbf16>
    %13 = vector.extract_strided_slice %10 {offsets = [0, 0, 1, 0, 0], sizes = [2, 8, 1, 16, 32], strides = [1, 1, 1, 1, 1]} : vector<2x8x2x16x32xbf16> to vector<2x8x1x16x32xbf16>
    %14 = vector.shape_cast %13 : vector<2x8x1x16x32xbf16> to vector<2x8x16x32xbf16>
    %15 = arith.maximumf %12, %14 : vector<2x8x16x32xbf16>
    %16 = vector.shape_cast %15 : vector<2x8x16x32xbf16> to vector<2x8x8x2x32xbf16>
    %17 = vector.extract_strided_slice %16 {offsets = [0, 0, 0, 0, 0], sizes = [2, 8, 8, 1, 32], strides = [1, 1, 1, 1, 1]} : vector<2x8x8x2x32xbf16> to vector<2x8x8x1x32xbf16>
    %18 = vector.shape_cast %17 : vector<2x8x8x1x32xbf16> to vector<2x8x8x32xbf16>
    %19 = vector.extract_strided_slice %16 {offsets = [0, 0, 0, 1, 0], sizes = [2, 8, 8, 1, 32], strides = [1, 1, 1, 1, 1]} : vector<2x8x8x2x32xbf16> to vector<2x8x8x1x32xbf16>
    %20 = vector.shape_cast %19 : vector<2x8x8x1x32xbf16> to vector<2x8x8x32xbf16>
    %21 = arith.maximumf %18, %20 : vector<2x8x8x32xbf16>
    %cst_7 = arith.constant 0.000000e+00 : bf16
    %22 = vector.broadcast %cst_7 : bf16 to vector<2x1x16x32xbf16>
    %c0_8 = arith.constant 0 : index
    %c0_9 = arith.constant 0 : index
    %c0_10 = arith.constant 0 : index
    %c0_11 = arith.constant 0 : index
    %23 = vector.load %arg13[%c0_8, %c0_9, %c0_10, %c0_11] : memref<2x10x16x32xbf16, #tpu.memory_space<vmem>>, vector<2x1x16x32xbf16>
    tpu.vector_store %arg13[%c0_8, %c0_9, %c0_10, %c0_11], %22 {strides = array<i32>} : memref<2x10x16x32xbf16, #tpu.memory_space<vmem>>, vector<2x1x16x32xbf16>,
    %c0_12 = arith.constant 0 : index
    %c9 = arith.constant 9 : index
    %c0_13 = arith.constant 0 : index
    %c0_14 = arith.constant 0 : index
    %24 = vector.load %arg13[%c0_12, %c9, %c0_13, %c0_14] : memref<2x10x16x32xbf16, #tpu.memory_space<vmem>>, vector<2x1x16x32xbf16>
    tpu.vector_store %arg13[%c0_12, %c9, %c0_13, %c0_14], %22 {strides = array<i32>} : memref<2x10x16x32xbf16, #tpu.memory_space<vmem>>, vector<2x1x16x32xbf16>,
    %cst_15 = arith.constant 0.000000e+00 : bf16
    %25 = vector.broadcast %cst_15 : bf16 to vector<2x8x1x32xbf16>
    %c0_16 = arith.constant 0 : index
    %c1 = arith.constant 1 : index
    %c0_17 = arith.constant 0 : index
    %c0_18 = arith.constant 0 : index
    %26 = vector.load %arg13[%c0_16, %c1, %c0_17, %c0_18] : memref<2x10x16x32xbf16, #tpu.memory_space<vmem>>, vector<2x8x1x32xbf16>
    tpu.vector_store %arg13[%c0_16, %c1, %c0_17, %c0_18], %25 {strides = array<i32>} : memref<2x10x16x32xbf16, #tpu.memory_space<vmem>>, vector<2x8x1x32xbf16>,
    %c0_19 = arith.constant 0 : index
    %c1_20 = arith.constant 1 : index
    %c9_21 = arith.constant 9 : index
    %c0_22 = arith.constant 0 : index
    %27 = vector.load %arg13[%c0_19, %c1_20, %c9_21, %c0_22] : memref<2x10x16x32xbf16, #tpu.memory_space<vmem>>, vector<2x8x1x32xbf16>
    tpu.vector_store %arg13[%c0_19, %c1_20, %c9_21, %c0_22], %25 {strides = array<i32>} : memref<2x10x16x32xbf16, #tpu.memory_space<vmem>>, vector<2x8x1x32xbf16>,
    %c0_23 = arith.constant 0 : index
    %c1_24 = arith.constant 1 : index
    %c1_25 = arith.constant 1 : index
    %c0_26 = arith.constant 0 : index
    %28 = vector.load %arg13[%c0_23, %c1_24, %c1_25, %c0_26] : memref<2x10x16x32xbf16, #tpu.memory_space<vmem>>, vector<2x8x8x32xbf16>
    tpu.vector_store %arg13[%c0_23, %c1_24, %c1_25, %c0_26], %21 {strides = array<i32>} : memref<2x10x16x32xbf16, #tpu.memory_space<vmem>>, vector<2x8x8x32xbf16>,
    %c0_27 = arith.constant 0 : index
    %c0_28 = arith.constant 0 : index
    %c0_29 = arith.constant 0 : index
    %c0_30 = arith.constant 0 : index
    %29 = vector.load %arg13[%c0_27, %c0_28, %c0_29, %c0_30] : memref<2x10x16x32xbf16, #tpu.memory_space<vmem>>, vector<2x8x8x32xbf16>
    %30 = vector.shape_cast %29 : vector<2x8x8x32xbf16> to vector<128x32xbf16>
    %c0_31 = arith.constant 0 : index
    %c0_32 = arith.constant 0 : index
    %c1_33 = arith.constant 1 : index
    %c0_34 = arith.constant 0 : index
    %31 = vector.load %arg13[%c0_31, %c0_32, %c1_33, %c0_34] : memref<2x10x16x32xbf16, #tpu.memory_space<vmem>>, vector<2x8x8x32xbf16>
    %32 = vector.shape_cast %31 : vector<2x8x8x32xbf16> to vector<128x32xbf16>
    %c0_35 = arith.constant 0 : index
    %c0_36 = arith.constant 0 : index
    %c2 = arith.constant 2 : index
    %c0_37 = arith.constant 0 : index
    %33 = vector.load %arg13[%c0_35, %c0_36, %c2, %c0_37] : memref<2x10x16x32xbf16, #tpu.memory_space<vmem>>, vector<2x8x8x32xbf16>
    %34 = vector.shape_cast %33 : vector<2x8x8x32xbf16> to vector<128x32xbf16>
    %c0_38 = arith.constant 0 : index
    %c1_39 = arith.constant 1 : index
    %c0_40 = arith.constant 0 : index
    %c0_41 = arith.constant 0 : index
    %35 = vector.load %arg13[%c0_38, %c1_39, %c0_40, %c0_41] : memref<2x10x16x32xbf16, #tpu.memory_space<vmem>>, vector<2x8x8x32xbf16>
    %36 = vector.shape_cast %35 : vector<2x8x8x32xbf16> to vector<128x32xbf16>
    %c0_42 = arith.constant 0 : index
    %c1_43 = arith.constant 1 : index
    %c1_44 = arith.constant 1 : index
    %c0_45 = arith.constant 0 : index
    %37 = vector.load %arg13[%c0_42, %c1_43, %c1_44, %c0_45] : memref<2x10x16x32xbf16, #tpu.memory_space<vmem>>, vector<2x8x8x32xbf16>
    %38 = vector.shape_cast %37 : vector<2x8x8x32xbf16> to vector<128x32xbf16>
    %c0_46 = arith.constant 0 : index
    %c1_47 = arith.constant 1 : index
    %c2_48 = arith.constant 2 : index
    %c0_49 = arith.constant 0 : index
    %39 = vector.load %arg13[%c0_46, %c1_47, %c2_48, %c0_49] : memref<2x10x16x32xbf16, #tpu.memory_space<vmem>>, vector<2x8x8x32xbf16>
    %40 = vector.shape_cast %39 : vector<2x8x8x32xbf16> to vector<128x32xbf16>
    %c0_50 = arith.constant 0 : index
    %c2_51 = arith.constant 2 : index
    %c0_52 = arith.constant 0 : index
    %c0_53 = arith.constant 0 : index
    %41 = vector.load %arg13[%c0_50, %c2_51, %c0_52, %c0_53] : memref<2x10x16x32xbf16, #tpu.memory_space<vmem>>, vector<2x8x8x32xbf16>
    %42 = vector.shape_cast %41 : vector<2x8x8x32xbf16> to vector<128x32xbf16>
    %c0_54 = arith.constant 0 : index
    %c2_55 = arith.constant 2 : index
    %c1_56 = arith.constant 1 : index
    %c0_57 = arith.constant 0 : index
    %43 = vector.load %arg13[%c0_54, %c2_55, %c1_56, %c0_57] : memref<2x10x16x32xbf16, #tpu.memory_space<vmem>>, vector<2x8x8x32xbf16>
    %44 = vector.shape_cast %43 : vector<2x8x8x32xbf16> to vector<128x32xbf16>
    %c0_58 = arith.constant 0 : index
    %c2_59 = arith.constant 2 : index
    %c2_60 = arith.constant 2 : index
    %c0_61 = arith.constant 0 : index
    %45 = vector.load %arg13[%c0_58, %c2_59, %c2_60, %c0_61] : memref<2x10x16x32xbf16, #tpu.memory_space<vmem>>, vector<2x8x8x32xbf16>
    %46 = vector.shape_cast %45 : vector<2x8x8x32xbf16> to vector<128x32xbf16>
    %47 = tpu.concatenate %30, %32, %34, %36, %38, %40, %42, %44, %46 in 1 : vector<128x32xbf16>, vector<128x32xbf16>, vector<128x32xbf16>, vector<128x32xbf16>, vector<128x32xbf16>, vector<128x32xbf16>, vector<128x32xbf16>, vector<128x32xbf16>, vector<128x32xbf16> -> vector<128x288xbf16>
    %c0_62 = arith.constant 0 : index
    %c0_63 = arith.constant 0 : index
    %48 = vector.load %arg4[%c0_62, %c0_63] : memref<288x256xbf16, #tpu.memory_space<vmem>>, vector<288x256xbf16>
    %cst_64 = arith.constant dense<0.000000e+00> : vector<128x256xf32>
    %49 = tpu.matmul %47, %48, %cst_64 {dimension_numbers = #tpu.dot_dimension_numbers<[1], [0], [0], [1], [0, 0, 1, 1], [], []>} : vector<128x288xbf16>, vector<288x256xbf16>, vector<128x256xf32> -> vector<128x256xf32>
    %c0_65 = arith.constant 0 : index
    %c0_66 = arith.constant 0 : index
    %50 = vector.load %arg5[%c0_65, %c0_66] : memref<1x256xf32, #tpu.memory_space<vmem>>, vector<1x256xf32>
    %51 = vector.broadcast %50 : vector<1x256xf32> to vector<128x256xf32>
    %52 = arith.addf %49, %51 : vector<128x256xf32>
    %cst_67 = arith.constant 0.000000e+00 : f32
    %53 = vector.broadcast %cst_67 : f32 to vector<128x256xf32>
    %54 = arith.maximumf %52, %53 : vector<128x256xf32>
    %55 = vector.shape_cast %54 : vector<128x256xf32> to vector<2x4x2x8x256xf32>
    %56 = vector.extract_strided_slice %55 {offsets = [0, 0, 0, 0, 0], sizes = [2, 4, 1, 8, 256], strides = [1, 1, 1, 1, 1]} : vector<2x4x2x8x256xf32> to vector<2x4x1x8x256xf32>
    %57 = vector.shape_cast %56 : vector<2x4x1x8x256xf32> to vector<2x4x8x256xf32>
    %58 = vector.extract_strided_slice %55 {offsets = [0, 0, 1, 0, 0], sizes = [2, 4, 1, 8, 256], strides = [1, 1, 1, 1, 1]} : vector<2x4x2x8x256xf32> to vector<2x4x1x8x256xf32>
    %59 = vector.shape_cast %58 : vector<2x4x1x8x256xf32> to vector<2x4x8x256xf32>
    %60 = arith.maximumf %57, %59 : vector<2x4x8x256xf32>
    %61 = vector.shape_cast %60 : vector<2x4x8x256xf32> to vector<2x4x4x2x256xf32>
    %62 = vector.extract_strided_slice %61 {offsets = [0, 0, 0, 0, 0], sizes = [2, 4, 4, 1, 256], strides = [1, 1, 1, 1, 1]} : vector<2x4x4x2x256xf32> to vector<2x4x4x1x256xf32>
    %63 = vector.shape_cast %62 : vector<2x4x4x1x256xf32> to vector<2x4x4x256xf32>
    %64 = vector.extract_strided_slice %61 {offsets = [0, 0, 0, 1, 0], sizes = [2, 4, 4, 1, 256], strides = [1, 1, 1, 1, 1]} : vector<2x4x4x2x256xf32> to vector<2x4x4x1x256xf32>
    %65 = vector.shape_cast %64 : vector<2x4x4x1x256xf32> to vector<2x4x4x256xf32>
    %66 = arith.maximumf %63, %65 : vector<2x4x4x256xf32>
    %cst_68 = arith.constant dense<0xFF800000> : vector<2x4x256xf32>
    %67 = vector.multi_reduction <maximumf>, %66, %cst_68 [2] : vector<2x4x4x256xf32> to vector<2x4x256xf32>
    %cst_69 = arith.constant dense<0xFF800000> : vector<2x256xf32>
    %68 = vector.multi_reduction <maximumf>, %67, %cst_69 [1] : vector<2x4x256xf32> to vector<2x256xf32>
    %cst_70 = arith.constant dense<0.000000e+00> : vector<2x4x256xf32>
    %69 = vector.multi_reduction <add>, %66, %cst_70 [2] : vector<2x4x4x256xf32> to vector<2x4x256xf32>
    %cst_71 = arith.constant 4.000000e+00 : f32
    %70 = vector.broadcast %cst_71 : f32 to vector<2x4x256xf32>
    %71 = arith.divf %69, %70 : vector<2x4x256xf32>
    %cst_72 = arith.constant dense<0.000000e+00> : vector<2x256xf32>
    %72 = vector.multi_reduction <add>, %71, %cst_72 [1] : vector<2x4x256xf32> to vector<2x256xf32>
    %cst_73 = arith.constant 4.000000e+00 : f32
    %73 = vector.broadcast %cst_73 : f32 to vector<2x256xf32>
    %74 = arith.divf %72, %73 : vector<2x256xf32>
    %75 = tpu.concatenate %68, %74 in 1 : vector<2x256xf32>, vector<2x256xf32> -> vector<2x512xf32>
    %76 = arith.truncf %75 : vector<2x512xf32> to vector<2x512xbf16>
    %c0_74 = arith.constant 0 : index
    %c0_75 = arith.constant 0 : index
    %77 = vector.load %arg6[%c0_74, %c0_75] : memref<512x1024xbf16, #tpu.memory_space<vmem>>, vector<512x1024xbf16>
    %cst_76 = arith.constant dense<0.000000e+00> : vector<2x1024xf32>
    %78 = tpu.matmul %76, %77, %cst_76 {dimension_numbers = #tpu.dot_dimension_numbers<[1], [0], [0], [1], [0, 0, 1, 1], [], []>} : vector<2x512xbf16>, vector<512x1024xbf16>, vector<2x1024xf32> -> vector<2x1024xf32>
    %c0_77 = arith.constant 0 : index
    %c0_78 = arith.constant 0 : index
    %79 = vector.load %arg7[%c0_77, %c0_78] : memref<1x1024xf32, #tpu.memory_space<vmem>>, vector<1x1024xf32>
    %80 = vector.broadcast %79 : vector<1x1024xf32> to vector<2x1024xf32>
    %81 = arith.addf %78, %80 : vector<2x1024xf32>
    %cst_79 = arith.constant 0.000000e+00 : f32
    %82 = vector.broadcast %cst_79 : f32 to vector<2x1024xf32>
    %83 = arith.maximumf %81, %82 : vector<2x1024xf32>
    %84 = arith.truncf %83 : vector<2x1024xf32> to vector<2x1024xbf16>
    %c0_80 = arith.constant 0 : index
    %c0_81 = arith.constant 0 : index
    %85 = vector.load %arg8[%c0_80, %c0_81] : memref<1024x256xbf16, #tpu.memory_space<vmem>>, vector<1024x256xbf16>
    %cst_82 = arith.constant dense<0.000000e+00> : vector<2x256xf32>
    %86 = tpu.matmul %84, %85, %cst_82 {dimension_numbers = #tpu.dot_dimension_numbers<[1], [0], [0], [1], [0, 0, 1, 1], [], []>} : vector<2x1024xbf16>, vector<1024x256xbf16>, vector<2x256xf32> -> vector<2x256xf32>
    %c0_83 = arith.constant 0 : index
    %c0_84 = arith.constant 0 : index
    %87 = vector.load %arg9[%c0_83, %c0_84] : memref<1x256xf32, #tpu.memory_space<vmem>>, vector<1x256xf32>
    %88 = vector.broadcast %87 : vector<1x256xf32> to vector<2x256xf32>
    %89 = arith.addf %86, %88 : vector<2x256xf32>
    %cst_85 = arith.constant 0.000000e+00 : f32
    %90 = vector.broadcast %cst_85 : f32 to vector<2x256xf32>
    %91 = arith.maximumf %89, %90 : vector<2x256xf32>
    %92 = arith.truncf %91 : vector<2x256xf32> to vector<2x256xbf16>
    %c0_86 = arith.constant 0 : index
    %c0_87 = arith.constant 0 : index
    %93 = vector.load %arg10[%c0_86, %c0_87] : memref<256x128xbf16, #tpu.memory_space<vmem>>, vector<256x128xbf16>
    %cst_88 = arith.constant dense<0.000000e+00> : vector<2x128xf32>
    %94 = tpu.matmul %92, %93, %cst_88 {dimension_numbers = #tpu.dot_dimension_numbers<[1], [0], [0], [1], [0, 0, 1, 1], [], []>} : vector<2x256xbf16>, vector<256x128xbf16>, vector<2x128xf32> -> vector<2x128xf32>
    %c0_89 = arith.constant 0 : index
    %c0_90 = arith.constant 0 : index
    %95 = vector.load %arg11[%c0_89, %c0_90] : memref<1x128xf32, #tpu.memory_space<vmem>>, vector<1x128xf32>
    %96 = vector.broadcast %95 : vector<1x128xf32> to vector<2x128xf32>
    %97 = arith.addf %94, %96 : vector<2x128xf32>
    %c0_91 = arith.constant 0 : index
    %c0_92 = arith.constant 0 : index
    %98 = vector.load %arg12[%c0_91, %c0_92] : memref<2x128xf32, #tpu.memory_space<vmem>>, vector<2x128xf32>
    tpu.vector_store %arg12[%c0_91, %c0_92], %97 {strides = array<i32>} : memref<2x128xf32, #tpu.memory_space<vmem>>, vector<2x128xf32>,
    return
  }
  func.func @transform_0(%arg0: i32) -> (i32, i32, i32) {
    %c0_i32 = arith.constant 0 : i32
    %c0_i32_0 = arith.constant 0 : i32
    %c0_i32_1 = arith.constant 0 : i32
    return %arg0, %c0_i32, %c0_i32_0 : i32, i32, i32
  }
  func.func @transform_1(%arg0: i32) -> (i32, i32) {
    %c0_i32 = arith.constant 0 : i32
    %c0_i32_0 = arith.constant 0 : i32
    %c0_i32_1 = arith.constant 0 : i32
    return %c0_i32, %c0_i32_0 : i32, i32
  }
  func.func @transform_2(%arg0: i32) -> (i32, i32) {
    %c0_i32 = arith.constant 0 : i32
    %c0_i32_0 = arith.constant 0 : i32
    %c0_i32_1 = arith.constant 0 : i32
    return %c0_i32, %c0_i32_0 : i32, i32
  }
  func.func @transform_3(%arg0: i32) -> (i32, i32) {
    %c0_i32 = arith.constant 0 : i32
    %c0_i32_0 = arith.constant 0 : i32
    %c0_i32_1 = arith.constant 0 : i32
    return %c0_i32, %c0_i32_0 : i32, i32
  }
  func.func @transform_4(%arg0: i32) -> (i32, i32) {
    %c0_i32 = arith.constant 0 : i32
    %c0_i32_0 = arith.constant 0 : i32
    %c0_i32_1 = arith.constant 0 : i32
    return %c0_i32, %c0_i32_0 : i32, i32
  }
  func.func @transform_5(%arg0: i32) -> (i32, i32) {
    %c0_i32 = arith.constant 0 : i32
    %c0_i32_0 = arith.constant 0 : i32
    %c0_i32_1 = arith.constant 0 : i32
    return %c0_i32, %c0_i32_0 : i32, i32
  }
  func.func @transform_6(%arg0: i32) -> (i32, i32) {
    %c0_i32 = arith.constant 0 : i32
    %c0_i32_0 = arith.constant 0 : i32
    %c0_i32_1 = arith.constant 0 : i32
    return %c0_i32, %c0_i32_0 : i32, i32
  }
  func.func @transform_7(%arg0: i32) -> (i32, i32) {
    %c0_i32 = arith.constant 0 : i32
    %c0_i32_0 = arith.constant 0 : i32
    %c0_i32_1 = arith.constant 0 : i32
    return %c0_i32, %c0_i32_0 : i32, i32
  }
  func.func @transform_8(%arg0: i32) -> (i32, i32) {
    %c0_i32 = arith.constant 0 : i32
    %c0_i32_0 = arith.constant 0 : i32
    %c0_i32_1 = arith.constant 0 : i32
    return %c0_i32, %c0_i32_0 : i32, i32
  }
  func.func @transform_9(%arg0: i32) -> (i32, i32) {
    %c0_i32 = arith.constant 0 : i32
    %c0_i32_0 = arith.constant 0 : i32
    %c0_i32_1 = arith.constant 0 : i32
    return %c0_i32, %c0_i32_0 : i32, i32
  }
  func.func @transform_10(%arg0: i32) -> (i32, i32) {
    %c0_i32 = arith.constant 0 : i32
    %c0_i32_0 = arith.constant 0 : i32
    %c0_i32_1 = arith.constant 0 : i32
    return %c0_i32, %c0_i32_0 : i32, i32
  }
  func.func @transform_11(%arg0: i32) -> (i32, i32) {
    %c0_i32 = arith.constant 0 : i32
    %c0_i32_0 = arith.constant 0 : i32
    return %arg0, %c0_i32 : i32, i32
  }
}

</mosaic_0001>

<llo_original>
// kernel: vgg_forward.1
$region0: #{vgg_forward.1}
  #allocation0 [shape = 'u32[]', space=smem, size = 0x4, offset = 0x4, fixed_abs, tag = 'smem constant byte address 0x4 - core index']
  #allocation1 [shape = 'u32[144,128]{1,0:T(1,128)}', space=vmem, size = 0x12000, scoped, tag = 'internal scratch']
  #allocation2 [shape = 'bf16[2,10,16,32]{3,2,1,0:T(16,128)(2,1)}', space=vmem, size = 0x14000, scoped, tag = 'scratch operand']
  %s0 = inlined_call_operand.vmem [shape: bf16[2,256,36], index: 0, kind: input, shape index: {}]
  %s1 = inlined_call_operand.vmem [shape: bf16[36,32], index: 1, kind: input, shape index: {}]
  %s2 = inlined_call_operand.vmem [shape: f32[1,32], index: 2, kind: input, shape index: {}]
  %s3 = inlined_call_operand.vmem [shape: bf16[288,256], index: 3, kind: input, shape index: {}]
  %s4 = inlined_call_operand.vmem [shape: f32[1,256], index: 4, kind: input, shape index: {}]
  %s5 = inlined_call_operand.vmem [shape: bf16[512,1024], index: 5, kind: input, shape index: {}]
  %s6 = inlined_call_operand.vmem [shape: f32[1,1024], index: 6, kind: input, shape index: {}]
  %s7 = inlined_call_operand.vmem [shape: bf16[1024,256], index: 7, kind: input, shape index: {}]
  %s8 = inlined_call_operand.vmem [shape: f32[1,256], index: 8, kind: input, shape index: {}]
  %s9 = inlined_call_operand.vmem [shape: bf16[256,128], index: 9, kind: input, shape index: {}]
  %s10 = inlined_call_operand.vmem [shape: f32[1,128], index: 10, kind: input, shape index: {}]
  %s11 = inlined_call_operand.hbm [shape: f32[2,128], index: 11, kind: output, shape index: {}]
  %s12 = sld [smem:[#allocation0]]
  $region54: #{vgg_forward.1} parent=0
    _
  %s14 = ssub.s32 1, %s12
  %s15 = scalar_select 0, %s14, %s12
  $region1: #{vgg_forward.1} parent=0
    #allocation3 [shape = 'u8[1024]{0}', space=vmem, size = 0x400, scoped, tag = 'output window, operand 0, single buffered']
    #allocation4 [shape = 's32[1]{0}', space=sflag, size = 0x4, scoped, tag = 'scoped memory for vgg_forward.1']
    %16 = vsyncpa [#allocation4], 0
    // Predicated region
    $region2: #{vgg_forward.1} parent=1 // pred_check
      _
    $region3: #{vgg_forward.1} parent=1 // pred_check_branch
      %18 = sbr.rel (0) target = $region5
    $region4: #{vgg_forward.1} parent=1 // pred_region
      _
    $region5: #{vgg_forward.1} parent=1 // pred_fallthru
      _
    // Predicated region
    $region6: #{vgg_forward.1} parent=1 // pred_check
      _
    $region7: #{vgg_forward.1} parent=1 // pred_check_branch
      %20 = sbr.rel (0) target = $region9
    $region8: #{vgg_forward.1} parent=1 // pred_region
      _
    $region9: #{vgg_forward.1} parent=1 // pred_fallthru
      _
    // Predicated region
    $region10: #{vgg_forward.1} parent=1 // pred_check
      _
    $region11: #{vgg_forward.1} parent=1 // pred_check_branch
      %22 = sbr.rel (0) target = $region13
    $region12: #{vgg_forward.1} parent=1 // pred_region
      _
    $region13: #{vgg_forward.1} parent=1 // pred_fallthru
      _
    // Predicated region
    $region14: #{vgg_forward.1} parent=1 // pred_check
      _
    $region15: #{vgg_forward.1} parent=1 // pred_check_branch
      %24 = sbr.rel (0) target = $region17
    $region16: #{vgg_forward.1} parent=1 // pred_region
      _
    $region17: #{vgg_forward.1} parent=1 // pred_fallthru
      _
    // Predicated region
    $region18: #{vgg_forward.1} parent=1 // pred_check
      _
    $region19: #{vgg_forward.1} parent=1 // pred_check_branch
      %26 = sbr.rel (0) target = $region21
    $region20: #{vgg_forward.1} parent=1 // pred_region
      _
    $region21: #{vgg_forward.1} parent=1 // pred_fallthru
      _
    // Predicated region
    $region22: #{vgg_forward.1} parent=1 // pred_check
      _
    $region23: #{vgg_forward.1} parent=1 // pred_check_branch
      %28 = sbr.rel (0) target = $region25
    $region24: #{vgg_forward.1} parent=1 // pred_region
      _
    $region25: #{vgg_forward.1} parent=1 // pred_fallthru
      _
    // Predicated region
    $region26: #{vgg_forward.1} parent=1 // pred_check
      _
    $region27: #{vgg_forward.1} parent=1 // pred_check_branch
      %30 = sbr.rel (0) target = $region29
    $region28: #{vgg_forward.1} parent=1 // pred_region
      _
    $region29: #{vgg_forward.1} parent=1 // pred_fallthru
      _
    // Predicated region
    $region30: #{vgg_forward.1} parent=1 // pred_check
      _
    $region31: #{vgg_forward.1} parent=1 // pred_check_branch
      %32 = sbr.rel (0) target = $region33
    $region32: #{vgg_forward.1} parent=1 // pred_region
      _
    $region33: #{vgg_forward.1} parent=1 // pred_fallthru
      _
    // Predicated region
    $region34: #{vgg_forward.1} parent=1 // pred_check
      _
    $region35: #{vgg_forward.1} parent=1 // pred_check_branch
      %34 = sbr.rel (0) target = $region37
    $region36: #{vgg_forward.1} parent=1 // pred_region
      _
    $region37: #{vgg_forward.1} parent=1 // pred_fallthru
      _
    // Predicated region
    $region38: #{vgg_forward.1} parent=1 // pred_check
      _
    $region39: #{vgg_forward.1} parent=1 // pred_check_branch
      %36 = sbr.rel (0) target = $region41
    $region40: #{vgg_forward.1} parent=1 // pred_region
      _
    $region41: #{vgg_forward.1} parent=1 // pred_fallthru
      _
    // Predicated region
    $region42: #{vgg_forward.1} parent=1 // pred_check
      _
    $region43: #{vgg_forward.1} parent=1 // pred_check_branch
      %38 = sbr.rel (0) target = $region45
    $region44: #{vgg_forward.1} parent=1 // pred_region
      _
    $region45: #{vgg_forward.1} parent=1 // pred_fallthru
      _
    %v40 = vld [vmem:[%s0] sm:$0xf]
    %v41 = vld [vmem:[%s0 + $0x4] sm:$0xf]
    %v42 = vld [vmem:[%s0 + $0x8] sm:$0xf]
    %v43 = vld [vmem:[%s0 + $0xc] sm:$0xf]
    %v44 = vld [vmem:[%s0 + $0x10] sm:$0xf]
    %v45 = vld [vmem:[%s0 + $0x14] sm:$0xf]
    %v46 = vld [vmem:[%s0 + $0x18] sm:$0xf]
    %v47 = vld [vmem:[%s0 + $0x1c] sm:$0xf]
    %v48 = vld [vmem:[%s0 + $0x20] sm:$0xf]
    %v49 = vld [vmem:[%s0 + $0x24] sm:$0xf]
    %v50 = vld [vmem:[%s0 + $0x28] sm:$0xf]
    %v51 = vld [vmem:[%s0 + $0x2c] sm:$0xf]
    %v52 = vld [vmem:[%s0 + $0x30] sm:$0xf]
    %v53 = vld [vmem:[%s0 + $0x34] sm:$0xf]
    %v54 = vld [vmem:[%s0 + $0x38] sm:$0xf]
    %v55 = vld [vmem:[%s0 + $0x3c] sm:$0xf]
    %v56 = vld [vmem:[%s0 + $0x40] sm:$0xf]
    %v57 = vld [vmem:[%s0 + $0x44] sm:$0xf]
    %v58 = vld [vmem:[%s0 + $0x48] sm:$0xf]
    %v59 = vld [vmem:[%s0 + $0x4c] sm:$0xf]
    %v60 = vld [vmem:[%s0 + $0x50] sm:$0xf]
    %v61 = vld [vmem:[%s0 + $0x54] sm:$0xf]
    %v62 = vld [vmem:[%s0 + $0x58] sm:$0xf]
    %v63 = vld [vmem:[%s0 + $0x5c] sm:$0xf]
    %v64 = vld [vmem:[%s0 + $0x60] sm:$0xf]
    %v65 = vld [vmem:[%s0 + $0x64] sm:$0xf]
    %v66 = vld [vmem:[%s0 + $0x68] sm:$0xf]
    %v67 = vld [vmem:[%s0 + $0x6c] sm:$0xf]
    %v68 = vld [vmem:[%s0 + $0x70] sm:$0xf]
    %v69 = vld [vmem:[%s0 + $0x74] sm:$0xf]
    %v70 = vld [vmem:[%s0 + $0x78] sm:$0xf]
    %v71 = vld [vmem:[%s0 + $0x7c] sm:$0xf]
    %v72 = vld [vmem:[%s0 + $0x80] sm:$0xf]
    %v73 = vld [vmem:[%s0 + $0x84] sm:$0xf]
    %v74 = vld [vmem:[%s0 + $0x88] sm:$0xf]
    %v75 = vld [vmem:[%s0 + $0x8c] sm:$0xf]
    %v76 = vld [vmem:[%s0 + $0x90] sm:$0xf]
    %v77 = vld [vmem:[%s0 + $0x94] sm:$0xf]
    %v78 = vld [vmem:[%s0 + $0x98] sm:$0xf]
    %v79 = vld [vmem:[%s0 + $0x9c] sm:$0xf]
    %v80 = vld [vmem:[%s0 + $0xa0] sm:$0xf]
    %v81 = vld [vmem:[%s0 + $0xa4] sm:$0xf]
    %v82 = vld [vmem:[%s0 + $0xa8] sm:$0xf]
    %v83 = vld [vmem:[%s0 + $0xac] sm:$0xf]
    %v84 = vld [vmem:[%s0 + $0xb0] sm:$0xf]
    %v85 = vld [vmem:[%s0 + $0xb4] sm:$0xf]
    %v86 = vld [vmem:[%s0 + $0xb8] sm:$0xf]
    %v87 = vld [vmem:[%s0 + $0xbc] sm:$0xf]
    %v88 = vld [vmem:[%s0 + $0xc0] sm:$0xf]
    %v89 = vld [vmem:[%s0 + $0xc4] sm:$0xf]
    %v90 = vld [vmem:[%s0 + $0xc8] sm:$0xf]
    %v91 = vld [vmem:[%s0 + $0xcc] sm:$0xf]
    %v92 = vld [vmem:[%s0 + $0xd0] sm:$0xf]
    %v93 = vld [vmem:[%s0 + $0xd4] sm:$0xf]
    %v94 = vld [vmem:[%s0 + $0xd8] sm:$0xf]
    %v95 = vld [vmem:[%s0 + $0xdc] sm:$0xf]
    %v96 = vld [vmem:[%s0 + $0xe0] sm:$0xf]
    %v97 = vld [vmem:[%s0 + $0xe4] sm:$0xf]
    %v98 = vld [vmem:[%s0 + $0xe8] sm:$0xf]
    %v99 = vld [vmem:[%s0 + $0xec] sm:$0xf]
    %v100 = vld [vmem:[%s0 + $0xf0] sm:$0xf]
    %v101 = vld [vmem:[%s0 + $0xf4] sm:$0xf]
    %v102 = vld [vmem:[%s0 + $0xf8] sm:$0xf]
    %v103 = vld [vmem:[%s0 + $0xfc] sm:$0xf]
    %v104 = vld [vmem:[%s1] sm:$0xf]
    %v105 = vld [vmem:[%s1 + $0x4] sm:$0xf]
    %v106 = vld [vmem:[%s1 + $0x8] sm:$0xf]
    %v107 = vld [vmem:[%s1 + $0xc] sm:$0xf]
    %v108 = vld [vmem:[%s1 + $0x10] sm:$0x3]
    %v109 = vld [vmem:[%s2] sm:$0x1]
    %v111 = vlaneseq
    %v112 = vshrl.u32 %v111, 7
    %v113 = vsub.s32 0, %v112
    %v114 = vrot.slane %v109, %v113
    %v180 = vunpack.c.l.b16 %v40
    %v181 = vunpack.c.l.b16 %v41
    %v182 = vunpack.c.l.b16 %v42
    %v183 = vunpack.c.l.b16 %v43
    %v184 = vunpack.c.l.b16 %v44
    %v185 = vunpack.c.l.b16 %v45
    %v186 = vunpack.c.l.b16 %v46
    %v187 = vunpack.c.l.b16 %v47
    %v188 = vunpack.c.l.b16 %v48
    %v189 = vunpack.c.l.b16 %v49
    %v190 = vunpack.c.l.b16 %v50
    %v191 = vunpack.c.l.b16 %v51
    %v192 = vunpack.c.l.b16 %v52
    %v193 = vunpack.c.l.b16 %v53
    %v194 = vunpack.c.l.b16 %v54
    %v195 = vunpack.c.l.b16 %v55
    %v196 = vunpack.c.l.b16 %v56
    %v197 = vunpack.c.l.b16 %v57
    %v198 = vunpack.c.l.b16 %v58
    %v199 = vunpack.c.l.b16 %v59
    %v200 = vunpack.c.l.b16 %v60
    %v201 = vunpack.c.l.b16 %v61
    %v202 = vunpack.c.l.b16 %v62
    %v203 = vunpack.c.l.b16 %v63
    %v204 = vunpack.c.l.b16 %v64
    %v205 = vunpack.c.l.b16 %v65
    %v206 = vunpack.c.l.b16 %v66
    %v207 = vunpack.c.l.b16 %v67
    %v208 = vunpack.c.l.b16 %v68
    %v209 = vunpack.c.l.b16 %v69
    %v210 = vunpack.c.l.b16 %v70
    %v211 = vunpack.c.l.b16 %v71
    %v212 = vunpack.c.l.b16 %v72
    %v213 = vunpack.c.l.b16 %v73
    %v214 = vunpack.c.l.b16 %v74
    %v215 = vunpack.c.l.b16 %v75
    %v216 = vunpack.c.l.b16 %v76
    %v217 = vunpack.c.l.b16 %v77
    %v218 = vunpack.c.l.b16 %v78
    %v219 = vunpack.c.l.b16 %v79
    %v220 = vunpack.c.l.b16 %v80
    %v221 = vunpack.c.l.b16 %v81
    %v222 = vunpack.c.l.b16 %v82
    %v223 = vunpack.c.l.b16 %v83
    %v224 = vunpack.c.l.b16 %v84
    %v225 = vunpack.c.l.b16 %v85
    %v226 = vunpack.c.l.b16 %v86
    %v227 = vunpack.c.l.b16 %v87
    %v228 = vunpack.c.l.b16 %v88
    %v229 = vunpack.c.l.b16 %v89
    %v230 = vunpack.c.l.b16 %v90
    %v231 = vunpack.c.l.b16 %v91
    %v232 = vunpack.c.l.b16 %v92
    %v233 = vunpack.c.l.b16 %v93
    %v234 = vunpack.c.l.b16 %v94
    %v235 = vunpack.c.l.b16 %v95
    %v236 = vunpack.c.l.b16 %v96
    %v237 = vunpack.c.l.b16 %v97
    %v238 = vunpack.c.l.b16 %v98
    %v239 = vunpack.c.l.b16 %v99
    %v240 = vunpack.c.l.b16 %v100
    %v241 = vunpack.c.l.b16 %v101
    %v242 = vunpack.c.l.b16 %v102
    %v243 = vunpack.c.l.b16 %v103
    %v244 = vpack.c.b16 %v181, %v180
    %v245 = vpack.c.b16 %v183, %v182
    %v246 = vpack.c.b16 %v185, %v184
    %v247 = vpack.c.b16 %v187, %v186
    %v248 = vpack.c.b16 %v189, %v188
    %v249 = vpack.c.b16 %v191, %v190
    %v250 = vpack.c.b16 %v193, %v192
    %v251 = vpack.c.b16 %v195, %v194
    %v252 = vpack.c.b16 %v197, %v196
    %v253 = vpack.c.b16 %v199, %v198
    %v254 = vpack.c.b16 %v201, %v200
    %v255 = vpack.c.b16 %v203, %v202
    %v256 = vpack.c.b16 %v205, %v204
    %v257 = vpack.c.b16 %v207, %v206
    %v258 = vpack.c.b16 %v209, %v208
    %v259 = vpack.c.b16 %v211, %v210
    %v260 = vpack.c.b16 %v213, %v212
    %v261 = vpack.c.b16 %v215, %v214
    %v262 = vpack.c.b16 %v217, %v216
    %v263 = vpack.c.b16 %v219, %v218
    %v264 = vpack.c.b16 %v221, %v220
    %v265 = vpack.c.b16 %v223, %v222
    %v266 = vpack.c.b16 %v225, %v224
    %v267 = vpack.c.b16 %v227, %v226
    %v268 = vpack.c.b16 %v229, %v228
    %v269 = vpack.c.b16 %v231, %v230
    %v270 = vpack.c.b16 %v233, %v232
    %v271 = vpack.c.b16 %v235, %v234
    %v272 = vpack.c.b16 %v237, %v236
    %v273 = vpack.c.b16 %v239, %v238
    %v274 = vpack.c.b16 %v241, %v240
    %v275 = vpack.c.b16 %v243, %v242
    %v281 = vunpack.c.l.b16 %v104
    %v282 = vunpack.c.l.b16 %v105
    %v283 = vunpack.c.l.b16 %v106
    %v284 = vunpack.c.l.b16 %v107
    %v285 = vunpack.c.l.b16 %v108
    %v286 = vpack.c.b16 %v282, %v281
    %v287 = vpack.c.b16 %v284, %v283
    %v288 = vpack.c.b16 %v285, %v285
    %vm291 = vcmask 293888
    %v293 = vsel %vm291, %v244, 0
    %v296 = vsel %vm291, %v245, 0
    %v299 = vsel %vm291, %v246, 0
    %v302 = vsel %vm291, %v247, 0
    %v305 = vsel %vm291, %v248, 0
    %v308 = vsel %vm291, %v249, 0
    %v311 = vsel %vm291, %v250, 0
    %v314 = vsel %vm291, %v251, 0
    %v317 = vsel %vm291, %v252, 0
    %v320 = vsel %vm291, %v253, 0
    %v323 = vsel %vm291, %v254, 0
    %v326 = vsel %vm291, %v255, 0
    %v329 = vsel %vm291, %v256, 0
    %v332 = vsel %vm291, %v257, 0
    %v335 = vsel %vm291, %v258, 0
    %v338 = vsel %vm291, %v259, 0
    %v341 = vsel %vm291, %v260, 0
    %v344 = vsel %vm291, %v261, 0
    %v347 = vsel %vm291, %v262, 0
    %v350 = vsel %vm291, %v263, 0
    %v353 = vsel %vm291, %v264, 0
    %v356 = vsel %vm291, %v265, 0
    %v359 = vsel %vm291, %v266, 0
    %v362 = vsel %vm291, %v267, 0
    %v365 = vsel %vm291, %v268, 0
    %v368 = vsel %vm291, %v269, 0
    %v371 = vsel %vm291, %v270, 0
    %v374 = vsel %vm291, %v271, 0
    %v377 = vsel %vm291, %v272, 0
    %v380 = vsel %vm291, %v273, 0
    %v383 = vsel %vm291, %v274, 0
    %v386 = vsel %vm291, %v275, 0
    %vm388 = vcmask 1041408
    %v390 = vsel %vm388, %v288, 0
    %392 = vmatprep.subr.bf16.mxu0 0
    %393 = vmatpush1.bf16.msra.mxu0 %v286
    %394 = vmatprep.subr.bf16.mxu0 0
    %395 = vmatpush1.bf16.msra.mxu0 %v287
    %396 = vmatprep.subr.bf16.mxu0 0
    %397 = vmatpush1.bf16.msra.mxu0 %v390
    %398 = vmatprep.subr.bf16.mxu0 0
    %399 = vmatpush1.bf16.msra.mxu0 0
    %400 = vmatprep.subr.bf16.mxu0 0
    %401 = vmatpush1.bf16.msra.mxu0 0
    %402 = vmatprep.subr.bf16.mxu0 0
    %403 = vmatpush1.bf16.msra.mxu0 0
    %404 = vmatprep.subr.bf16.mxu0 0
    %405 = vmatpush1.bf16.msra.mxu0 0
    %406 = vmatprep.subr.bf16.mxu0 0
    %407 = vmatpush1.bf16.msra.mxu0 0
    %408 = vmatprep.subr.bf16.mxu0 0
    %409 = vmatpush1.bf16.msra.mxu0 0
    %410 = vmatprep.subr.bf16.mxu0 0
    %411 = vmatpush1.bf16.msra.mxu0 0
    %412 = vmatprep.subr.bf16.mxu0 0
    %413 = vmatpush1.bf16.msra.mxu0 0
    %414 = vmatprep.subr.bf16.mxu0 0
    %415 = vmatpush1.bf16.msra.mxu0 0
    %416 = vmatprep.subr.bf16.mxu0 0
    %417 = vmatpush1.bf16.msra.mxu0 0
    %418 = vmatprep.subr.bf16.mxu0 0
    %419 = vmatpush1.bf16.msra.mxu0 0
    %420 = vmatprep.subr.bf16.mxu0 0
    %421 = vmatpush1.bf16.msra.mxu0 0
    %422 = vmatprep.subr.bf16.mxu0 0
    %423 = vmatpush1.bf16.msra.mxu0 0
    %424 = vmatprep.mubr.bf16.mxu0 0
    %425 = vmatmul.mubr.bf16.gmra.mrb[0].mxu0 %v293
    %v426 = vpop.f32.mrb[0].mxu0
    %v427 = vadd.f32 %v114, %v426
    %v428 = vpop.f32.mrb[0].mxu0
    %v429 = vpop.f32.mrb[0].mxu0
    %v430 = vadd.f32 %v114, %v429
    %v431 = vpop.f32.mrb[0].mxu0
    %432 = vmatprep.mubr.bf16.mxu0 0
    %433 = vmatmul.mubr.bf16.gmra.mrb[0].mxu0 %v296
    %v434 = vpop.f32.mrb[0].mxu0
    %v435 = vadd.f32 %v114, %v434
    %v436 = vpop.f32.mrb[0].mxu0
    %v437 = vpop.f32.mrb[0].mxu0
    %v438 = vadd.f32 %v114, %v437
    %v439 = vpop.f32.mrb[0].mxu0
    %440 = vmatprep.mubr.bf16.mxu0 0
    %441 = vmatmul.mubr.bf16.gmra.mrb[0].mxu0 %v299
    %v442 = vpop.f32.mrb[0].mxu0
    %v443 = vadd.f32 %v114, %v442
    %v444 = vpop.f32.mrb[0].mxu0
    %v445 = vpop.f32.mrb[0].mxu0
    %v446 = vadd.f32 %v114, %v445
    %v447 = vpop.f32.mrb[0].mxu0
    %448 = vmatprep.mubr.bf16.mxu0 0
    %449 = vmatmul.mubr.bf16.gmra.mrb[0].mxu0 %v302
    %v450 = vpop.f32.mrb[0].mxu0
    %v451 = vadd.f32 %v114, %v450
    %v452 = vpop.f32.mrb[0].mxu0
    %v453 = vpop.f32.mrb[0].mxu0
    %v454 = vadd.f32 %v114, %v453
    %v455 = vpop.f32.mrb[0].mxu0
    %456 = vmatprep.mubr.bf16.mxu0 0
    %457 = vmatmul.mubr.bf16.gmra.mrb[0].mxu0 %v305
    %v458 = vpop.f32.mrb[0].mxu0
    %v459 = vadd.f32 %v114, %v458
    %v460 = vpop.f32.mrb[0].mxu0
    %v461 = vpop.f32.mrb[0].mxu0
    %v462 = vadd.f32 %v114, %v461
    %v463 = vpop.f32.mrb[0].mxu0
    %464 = vmatprep.mubr.bf16.mxu0 0
    %465 = vmatmul.mubr.bf16.gmra.mrb[0].mxu0 %v308
    %v466 = vpop.f32.mrb[0].mxu0
    %v467 = vadd.f32 %v114, %v466
    %v468 = vpop.f32.mrb[0].mxu0
    %v469 = vpop.f32.mrb[0].mxu0
    %v470 = vadd.f32 %v114, %v469
    %v471 = vpop.f32.mrb[0].mxu0
    %472 = vmatprep.mubr.bf16.mxu0 0
    %473 = vmatmul.mubr.bf16.gmra.mrb[0].mxu0 %v311
    %v474 = vpop.f32.mrb[0].mxu0
    %v475 = vadd.f32 %v114, %v474
    %v476 = vpop.f32.mrb[0].mxu0
    %v477 = vpop.f32.mrb[0].mxu0
    %v478 = vadd.f32 %v114, %v477
    %v479 = vpop.f32.mrb[0].mxu0
    %480 = vmatprep.mubr.bf16.mxu0 0
    %481 = vmatmul.mubr.bf16.gmra.mrb[0].mxu0 %v314
    %v482 = vpop.f32.mrb[0].mxu0
    %v483 = vadd.f32 %v114, %v482
    %v484 = vpop.f32.mrb[0].mxu0
    %v485 = vpop.f32.mrb[0].mxu0
    %v486 = vadd.f32 %v114, %v485
    %v487 = vpop.f32.mrb[0].mxu0
    %488 = vmatprep.mubr.bf16.mxu0 0
    %489 = vmatmul.mubr.bf16.gmra.mrb[0].mxu0 %v317
    %v490 = vpop.f32.mrb[0].mxu0
    %v491 = vadd.f32 %v114, %v490
    %v492 = vpop.f32.mrb[0].mxu0
    %v493 = vpop.f32.mrb[0].mxu0
    %v494 = vadd.f32 %v114, %v493
    %v495 = vpop.f32.mrb[0].mxu0
    %496 = vmatprep.mubr.bf16.mxu0 0
    %497 = vmatmul.mubr.bf16.gmra.mrb[0].mxu0 %v320
    %v498 = vpop.f32.mrb[0].mxu0
    %v499 = vadd.f32 %v114, %v498
    %v500 = vpop.f32.mrb[0].mxu0
    %v501 = vpop.f32.mrb[0].mxu0
    %v502 = vadd.f32 %v114, %v501
    %v503 = vpop.f32.mrb[0].mxu0
    %504 = vmatprep.mubr.bf16.mxu0 0
    %505 = vmatmul.mubr.bf16.gmra.mrb[0].mxu0 %v323
    %v506 = vpop.f32.mrb[0].mxu0
    %v507 = vadd.f32 %v114, %v506
    %v508 = vpop.f32.mrb[0].mxu0
    %v509 = vpop.f32.mrb[0].mxu0
    %v510 = vadd.f32 %v114, %v509
    %v511 = vpop.f32.mrb[0].mxu0
    %512 = vmatprep.mubr.bf16.mxu0 0
    %513 = vmatmul.mubr.bf16.gmra.mrb[0].mxu0 %v326
    %v514 = vpop.f32.mrb[0].mxu0
    %v515 = vadd.f32 %v114, %v514
    %v516 = vpop.f32.mrb[0].mxu0
    %v517 = vpop.f32.mrb[0].mxu0
    %v518 = vadd.f32 %v114, %v517
    %v519 = vpop.f32.mrb[0].mxu0
    %520 = vmatprep.mubr.bf16.mxu0 0
    %521 = vmatmul.mubr.bf16.gmra.mrb[0].mxu0 %v329
    %v522 = vpop.f32.mrb[0].mxu0
    %v523 = vadd.f32 %v114, %v522
    %v524 = vpop.f32.mrb[0].mxu0
    %v525 = vpop.f32.mrb[0].mxu0
    %v526 = vadd.f32 %v114, %v525
    %v527 = vpop.f32.mrb[0].mxu0
    %528 = vmatprep.mubr.bf16.mxu0 0
    %529 = vmatmul.mubr.bf16.gmra.mrb[0].mxu0 %v332
    %v530 = vpop.f32.mrb[0].mxu0
    %v531 = vadd.f32 %v114, %v530
    %v532 = vpop.f32.mrb[0].mxu0
    %v533 = vpop.f32.mrb[0].mxu0
    %v534 = vadd.f32 %v114, %v533
    %v535 = vpop.f32.mrb[0].mxu0
    %536 = vmatprep.mubr.bf16.mxu0 0
    %537 = vmatmul.mubr.bf16.gmra.mrb[0].mxu0 %v335
    %v538 = vpop.f32.mrb[0].mxu0
    %v539 = vadd.f32 %v114, %v538
    %v540 = vpop.f32.mrb[0].mxu0
    %v541 = vpop.f32.mrb[0].mxu0
    %v542 = vadd.f32 %v114, %v541
    %v543 = vpop.f32.mrb[0].mxu0
    %544 = vmatprep.mubr.bf16.mxu0 0
    %545 = vmatmul.mubr.bf16.gmra.mrb[0].mxu0 %v338
    %v546 = vpop.f32.mrb[0].mxu0
    %v547 = vadd.f32 %v114, %v546
    %v548 = vpop.f32.mrb[0].mxu0
    %v549 = vpop.f32.mrb[0].mxu0
    %v550 = vadd.f32 %v114, %v549
    %v551 = vpop.f32.mrb[0].mxu0
    %552 = vmatprep.mubr.bf16.mxu0 0
    %553 = vmatmul.mubr.bf16.gmra.mrb[0].mxu0 %v341
    %v554 = vpop.f32.mrb[0].mxu0
    %v555 = vadd.f32 %v114, %v554
    %v556 = vpop.f32.mrb[0].mxu0
    %v557 = vpop.f32.mrb[0].mxu0
    %v558 = vadd.f32 %v114, %v557
    %v559 = vpop.f32.mrb[0].mxu0
    %560 = vmatprep.mubr.bf16.mxu0 0
    %561 = vmatmul.mubr.bf16.gmra.mrb[0].mxu0 %v344
    %v562 = vpop.f32.mrb[0].mxu0
    %v563 = vadd.f32 %v114, %v562
    %v564 = vpop.f32.mrb[0].mxu0
    %v565 = vpop.f32.mrb[0].mxu0
    %v566 = vadd.f32 %v114, %v565
    %v567 = vpop.f32.mrb[0].mxu0
    %568 = vmatprep.mubr.bf16.mxu0 0
    %569 = vmatmul.mubr.bf16.gmra.mrb[0].mxu0 %v347
    %v570 = vpop.f32.mrb[0].mxu0
    %v571 = vadd.f32 %v114, %v570
    %v572 = vpop.f32.mrb[0].mxu0
    %v573 = vpop.f32.mrb[0].mxu0
    %v574 = vadd.f32 %v114, %v573
    %v575 = vpop.f32.mrb[0].mxu0
    %576 = vmatprep.mubr.bf16.mxu0 0
    %577 = vmatmul.mubr.bf16.gmra.mrb[0].mxu0 %v350
    %v578 = vpop.f32.mrb[0].mxu0
    %v579 = vadd.f32 %v114, %v578
    %v580 = vpop.f32.mrb[0].mxu0
    %v581 = vpop.f32.mrb[0].mxu0
    %v582 = vadd.f32 %v114, %v581
    %v583 = vpop.f32.mrb[0].mxu0
    %584 = vmatprep.mubr.bf16.mxu0 0
    %585 = vmatmul.mubr.bf16.gmra.mrb[0].mxu0 %v353
    %v586 = vpop.f32.mrb[0].mxu0
    %v587 = vadd.f32 %v114, %v586
    %v588 = vpop.f32.mrb[0].mxu0
    %v589 = vpop.f32.mrb[0].mxu0
    %v590 = vadd.f32 %v114, %v589
    %v591 = vpop.f32.mrb[0].mxu0
    %592 = vmatprep.mubr.bf16.mxu0 0
    %593 = vmatmul.mubr.bf16.gmra.mrb[0].mxu0 %v356
    %v594 = vpop.f32.mrb[0].mxu0
    %v595 = vadd.f32 %v114, %v594
    %v596 = vpop.f32.mrb[0].mxu0
    %v597 = vpop.f32.mrb[0].mxu0
    %v598 = vadd.f32 %v114, %v597
    %v599 = vpop.f32.mrb[0].mxu0
    %600 = vmatprep.mubr.bf16.mxu0 0
    %601 = vmatmul.mubr.bf16.gmra.mrb[0].mxu0 %v359
    %v602 = vpop.f32.mrb[0].mxu0
    %v603 = vadd.f32 %v114, %v602
    %v604 = vpop.f32.mrb[0].mxu0
    %v605 = vpop.f32.mrb[0].mxu0
    %v606 = vadd.f32 %v114, %v605
    %v607 = vpop.f32.mrb[0].mxu0
    %608 = vmatprep.mubr.bf16.mxu0 0
    %609 = vmatmul.mubr.bf16.gmra.mrb[0].mxu0 %v362
    %v610 = vpop.f32.mrb[0].mxu0
    %v611 = vadd.f32 %v114, %v610
    %v612 = vpop.f32.mrb[0].mxu0
    %v613 = vpop.f32.mrb[0].mxu0
    %v614 = vadd.f32 %v114, %v613
    %v615 = vpop.f32.mrb[0].mxu0
    %616 = vmatprep.mubr.bf16.mxu0 0
    %617 = vmatmul.mubr.bf16.gmra.mrb[0].mxu0 %v365
    %v618 = vpop.f32.mrb[0].mxu0
    %v619 = vadd.f32 %v114, %v618
    %v620 = vpop.f32.mrb[0].mxu0
    %v621 = vpop.f32.mrb[0].mxu0
    %v622 = vadd.f32 %v114, %v621
    %v623 = vpop.f32.mrb[0].mxu0
    %624 = vmatprep.mubr.bf16.mxu0 0
    %625 = vmatmul.mubr.bf16.gmra.mrb[0].mxu0 %v368
    %v626 = vpop.f32.mrb[0].mxu0
    %v627 = vadd.f32 %v114, %v626
    %v628 = vpop.f32.mrb[0].mxu0
    %v629 = vpop.f32.mrb[0].mxu0
    %v630 = vadd.f32 %v114, %v629
    %v631 = vpop.f32.mrb[0].mxu0
    %632 = vmatprep.mubr.bf16.mxu0 0
    %633 = vmatmul.mubr.bf16.gmra.mrb[0].mxu0 %v371
    %v634 = vpop.f32.mrb[0].mxu0
    %v635 = vadd.f32 %v114, %v634
    %v636 = vpop.f32.mrb[0].mxu0
    %v637 = vpop.f32.mrb[0].mxu0
    %v638 = vadd.f32 %v114, %v637
    %v639 = vpop.f32.mrb[0].mxu0
    %640 = vmatprep.mubr.bf16.mxu0 0
    %641 = vmatmul.mubr.bf16.gmra.mrb[0].mxu0 %v374
    %v642 = vpop.f32.mrb[0].mxu0
    %v643 = vadd.f32 %v114, %v642
    %v644 = vpop.f32.mrb[0].mxu0
    %v645 = vpop.f32.mrb[0].mxu0
    %v646 = vadd.f32 %v114, %v645
    %v647 = vpop.f32.mrb[0].mxu0
    %648 = vmatprep.mubr.bf16.mxu0 0
    %649 = vmatmul.mubr.bf16.gmra.mrb[0].mxu0 %v377
    %v650 = vpop.f32.mrb[0].mxu0
    %v651 = vadd.f32 %v114, %v650
    %v652 = vpop.f32.mrb[0].mxu0
    %v653 = vpop.f32.mrb[0].mxu0
    %v654 = vadd.f32 %v114, %v653
    %v655 = vpop.f32.mrb[0].mxu0
    %656 = vmatprep.mubr.bf16.mxu0 0
    %657 = vmatmul.mubr.bf16.gmra.mrb[0].mxu0 %v380
    %v658 = vpop.f32.mrb[0].mxu0
    %v659 = vadd.f32 %v114, %v658
    %v660 = vpop.f32.mrb[0].mxu0
    %v661 = vpop.f32.mrb[0].mxu0
    %v662 = vadd.f32 %v114, %v661
    %v663 = vpop.f32.mrb[0].mxu0
    %664 = vmatprep.mubr.bf16.mxu0 0
    %665 = vmatmul.mubr.bf16.gmra.mrb[0].mxu0 %v383
    %v666 = vpop.f32.mrb[0].mxu0
    %v667 = vadd.f32 %v114, %v666
    %v668 = vpop.f32.mrb[0].mxu0
    %v669 = vpop.f32.mrb[0].mxu0
    %v670 = vadd.f32 %v114, %v669
    %v671 = vpop.f32.mrb[0].mxu0
    %672 = vmatprep.mubr.bf16.mxu0 0
    %673 = vmatmul.mubr.bf16.gmra.mrb[0].mxu0 %v386
    %v674 = vpop.f32.mrb[0].mxu0
    %v675 = vadd.f32 %v114, %v674
    %v676 = vpop.f32.mrb[0].mxu0
    %v677 = vpop.f32.mrb[0].mxu0
    %v678 = vadd.f32 %v114, %v677
    %v679 = vpop.f32.mrb[0].mxu0
    %680 = vdwg.mxu0
    %v681 = vmax.f32 %v427, 0.0
    %v682 = vmax.f32 %v430, 0.0
    %v683 = vmax.f32 %v435, 0.0
    %v684 = vmax.f32 %v438, 0.0
    %v685 = vmax.f32 %v443, 0.0
    %v686 = vmax.f32 %v446, 0.0
    %v687 = vmax.f32 %v451, 0.0
    %v688 = vmax.f32 %v454, 0.0
    %v689 = vmax.f32 %v459, 0.0
    %v690 = vmax.f32 %v462, 0.0
    %v691 = vmax.f32 %v467, 0.0
    %v692 = vmax.f32 %v470, 0.0
    %v693 = vmax.f32 %v475, 0.0
    %v694 = vmax.f32 %v478, 0.0
    %v695 = vmax.f32 %v483, 0.0
    %v696 = vmax.f32 %v486, 0.0
    %v697 = vmax.f32 %v491, 0.0
    %v698 = vmax.f32 %v494, 0.0
    %v699 = vmax.f32 %v499, 0.0
    %v700 = vmax.f32 %v502, 0.0
    %v701 = vmax.f32 %v507, 0.0
    %v702 = vmax.f32 %v510, 0.0
    %v703 = vmax.f32 %v515, 0.0
    %v704 = vmax.f32 %v518, 0.0
    %v705 = vmax.f32 %v523, 0.0
    %v706 = vmax.f32 %v526, 0.0
    %v707 = vmax.f32 %v531, 0.0
    %v708 = vmax.f32 %v534, 0.0
    %v709 = vmax.f32 %v539, 0.0
    %v710 = vmax.f32 %v542, 0.0
    %v711 = vmax.f32 %v547, 0.0
    %v712 = vmax.f32 %v550, 0.0
    %v713 = vmax.f32 %v555, 0.0
    %v714 = vmax.f32 %v558, 0.0
    %v715 = vmax.f32 %v563, 0.0
    %v716 = vmax.f32 %v566, 0.0
    %v717 = vmax.f32 %v571, 0.0
    %v718 = vmax.f32 %v574, 0.0
    %v719 = vmax.f32 %v579, 0.0
    %v720 = vmax.f32 %v582, 0.0
    %v721 = vmax.f32 %v587, 0.0
    %v722 = vmax.f32 %v590, 0.0
    %v723 = vmax.f32 %v595, 0.0
    %v724 = vmax.f32 %v598, 0.0
    %v725 = vmax.f32 %v603, 0.0
    %v726 = vmax.f32 %v606, 0.0
    %v727 = vmax.f32 %v611, 0.0
    %v728 = vmax.f32 %v614, 0.0
    %v729 = vmax.f32 %v619, 0.0
    %v730 = vmax.f32 %v622, 0.0
    %v731 = vmax.f32 %v627, 0.0
    %v732 = vmax.f32 %v630, 0.0
    %v733 = vmax.f32 %v635, 0.0
    %v734 = vmax.f32 %v638, 0.0
    %v735 = vmax.f32 %v643, 0.0
    %v736 = vmax.f32 %v646, 0.0
    %v737 = vmax.f32 %v651, 0.0
    %v738 = vmax.f32 %v654, 0.0
    %v739 = vmax.f32 %v659, 0.0
    %v740 = vmax.f32 %v662, 0.0
    %v741 = vmax.f32 %v667, 0.0
    %v742 = vmax.f32 %v670, 0.0
    %v743 = vmax.f32 %v675, 0.0
    %v744 = vmax.f32 %v678, 0.0
    %v745 = vpack.c.bf16 %v682, %v681
    %v746 = vpack.c.bf16 %v684, %v683
    %v747 = vpack.c.bf16 %v686, %v685
    %v748 = vpack.c.bf16 %v688, %v687
    %v749 = vpack.c.bf16 %v690, %v689
    %v750 = vpack.c.bf16 %v692, %v691
    %v751 = vpack.c.bf16 %v694, %v693
    %v752 = vpack.c.bf16 %v696, %v695
    %v753 = vpack.c.bf16 %v698, %v697
    %v754 = vpack.c.bf16 %v700, %v699
    %v755 = vpack.c.bf16 %v702, %v701
    %v756 = vpack.c.bf16 %v704, %v703
    %v757 = vpack.c.bf16 %v706, %v705
    %v758 = vpack.c.bf16 %v708, %v707
    %v759 = vpack.c.bf16 %v710, %v709
    %v760 = vpack.c.bf16 %v712, %v711
    %v761 = vpack.c.bf16 %v714, %v713
    %v762 = vpack.c.bf16 %v716, %v715
    %v763 = vpack.c.bf16 %v718, %v717
    %v764 = vpack.c.bf16 %v720, %v719
    %v765 = vpack.c.bf16 %v722, %v721
    %v766 = vpack.c.bf16 %v724, %v723
    %v767 = vpack.c.bf16 %v726, %v725
    %v768 = vpack.c.bf16 %v728, %v727
    %v769 = vpack.c.bf16 %v730, %v729
    %v770 = vpack.c.bf16 %v732, %v731
    %v771 = vpack.c.bf16 %v734, %v733
    %v772 = vpack.c.bf16 %v736, %v735
    %v773 = vpack.c.bf16 %v738, %v737
    %v774 = vpack.c.bf16 %v740, %v739
    %v775 = vpack.c.bf16 %v742, %v741
    %v776 = vpack.c.bf16 %v744, %v743
    %v777 = vmax.bf16 %v745, %v746
    %v778 = vmax.bf16 %v747, %v748
    %v779 = vmax.bf16 %v749, %v750
    %v780 = vmax.bf16 %v751, %v752
    %v781 = vmax.bf16 %v753, %v754
    %v782 = vmax.bf16 %v755, %v756
    %v783 = vmax.bf16 %v757, %v758
    %v784 = vmax.bf16 %v759, %v760
    %v785 = vmax.bf16 %v761, %v762
    %v786 = vmax.bf16 %v763, %v764
    %v787 = vmax.bf16 %v765, %v766
    %v788 = vmax.bf16 %v767, %v768
    %v789 = vmax.bf16 %v769, %v770
    %v790 = vmax.bf16 %v771, %v772
    %v791 = vmax.bf16 %v773, %v774
    %v792 = vmax.bf16 %v775, %v776
    %v809 = vcombine.high %v777, %v777
    %v811 = vunpack.c.l.s4 1966171168
    %v812 = vunpack.c.0.s8 %v811
    %v813 = vlaneseq
    %v814 = vshrl.u32 %v813, 7
    %v815 = vsub.s32 %v812, %v814
    %v816 = vrot.slane %v777, %v815
    %v818 = vunpack.c.l.s4 1966171168
    %v819 = vunpack.c.0.s8 %v818
    %v820 = vlaneseq
    %v821 = vshrl.u32 %v820, 7
    %v822 = vsub.s32 %v819, %v821
    %v823 = vrot.slane %v809, %v822
    %v824 = vcombine.high %v816, %v816
    %v825 = vcombine.high %v823, %v823
    %v827 = vunpack.c.l.s4 1966171168
    %v828 = vunpack.c.0.s8 %v827
    %v829 = vlaneseq
    %v830 = vshrl.u32 %v829, 7
    %v831 = vsub.s32 %v828, %v830
    %v832 = vrot.slane %v816, %v831
    %v834 = vunpack.c.l.s4 1966171168
    %v835 = vunpack.c.0.s8 %v834
    %v836 = vlaneseq
    %v837 = vshrl.u32 %v836, 7
    %v838 = vsub.s32 %v835, %v837
    %v839 = vrot.slane %v823, %v838
    %v841 = vunpack.c.l.s4 1966171168
    %v842 = vunpack.c.0.s8 %v841
    %v843 = vlaneseq
    %v844 = vshrl.u32 %v843, 7
    %v845 = vsub.s32 %v842, %v844
    %v846 = vrot.slane %v824, %v845
    %v848 = vunpack.c.l.s4 1966171168
    %v849 = vunpack.c.0.s8 %v848
    %v850 = vlaneseq
    %v851 = vshrl.u32 %v850, 7
    %v852 = vsub.s32 %v849, %v851
    %v853 = vrot.slane %v825, %v852
    %v854 = vcombine.high %v832, %v832
    %v855 = vcombine.high %v839, %v839
    %v856 = vcombine.high %v846, %v846
    %v857 = vcombine.high %v853, %v853
    %v858 = vcombine.high %v778, %v778
    %v860 = vunpack.c.l.s4 1966171168
    %v861 = vunpack.c.0.s8 %v860
    %v862 = vlaneseq
    %v863 = vshrl.u32 %v862, 7
    %v864 = vsub.s32 %v861, %v863
    %v865 = vrot.slane %v778, %v864
    %v867 = vunpack.c.l.s4 1966171168
    %v868 = vunpack.c.0.s8 %v867
    %v869 = vlaneseq
    %v870 = vshrl.u32 %v869, 7
    %v871 = vsub.s32 %v868, %v870
    %v872 = vrot.slane %v858, %v871
    %v873 = vcombine.high %v865, %v865
    %v874 = vcombine.high %v872, %v872
    %v876 = vunpack.c.l.s4 1966171168
    %v877 = vunpack.c.0.s8 %v876
    %v878 = vlaneseq
    %v879 = vshrl.u32 %v878, 7
    %v880 = vsub.s32 %v877, %v879
    %v881 = vrot.slane %v865, %v880
    %v883 = vunpack.c.l.s4 1966171168
    %v884 = vunpack.c.0.s8 %v883
    %v885 = vlaneseq
    %v886 = vshrl.u32 %v885, 7
    %v887 = vsub.s32 %v884, %v886
    %v888 = vrot.slane %v872, %v887
    %v890 = vunpack.c.l.s4 1966171168
    %v891 = vunpack.c.0.s8 %v890
    %v892 = vlaneseq
    %v893 = vshrl.u32 %v892, 7
    %v894 = vsub.s32 %v891, %v893
    %v895 = vrot.slane %v873, %v894
    %v897 = vunpack.c.l.s4 1966171168
    %v898 = vunpack.c.0.s8 %v897
    %v899 = vlaneseq
    %v900 = vshrl.u32 %v899, 7
    %v901 = vsub.s32 %v898, %v900
    %v902 = vrot.slane %v874, %v901
    %v903 = vcombine.high %v881, %v881
    %v904 = vcombine.high %v888, %v888
    %v905 = vcombine.high %v895, %v895
    %v906 = vcombine.high %v902, %v902
    %v907 = vcombine.high %v779, %v779
    %v909 = vunpack.c.l.s4 1966171168
    %v910 = vunpack.c.0.s8 %v909
    %v911 = vlaneseq
    %v912 = vshrl.u32 %v911, 7
    %v913 = vsub.s32 %v910, %v912
    %v914 = vrot.slane %v779, %v913
    %v916 = vunpack.c.l.s4 1966171168
    %v917 = vunpack.c.0.s8 %v916
    %v918 = vlaneseq
    %v919 = vshrl.u32 %v918, 7
    %v920 = vsub.s32 %v917, %v919
    %v921 = vrot.slane %v907, %v920
    %v922 = vcombine.high %v914, %v914
    %v923 = vcombine.high %v921, %v921
    %v925 = vunpack.c.l.s4 1966171168
    %v926 = vunpack.c.0.s8 %v925
    %v927 = vlaneseq
    %v928 = vshrl.u32 %v927, 7
    %v929 = vsub.s32 %v926, %v928
    %v930 = vrot.slane %v914, %v929
    %v932 = vunpack.c.l.s4 1966171168
    %v933 = vunpack.c.0.s8 %v932
    %v934 = vlaneseq
    %v935 = vshrl.u32 %v934, 7
    %v936 = vsub.s32 %v933, %v935
    %v937 = vrot.slane %v921, %v936
    %v939 = vunpack.c.l.s4 1966171168
    %v940 = vunpack.c.0.s8 %v939
    %v941 = vlaneseq
    %v942 = vshrl.u32 %v941, 7
    %v943 = vsub.s32 %v940, %v942
    %v944 = vrot.slane %v922, %v943
    %v946 = vunpack.c.l.s4 1966171168
    %v947 = vunpack.c.0.s8 %v946
    %v948 = vlaneseq
    %v949 = vshrl.u32 %v948, 7
    %v950 = vsub.s32 %v947, %v949
    %v951 = vrot.slane %v923, %v950
    %v952 = vcombine.high %v930, %v930
    %v953 = vcombine.high %v937, %v937
    %v954 = vcombine.high %v944, %v944
    %v955 = vcombine.high %v951, %v951
    %v956 = vcombine.high %v780, %v780
    %v958 = vunpack.c.l.s4 1966171168
    %v959 = vunpack.c.0.s8 %v958
    %v960 = vlaneseq
    %v961 = vshrl.u32 %v960, 7
    %v962 = vsub.s32 %v959, %v961
    %v963 = vrot.slane %v780, %v962
    %v965 = vunpack.c.l.s4 1966171168
    %v966 = vunpack.c.0.s8 %v965
    %v967 = vlaneseq
    %v968 = vshrl.u32 %v967, 7
    %v969 = vsub.s32 %v966, %v968
    %v970 = vrot.slane %v956, %v969
    %v971 = vcombine.high %v963, %v963
    %v972 = vcombine.high %v970, %v970
    %v974 = vunpack.c.l.s4 1966171168
    %v975 = vunpack.c.0.s8 %v974
    %v976 = vlaneseq
    %v977 = vshrl.u32 %v976, 7
    %v978 = vsub.s32 %v975, %v977
    %v979 = vrot.slane %v963, %v978
    %v981 = vunpack.c.l.s4 1966171168
    %v982 = vunpack.c.0.s8 %v981
    %v983 = vlaneseq
    %v984 = vshrl.u32 %v983, 7
    %v985 = vsub.s32 %v982, %v984
    %v986 = vrot.slane %v970, %v985
    %v988 = vunpack.c.l.s4 1966171168
    %v989 = vunpack.c.0.s8 %v988
    %v990 = vlaneseq
    %v991 = vshrl.u32 %v990, 7
    %v992 = vsub.s32 %v989, %v991
    %v993 = vrot.slane %v971, %v992
    %v995 = vunpack.c.l.s4 1966171168
    %v996 = vunpack.c.0.s8 %v995
    %v997 = vlaneseq
    %v998 = vshrl.u32 %v997, 7
    %v999 = vsub.s32 %v996, %v998
    %v1000 = vrot.slane %v972, %v999
    %v1001 = vcombine.high %v979, %v979
    %v1002 = vcombine.high %v986, %v986
    %v1003 = vcombine.high %v993, %v993
    %v1004 = vcombine.high %v1000, %v1000
    %v1005 = vcombine.high %v781, %v781
    %v1007 = vunpack.c.l.s4 1966171168
    %v1008 = vunpack.c.0.s8 %v1007
    %v1009 = vlaneseq
    %v1010 = vshrl.u32 %v1009, 7
    %v1011 = vsub.s32 %v1008, %v1010
    %v1012 = vrot.slane %v781, %v1011
    %v1014 = vunpack.c.l.s4 1966171168
    %v1015 = vunpack.c.0.s8 %v1014
    %v1016 = vlaneseq
    %v1017 = vshrl.u32 %v1016, 7
    %v1018 = vsub.s32 %v1015, %v1017
    %v1019 = vrot.slane %v1005, %v1018
    %v1020 = vcombine.high %v1012, %v1012
    %v1021 = vcombine.high %v1019, %v1019
    %v1023 = vunpack.c.l.s4 1966171168
    %v1024 = vunpack.c.0.s8 %v1023
    %v1025 = vlaneseq
    %v1026 = vshrl.u32 %v1025, 7
    %v1027 = vsub.s32 %v1024, %v1026
    %v1028 = vrot.slane %v1012, %v1027
    %v1030 = vunpack.c.l.s4 1966171168
    %v1031 = vunpack.c.0.s8 %v1030
    %v1032 = vlaneseq
    %v1033 = vshrl.u32 %v1032, 7
    %v1034 = vsub.s32 %v1031, %v1033
    %v1035 = vrot.slane %v1019, %v1034
    %v1037 = vunpack.c.l.s4 1966171168
    %v1038 = vunpack.c.0.s8 %v1037
    %v1039 = vlaneseq
    %v1040 = vshrl.u32 %v1039, 7
    %v1041 = vsub.s32 %v1038, %v1040
    %v1042 = vrot.slane %v1020, %v1041
    %v1044 = vunpack.c.l.s4 1966171168
    %v1045 = vunpack.c.0.s8 %v1044
    %v1046 = vlaneseq
    %v1047 = vshrl.u32 %v1046, 7
    %v1048 = vsub.s32 %v1045, %v1047
    %v1049 = vrot.slane %v1021, %v1048
    %v1050 = vcombine.high %v1028, %v1028
    %v1051 = vcombine.high %v1035, %v1035
    %v1052 = vcombine.high %v1042, %v1042
    %v1053 = vcombine.high %v1049, %v1049
    %v1054 = vcombine.high %v782, %v782
    %v1056 = vunpack.c.l.s4 1966171168
    %v1057 = vunpack.c.0.s8 %v1056
    %v1058 = vlaneseq
    %v1059 = vshrl.u32 %v1058, 7
    %v1060 = vsub.s32 %v1057, %v1059
    %v1061 = vrot.slane %v782, %v1060
    %v1063 = vunpack.c.l.s4 1966171168
    %v1064 = vunpack.c.0.s8 %v1063
    %v1065 = vlaneseq
    %v1066 = vshrl.u32 %v1065, 7
    %v1067 = vsub.s32 %v1064, %v1066
    %v1068 = vrot.slane %v1054, %v1067
    %v1069 = vcombine.high %v1061, %v1061
    %v1070 = vcombine.high %v1068, %v1068
    %v1072 = vunpack.c.l.s4 1966171168
    %v1073 = vunpack.c.0.s8 %v1072
    %v1074 = vlaneseq
    %v1075 = vshrl.u32 %v1074, 7
    %v1076 = vsub.s32 %v1073, %v1075
    %v1077 = vrot.slane %v1061, %v1076
    %v1079 = vunpack.c.l.s4 1966171168
    %v1080 = vunpack.c.0.s8 %v1079
    %v1081 = vlaneseq
    %v1082 = vshrl.u32 %v1081, 7
    %v1083 = vsub.s32 %v1080, %v1082
    %v1084 = vrot.slane %v1068, %v1083
    %v1086 = vunpack.c.l.s4 1966171168
    %v1087 = vunpack.c.0.s8 %v1086
    %v1088 = vlaneseq
    %v1089 = vshrl.u32 %v1088, 7
    %v1090 = vsub.s32 %v1087, %v1089
    %v1091 = vrot.slane %v1069, %v1090
    %v1093 = vunpack.c.l.s4 1966171168
    %v1094 = vunpack.c.0.s8 %v1093
    %v1095 = vlaneseq
    %v1096 = vshrl.u32 %v1095, 7
    %v1097 = vsub.s32 %v1094, %v1096
    %v1098 = vrot.slane %v1070, %v1097
    %v1099 = vcombine.high %v1077, %v1077
    %v1100 = vcombine.high %v1084, %v1084
    %v1101 = vcombine.high %v1091, %v1091
    %v1102 = vcombine.high %v1098, %v1098
    %v1103 = vcombine.high %v783, %v783
    %v1105 = vunpack.c.l.s4 1966171168
    %v1106 = vunpack.c.0.s8 %v1105
    %v1107 = vlaneseq
    %v1108 = vshrl.u32 %v1107, 7
    %v1109 = vsub.s32 %v1106, %v1108
    %v1110 = vrot.slane %v783, %v1109
    %v1112 = vunpack.c.l.s4 1966171168
    %v1113 = vunpack.c.0.s8 %v1112
    %v1114 = vlaneseq
    %v1115 = vshrl.u32 %v1114, 7
    %v1116 = vsub.s32 %v1113, %v1115
    %v1117 = vrot.slane %v1103, %v1116
    %v1118 = vcombine.high %v1110, %v1110
    %v1119 = vcombine.high %v1117, %v1117
    %v1121 = vunpack.c.l.s4 1966171168
    %v1122 = vunpack.c.0.s8 %v1121
    %v1123 = vlaneseq
    %v1124 = vshrl.u32 %v1123, 7
    %v1125 = vsub.s32 %v1122, %v1124
    %v1126 = vrot.slane %v1110, %v1125
    %v1128 = vunpack.c.l.s4 1966171168
    %v1129 = vunpack.c.0.s8 %v1128
    %v1130 = vlaneseq
    %v1131 = vshrl.u32 %v1130, 7
    %v1132 = vsub.s32 %v1129, %v1131
    %v1133 = vrot.slane %v1117, %v1132
    %v1135 = vunpack.c.l.s4 1966171168
    %v1136 = vunpack.c.0.s8 %v1135
    %v1137 = vlaneseq
    %v1138 = vshrl.u32 %v1137, 7
    %v1139 = vsub.s32 %v1136, %v1138
    %v1140 = vrot.slane %v1118, %v1139
    %v1142 = vunpack.c.l.s4 1966171168
    %v1143 = vunpack.c.0.s8 %v1142
    %v1144 = vlaneseq
    %v1145 = vshrl.u32 %v1144, 7
    %v1146 = vsub.s32 %v1143, %v1145
    %v1147 = vrot.slane %v1119, %v1146
    %v1148 = vcombine.high %v1126, %v1126
    %v1149 = vcombine.high %v1133, %v1133
    %v1150 = vcombine.high %v1140, %v1140
    %v1151 = vcombine.high %v1147, %v1147
    %v1152 = vcombine.high %v784, %v784
    %v1154 = vunpack.c.l.s4 1966171168
    %v1155 = vunpack.c.0.s8 %v1154
    %v1156 = vlaneseq
    %v1157 = vshrl.u32 %v1156, 7
    %v1158 = vsub.s32 %v1155, %v1157
    %v1159 = vrot.slane %v784, %v1158
    %v1161 = vunpack.c.l.s4 1966171168
    %v1162 = vunpack.c.0.s8 %v1161
    %v1163 = vlaneseq
    %v1164 = vshrl.u32 %v1163, 7
    %v1165 = vsub.s32 %v1162, %v1164
    %v1166 = vrot.slane %v1152, %v1165
    %v1167 = vcombine.high %v1159, %v1159
    %v1168 = vcombine.high %v1166, %v1166
    %v1170 = vunpack.c.l.s4 1966171168
    %v1171 = vunpack.c.0.s8 %v1170
    %v1172 = vlaneseq
    %v1173 = vshrl.u32 %v1172, 7
    %v1174 = vsub.s32 %v1171, %v1173
    %v1175 = vrot.slane %v1159, %v1174
    %v1177 = vunpack.c.l.s4 1966171168
    %v1178 = vunpack.c.0.s8 %v1177
    %v1179 = vlaneseq
    %v1180 = vshrl.u32 %v1179, 7
    %v1181 = vsub.s32 %v1178, %v1180
    %v1182 = vrot.slane %v1166, %v1181
    %v1184 = vunpack.c.l.s4 1966171168
    %v1185 = vunpack.c.0.s8 %v1184
    %v1186 = vlaneseq
    %v1187 = vshrl.u32 %v1186, 7
    %v1188 = vsub.s32 %v1185, %v1187
    %v1189 = vrot.slane %v1167, %v1188
    %v1191 = vunpack.c.l.s4 1966171168
    %v1192 = vunpack.c.0.s8 %v1191
    %v1193 = vlaneseq
    %v1194 = vshrl.u32 %v1193, 7
    %v1195 = vsub.s32 %v1192, %v1194
    %v1196 = vrot.slane %v1168, %v1195
    %v1197 = vcombine.high %v1175, %v1175
    %v1198 = vcombine.high %v1182, %v1182
    %v1199 = vcombine.high %v1189, %v1189
    %v1200 = vcombine.high %v1196, %v1196
    %v1201 = vcombine.high %v785, %v785
    %v1203 = vunpack.c.l.s4 1966171168
    %v1204 = vunpack.c.0.s8 %v1203
    %v1205 = vlaneseq
    %v1206 = vshrl.u32 %v1205, 7
    %v1207 = vsub.s32 %v1204, %v1206
    %v1208 = vrot.slane %v785, %v1207
    %v1210 = vunpack.c.l.s4 1966171168
    %v1211 = vunpack.c.0.s8 %v1210
    %v1212 = vlaneseq
    %v1213 = vshrl.u32 %v1212, 7
    %v1214 = vsub.s32 %v1211, %v1213
    %v1215 = vrot.slane %v1201, %v1214
    %v1216 = vcombine.high %v1208, %v1208
    %v1217 = vcombine.high %v1215, %v1215
    %v1219 = vunpack.c.l.s4 1966171168
    %v1220 = vunpack.c.0.s8 %v1219
    %v1221 = vlaneseq
    %v1222 = vshrl.u32 %v1221, 7
    %v1223 = vsub.s32 %v1220, %v1222
    %v1224 = vrot.slane %v1208, %v1223
    %v1226 = vunpack.c.l.s4 1966171168
    %v1227 = vunpack.c.0.s8 %v1226
    %v1228 = vlaneseq
    %v1229 = vshrl.u32 %v1228, 7
    %v1230 = vsub.s32 %v1227, %v1229
    %v1231 = vrot.slane %v1215, %v1230
    %v1233 = vunpack.c.l.s4 1966171168
    %v1234 = vunpack.c.0.s8 %v1233
    %v1235 = vlaneseq
    %v1236 = vshrl.u32 %v1235, 7
    %v1237 = vsub.s32 %v1234, %v1236
    %v1238 = vrot.slane %v1216, %v1237
    %v1240 = vunpack.c.l.s4 1966171168
    %v1241 = vunpack.c.0.s8 %v1240
    %v1242 = vlaneseq
    %v1243 = vshrl.u32 %v1242, 7
    %v1244 = vsub.s32 %v1241, %v1243
    %v1245 = vrot.slane %v1217, %v1244
    %v1246 = vcombine.high %v1224, %v1224
    %v1247 = vcombine.high %v1231, %v1231
    %v1248 = vcombine.high %v1238, %v1238
    %v1249 = vcombine.high %v1245, %v1245
    %v1250 = vcombine.high %v786, %v786
    %v1252 = vunpack.c.l.s4 1966171168
    %v1253 = vunpack.c.0.s8 %v1252
    %v1254 = vlaneseq
    %v1255 = vshrl.u32 %v1254, 7
    %v1256 = vsub.s32 %v1253, %v1255
    %v1257 = vrot.slane %v786, %v1256
    %v1259 = vunpack.c.l.s4 1966171168
    %v1260 = vunpack.c.0.s8 %v1259
    %v1261 = vlaneseq
    %v1262 = vshrl.u32 %v1261, 7
    %v1263 = vsub.s32 %v1260, %v1262
    %v1264 = vrot.slane %v1250, %v1263
    %v1265 = vcombine.high %v1257, %v1257
    %v1266 = vcombine.high %v1264, %v1264
    %v1268 = vunpack.c.l.s4 1966171168
    %v1269 = vunpack.c.0.s8 %v1268
    %v1270 = vlaneseq
    %v1271 = vshrl.u32 %v1270, 7
    %v1272 = vsub.s32 %v1269, %v1271
    %v1273 = vrot.slane %v1257, %v1272
    %v1275 = vunpack.c.l.s4 1966171168
    %v1276 = vunpack.c.0.s8 %v1275
    %v1277 = vlaneseq
    %v1278 = vshrl.u32 %v1277, 7
    %v1279 = vsub.s32 %v1276, %v1278
    %v1280 = vrot.slane %v1264, %v1279
    %v1282 = vunpack.c.l.s4 1966171168
    %v1283 = vunpack.c.0.s8 %v1282
    %v1284 = vlaneseq
    %v1285 = vshrl.u32 %v1284, 7
    %v1286 = vsub.s32 %v1283, %v1285
    %v1287 = vrot.slane %v1265, %v1286
    %v1289 = vunpack.c.l.s4 1966171168
    %v1290 = vunpack.c.0.s8 %v1289
    %v1291 = vlaneseq
    %v1292 = vshrl.u32 %v1291, 7
    %v1293 = vsub.s32 %v1290, %v1292
    %v1294 = vrot.slane %v1266, %v1293
    %v1295 = vcombine.high %v1273, %v1273
    %v1296 = vcombine.high %v1280, %v1280
    %v1297 = vcombine.high %v1287, %v1287
    %v1298 = vcombine.high %v1294, %v1294
    %v1299 = vcombine.high %v787, %v787
    %v1301 = vunpack.c.l.s4 1966171168
    %v1302 = vunpack.c.0.s8 %v1301
    %v1303 = vlaneseq
    %v1304 = vshrl.u32 %v1303, 7
    %v1305 = vsub.s32 %v1302, %v1304
    %v1306 = vrot.slane %v787, %v1305
    %v1308 = vunpack.c.l.s4 1966171168
    %v1309 = vunpack.c.0.s8 %v1308
    %v1310 = vlaneseq
    %v1311 = vshrl.u32 %v1310, 7
    %v1312 = vsub.s32 %v1309, %v1311
    %v1313 = vrot.slane %v1299, %v1312
    %v1314 = vcombine.high %v1306, %v1306
    %v1315 = vcombine.high %v1313, %v1313
    %v1317 = vunpack.c.l.s4 1966171168
    %v1318 = vunpack.c.0.s8 %v1317
    %v1319 = vlaneseq
    %v1320 = vshrl.u32 %v1319, 7
    %v1321 = vsub.s32 %v1318, %v1320
    %v1322 = vrot.slane %v1306, %v1321
    %v1324 = vunpack.c.l.s4 1966171168
    %v1325 = vunpack.c.0.s8 %v1324
    %v1326 = vlaneseq
    %v1327 = vshrl.u32 %v1326, 7
    %v1328 = vsub.s32 %v1325, %v1327
    %v1329 = vrot.slane %v1313, %v1328
    %v1331 = vunpack.c.l.s4 1966171168
    %v1332 = vunpack.c.0.s8 %v1331
    %v1333 = vlaneseq
    %v1334 = vshrl.u32 %v1333, 7
    %v1335 = vsub.s32 %v1332, %v1334
    %v1336 = vrot.slane %v1314, %v1335
    %v1338 = vunpack.c.l.s4 1966171168
    %v1339 = vunpack.c.0.s8 %v1338
    %v1340 = vlaneseq
    %v1341 = vshrl.u32 %v1340, 7
    %v1342 = vsub.s32 %v1339, %v1341
    %v1343 = vrot.slane %v1315, %v1342
    %v1344 = vcombine.high %v1322, %v1322
    %v1345 = vcombine.high %v1329, %v1329
    %v1346 = vcombine.high %v1336, %v1336
    %v1347 = vcombine.high %v1343, %v1343
    %v1348 = vcombine.high %v788, %v788
    %v1350 = vunpack.c.l.s4 1966171168
    %v1351 = vunpack.c.0.s8 %v1350
    %v1352 = vlaneseq
    %v1353 = vshrl.u32 %v1352, 7
    %v1354 = vsub.s32 %v1351, %v1353
    %v1355 = vrot.slane %v788, %v1354
    %v1357 = vunpack.c.l.s4 1966171168
    %v1358 = vunpack.c.0.s8 %v1357
    %v1359 = vlaneseq
    %v1360 = vshrl.u32 %v1359, 7
    %v1361 = vsub.s32 %v1358, %v1360
    %v1362 = vrot.slane %v1348, %v1361
    %v1363 = vcombine.high %v1355, %v1355
    %v1364 = vcombine.high %v1362, %v1362
    %v1366 = vunpack.c.l.s4 1966171168
    %v1367 = vunpack.c.0.s8 %v1366
    %v1368 = vlaneseq
    %v1369 = vshrl.u32 %v1368, 7
    %v1370 = vsub.s32 %v1367, %v1369
    %v1371 = vrot.slane %v1355, %v1370
    %v1373 = vunpack.c.l.s4 1966171168
    %v1374 = vunpack.c.0.s8 %v1373
    %v1375 = vlaneseq
    %v1376 = vshrl.u32 %v1375, 7
    %v1377 = vsub.s32 %v1374, %v1376
    %v1378 = vrot.slane %v1362, %v1377
    %v1380 = vunpack.c.l.s4 1966171168
    %v1381 = vunpack.c.0.s8 %v1380
    %v1382 = vlaneseq
    %v1383 = vshrl.u32 %v1382, 7
    %v1384 = vsub.s32 %v1381, %v1383
    %v1385 = vrot.slane %v1363, %v1384
    %v1387 = vunpack.c.l.s4 1966171168
    %v1388 = vunpack.c.0.s8 %v1387
    %v1389 = vlaneseq
    %v1390 = vshrl.u32 %v1389, 7
    %v1391 = vsub.s32 %v1388, %v1390
    %v1392 = vrot.slane %v1364, %v1391
    %v1393 = vcombine.high %v1371, %v1371
    %v1394 = vcombine.high %v1378, %v1378
    %v1395 = vcombine.high %v1385, %v1385
    %v1396 = vcombine.high %v1392, %v1392
    %v1397 = vcombine.high %v789, %v789
    %v1399 = vunpack.c.l.s4 1966171168
    %v1400 = vunpack.c.0.s8 %v1399
    %v1401 = vlaneseq
    %v1402 = vshrl.u32 %v1401, 7
    %v1403 = vsub.s32 %v1400, %v1402
    %v1404 = vrot.slane %v789, %v1403
    %v1406 = vunpack.c.l.s4 1966171168
    %v1407 = vunpack.c.0.s8 %v1406
    %v1408 = vlaneseq
    %v1409 = vshrl.u32 %v1408, 7
    %v1410 = vsub.s32 %v1407, %v1409
    %v1411 = vrot.slane %v1397, %v1410
    %v1412 = vcombine.high %v1404, %v1404
    %v1413 = vcombine.high %v1411, %v1411
    %v1415 = vunpack.c.l.s4 1966171168
    %v1416 = vunpack.c.0.s8 %v1415
    %v1417 = vlaneseq
    %v1418 = vshrl.u32 %v1417, 7
    %v1419 = vsub.s32 %v1416, %v1418
    %v1420 = vrot.slane %v1404, %v1419
    %v1422 = vunpack.c.l.s4 1966171168
    %v1423 = vunpack.c.0.s8 %v1422
    %v1424 = vlaneseq
    %v1425 = vshrl.u32 %v1424, 7
    %v1426 = vsub.s32 %v1423, %v1425
    %v1427 = vrot.slane %v1411, %v1426
    %v1429 = vunpack.c.l.s4 1966171168
    %v1430 = vunpack.c.0.s8 %v1429
    %v1431 = vlaneseq
    %v1432 = vshrl.u32 %v1431, 7
    %v1433 = vsub.s32 %v1430, %v1432
    %v1434 = vrot.slane %v1412, %v1433
    %v1436 = vunpack.c.l.s4 1966171168
    %v1437 = vunpack.c.0.s8 %v1436
    %v1438 = vlaneseq
    %v1439 = vshrl.u32 %v1438, 7
    %v1440 = vsub.s32 %v1437, %v1439
    %v1441 = vrot.slane %v1413, %v1440
    %v1442 = vcombine.high %v1420, %v1420
    %v1443 = vcombine.high %v1427, %v1427
    %v1444 = vcombine.high %v1434, %v1434
    %v1445 = vcombine.high %v1441, %v1441
    %v1446 = vcombine.high %v790, %v790
    %v1448 = vunpack.c.l.s4 1966171168
    %v1449 = vunpack.c.0.s8 %v1448
    %v1450 = vlaneseq
    %v1451 = vshrl.u32 %v1450, 7
    %v1452 = vsub.s32 %v1449, %v1451
    %v1453 = vrot.slane %v790, %v1452
    %v1455 = vunpack.c.l.s4 1966171168
    %v1456 = vunpack.c.0.s8 %v1455
    %v1457 = vlaneseq
    %v1458 = vshrl.u32 %v1457, 7
    %v1459 = vsub.s32 %v1456, %v1458
    %v1460 = vrot.slane %v1446, %v1459
    %v1461 = vcombine.high %v1453, %v1453
    %v1462 = vcombine.high %v1460, %v1460
    %v1464 = vunpack.c.l.s4 1966171168
    %v1465 = vunpack.c.0.s8 %v1464
    %v1466 = vlaneseq
    %v1467 = vshrl.u32 %v1466, 7
    %v1468 = vsub.s32 %v1465, %v1467
    %v1469 = vrot.slane %v1453, %v1468
    %v1471 = vunpack.c.l.s4 1966171168
    %v1472 = vunpack.c.0.s8 %v1471
    %v1473 = vlaneseq
    %v1474 = vshrl.u32 %v1473, 7
    %v1475 = vsub.s32 %v1472, %v1474
    %v1476 = vrot.slane %v1460, %v1475
    %v1478 = vunpack.c.l.s4 1966171168
    %v1479 = vunpack.c.0.s8 %v1478
    %v1480 = vlaneseq
    %v1481 = vshrl.u32 %v1480, 7
    %v1482 = vsub.s32 %v1479, %v1481
    %v1483 = vrot.slane %v1461, %v1482
    %v1485 = vunpack.c.l.s4 1966171168
    %v1486 = vunpack.c.0.s8 %v1485
    %v1487 = vlaneseq
    %v1488 = vshrl.u32 %v1487, 7
    %v1489 = vsub.s32 %v1486, %v1488
    %v1490 = vrot.slane %v1462, %v1489
    %v1491 = vcombine.high %v1469, %v1469
    %v1492 = vcombine.high %v1476, %v1476
    %v1493 = vcombine.high %v1483, %v1483
    %v1494 = vcombine.high %v1490, %v1490
    %v1495 = vcombine.high %v791, %v791
    %v1497 = vunpack.c.l.s4 1966171168
    %v1498 = vunpack.c.0.s8 %v1497
    %v1499 = vlaneseq
    %v1500 = vshrl.u32 %v1499, 7
    %v1501 = vsub.s32 %v1498, %v1500
    %v1502 = vrot.slane %v791, %v1501
    %v1504 = vunpack.c.l.s4 1966171168
    %v1505 = vunpack.c.0.s8 %v1504
    %v1506 = vlaneseq
    %v1507 = vshrl.u32 %v1506, 7
    %v1508 = vsub.s32 %v1505, %v1507
    %v1509 = vrot.slane %v1495, %v1508
    %v1510 = vcombine.high %v1502, %v1502
    %v1511 = vcombine.high %v1509, %v1509
    %v1513 = vunpack.c.l.s4 1966171168
    %v1514 = vunpack.c.0.s8 %v1513
    %v1515 = vlaneseq
    %v1516 = vshrl.u32 %v1515, 7
    %v1517 = vsub.s32 %v1514, %v1516
    %v1518 = vrot.slane %v1502, %v1517
    %v1520 = vunpack.c.l.s4 1966171168
    %v1521 = vunpack.c.0.s8 %v1520
    %v1522 = vlaneseq
    %v1523 = vshrl.u32 %v1522, 7
    %v1524 = vsub.s32 %v1521, %v1523
    %v1525 = vrot.slane %v1509, %v1524
    %v1527 = vunpack.c.l.s4 1966171168
    %v1528 = vunpack.c.0.s8 %v1527
    %v1529 = vlaneseq
    %v1530 = vshrl.u32 %v1529, 7
    %v1531 = vsub.s32 %v1528, %v1530
    %v1532 = vrot.slane %v1510, %v1531
    %v1534 = vunpack.c.l.s4 1966171168
    %v1535 = vunpack.c.0.s8 %v1534
    %v1536 = vlaneseq
    %v1537 = vshrl.u32 %v1536, 7
    %v1538 = vsub.s32 %v1535, %v1537
    %v1539 = vrot.slane %v1511, %v1538
    %v1540 = vcombine.high %v1518, %v1518
    %v1541 = vcombine.high %v1525, %v1525
    %v1542 = vcombine.high %v1532, %v1532
    %v1543 = vcombine.high %v1539, %v1539
    %v1544 = vcombine.high %v792, %v792
    %v1546 = vunpack.c.l.s4 1966171168
    %v1547 = vunpack.c.0.s8 %v1546
    %v1548 = vlaneseq
    %v1549 = vshrl.u32 %v1548, 7
    %v1550 = vsub.s32 %v1547, %v1549
    %v1551 = vrot.slane %v792, %v1550
    %v1553 = vunpack.c.l.s4 1966171168
    %v1554 = vunpack.c.0.s8 %v1553
    %v1555 = vlaneseq
    %v1556 = vshrl.u32 %v1555, 7
    %v1557 = vsub.s32 %v1554, %v1556
    %v1558 = vrot.slane %v1544, %v1557
    %v1559 = vcombine.high %v1551, %v1551
    %v1560 = vcombine.high %v1558, %v1558
    %v1562 = vunpack.c.l.s4 1966171168
    %v1563 = vunpack.c.0.s8 %v1562
    %v1564 = vlaneseq
    %v1565 = vshrl.u32 %v1564, 7
    %v1566 = vsub.s32 %v1563, %v1565
    %v1567 = vrot.slane %v1551, %v1566
    %v1569 = vunpack.c.l.s4 1966171168
    %v1570 = vunpack.c.0.s8 %v1569
    %v1571 = vlaneseq
    %v1572 = vshrl.u32 %v1571, 7
    %v1573 = vsub.s32 %v1570, %v1572
    %v1574 = vrot.slane %v1558, %v1573
    %v1576 = vunpack.c.l.s4 1966171168
    %v1577 = vunpack.c.0.s8 %v1576
    %v1578 = vlaneseq
    %v1579 = vshrl.u32 %v1578, 7
    %v1580 = vsub.s32 %v1577, %v1579
    %v1581 = vrot.slane %v1559, %v1580
    %v1583 = vunpack.c.l.s4 1966171168
    %v1584 = vunpack.c.0.s8 %v1583
    %v1585 = vlaneseq
    %v1586 = vshrl.u32 %v1585, 7
    %v1587 = vsub.s32 %v1584, %v1586
    %v1588 = vrot.slane %v1560, %v1587
    %v1589 = vcombine.high %v1567, %v1567
    %v1590 = vcombine.high %v1574, %v1574
    %v1591 = vcombine.high %v1581, %v1581
    %v1592 = vcombine.high %v1588, %v1588
    %v1722 = vshrl.u32 %v832, 16
    %v1724 = vrot.slane %v1722, 7
    %v1725 = vrot.slane %v1724, 1
    %v1727 = vshrl.u32 %v846, 16
    %v1729 = vrot.slane %v1727, 7
    %v1730 = vrot.slane %v1729, 1
    %v1732 = vshrl.u32 %v854, 16
    %v1734 = vrot.slane %v1732, 7
    %v1735 = vrot.slane %v1734, 1
    %v1737 = vshrl.u32 %v856, 16
    %v1739 = vrot.slane %v1737, 7
    %v1740 = vrot.slane %v1739, 1
    %v1742 = vshrl.u32 %v839, 16
    %v1744 = vrot.slane %v1742, 7
    %v1745 = vrot.slane %v1744, 1
    %v1747 = vshrl.u32 %v853, 16
    %v1749 = vrot.slane %v1747, 7
    %v1750 = vrot.slane %v1749, 1
    %v1752 = vshrl.u32 %v855, 16
    %v1754 = vrot.slane %v1752, 7
    %v1755 = vrot.slane %v1754, 1
    %v1757 = vshrl.u32 %v857, 16
    %v1759 = vrot.slane %v1757, 7
    %v1760 = vrot.slane %v1759, 1
    %v1762 = vshrl.u32 %v881, 16
    %v1764 = vrot.slane %v1762, 7
    %v1765 = vrot.slane %v1764, 1
    %v1767 = vshrl.u32 %v895, 16
    %v1769 = vrot.slane %v1767, 7
    %v1770 = vrot.slane %v1769, 1
    %v1772 = vshrl.u32 %v903, 16
    %v1774 = vrot.slane %v1772, 7
    %v1775 = vrot.slane %v1774, 1
    %v1777 = vshrl.u32 %v905, 16
    %v1779 = vrot.slane %v1777, 7
    %v1780 = vrot.slane %v1779, 1
    %v1782 = vshrl.u32 %v888, 16
    %v1784 = vrot.slane %v1782, 7
    %v1785 = vrot.slane %v1784, 1
    %v1787 = vshrl.u32 %v902, 16
    %v1789 = vrot.slane %v1787, 7
    %v1790 = vrot.slane %v1789, 1
    %v1792 = vshrl.u32 %v904, 16
    %v1794 = vrot.slane %v1792, 7
    %v1795 = vrot.slane %v1794, 1
    %v1797 = vshrl.u32 %v906, 16
    %v1799 = vrot.slane %v1797, 7
    %v1800 = vrot.slane %v1799, 1
    %v1802 = vshrl.u32 %v930, 16
    %v1804 = vrot.slane %v1802, 7
    %v1805 = vrot.slane %v1804, 1
    %v1807 = vshrl.u32 %v944, 16
    %v1809 = vrot.slane %v1807, 7
    %v1810 = vrot.slane %v1809, 1
    %v1812 = vshrl.u32 %v952, 16
    %v1814 = vrot.slane %v1812, 7
    %v1815 = vrot.slane %v1814, 1
    %v1817 = vshrl.u32 %v954, 16
    %v1819 = vrot.slane %v1817, 7
    %v1820 = vrot.slane %v1819, 1
    %v1822 = vshrl.u32 %v937, 16
    %v1824 = vrot.slane %v1822, 7
    %v1825 = vrot.slane %v1824, 1
    %v1827 = vshrl.u32 %v951, 16
    %v1829 = vrot.slane %v1827, 7
    %v1830 = vrot.slane %v1829, 1
    %v1832 = vshrl.u32 %v953, 16
    %v1834 = vrot.slane %v1832, 7
    %v1835 = vrot.slane %v1834, 1
    %v1837 = vshrl.u32 %v955, 16
    %v1839 = vrot.slane %v1837, 7
    %v1840 = vrot.slane %v1839, 1
    %v1842 = vshrl.u32 %v979, 16
    %v1844 = vrot.slane %v1842, 7
    %v1845 = vrot.slane %v1844, 1
    %v1847 = vshrl.u32 %v993, 16
    %v1849 = vrot.slane %v1847, 7
    %v1850 = vrot.slane %v1849, 1
    %v1852 = vshrl.u32 %v1001, 16
    %v1854 = vrot.slane %v1852, 7
    %v1855 = vrot.slane %v1854, 1
    %v1857 = vshrl.u32 %v1003, 16
    %v1859 = vrot.slane %v1857, 7
    %v1860 = vrot.slane %v1859, 1
    %v1862 = vshrl.u32 %v986, 16
    %v1864 = vrot.slane %v1862, 7
    %v1865 = vrot.slane %v1864, 1
    %v1867 = vshrl.u32 %v1000, 16
    %v1869 = vrot.slane %v1867, 7
    %v1870 = vrot.slane %v1869, 1
    %v1872 = vshrl.u32 %v1002, 16
    %v1874 = vrot.slane %v1872, 7
    %v1875 = vrot.slane %v1874, 1
    %v1877 = vshrl.u32 %v1004, 16
    %v1879 = vrot.slane %v1877, 7
    %v1880 = vrot.slane %v1879, 1
    %v1882 = vshrl.u32 %v1028, 16
    %v1884 = vrot.slane %v1882, 7
    %v1885 = vrot.slane %v1884, 1
    %v1887 = vshrl.u32 %v1042, 16
    %v1889 = vrot.slane %v1887, 7
    %v1890 = vrot.slane %v1889, 1
    %v1892 = vshrl.u32 %v1050, 16
    %v1894 = vrot.slane %v1892, 7
    %v1895 = vrot.slane %v1894, 1
    %v1897 = vshrl.u32 %v1052, 16
    %v1899 = vrot.slane %v1897, 7
    %v1900 = vrot.slane %v1899, 1
    %v1902 = vshrl.u32 %v1035, 16
    %v1904 = vrot.slane %v1902, 7
    %v1905 = vrot.slane %v1904, 1
    %v1907 = vshrl.u32 %v1049, 16
    %v1909 = vrot.slane %v1907, 7
    %v1910 = vrot.slane %v1909, 1
    %v1912 = vshrl.u32 %v1051, 16
    %v1914 = vrot.slane %v1912, 7
    %v1915 = vrot.slane %v1914, 1
    %v1917 = vshrl.u32 %v1053, 16
    %v1919 = vrot.slane %v1917, 7
    %v1920 = vrot.slane %v1919, 1
    %v1922 = vshrl.u32 %v1077, 16
    %v1924 = vrot.slane %v1922, 7
    %v1925 = vrot.slane %v1924, 1
    %v1927 = vshrl.u32 %v1091, 16
    %v1929 = vrot.slane %v1927, 7
    %v1930 = vrot.slane %v1929, 1
    %v1932 = vshrl.u32 %v1099, 16
    %v1934 = vrot.slane %v1932, 7
    %v1935 = vrot.slane %v1934, 1
    %v1937 = vshrl.u32 %v1101, 16
    %v1939 = vrot.slane %v1937, 7
    %v1940 = vrot.slane %v1939, 1
    %v1942 = vshrl.u32 %v1084, 16
    %v1944 = vrot.slane %v1942, 7
    %v1945 = vrot.slane %v1944, 1
    %v1947 = vshrl.u32 %v1098, 16
    %v1949 = vrot.slane %v1947, 7
    %v1950 = vrot.slane %v1949, 1
    %v1952 = vshrl.u32 %v1100, 16
    %v1954 = vrot.slane %v1952, 7
    %v1955 = vrot.slane %v1954, 1
    %v1957 = vshrl.u32 %v1102, 16
    %v1959 = vrot.slane %v1957, 7
    %v1960 = vrot.slane %v1959, 1
    %v1962 = vshrl.u32 %v1126, 16
    %v1964 = vrot.slane %v1962, 7
    %v1965 = vrot.slane %v1964, 1
    %v1967 = vshrl.u32 %v1140, 16
    %v1969 = vrot.slane %v1967, 7
    %v1970 = vrot.slane %v1969, 1
    %v1972 = vshrl.u32 %v1148, 16
    %v1974 = vrot.slane %v1972, 7
    %v1975 = vrot.slane %v1974, 1
    %v1977 = vshrl.u32 %v1150, 16
    %v1979 = vrot.slane %v1977, 7
    %v1980 = vrot.slane %v1979, 1
    %v1982 = vshrl.u32 %v1133, 16
    %v1984 = vrot.slane %v1982, 7
    %v1985 = vrot.slane %v1984, 1
    %v1987 = vshrl.u32 %v1147, 16
    %v1989 = vrot.slane %v1987, 7
    %v1990 = vrot.slane %v1989, 1
    %v1992 = vshrl.u32 %v1149, 16
    %v1994 = vrot.slane %v1992, 7
    %v1995 = vrot.slane %v1994, 1
    %v1997 = vshrl.u32 %v1151, 16
    %v1999 = vrot.slane %v1997, 7
    %v2000 = vrot.slane %v1999, 1
    %v2002 = vshrl.u32 %v1175, 16
    %v2004 = vrot.slane %v2002, 7
    %v2005 = vrot.slane %v2004, 1
    %v2007 = vshrl.u32 %v1189, 16
    %v2009 = vrot.slane %v2007, 7
    %v2010 = vrot.slane %v2009, 1
    %v2012 = vshrl.u32 %v1197, 16
    %v2014 = vrot.slane %v2012, 7
    %v2015 = vrot.slane %v2014, 1
    %v2017 = vshrl.u32 %v1199, 16
    %v2019 = vrot.slane %v2017, 7
    %v2020 = vrot.slane %v2019, 1
    %v2022 = vshrl.u32 %v1182, 16
    %v2024 = vrot.slane %v2022, 7
    %v2025 = vrot.slane %v2024, 1
    %v2027 = vshrl.u32 %v1196, 16
    %v2029 = vrot.slane %v2027, 7
    %v2030 = vrot.slane %v2029, 1
    %v2032 = vshrl.u32 %v1198, 16
    %v2034 = vrot.slane %v2032, 7
    %v2035 = vrot.slane %v2034, 1
    %v2037 = vshrl.u32 %v1200, 16
    %v2039 = vrot.slane %v2037, 7
    %v2040 = vrot.slane %v2039, 1
    %v2042 = vshrl.u32 %v1224, 16
    %v2044 = vrot.slane %v2042, 7
    %v2045 = vrot.slane %v2044, 1
    %v2047 = vshrl.u32 %v1238, 16
    %v2049 = vrot.slane %v2047, 7
    %v2050 = vrot.slane %v2049, 1
    %v2052 = vshrl.u32 %v1246, 16
    %v2054 = vrot.slane %v2052, 7
    %v2055 = vrot.slane %v2054, 1
    %v2057 = vshrl.u32 %v1248, 16
    %v2059 = vrot.slane %v2057, 7
    %v2060 = vrot.slane %v2059, 1
    %v2062 = vshrl.u32 %v1231, 16
    %v2064 = vrot.slane %v2062, 7
    %v2065 = vrot.slane %v2064, 1
    %v2067 = vshrl.u32 %v1245, 16
    %v2069 = vrot.slane %v2067, 7
    %v2070 = vrot.slane %v2069, 1
    %v2072 = vshrl.u32 %v1247, 16
    %v2074 = vrot.slane %v2072, 7
    %v2075 = vrot.slane %v2074, 1
    %v2077 = vshrl.u32 %v1249, 16
    %v2079 = vrot.slane %v2077, 7
    %v2080 = vrot.slane %v2079, 1
    %v2082 = vshrl.u32 %v1273, 16
    %v2084 = vrot.slane %v2082, 7
    %v2085 = vrot.slane %v2084, 1
    %v2087 = vshrl.u32 %v1287, 16
    %v2089 = vrot.slane %v2087, 7
    %v2090 = vrot.slane %v2089, 1
    %v2092 = vshrl.u32 %v1295, 16
    %v2094 = vrot.slane %v2092, 7
    %v2095 = vrot.slane %v2094, 1
    %v2097 = vshrl.u32 %v1297, 16
    %v2099 = vrot.slane %v2097, 7
    %v2100 = vrot.slane %v2099, 1
    %v2102 = vshrl.u32 %v1280, 16
    %v2104 = vrot.slane %v2102, 7
    %v2105 = vrot.slane %v2104, 1
    %v2107 = vshrl.u32 %v1294, 16
    %v2109 = vrot.slane %v2107, 7
    %v2110 = vrot.slane %v2109, 1
    %v2112 = vshrl.u32 %v1296, 16
    %v2114 = vrot.slane %v2112, 7
    %v2115 = vrot.slane %v2114, 1
    %v2117 = vshrl.u32 %v1298, 16
    %v2119 = vrot.slane %v2117, 7
    %v2120 = vrot.slane %v2119, 1
    %v2122 = vshrl.u32 %v1322, 16
    %v2124 = vrot.slane %v2122, 7
    %v2125 = vrot.slane %v2124, 1
    %v2127 = vshrl.u32 %v1336, 16
    %v2129 = vrot.slane %v2127, 7
    %v2130 = vrot.slane %v2129, 1
    %v2132 = vshrl.u32 %v1344, 16
    %v2134 = vrot.slane %v2132, 7
    %v2135 = vrot.slane %v2134, 1
    %v2137 = vshrl.u32 %v1346, 16
    %v2139 = vrot.slane %v2137, 7
    %v2140 = vrot.slane %v2139, 1
    %v2142 = vshrl.u32 %v1329, 16
    %v2144 = vrot.slane %v2142, 7
    %v2145 = vrot.slane %v2144, 1
    %v2147 = vshrl.u32 %v1343, 16
    %v2149 = vrot.slane %v2147, 7
    %v2150 = vrot.slane %v2149, 1
    %v2152 = vshrl.u32 %v1345, 16
    %v2154 = vrot.slane %v2152, 7
    %v2155 = vrot.slane %v2154, 1
    %v2157 = vshrl.u32 %v1347, 16
    %v2159 = vrot.slane %v2157, 7
    %v2160 = vrot.slane %v2159, 1
    %v2162 = vshrl.u32 %v1371, 16
    %v2164 = vrot.slane %v2162, 7
    %v2165 = vrot.slane %v2164, 1
    %v2167 = vshrl.u32 %v1385, 16
    %v2169 = vrot.slane %v2167, 7
    %v2170 = vrot.slane %v2169, 1
    %v2172 = vshrl.u32 %v1393, 16
    %v2174 = vrot.slane %v2172, 7
    %v2175 = vrot.slane %v2174, 1
    %v2177 = vshrl.u32 %v1395, 16
    %v2179 = vrot.slane %v2177, 7
    %v2180 = vrot.slane %v2179, 1
    %v2182 = vshrl.u32 %v1378, 16
    %v2184 = vrot.slane %v2182, 7
    %v2185 = vrot.slane %v2184, 1
    %v2187 = vshrl.u32 %v1392, 16
    %v2189 = vrot.slane %v2187, 7
    %v2190 = vrot.slane %v2189, 1
    %v2192 = vshrl.u32 %v1394, 16
    %v2194 = vrot.slane %v2192, 7
    %v2195 = vrot.slane %v2194, 1
    %v2197 = vshrl.u32 %v1396, 16
    %v2199 = vrot.slane %v2197, 7
    %v2200 = vrot.slane %v2199, 1
    %v2202 = vshrl.u32 %v1420, 16
    %v2204 = vrot.slane %v2202, 7
    %v2205 = vrot.slane %v2204, 1
    %v2207 = vshrl.u32 %v1434, 16
    %v2209 = vrot.slane %v2207, 7
    %v2210 = vrot.slane %v2209, 1
    %v2212 = vshrl.u32 %v1442, 16
    %v2214 = vrot.slane %v2212, 7
    %v2215 = vrot.slane %v2214, 1
    %v2217 = vshrl.u32 %v1444, 16
    %v2219 = vrot.slane %v2217, 7
    %v2220 = vrot.slane %v2219, 1
    %v2222 = vshrl.u32 %v1427, 16
    %v2224 = vrot.slane %v2222, 7
    %v2225 = vrot.slane %v2224, 1
    %v2227 = vshrl.u32 %v1441, 16
    %v2229 = vrot.slane %v2227, 7
    %v2230 = vrot.slane %v2229, 1
    %v2232 = vshrl.u32 %v1443, 16
    %v2234 = vrot.slane %v2232, 7
    %v2235 = vrot.slane %v2234, 1
    %v2237 = vshrl.u32 %v1445, 16
    %v2239 = vrot.slane %v2237, 7
    %v2240 = vrot.slane %v2239, 1
    %v2242 = vshrl.u32 %v1469, 16
    %v2244 = vrot.slane %v2242, 7
    %v2245 = vrot.slane %v2244, 1
    %v2247 = vshrl.u32 %v1483, 16
    %v2249 = vrot.slane %v2247, 7
    %v2250 = vrot.slane %v2249, 1
    %v2252 = vshrl.u32 %v1491, 16
    %v2254 = vrot.slane %v2252, 7
    %v2255 = vrot.slane %v2254, 1
    %v2257 = vshrl.u32 %v1493, 16
    %v2259 = vrot.slane %v2257, 7
    %v2260 = vrot.slane %v2259, 1
    %v2262 = vshrl.u32 %v1476, 16
    %v2264 = vrot.slane %v2262, 7
    %v2265 = vrot.slane %v2264, 1
    %v2267 = vshrl.u32 %v1490, 16
    %v2269 = vrot.slane %v2267, 7
    %v2270 = vrot.slane %v2269, 1
    %v2272 = vshrl.u32 %v1492, 16
    %v2274 = vrot.slane %v2272, 7
    %v2275 = vrot.slane %v2274, 1
    %v2277 = vshrl.u32 %v1494, 16
    %v2279 = vrot.slane %v2277, 7
    %v2280 = vrot.slane %v2279, 1
    %v2282 = vshrl.u32 %v1518, 16
    %v2284 = vrot.slane %v2282, 7
    %v2285 = vrot.slane %v2284, 1
    %v2287 = vshrl.u32 %v1532, 16
    %v2289 = vrot.slane %v2287, 7
    %v2290 = vrot.slane %v2289, 1
    %v2292 = vshrl.u32 %v1540, 16
    %v2294 = vrot.slane %v2292, 7
    %v2295 = vrot.slane %v2294, 1
    %v2297 = vshrl.u32 %v1542, 16
    %v2299 = vrot.slane %v2297, 7
    %v2300 = vrot.slane %v2299, 1
    %v2302 = vshrl.u32 %v1525, 16
    %v2304 = vrot.slane %v2302, 7
    %v2305 = vrot.slane %v2304, 1
    %v2307 = vshrl.u32 %v1539, 16
    %v2309 = vrot.slane %v2307, 7
    %v2310 = vrot.slane %v2309, 1
    %v2312 = vshrl.u32 %v1541, 16
    %v2314 = vrot.slane %v2312, 7
    %v2315 = vrot.slane %v2314, 1
    %v2317 = vshrl.u32 %v1543, 16
    %v2319 = vrot.slane %v2317, 7
    %v2320 = vrot.slane %v2319, 1
    %v2322 = vshrl.u32 %v1567, 16
    %v2324 = vrot.slane %v2322, 7
    %v2325 = vrot.slane %v2324, 1
    %v2327 = vshrl.u32 %v1581, 16
    %v2329 = vrot.slane %v2327, 7
    %v2330 = vrot.slane %v2329, 1
    %v2332 = vshrl.u32 %v1589, 16
    %v2334 = vrot.slane %v2332, 7
    %v2335 = vrot.slane %v2334, 1
    %v2337 = vshrl.u32 %v1591, 16
    %v2339 = vrot.slane %v2337, 7
    %v2340 = vrot.slane %v2339, 1
    %v2342 = vshrl.u32 %v1574, 16
    %v2344 = vrot.slane %v2342, 7
    %v2345 = vrot.slane %v2344, 1
    %v2347 = vshrl.u32 %v1588, 16
    %v2349 = vrot.slane %v2347, 7
    %v2350 = vrot.slane %v2349, 1
    %v2352 = vshrl.u32 %v1590, 16
    %v2354 = vrot.slane %v2352, 7
    %v2355 = vrot.slane %v2354, 1
    %v2357 = vshrl.u32 %v1592, 16
    %v2359 = vrot.slane %v2357, 7
    %v2360 = vrot.slane %v2359, 1
    %v2489 = vmax.bf16 %v832, %v1725
    %v2490 = vmax.bf16 %v846, %v1730
    %v2491 = vmax.bf16 %v854, %v1735
    %v2492 = vmax.bf16 %v856, %v1740
    %v2493 = vmax.bf16 %v839, %v1745
    %v2494 = vmax.bf16 %v853, %v1750
    %v2495 = vmax.bf16 %v855, %v1755
    %v2496 = vmax.bf16 %v857, %v1760
    %v2497 = vmax.bf16 %v881, %v1765
    %v2498 = vmax.bf16 %v895, %v1770
    %v2499 = vmax.bf16 %v903, %v1775
    %v2500 = vmax.bf16 %v905, %v1780
    %v2501 = vmax.bf16 %v888, %v1785
    %v2502 = vmax.bf16 %v902, %v1790
    %v2503 = vmax.bf16 %v904, %v1795
    %v2504 = vmax.bf16 %v906, %v1800
    %v2505 = vmax.bf16 %v930, %v1805
    %v2506 = vmax.bf16 %v944, %v1810
    %v2507 = vmax.bf16 %v952, %v1815
    %v2508 = vmax.bf16 %v954, %v1820
    %v2509 = vmax.bf16 %v937, %v1825
    %v2510 = vmax.bf16 %v951, %v1830
    %v2511 = vmax.bf16 %v953, %v1835
    %v2512 = vmax.bf16 %v955, %v1840
    %v2513 = vmax.bf16 %v979, %v1845
    %v2514 = vmax.bf16 %v993, %v1850
    %v2515 = vmax.bf16 %v1001, %v1855
    %v2516 = vmax.bf16 %v1003, %v1860
    %v2517 = vmax.bf16 %v986, %v1865
    %v2518 = vmax.bf16 %v1000, %v1870
    %v2519 = vmax.bf16 %v1002, %v1875
    %v2520 = vmax.bf16 %v1004, %v1880
    %v2521 = vmax.bf16 %v1028, %v1885
    %v2522 = vmax.bf16 %v1042, %v1890
    %v2523 = vmax.bf16 %v1050, %v1895
    %v2524 = vmax.bf16 %v1052, %v1900
    %v2525 = vmax.bf16 %v1035, %v1905
    %v2526 = vmax.bf16 %v1049, %v1910
    %v2527 = vmax.bf16 %v1051, %v1915
    %v2528 = vmax.bf16 %v1053, %v1920
    %v2529 = vmax.bf16 %v1077, %v1925
    %v2530 = vmax.bf16 %v1091, %v1930
    %v2531 = vmax.bf16 %v1099, %v1935
    %v2532 = vmax.bf16 %v1101, %v1940
    %v2533 = vmax.bf16 %v1084, %v1945
    %v2534 = vmax.bf16 %v1098, %v1950
    %v2535 = vmax.bf16 %v1100, %v1955
    %v2536 = vmax.bf16 %v1102, %v1960
    %v2537 = vmax.bf16 %v1126, %v1965
    %v2538 = vmax.bf16 %v1140, %v1970
    %v2539 = vmax.bf16 %v1148, %v1975
    %v2540 = vmax.bf16 %v1150, %v1980
    %v2541 = vmax.bf16 %v1133, %v1985
    %v2542 = vmax.bf16 %v1147, %v1990
    %v2543 = vmax.bf16 %v1149, %v1995
    %v2544 = vmax.bf16 %v1151, %v2000
    %v2545 = vmax.bf16 %v1175, %v2005
    %v2546 = vmax.bf16 %v1189, %v2010
    %v2547 = vmax.bf16 %v1197, %v2015
    %v2548 = vmax.bf16 %v1199, %v2020
    %v2549 = vmax.bf16 %v1182, %v2025
    %v2550 = vmax.bf16 %v1196, %v2030
    %v2551 = vmax.bf16 %v1198, %v2035
    %v2552 = vmax.bf16 %v1200, %v2040
    %v2553 = vmax.bf16 %v1224, %v2045
    %v2554 = vmax.bf16 %v1238, %v2050
    %v2555 = vmax.bf16 %v1246, %v2055
    %v2556 = vmax.bf16 %v1248, %v2060
    %v2557 = vmax.bf16 %v1231, %v2065
    %v2558 = vmax.bf16 %v1245, %v2070
    %v2559 = vmax.bf16 %v1247, %v2075
    %v2560 = vmax.bf16 %v1249, %v2080
    %v2561 = vmax.bf16 %v1273, %v2085
    %v2562 = vmax.bf16 %v1287, %v2090
    %v2563 = vmax.bf16 %v1295, %v2095
    %v2564 = vmax.bf16 %v1297, %v2100
    %v2565 = vmax.bf16 %v1280, %v2105
    %v2566 = vmax.bf16 %v1294, %v2110
    %v2567 = vmax.bf16 %v1296, %v2115
    %v2568 = vmax.bf16 %v1298, %v2120
    %v2569 = vmax.bf16 %v1322, %v2125
    %v2570 = vmax.bf16 %v1336, %v2130
    %v2571 = vmax.bf16 %v1344, %v2135
    %v2572 = vmax.bf16 %v1346, %v2140
    %v2573 = vmax.bf16 %v1329, %v2145
    %v2574 = vmax.bf16 %v1343, %v2150
    %v2575 = vmax.bf16 %v1345, %v2155
    %v2576 = vmax.bf16 %v1347, %v2160
    %v2577 = vmax.bf16 %v1371, %v2165
    %v2578 = vmax.bf16 %v1385, %v2170
    %v2579 = vmax.bf16 %v1393, %v2175
    %v2580 = vmax.bf16 %v1395, %v2180
    %v2581 = vmax.bf16 %v1378, %v2185
    %v2582 = vmax.bf16 %v1392, %v2190
    %v2583 = vmax.bf16 %v1394, %v2195
    %v2584 = vmax.bf16 %v1396, %v2200
    %v2585 = vmax.bf16 %v1420, %v2205
    %v2586 = vmax.bf16 %v1434, %v2210
    %v2587 = vmax.bf16 %v1442, %v2215
    %v2588 = vmax.bf16 %v1444, %v2220
    %v2589 = vmax.bf16 %v1427, %v2225
    %v2590 = vmax.bf16 %v1441, %v2230
    %v2591 = vmax.bf16 %v1443, %v2235
    %v2592 = vmax.bf16 %v1445, %v2240
    %v2593 = vmax.bf16 %v1469, %v2245
    %v2594 = vmax.bf16 %v1483, %v2250
    %v2595 = vmax.bf16 %v1491, %v2255
    %v2596 = vmax.bf16 %v1493, %v2260
    %v2597 = vmax.bf16 %v1476, %v2265
    %v2598 = vmax.bf16 %v1490, %v2270
    %v2599 = vmax.bf16 %v1492, %v2275
    %v2600 = vmax.bf16 %v1494, %v2280
    %v2601 = vmax.bf16 %v1518, %v2285
    %v2602 = vmax.bf16 %v1532, %v2290
    %v2603 = vmax.bf16 %v1540, %v2295
    %v2604 = vmax.bf16 %v1542, %v2300
    %v2605 = vmax.bf16 %v1525, %v2305
    %v2606 = vmax.bf16 %v1539, %v2310
    %v2607 = vmax.bf16 %v1541, %v2315
    %v2608 = vmax.bf16 %v1543, %v2320
    %v2609 = vmax.bf16 %v1567, %v2325
    %v2610 = vmax.bf16 %v1581, %v2330
    %v2611 = vmax.bf16 %v1589, %v2335
    %v2612 = vmax.bf16 %v1591, %v2340
    %v2613 = vmax.bf16 %v1574, %v2345
    %v2614 = vmax.bf16 %v1588, %v2350
    %v2615 = vmax.bf16 %v1590, %v2355
    %v2616 = vmax.bf16 %v1592, %v2360
    %vm2617 = vcmask 261120
    %2618 = vst.msk [vmem:[#allocation2] sm:$0xff] %vm2617, 0
    %2619 = vst.msk [vmem:[#allocation2 + $0x50] sm:$0xff] %vm2617, 0
    %s2620 = scalar_lea.vmem [#allocation2], 72
    %2621 = vst.msk [vmem:[%s2620] sm:$0xff] %vm2617, 0
    %2622 = vst.msk [vmem:[%s2620 + $0x50] sm:$0xff] %vm2617, 0
    %s2623 = scalar_lea.vmem [#allocation2], 8
    %vm2624 = vcmask 253952
    %vm2625 = vsmask.f32 256
    %vm2626 = vmand %vm2624, %vm2625
    %v2627 = vld [vmem:[%s2623] sm:$0x1]
    %v2628 = vsel %vm2626, 0, %v2627
    %2629 = vst [vmem:[%s2623] sm:$0x1] %v2628
    %v2630 = vld [vmem:[%s2623 + $0x8] sm:$0x1]
    %v2631 = vsel %vm2626, 0, %v2630
    %2632 = vst [vmem:[%s2623 + $0x8] sm:$0x1] %v2631
    %v2633 = vld [vmem:[%s2623 + $0x10] sm:$0x1]
    %v2634 = vsel %vm2626, 0, %v2633
    %2635 = vst [vmem:[%s2623 + $0x10] sm:$0x1] %v2634
    %v2636 = vld [vmem:[%s2623 + $0x18] sm:$0x1]
    %v2637 = vsel %vm2626, 0, %v2636
    %2638 = vst [vmem:[%s2623 + $0x18] sm:$0x1] %v2637
    %v2639 = vld [vmem:[%s2623 + $0x20] sm:$0x1]
    %v2640 = vsel %vm2626, 0, %v2639
    %2641 = vst [vmem:[%s2623 + $0x20] sm:$0x1] %v2640
    %v2642 = vld [vmem:[%s2623 + $0x28] sm:$0x1]
    %v2643 = vsel %vm2626, 0, %v2642
    %2644 = vst [vmem:[%s2623 + $0x28] sm:$0x1] %v2643
    %v2645 = vld [vmem:[%s2623 + $0x30] sm:$0x1]
    %v2646 = vsel %vm2626, 0, %v2645
    %2647 = vst [vmem:[%s2623 + $0x30] sm:$0x1] %v2646
    %v2648 = vld [vmem:[%s2623 + $0x38] sm:$0x1]
    %v2649 = vsel %vm2626, 0, %v2648
    %2650 = vst [vmem:[%s2623 + $0x38] sm:$0x1] %v2649
    %v2651 = vld [vmem:[%s2623 + $0x50] sm:$0x1]
    %v2652 = vsel %vm2626, 0, %v2651
    %2653 = vst [vmem:[%s2623 + $0x50] sm:$0x1] %v2652
    %v2654 = vld [vmem:[%s2623 + $0x58] sm:$0x1]
    %v2655 = vsel %vm2626, 0, %v2654
    %2656 = vst [vmem:[%s2623 + $0x58] sm:$0x1] %v2655
    %v2657 = vld [vmem:[%s2623 + $0x60] sm:$0x1]
    %v2658 = vsel %vm2626, 0, %v2657
    %2659 = vst [vmem:[%s2623 + $0x60] sm:$0x1] %v2658
    %v2660 = vld [vmem:[%s2623 + $0x68] sm:$0x1]
    %v2661 = vsel %vm2626, 0, %v2660
    %2662 = vst [vmem:[%s2623 + $0x68] sm:$0x1] %v2661
    %v2663 = vld [vmem:[%s2623 + $0x70] sm:$0x1]
    %v2664 = vsel %vm2626, 0, %v2663
    %2665 = vst [vmem:[%s2623 + $0x70] sm:$0x1] %v2664
    %v2666 = vld [vmem:[%s2623 + $0x78] sm:$0x1]
    %v2667 = vsel %vm2626, 0, %v2666
    %2668 = vst [vmem:[%s2623 + $0x78] sm:$0x1] %v2667
    %v2669 = vld [vmem:[%s2623 + $0x80] sm:$0x1]
    %v2670 = vsel %vm2626, 0, %v2669
    %2671 = vst [vmem:[%s2623 + $0x80] sm:$0x1] %v2670
    %v2672 = vld [vmem:[%s2623 + $0x88] sm:$0x1]
    %v2673 = vsel %vm2626, 0, %v2672
    %2674 = vst [vmem:[%s2623 + $0x88] sm:$0x1] %v2673
    %vm2675 = vcmask 258052
    %vm2676 = vsmask.f32 7954
    %vm2677 = vmand %vm2675, %vm2676
    %v2678 = vld [vmem:[%s2623] sm:$0x10]
    %v2679 = vsel %vm2677, 0, %v2678
    %2680 = vst [vmem:[%s2623] sm:$0x10] %v2679
    %v2681 = vld [vmem:[%s2623 + $0x8] sm:$0x10]
    %v2682 = vsel %vm2677, 0, %v2681
    %2683 = vst [vmem:[%s2623 + $0x8] sm:$0x10] %v2682
    %v2684 = vld [vmem:[%s2623 + $0x10] sm:$0x10]
    %v2685 = vsel %vm2677, 0, %v2684
    %2686 = vst [vmem:[%s2623 + $0x10] sm:$0x10] %v2685
    %v2687 = vld [vmem:[%s2623 + $0x18] sm:$0x10]
    %v2688 = vsel %vm2677, 0, %v2687
    %2689 = vst [vmem:[%s2623 + $0x18] sm:$0x10] %v2688
    %v2690 = vld [vmem:[%s2623 + $0x20] sm:$0x10]
    %v2691 = vsel %vm2677, 0, %v2690
    %2692 = vst [vmem:[%s2623 + $0x20] sm:$0x10] %v2691
    %v2693 = vld [vmem:[%s2623 + $0x28] sm:$0x10]
    %v2694 = vsel %vm2677, 0, %v2693
    %2695 = vst [vmem:[%s2623 + $0x28] sm:$0x10] %v2694
    %v2696 = vld [vmem:[%s2623 + $0x30] sm:$0x10]
    %v2697 = vsel %vm2677, 0, %v2696
    %2698 = vst [vmem:[%s2623 + $0x30] sm:$0x10] %v2697
    %v2699 = vld [vmem:[%s2623 + $0x38] sm:$0x10]
    %v2700 = vsel %vm2677, 0, %v2699
    %2701 = vst [vmem:[%s2623 + $0x38] sm:$0x10] %v2700
    %v2702 = vld [vmem:[%s2623 + $0x50] sm:$0x10]
    %v2703 = vsel %vm2677, 0, %v2702
    %2704 = vst [vmem:[%s2623 + $0x50] sm:$0x10] %v2703
    %v2705 = vld [vmem:[%s2623 + $0x58] sm:$0x10]
    %v2706 = vsel %vm2677, 0, %v2705
    %2707 = vst [vmem:[%s2623 + $0x58] sm:$0x10] %v2706
    %v2708 = vld [vmem:[%s2623 + $0x60] sm:$0x10]
    %v2709 = vsel %vm2677, 0, %v2708
    %2710 = vst [vmem:[%s2623 + $0x60] sm:$0x10] %v2709
    %v2711 = vld [vmem:[%s2623 + $0x68] sm:$0x10]
    %v2712 = vsel %vm2677, 0, %v2711
    %2713 = vst [vmem:[%s2623 + $0x68] sm:$0x10] %v2712
    %v2714 = vld [vmem:[%s2623 + $0x70] sm:$0x10]
    %v2715 = vsel %vm2677, 0, %v2714
    %2716 = vst [vmem:[%s2623 + $0x70] sm:$0x10] %v2715
    %v2717 = vld [vmem:[%s2623 + $0x78] sm:$0x10]
    %v2718 = vsel %vm2677, 0, %v2717
    %2719 = vst [vmem:[%s2623 + $0x78] sm:$0x10] %v2718
    %v2720 = vld [vmem:[%s2623 + $0x80] sm:$0x10]
    %v2721 = vsel %vm2677, 0, %v2720
    %2722 = vst [vmem:[%s2623 + $0x80] sm:$0x10] %v2721
    %v2723 = vld [vmem:[%s2623 + $0x88] sm:$0x10]
    %v2724 = vsel %vm2677, 0, %v2723
    %2725 = vst [vmem:[%s2623 + $0x88] sm:$0x10] %v2724
    %v2855 = vunpack.c.l.s4 1966171168
    %v2856 = vunpack.c.0.s8 %v2855
    %v2857 = vlaneseq
    %v2858 = vshrl.u32 %v2857, 7
    %v2859 = vsub.s32 %v2856, %v2858
    %v2860 = vrot.slane %v2489, %v2859
    %v2862 = vunpack.c.l.s4 1966171168
    %v2863 = vunpack.c.0.s8 %v2862
    %v2864 = vlaneseq
    %v2865 = vshrl.u32 %v2864, 7
    %v2866 = vsub.s32 %v2863, %v2865
    %v2867 = vrot.slane %v2860, %v2866
    %v2869 = vunpack.c.l.s4 1966171168
    %v2870 = vunpack.c.0.s8 %v2869
    %v2871 = vlaneseq
    %v2872 = vshrl.u32 %v2871, 7
    %v2873 = vsub.s32 %v2870, %v2872
    %v2874 = vrot.slane %v2490, %v2873
    %v2876 = vunpack.c.l.s4 1966171168
    %v2877 = vunpack.c.0.s8 %v2876
    %v2878 = vlaneseq
    %v2879 = vshrl.u32 %v2878, 7
    %v2880 = vsub.s32 %v2877, %v2879
    %v2881 = vrot.slane %v2874, %v2880
    %v2883 = vunpack.c.l.s4 1966171168
    %v2884 = vunpack.c.0.s8 %v2883
    %v2885 = vlaneseq
    %v2886 = vshrl.u32 %v2885, 7
    %v2887 = vsub.s32 %v2884, %v2886
    %v2888 = vrot.slane %v2491, %v2887
    %v2890 = vunpack.c.l.s4 1966171168
    %v2891 = vunpack.c.0.s8 %v2890
    %v2892 = vlaneseq
    %v2893 = vshrl.u32 %v2892, 7
    %v2894 = vsub.s32 %v2891, %v2893
    %v2895 = vrot.slane %v2888, %v2894
    %v2897 = vunpack.c.l.s4 1966171168
    %v2898 = vunpack.c.0.s8 %v2897
    %v2899 = vlaneseq
    %v2900 = vshrl.u32 %v2899, 7
    %v2901 = vsub.s32 %v2898, %v2900
    %v2902 = vrot.slane %v2492, %v2901
    %v2904 = vunpack.c.l.s4 1966171168
    %v2905 = vunpack.c.0.s8 %v2904
    %v2906 = vlaneseq
    %v2907 = vshrl.u32 %v2906, 7
    %v2908 = vsub.s32 %v2905, %v2907
    %v2909 = vrot.slane %v2902, %v2908
    %v2911 = vunpack.c.l.s4 1966171168
    %v2912 = vunpack.c.0.s8 %v2911
    %v2913 = vlaneseq
    %v2914 = vshrl.u32 %v2913, 7
    %v2915 = vsub.s32 %v2912, %v2914
    %v2916 = vrot.slane %v2493, %v2915
    %v2918 = vunpack.c.l.s4 1966171168
    %v2919 = vunpack.c.0.s8 %v2918
    %v2920 = vlaneseq
    %v2921 = vshrl.u32 %v2920, 7
    %v2922 = vsub.s32 %v2919, %v2921
    %v2923 = vrot.slane %v2916, %v2922
    %v2925 = vunpack.c.l.s4 1966171168
    %v2926 = vunpack.c.0.s8 %v2925
    %v2927 = vlaneseq
    %v2928 = vshrl.u32 %v2927, 7
    %v2929 = vsub.s32 %v2926, %v2928
    %v2930 = vrot.slane %v2494, %v2929
    %v2932 = vunpack.c.l.s4 1966171168
    %v2933 = vunpack.c.0.s8 %v2932
    %v2934 = vlaneseq
    %v2935 = vshrl.u32 %v2934, 7
    %v2936 = vsub.s32 %v2933, %v2935
    %v2937 = vrot.slane %v2930, %v2936
    %v2939 = vunpack.c.l.s4 1966171168
    %v2940 = vunpack.c.0.s8 %v2939
    %v2941 = vlaneseq
    %v2942 = vshrl.u32 %v2941, 7
    %v2943 = vsub.s32 %v2940, %v2942
    %v2944 = vrot.slane %v2495, %v2943
    %v2946 = vunpack.c.l.s4 1966171168
    %v2947 = vunpack.c.0.s8 %v2946
    %v2948 = vlaneseq
    %v2949 = vshrl.u32 %v2948, 7
    %v2950 = vsub.s32 %v2947, %v2949
    %v2951 = vrot.slane %v2944, %v2950
    %v2953 = vunpack.c.l.s4 1966171168
    %v2954 = vunpack.c.0.s8 %v2953
    %v2955 = vlaneseq
    %v2956 = vshrl.u32 %v2955, 7
    %v2957 = vsub.s32 %v2954, %v2956
    %v2958 = vrot.slane %v2496, %v2957
    %v2960 = vunpack.c.l.s4 1966171168
    %v2961 = vunpack.c.0.s8 %v2960
    %v2962 = vlaneseq
    %v2963 = vshrl.u32 %v2962, 7
    %v2964 = vsub.s32 %v2961, %v2963
    %v2965 = vrot.slane %v2958, %v2964
    %v2967 = vunpack.c.l.s4 1966171168
    %v2968 = vunpack.c.0.s8 %v2967
    %v2969 = vlaneseq
    %v2970 = vshrl.u32 %v2969, 7
    %v2971 = vsub.s32 %v2968, %v2970
    %v2972 = vrot.slane %v2497, %v2971
    %v2974 = vunpack.c.l.s4 1966171168
    %v2975 = vunpack.c.0.s8 %v2974
    %v2976 = vlaneseq
    %v2977 = vshrl.u32 %v2976, 7
    %v2978 = vsub.s32 %v2975, %v2977
    %v2979 = vrot.slane %v2972, %v2978
    %v2981 = vunpack.c.l.s4 1966171168
    %v2982 = vunpack.c.0.s8 %v2981
    %v2983 = vlaneseq
    %v2984 = vshrl.u32 %v2983, 7
    %v2985 = vsub.s32 %v2982, %v2984
    %v2986 = vrot.slane %v2498, %v2985
    %v2988 = vunpack.c.l.s4 1966171168
    %v2989 = vunpack.c.0.s8 %v2988
    %v2990 = vlaneseq
    %v2991 = vshrl.u32 %v2990, 7
    %v2992 = vsub.s32 %v2989, %v2991
    %v2993 = vrot.slane %v2986, %v2992
    %v2995 = vunpack.c.l.s4 1966171168
    %v2996 = vunpack.c.0.s8 %v2995
    %v2997 = vlaneseq
    %v2998 = vshrl.u32 %v2997, 7
    %v2999 = vsub.s32 %v2996, %v2998
    %v3000 = vrot.slane %v2499, %v2999
    %v3002 = vunpack.c.l.s4 1966171168
    %v3003 = vunpack.c.0.s8 %v3002
    %v3004 = vlaneseq
    %v3005 = vshrl.u32 %v3004, 7
    %v3006 = vsub.s32 %v3003, %v3005
    %v3007 = vrot.slane %v3000, %v3006
    %v3009 = vunpack.c.l.s4 1966171168
    %v3010 = vunpack.c.0.s8 %v3009
    %v3011 = vlaneseq
    %v3012 = vshrl.u32 %v3011, 7
    %v3013 = vsub.s32 %v3010, %v3012
    %v3014 = vrot.slane %v2500, %v3013
    %v3016 = vunpack.c.l.s4 1966171168
    %v3017 = vunpack.c.0.s8 %v3016
    %v3018 = vlaneseq
    %v3019 = vshrl.u32 %v3018, 7
    %v3020 = vsub.s32 %v3017, %v3019
    %v3021 = vrot.slane %v3014, %v3020
    %v3023 = vunpack.c.l.s4 1966171168
    %v3024 = vunpack.c.0.s8 %v3023
    %v3025 = vlaneseq
    %v3026 = vshrl.u32 %v3025, 7
    %v3027 = vsub.s32 %v3024, %v3026
    %v3028 = vrot.slane %v2501, %v3027
    %v3030 = vunpack.c.l.s4 1966171168
    %v3031 = vunpack.c.0.s8 %v3030
    %v3032 = vlaneseq
    %v3033 = vshrl.u32 %v3032, 7
    %v3034 = vsub.s32 %v3031, %v3033
    %v3035 = vrot.slane %v3028, %v3034
    %v3037 = vunpack.c.l.s4 1966171168
    %v3038 = vunpack.c.0.s8 %v3037
    %v3039 = vlaneseq
    %v3040 = vshrl.u32 %v3039, 7
    %v3041 = vsub.s32 %v3038, %v3040
    %v3042 = vrot.slane %v2502, %v3041
    %v3044 = vunpack.c.l.s4 1966171168
    %v3045 = vunpack.c.0.s8 %v3044
    %v3046 = vlaneseq
    %v3047 = vshrl.u32 %v3046, 7
    %v3048 = vsub.s32 %v3045, %v3047
    %v3049 = vrot.slane %v3042, %v3048
    %v3051 = vunpack.c.l.s4 1966171168
    %v3052 = vunpack.c.0.s8 %v3051
    %v3053 = vlaneseq
    %v3054 = vshrl.u32 %v3053, 7
    %v3055 = vsub.s32 %v3052, %v3054
    %v3056 = vrot.slane %v2503, %v3055
    %v3058 = vunpack.c.l.s4 1966171168
    %v3059 = vunpack.c.0.s8 %v3058
    %v3060 = vlaneseq
    %v3061 = vshrl.u32 %v3060, 7
    %v3062 = vsub.s32 %v3059, %v3061
    %v3063 = vrot.slane %v3056, %v3062
    %v3065 = vunpack.c.l.s4 1966171168
    %v3066 = vunpack.c.0.s8 %v3065
    %v3067 = vlaneseq
    %v3068 = vshrl.u32 %v3067, 7
    %v3069 = vsub.s32 %v3066, %v3068
    %v3070 = vrot.slane %v2504, %v3069
    %v3072 = vunpack.c.l.s4 1966171168
    %v3073 = vunpack.c.0.s8 %v3072
    %v3074 = vlaneseq
    %v3075 = vshrl.u32 %v3074, 7
    %v3076 = vsub.s32 %v3073, %v3075
    %v3077 = vrot.slane %v3070, %v3076
    %v3079 = vunpack.c.l.s4 1966171168
    %v3080 = vunpack.c.0.s8 %v3079
    %v3081 = vlaneseq
    %v3082 = vshrl.u32 %v3081, 7
    %v3083 = vsub.s32 %v3080, %v3082
    %v3084 = vrot.slane %v2505, %v3083
    %v3086 = vunpack.c.l.s4 1966171168
    %v3087 = vunpack.c.0.s8 %v3086
    %v3088 = vlaneseq
    %v3089 = vshrl.u32 %v3088, 7
    %v3090 = vsub.s32 %v3087, %v3089
    %v3091 = vrot.slane %v3084, %v3090
    %v3093 = vunpack.c.l.s4 1966171168
    %v3094 = vunpack.c.0.s8 %v3093
    %v3095 = vlaneseq
    %v3096 = vshrl.u32 %v3095, 7
    %v3097 = vsub.s32 %v3094, %v3096
    %v3098 = vrot.slane %v2506, %v3097
    %v3100 = vunpack.c.l.s4 1966171168
    %v3101 = vunpack.c.0.s8 %v3100
    %v3102 = vlaneseq
    %v3103 = vshrl.u32 %v3102, 7
    %v3104 = vsub.s32 %v3101, %v3103
    %v3105 = vrot.slane %v3098, %v3104
    %v3107 = vunpack.c.l.s4 1966171168
    %v3108 = vunpack.c.0.s8 %v3107
    %v3109 = vlaneseq
    %v3110 = vshrl.u32 %v3109, 7
    %v3111 = vsub.s32 %v3108, %v3110
    %v3112 = vrot.slane %v2507, %v3111
    %v3114 = vunpack.c.l.s4 1966171168
    %v3115 = vunpack.c.0.s8 %v3114
    %v3116 = vlaneseq
    %v3117 = vshrl.u32 %v3116, 7
    %v3118 = vsub.s32 %v3115, %v3117
    %v3119 = vrot.slane %v3112, %v3118
    %v3121 = vunpack.c.l.s4 1966171168
    %v3122 = vunpack.c.0.s8 %v3121
    %v3123 = vlaneseq
    %v3124 = vshrl.u32 %v3123, 7
    %v3125 = vsub.s32 %v3122, %v3124
    %v3126 = vrot.slane %v2508, %v3125
    %v3128 = vunpack.c.l.s4 1966171168
    %v3129 = vunpack.c.0.s8 %v3128
    %v3130 = vlaneseq
    %v3131 = vshrl.u32 %v3130, 7
    %v3132 = vsub.s32 %v3129, %v3131
    %v3133 = vrot.slane %v3126, %v3132
    %v3135 = vunpack.c.l.s4 1966171168
    %v3136 = vunpack.c.0.s8 %v3135
    %v3137 = vlaneseq
    %v3138 = vshrl.u32 %v3137, 7
    %v3139 = vsub.s32 %v3136, %v3138
    %v3140 = vrot.slane %v2509, %v3139
    %v3142 = vunpack.c.l.s4 1966171168
    %v3143 = vunpack.c.0.s8 %v3142
    %v3144 = vlaneseq
    %v3145 = vshrl.u32 %v3144, 7
    %v3146 = vsub.s32 %v3143, %v3145
    %v3147 = vrot.slane %v3140, %v3146
    %v3149 = vunpack.c.l.s4 1966171168
    %v3150 = vunpack.c.0.s8 %v3149
    %v3151 = vlaneseq
    %v3152 = vshrl.u32 %v3151, 7
    %v3153 = vsub.s32 %v3150, %v3152
    %v3154 = vrot.slane %v2510, %v3153
    %v3156 = vunpack.c.l.s4 1966171168
    %v3157 = vunpack.c.0.s8 %v3156
    %v3158 = vlaneseq
    %v3159 = vshrl.u32 %v3158, 7
    %v3160 = vsub.s32 %v3157, %v3159
    %v3161 = vrot.slane %v3154, %v3160
    %v3163 = vunpack.c.l.s4 1966171168
    %v3164 = vunpack.c.0.s8 %v3163
    %v3165 = vlaneseq
    %v3166 = vshrl.u32 %v3165, 7
    %v3167 = vsub.s32 %v3164, %v3166
    %v3168 = vrot.slane %v2511, %v3167
    %v3170 = vunpack.c.l.s4 1966171168
    %v3171 = vunpack.c.0.s8 %v3170
    %v3172 = vlaneseq
    %v3173 = vshrl.u32 %v3172, 7
    %v3174 = vsub.s32 %v3171, %v3173
    %v3175 = vrot.slane %v3168, %v3174
    %v3177 = vunpack.c.l.s4 1966171168
    %v3178 = vunpack.c.0.s8 %v3177
    %v3179 = vlaneseq
    %v3180 = vshrl.u32 %v3179, 7
    %v3181 = vsub.s32 %v3178, %v3180
    %v3182 = vrot.slane %v2512, %v3181
    %v3184 = vunpack.c.l.s4 1966171168
    %v3185 = vunpack.c.0.s8 %v3184
    %v3186 = vlaneseq
    %v3187 = vshrl.u32 %v3186, 7
    %v3188 = vsub.s32 %v3185, %v3187
    %v3189 = vrot.slane %v3182, %v3188
    %v3191 = vunpack.c.l.s4 1966171168
    %v3192 = vunpack.c.0.s8 %v3191
    %v3193 = vlaneseq
    %v3194 = vshrl.u32 %v3193, 7
    %v3195 = vsub.s32 %v3192, %v3194
    %v3196 = vrot.slane %v2513, %v3195
    %v3198 = vunpack.c.l.s4 1966171168
    %v3199 = vunpack.c.0.s8 %v3198
    %v3200 = vlaneseq
    %v3201 = vshrl.u32 %v3200, 7
    %v3202 = vsub.s32 %v3199, %v3201
    %v3203 = vrot.slane %v3196, %v3202
    %v3205 = vunpack.c.l.s4 1966171168
    %v3206 = vunpack.c.0.s8 %v3205
    %v3207 = vlaneseq
    %v3208 = vshrl.u32 %v3207, 7
    %v3209 = vsub.s32 %v3206, %v3208
    %v3210 = vrot.slane %v2514, %v3209
    %v3212 = vunpack.c.l.s4 1966171168
    %v3213 = vunpack.c.0.s8 %v3212
    %v3214 = vlaneseq
    %v3215 = vshrl.u32 %v3214, 7
    %v3216 = vsub.s32 %v3213, %v3215
    %v3217 = vrot.slane %v3210, %v3216
    %v3219 = vunpack.c.l.s4 1966171168
    %v3220 = vunpack.c.0.s8 %v3219
    %v3221 = vlaneseq
    %v3222 = vshrl.u32 %v3221, 7
    %v3223 = vsub.s32 %v3220, %v3222
    %v3224 = vrot.slane %v2515, %v3223
    %v3226 = vunpack.c.l.s4 1966171168
    %v3227 = vunpack.c.0.s8 %v3226
    %v3228 = vlaneseq
    %v3229 = vshrl.u32 %v3228, 7
    %v3230 = vsub.s32 %v3227, %v3229
    %v3231 = vrot.slane %v3224, %v3230
    %v3233 = vunpack.c.l.s4 1966171168
    %v3234 = vunpack.c.0.s8 %v3233
    %v3235 = vlaneseq
    %v3236 = vshrl.u32 %v3235, 7
    %v3237 = vsub.s32 %v3234, %v3236
    %v3238 = vrot.slane %v2516, %v3237
    %v3240 = vunpack.c.l.s4 1966171168
    %v3241 = vunpack.c.0.s8 %v3240
    %v3242 = vlaneseq
    %v3243 = vshrl.u32 %v3242, 7
    %v3244 = vsub.s32 %v3241, %v3243
    %v3245 = vrot.slane %v3238, %v3244
    %v3247 = vunpack.c.l.s4 1966171168
    %v3248 = vunpack.c.0.s8 %v3247
    %v3249 = vlaneseq
    %v3250 = vshrl.u32 %v3249, 7
    %v3251 = vsub.s32 %v3248, %v3250
    %v3252 = vrot.slane %v2517, %v3251
    %v3254 = vunpack.c.l.s4 1966171168
    %v3255 = vunpack.c.0.s8 %v3254
    %v3256 = vlaneseq
    %v3257 = vshrl.u32 %v3256, 7
    %v3258 = vsub.s32 %v3255, %v3257
    %v3259 = vrot.slane %v3252, %v3258
    %v3261 = vunpack.c.l.s4 1966171168
    %v3262 = vunpack.c.0.s8 %v3261
    %v3263 = vlaneseq
    %v3264 = vshrl.u32 %v3263, 7
    %v3265 = vsub.s32 %v3262, %v3264
    %v3266 = vrot.slane %v2518, %v3265
    %v3268 = vunpack.c.l.s4 1966171168
    %v3269 = vunpack.c.0.s8 %v3268
    %v3270 = vlaneseq
    %v3271 = vshrl.u32 %v3270, 7
    %v3272 = vsub.s32 %v3269, %v3271
    %v3273 = vrot.slane %v3266, %v3272
    %v3275 = vunpack.c.l.s4 1966171168
    %v3276 = vunpack.c.0.s8 %v3275
    %v3277 = vlaneseq
    %v3278 = vshrl.u32 %v3277, 7
    %v3279 = vsub.s32 %v3276, %v3278
    %v3280 = vrot.slane %v2519, %v3279
    %v3282 = vunpack.c.l.s4 1966171168
    %v3283 = vunpack.c.0.s8 %v3282
    %v3284 = vlaneseq
    %v3285 = vshrl.u32 %v3284, 7
    %v3286 = vsub.s32 %v3283, %v3285
    %v3287 = vrot.slane %v3280, %v3286
    %v3289 = vunpack.c.l.s4 1966171168
    %v3290 = vunpack.c.0.s8 %v3289
    %v3291 = vlaneseq
    %v3292 = vshrl.u32 %v3291, 7
    %v3293 = vsub.s32 %v3290, %v3292
    %v3294 = vrot.slane %v2520, %v3293
    %v3296 = vunpack.c.l.s4 1966171168
    %v3297 = vunpack.c.0.s8 %v3296
    %v3298 = vlaneseq
    %v3299 = vshrl.u32 %v3298, 7
    %v3300 = vsub.s32 %v3297, %v3299
    %v3301 = vrot.slane %v3294, %v3300
    %v3303 = vunpack.c.l.s4 1966171168
    %v3304 = vunpack.c.0.s8 %v3303
    %v3305 = vlaneseq
    %v3306 = vshrl.u32 %v3305, 7
    %v3307 = vsub.s32 %v3304, %v3306
    %v3308 = vrot.slane %v2521, %v3307
    %v3310 = vunpack.c.l.s4 1966171168
    %v3311 = vunpack.c.0.s8 %v3310
    %v3312 = vlaneseq
    %v3313 = vshrl.u32 %v3312, 7
    %v3314 = vsub.s32 %v3311, %v3313
    %v3315 = vrot.slane %v3308, %v3314
    %v3317 = vunpack.c.l.s4 1966171168
    %v3318 = vunpack.c.0.s8 %v3317
    %v3319 = vlaneseq
    %v3320 = vshrl.u32 %v3319, 7
    %v3321 = vsub.s32 %v3318, %v3320
    %v3322 = vrot.slane %v2522, %v3321
    %v3324 = vunpack.c.l.s4 1966171168
    %v3325 = vunpack.c.0.s8 %v3324
    %v3326 = vlaneseq
    %v3327 = vshrl.u32 %v3326, 7
    %v3328 = vsub.s32 %v3325, %v3327
    %v3329 = vrot.slane %v3322, %v3328
    %v3331 = vunpack.c.l.s4 1966171168
    %v3332 = vunpack.c.0.s8 %v3331
    %v3333 = vlaneseq
    %v3334 = vshrl.u32 %v3333, 7
    %v3335 = vsub.s32 %v3332, %v3334
    %v3336 = vrot.slane %v2523, %v3335
    %v3338 = vunpack.c.l.s4 1966171168
    %v3339 = vunpack.c.0.s8 %v3338
    %v3340 = vlaneseq
    %v3341 = vshrl.u32 %v3340, 7
    %v3342 = vsub.s32 %v3339, %v3341
    %v3343 = vrot.slane %v3336, %v3342
    %v3345 = vunpack.c.l.s4 1966171168
    %v3346 = vunpack.c.0.s8 %v3345
    %v3347 = vlaneseq
    %v3348 = vshrl.u32 %v3347, 7
    %v3349 = vsub.s32 %v3346, %v3348
    %v3350 = vrot.slane %v2524, %v3349
    %v3352 = vunpack.c.l.s4 1966171168
    %v3353 = vunpack.c.0.s8 %v3352
    %v3354 = vlaneseq
    %v3355 = vshrl.u32 %v3354, 7
    %v3356 = vsub.s32 %v3353, %v3355
    %v3357 = vrot.slane %v3350, %v3356
    %v3359 = vunpack.c.l.s4 1966171168
    %v3360 = vunpack.c.0.s8 %v3359
    %v3361 = vlaneseq
    %v3362 = vshrl.u32 %v3361, 7
    %v3363 = vsub.s32 %v3360, %v3362
    %v3364 = vrot.slane %v2525, %v3363
    %v3366 = vunpack.c.l.s4 1966171168
    %v3367 = vunpack.c.0.s8 %v3366
    %v3368 = vlaneseq
    %v3369 = vshrl.u32 %v3368, 7
    %v3370 = vsub.s32 %v3367, %v3369
    %v3371 = vrot.slane %v3364, %v3370
    %v3373 = vunpack.c.l.s4 1966171168
    %v3374 = vunpack.c.0.s8 %v3373
    %v3375 = vlaneseq
    %v3376 = vshrl.u32 %v3375, 7
    %v3377 = vsub.s32 %v3374, %v3376
    %v3378 = vrot.slane %v2526, %v3377
    %v3380 = vunpack.c.l.s4 1966171168
    %v3381 = vunpack.c.0.s8 %v3380
    %v3382 = vlaneseq
    %v3383 = vshrl.u32 %v3382, 7
    %v3384 = vsub.s32 %v3381, %v3383
    %v3385 = vrot.slane %v3378, %v3384
    %v3387 = vunpack.c.l.s4 1966171168
    %v3388 = vunpack.c.0.s8 %v3387
    %v3389 = vlaneseq
    %v3390 = vshrl.u32 %v3389, 7
    %v3391 = vsub.s32 %v3388, %v3390
    %v3392 = vrot.slane %v2527, %v3391
    %v3394 = vunpack.c.l.s4 1966171168
    %v3395 = vunpack.c.0.s8 %v3394
    %v3396 = vlaneseq
    %v3397 = vshrl.u32 %v3396, 7
    %v3398 = vsub.s32 %v3395, %v3397
    %v3399 = vrot.slane %v3392, %v3398
    %v3401 = vunpack.c.l.s4 1966171168
    %v3402 = vunpack.c.0.s8 %v3401
    %v3403 = vlaneseq
    %v3404 = vshrl.u32 %v3403, 7
    %v3405 = vsub.s32 %v3402, %v3404
    %v3406 = vrot.slane %v2528, %v3405
    %v3408 = vunpack.c.l.s4 1966171168
    %v3409 = vunpack.c.0.s8 %v3408
    %v3410 = vlaneseq
    %v3411 = vshrl.u32 %v3410, 7
    %v3412 = vsub.s32 %v3409, %v3411
    %v3413 = vrot.slane %v3406, %v3412
    %v3415 = vunpack.c.l.s4 1966171168
    %v3416 = vunpack.c.0.s8 %v3415
    %v3417 = vlaneseq
    %v3418 = vshrl.u32 %v3417, 7
    %v3419 = vsub.s32 %v3416, %v3418
    %v3420 = vrot.slane %v2529, %v3419
    %v3422 = vunpack.c.l.s4 1966171168
    %v3423 = vunpack.c.0.s8 %v3422
    %v3424 = vlaneseq
    %v3425 = vshrl.u32 %v3424, 7
    %v3426 = vsub.s32 %v3423, %v3425
    %v3427 = vrot.slane %v3420, %v3426
    %v3429 = vunpack.c.l.s4 1966171168
    %v3430 = vunpack.c.0.s8 %v3429
    %v3431 = vlaneseq
    %v3432 = vshrl.u32 %v3431, 7
    %v3433 = vsub.s32 %v3430, %v3432
    %v3434 = vrot.slane %v2530, %v3433
    %v3436 = vunpack.c.l.s4 1966171168
    %v3437 = vunpack.c.0.s8 %v3436
    %v3438 = vlaneseq
    %v3439 = vshrl.u32 %v3438, 7
    %v3440 = vsub.s32 %v3437, %v3439
    %v3441 = vrot.slane %v3434, %v3440
    %v3443 = vunpack.c.l.s4 1966171168
    %v3444 = vunpack.c.0.s8 %v3443
    %v3445 = vlaneseq
    %v3446 = vshrl.u32 %v3445, 7
    %v3447 = vsub.s32 %v3444, %v3446
    %v3448 = vrot.slane %v2531, %v3447
    %v3450 = vunpack.c.l.s4 1966171168
    %v3451 = vunpack.c.0.s8 %v3450
    %v3452 = vlaneseq
    %v3453 = vshrl.u32 %v3452, 7
    %v3454 = vsub.s32 %v3451, %v3453
    %v3455 = vrot.slane %v3448, %v3454
    %v3457 = vunpack.c.l.s4 1966171168
    %v3458 = vunpack.c.0.s8 %v3457
    %v3459 = vlaneseq
    %v3460 = vshrl.u32 %v3459, 7
    %v3461 = vsub.s32 %v3458, %v3460
    %v3462 = vrot.slane %v2532, %v3461
    %v3464 = vunpack.c.l.s4 1966171168
    %v3465 = vunpack.c.0.s8 %v3464
    %v3466 = vlaneseq
    %v3467 = vshrl.u32 %v3466, 7
    %v3468 = vsub.s32 %v3465, %v3467
    %v3469 = vrot.slane %v3462, %v3468
    %v3471 = vunpack.c.l.s4 1966171168
    %v3472 = vunpack.c.0.s8 %v3471
    %v3473 = vlaneseq
    %v3474 = vshrl.u32 %v3473, 7
    %v3475 = vsub.s32 %v3472, %v3474
    %v3476 = vrot.slane %v2533, %v3475
    %v3478 = vunpack.c.l.s4 1966171168
    %v3479 = vunpack.c.0.s8 %v3478
    %v3480 = vlaneseq
    %v3481 = vshrl.u32 %v3480, 7
    %v3482 = vsub.s32 %v3479, %v3481
    %v3483 = vrot.slane %v3476, %v3482
    %v3485 = vunpack.c.l.s4 1966171168
    %v3486 = vunpack.c.0.s8 %v3485
    %v3487 = vlaneseq
    %v3488 = vshrl.u32 %v3487, 7
    %v3489 = vsub.s32 %v3486, %v3488
    %v3490 = vrot.slane %v2534, %v3489
    %v3492 = vunpack.c.l.s4 1966171168
    %v3493 = vunpack.c.0.s8 %v3492
    %v3494 = vlaneseq
    %v3495 = vshrl.u32 %v3494, 7
    %v3496 = vsub.s32 %v3493, %v3495
    %v3497 = vrot.slane %v3490, %v3496
    %v3499 = vunpack.c.l.s4 1966171168
    %v3500 = vunpack.c.0.s8 %v3499
    %v3501 = vlaneseq
    %v3502 = vshrl.u32 %v3501, 7
    %v3503 = vsub.s32 %v3500, %v3502
    %v3504 = vrot.slane %v2535, %v3503
    %v3506 = vunpack.c.l.s4 1966171168
    %v3507 = vunpack.c.0.s8 %v3506
    %v3508 = vlaneseq
    %v3509 = vshrl.u32 %v3508, 7
    %v3510 = vsub.s32 %v3507, %v3509
    %v3511 = vrot.slane %v3504, %v3510
    %v3513 = vunpack.c.l.s4 1966171168
    %v3514 = vunpack.c.0.s8 %v3513
    %v3515 = vlaneseq
    %v3516 = vshrl.u32 %v3515, 7
    %v3517 = vsub.s32 %v3514, %v3516
    %v3518 = vrot.slane %v2536, %v3517
    %v3520 = vunpack.c.l.s4 1966171168
    %v3521 = vunpack.c.0.s8 %v3520
    %v3522 = vlaneseq
    %v3523 = vshrl.u32 %v3522, 7
    %v3524 = vsub.s32 %v3521, %v3523
    %v3525 = vrot.slane %v3518, %v3524
    %v3527 = vunpack.c.l.s4 1966171168
    %v3528 = vunpack.c.0.s8 %v3527
    %v3529 = vlaneseq
    %v3530 = vshrl.u32 %v3529, 7
    %v3531 = vsub.s32 %v3528, %v3530
    %v3532 = vrot.slane %v2537, %v3531
    %v3534 = vunpack.c.l.s4 1966171168
    %v3535 = vunpack.c.0.s8 %v3534
    %v3536 = vlaneseq
    %v3537 = vshrl.u32 %v3536, 7
    %v3538 = vsub.s32 %v3535, %v3537
    %v3539 = vrot.slane %v3532, %v3538
    %v3541 = vunpack.c.l.s4 1966171168
    %v3542 = vunpack.c.0.s8 %v3541
    %v3543 = vlaneseq
    %v3544 = vshrl.u32 %v3543, 7
    %v3545 = vsub.s32 %v3542, %v3544
    %v3546 = vrot.slane %v2538, %v3545
    %v3548 = vunpack.c.l.s4 1966171168
    %v3549 = vunpack.c.0.s8 %v3548
    %v3550 = vlaneseq
    %v3551 = vshrl.u32 %v3550, 7
    %v3552 = vsub.s32 %v3549, %v3551
    %v3553 = vrot.slane %v3546, %v3552
    %v3555 = vunpack.c.l.s4 1966171168
    %v3556 = vunpack.c.0.s8 %v3555
    %v3557 = vlaneseq
    %v3558 = vshrl.u32 %v3557, 7
    %v3559 = vsub.s32 %v3556, %v3558
    %v3560 = vrot.slane %v2539, %v3559
    %v3562 = vunpack.c.l.s4 1966171168
    %v3563 = vunpack.c.0.s8 %v3562
    %v3564 = vlaneseq
    %v3565 = vshrl.u32 %v3564, 7
    %v3566 = vsub.s32 %v3563, %v3565
    %v3567 = vrot.slane %v3560, %v3566
    %v3569 = vunpack.c.l.s4 1966171168
    %v3570 = vunpack.c.0.s8 %v3569
    %v3571 = vlaneseq
    %v3572 = vshrl.u32 %v3571, 7
    %v3573 = vsub.s32 %v3570, %v3572
    %v3574 = vrot.slane %v2540, %v3573
    %v3576 = vunpack.c.l.s4 1966171168
    %v3577 = vunpack.c.0.s8 %v3576
    %v3578 = vlaneseq
    %v3579 = vshrl.u32 %v3578, 7
    %v3580 = vsub.s32 %v3577, %v3579
    %v3581 = vrot.slane %v3574, %v3580
    %v3583 = vunpack.c.l.s4 1966171168
    %v3584 = vunpack.c.0.s8 %v3583
    %v3585 = vlaneseq
    %v3586 = vshrl.u32 %v3585, 7
    %v3587 = vsub.s32 %v3584, %v3586
    %v3588 = vrot.slane %v2541, %v3587
    %v3590 = vunpack.c.l.s4 1966171168
    %v3591 = vunpack.c.0.s8 %v3590
    %v3592 = vlaneseq
    %v3593 = vshrl.u32 %v3592, 7
    %v3594 = vsub.s32 %v3591, %v3593
    %v3595 = vrot.slane %v3588, %v3594
    %v3597 = vunpack.c.l.s4 1966171168
    %v3598 = vunpack.c.0.s8 %v3597
    %v3599 = vlaneseq
    %v3600 = vshrl.u32 %v3599, 7
    %v3601 = vsub.s32 %v3598, %v3600
    %v3602 = vrot.slane %v2542, %v3601
    %v3604 = vunpack.c.l.s4 1966171168
    %v3605 = vunpack.c.0.s8 %v3604
    %v3606 = vlaneseq
    %v3607 = vshrl.u32 %v3606, 7
    %v3608 = vsub.s32 %v3605, %v3607
    %v3609 = vrot.slane %v3602, %v3608
    %v3611 = vunpack.c.l.s4 1966171168
    %v3612 = vunpack.c.0.s8 %v3611
    %v3613 = vlaneseq
    %v3614 = vshrl.u32 %v3613, 7
    %v3615 = vsub.s32 %v3612, %v3614
    %v3616 = vrot.slane %v2543, %v3615
    %v3618 = vunpack.c.l.s4 1966171168
    %v3619 = vunpack.c.0.s8 %v3618
    %v3620 = vlaneseq
    %v3621 = vshrl.u32 %v3620, 7
    %v3622 = vsub.s32 %v3619, %v3621
    %v3623 = vrot.slane %v3616, %v3622
    %v3625 = vunpack.c.l.s4 1966171168
    %v3626 = vunpack.c.0.s8 %v3625
    %v3627 = vlaneseq
    %v3628 = vshrl.u32 %v3627, 7
    %v3629 = vsub.s32 %v3626, %v3628
    %v3630 = vrot.slane %v2544, %v3629
    %v3632 = vunpack.c.l.s4 1966171168
    %v3633 = vunpack.c.0.s8 %v3632
    %v3634 = vlaneseq
    %v3635 = vshrl.u32 %v3634, 7
    %v3636 = vsub.s32 %v3633, %v3635
    %v3637 = vrot.slane %v3630, %v3636
    %v3639 = vunpack.c.l.s4 1966171168
    %v3640 = vunpack.c.0.s8 %v3639
    %v3641 = vlaneseq
    %v3642 = vshrl.u32 %v3641, 7
    %v3643 = vsub.s32 %v3640, %v3642
    %v3644 = vrot.slane %v2545, %v3643
    %v3646 = vunpack.c.l.s4 1966171168
    %v3647 = vunpack.c.0.s8 %v3646
    %v3648 = vlaneseq
    %v3649 = vshrl.u32 %v3648, 7
    %v3650 = vsub.s32 %v3647, %v3649
    %v3651 = vrot.slane %v3644, %v3650
    %v3653 = vunpack.c.l.s4 1966171168
    %v3654 = vunpack.c.0.s8 %v3653
    %v3655 = vlaneseq
    %v3656 = vshrl.u32 %v3655, 7
    %v3657 = vsub.s32 %v3654, %v3656
    %v3658 = vrot.slane %v2546, %v3657
    %v3660 = vunpack.c.l.s4 1966171168
    %v3661 = vunpack.c.0.s8 %v3660
    %v3662 = vlaneseq
    %v3663 = vshrl.u32 %v3662, 7
    %v3664 = vsub.s32 %v3661, %v3663
    %v3665 = vrot.slane %v3658, %v3664
    %v3667 = vunpack.c.l.s4 1966171168
    %v3668 = vunpack.c.0.s8 %v3667
    %v3669 = vlaneseq
    %v3670 = vshrl.u32 %v3669, 7
    %v3671 = vsub.s32 %v3668, %v3670
    %v3672 = vrot.slane %v2547, %v3671
    %v3674 = vunpack.c.l.s4 1966171168
    %v3675 = vunpack.c.0.s8 %v3674
    %v3676 = vlaneseq
    %v3677 = vshrl.u32 %v3676, 7
    %v3678 = vsub.s32 %v3675, %v3677
    %v3679 = vrot.slane %v3672, %v3678
    %v3681 = vunpack.c.l.s4 1966171168
    %v3682 = vunpack.c.0.s8 %v3681
    %v3683 = vlaneseq
    %v3684 = vshrl.u32 %v3683, 7
    %v3685 = vsub.s32 %v3682, %v3684
    %v3686 = vrot.slane %v2548, %v3685
    %v3688 = vunpack.c.l.s4 1966171168
    %v3689 = vunpack.c.0.s8 %v3688
    %v3690 = vlaneseq
    %v3691 = vshrl.u32 %v3690, 7
    %v3692 = vsub.s32 %v3689, %v3691
    %v3693 = vrot.slane %v3686, %v3692
    %v3695 = vunpack.c.l.s4 1966171168
    %v3696 = vunpack.c.0.s8 %v3695
    %v3697 = vlaneseq
    %v3698 = vshrl.u32 %v3697, 7
    %v3699 = vsub.s32 %v3696, %v3698
    %v3700 = vrot.slane %v2549, %v3699
    %v3702 = vunpack.c.l.s4 1966171168
    %v3703 = vunpack.c.0.s8 %v3702
    %v3704 = vlaneseq
    %v3705 = vshrl.u32 %v3704, 7
    %v3706 = vsub.s32 %v3703, %v3705
    %v3707 = vrot.slane %v3700, %v3706
    %v3709 = vunpack.c.l.s4 1966171168
    %v3710 = vunpack.c.0.s8 %v3709
    %v3711 = vlaneseq
    %v3712 = vshrl.u32 %v3711, 7
    %v3713 = vsub.s32 %v3710, %v3712
    %v3714 = vrot.slane %v2550, %v3713
    %v3716 = vunpack.c.l.s4 1966171168
    %v3717 = vunpack.c.0.s8 %v3716
    %v3718 = vlaneseq
    %v3719 = vshrl.u32 %v3718, 7
    %v3720 = vsub.s32 %v3717, %v3719
    %v3721 = vrot.slane %v3714, %v3720
    %v3723 = vunpack.c.l.s4 1966171168
    %v3724 = vunpack.c.0.s8 %v3723
    %v3725 = vlaneseq
    %v3726 = vshrl.u32 %v3725, 7
    %v3727 = vsub.s32 %v3724, %v3726
    %v3728 = vrot.slane %v2551, %v3727
    %v3730 = vunpack.c.l.s4 1966171168
    %v3731 = vunpack.c.0.s8 %v3730
    %v3732 = vlaneseq
    %v3733 = vshrl.u32 %v3732, 7
    %v3734 = vsub.s32 %v3731, %v3733
    %v3735 = vrot.slane %v3728, %v3734
    %v3737 = vunpack.c.l.s4 1966171168
    %v3738 = vunpack.c.0.s8 %v3737
    %v3739 = vlaneseq
    %v3740 = vshrl.u32 %v3739, 7
    %v3741 = vsub.s32 %v3738, %v3740
    %v3742 = vrot.slane %v2552, %v3741
    %v3744 = vunpack.c.l.s4 1966171168
    %v3745 = vunpack.c.0.s8 %v3744
    %v3746 = vlaneseq
    %v3747 = vshrl.u32 %v3746, 7
    %v3748 = vsub.s32 %v3745, %v3747
    %v3749 = vrot.slane %v3742, %v3748
    %v3751 = vunpack.c.l.s4 1966171168
    %v3752 = vunpack.c.0.s8 %v3751
    %v3753 = vlaneseq
    %v3754 = vshrl.u32 %v3753, 7
    %v3755 = vsub.s32 %v3752, %v3754
    %v3756 = vrot.slane %v2553, %v3755
    %v3758 = vunpack.c.l.s4 1966171168
    %v3759 = vunpack.c.0.s8 %v3758
    %v3760 = vlaneseq
    %v3761 = vshrl.u32 %v3760, 7
    %v3762 = vsub.s32 %v3759, %v3761
    %v3763 = vrot.slane %v3756, %v3762
    %v3765 = vunpack.c.l.s4 1966171168
    %v3766 = vunpack.c.0.s8 %v3765
    %v3767 = vlaneseq
    %v3768 = vshrl.u32 %v3767, 7
    %v3769 = vsub.s32 %v3766, %v3768
    %v3770 = vrot.slane %v2554, %v3769
    %v3772 = vunpack.c.l.s4 1966171168
    %v3773 = vunpack.c.0.s8 %v3772
    %v3774 = vlaneseq
    %v3775 = vshrl.u32 %v3774, 7
    %v3776 = vsub.s32 %v3773, %v3775
    %v3777 = vrot.slane %v3770, %v3776
    %v3779 = vunpack.c.l.s4 1966171168
    %v3780 = vunpack.c.0.s8 %v3779
    %v3781 = vlaneseq
    %v3782 = vshrl.u32 %v3781, 7
    %v3783 = vsub.s32 %v3780, %v3782
    %v3784 = vrot.slane %v2555, %v3783
    %v3786 = vunpack.c.l.s4 1966171168
    %v3787 = vunpack.c.0.s8 %v3786
    %v3788 = vlaneseq
    %v3789 = vshrl.u32 %v3788, 7
    %v3790 = vsub.s32 %v3787, %v3789
    %v3791 = vrot.slane %v3784, %v3790
    %v3793 = vunpack.c.l.s4 1966171168
    %v3794 = vunpack.c.0.s8 %v3793
    %v3795 = vlaneseq
    %v3796 = vshrl.u32 %v3795, 7
    %v3797 = vsub.s32 %v3794, %v3796
    %v3798 = vrot.slane %v2556, %v3797
    %v3800 = vunpack.c.l.s4 1966171168
    %v3801 = vunpack.c.0.s8 %v3800
    %v3802 = vlaneseq
    %v3803 = vshrl.u32 %v3802, 7
    %v3804 = vsub.s32 %v3801, %v3803
    %v3805 = vrot.slane %v3798, %v3804
    %v3807 = vunpack.c.l.s4 1966171168
    %v3808 = vunpack.c.0.s8 %v3807
    %v3809 = vlaneseq
    %v3810 = vshrl.u32 %v3809, 7
    %v3811 = vsub.s32 %v3808, %v3810
    %v3812 = vrot.slane %v2557, %v3811
    %v3814 = vunpack.c.l.s4 1966171168
    %v3815 = vunpack.c.0.s8 %v3814
    %v3816 = vlaneseq
    %v3817 = vshrl.u32 %v3816, 7
    %v3818 = vsub.s32 %v3815, %v3817
    %v3819 = vrot.slane %v3812, %v3818
    %v3821 = vunpack.c.l.s4 1966171168
    %v3822 = vunpack.c.0.s8 %v3821
    %v3823 = vlaneseq
    %v3824 = vshrl.u32 %v3823, 7
    %v3825 = vsub.s32 %v3822, %v3824
    %v3826 = vrot.slane %v2558, %v3825
    %v3828 = vunpack.c.l.s4 1966171168
    %v3829 = vunpack.c.0.s8 %v3828
    %v3830 = vlaneseq
    %v3831 = vshrl.u32 %v3830, 7
    %v3832 = vsub.s32 %v3829, %v3831
    %v3833 = vrot.slane %v3826, %v3832
    %v3835 = vunpack.c.l.s4 1966171168
    %v3836 = vunpack.c.0.s8 %v3835
    %v3837 = vlaneseq
    %v3838 = vshrl.u32 %v3837, 7
    %v3839 = vsub.s32 %v3836, %v3838
    %v3840 = vrot.slane %v2559, %v3839
    %v3842 = vunpack.c.l.s4 1966171168
    %v3843 = vunpack.c.0.s8 %v3842
    %v3844 = vlaneseq
    %v3845 = vshrl.u32 %v3844, 7
    %v3846 = vsub.s32 %v3843, %v3845
    %v3847 = vrot.slane %v3840, %v3846
    %v3849 = vunpack.c.l.s4 1966171168
    %v3850 = vunpack.c.0.s8 %v3849
    %v3851 = vlaneseq
    %v3852 = vshrl.u32 %v3851, 7
    %v3853 = vsub.s32 %v3850, %v3852
    %v3854 = vrot.slane %v2560, %v3853
    %v3856 = vunpack.c.l.s4 1966171168
    %v3857 = vunpack.c.0.s8 %v3856
    %v3858 = vlaneseq
    %v3859 = vshrl.u32 %v3858, 7
    %v3860 = vsub.s32 %v3857, %v3859
    %v3861 = vrot.slane %v3854, %v3860
    %v3863 = vunpack.c.l.s4 1966171168
    %v3864 = vunpack.c.0.s8 %v3863
    %v3865 = vlaneseq
    %v3866 = vshrl.u32 %v3865, 7
    %v3867 = vsub.s32 %v3864, %v3866
    %v3868 = vrot.slane %v2561, %v3867
    %v3870 = vunpack.c.l.s4 1966171168
    %v3871 = vunpack.c.0.s8 %v3870
    %v3872 = vlaneseq
    %v3873 = vshrl.u32 %v3872, 7
    %v3874 = vsub.s32 %v3871, %v3873
    %v3875 = vrot.slane %v3868, %v3874
    %v3877 = vunpack.c.l.s4 1966171168
    %v3878 = vunpack.c.0.s8 %v3877
    %v3879 = vlaneseq
    %v3880 = vshrl.u32 %v3879, 7
    %v3881 = vsub.s32 %v3878, %v3880
    %v3882 = vrot.slane %v2562, %v3881
    %v3884 = vunpack.c.l.s4 1966171168
    %v3885 = vunpack.c.0.s8 %v3884
    %v3886 = vlaneseq
    %v3887 = vshrl.u32 %v3886, 7
    %v3888 = vsub.s32 %v3885, %v3887
    %v3889 = vrot.slane %v3882, %v3888
    %v3891 = vunpack.c.l.s4 1966171168
    %v3892 = vunpack.c.0.s8 %v3891
    %v3893 = vlaneseq
    %v3894 = vshrl.u32 %v3893, 7
    %v3895 = vsub.s32 %v3892, %v3894
    %v3896 = vrot.slane %v2563, %v3895
    %v3898 = vunpack.c.l.s4 1966171168
    %v3899 = vunpack.c.0.s8 %v3898
    %v3900 = vlaneseq
    %v3901 = vshrl.u32 %v3900, 7
    %v3902 = vsub.s32 %v3899, %v3901
    %v3903 = vrot.slane %v3896, %v3902
    %v3905 = vunpack.c.l.s4 1966171168
    %v3906 = vunpack.c.0.s8 %v3905
    %v3907 = vlaneseq
    %v3908 = vshrl.u32 %v3907, 7
    %v3909 = vsub.s32 %v3906, %v3908
    %v3910 = vrot.slane %v2564, %v3909
    %v3912 = vunpack.c.l.s4 1966171168
    %v3913 = vunpack.c.0.s8 %v3912
    %v3914 = vlaneseq
    %v3915 = vshrl.u32 %v3914, 7
    %v3916 = vsub.s32 %v3913, %v3915
    %v3917 = vrot.slane %v3910, %v3916
    %v3919 = vunpack.c.l.s4 1966171168
    %v3920 = vunpack.c.0.s8 %v3919
    %v3921 = vlaneseq
    %v3922 = vshrl.u32 %v3921, 7
    %v3923 = vsub.s32 %v3920, %v3922
    %v3924 = vrot.slane %v2565, %v3923
    %v3926 = vunpack.c.l.s4 1966171168
    %v3927 = vunpack.c.0.s8 %v3926
    %v3928 = vlaneseq
    %v3929 = vshrl.u32 %v3928, 7
    %v3930 = vsub.s32 %v3927, %v3929
    %v3931 = vrot.slane %v3924, %v3930
    %v3933 = vunpack.c.l.s4 1966171168
    %v3934 = vunpack.c.0.s8 %v3933
    %v3935 = vlaneseq
    %v3936 = vshrl.u32 %v3935, 7
    %v3937 = vsub.s32 %v3934, %v3936
    %v3938 = vrot.slane %v2566, %v3937
    %v3940 = vunpack.c.l.s4 1966171168
    %v3941 = vunpack.c.0.s8 %v3940
    %v3942 = vlaneseq
    %v3943 = vshrl.u32 %v3942, 7
    %v3944 = vsub.s32 %v3941, %v3943
    %v3945 = vrot.slane %v3938, %v3944
    %v3947 = vunpack.c.l.s4 1966171168
    %v3948 = vunpack.c.0.s8 %v3947
    %v3949 = vlaneseq
    %v3950 = vshrl.u32 %v3949, 7
    %v3951 = vsub.s32 %v3948, %v3950
    %v3952 = vrot.slane %v2567, %v3951
    %v3954 = vunpack.c.l.s4 1966171168
    %v3955 = vunpack.c.0.s8 %v3954
    %v3956 = vlaneseq
    %v3957 = vshrl.u32 %v3956, 7
    %v3958 = vsub.s32 %v3955, %v3957
    %v3959 = vrot.slane %v3952, %v3958
    %v3961 = vunpack.c.l.s4 1966171168
    %v3962 = vunpack.c.0.s8 %v3961
    %v3963 = vlaneseq
    %v3964 = vshrl.u32 %v3963, 7
    %v3965 = vsub.s32 %v3962, %v3964
    %v3966 = vrot.slane %v2568, %v3965
    %v3968 = vunpack.c.l.s4 1966171168
    %v3969 = vunpack.c.0.s8 %v3968
    %v3970 = vlaneseq
    %v3971 = vshrl.u32 %v3970, 7
    %v3972 = vsub.s32 %v3969, %v3971
    %v3973 = vrot.slane %v3966, %v3972
    %v3975 = vunpack.c.l.s4 1966171168
    %v3976 = vunpack.c.0.s8 %v3975
    %v3977 = vlaneseq
    %v3978 = vshrl.u32 %v3977, 7
    %v3979 = vsub.s32 %v3976, %v3978
    %v3980 = vrot.slane %v2569, %v3979
    %v3982 = vunpack.c.l.s4 1966171168
    %v3983 = vunpack.c.0.s8 %v3982
    %v3984 = vlaneseq
    %v3985 = vshrl.u32 %v3984, 7
    %v3986 = vsub.s32 %v3983, %v3985
    %v3987 = vrot.slane %v3980, %v3986
    %v3989 = vunpack.c.l.s4 1966171168
    %v3990 = vunpack.c.0.s8 %v3989
    %v3991 = vlaneseq
    %v3992 = vshrl.u32 %v3991, 7
    %v3993 = vsub.s32 %v3990, %v3992
    %v3994 = vrot.slane %v2570, %v3993
    %v3996 = vunpack.c.l.s4 1966171168
    %v3997 = vunpack.c.0.s8 %v3996
    %v3998 = vlaneseq
    %v3999 = vshrl.u32 %v3998, 7
    %v4000 = vsub.s32 %v3997, %v3999
    %v4001 = vrot.slane %v3994, %v4000
    %v4003 = vunpack.c.l.s4 1966171168
    %v4004 = vunpack.c.0.s8 %v4003
    %v4005 = vlaneseq
    %v4006 = vshrl.u32 %v4005, 7
    %v4007 = vsub.s32 %v4004, %v4006
    %v4008 = vrot.slane %v2571, %v4007
    %v4010 = vunpack.c.l.s4 1966171168
    %v4011 = vunpack.c.0.s8 %v4010
    %v4012 = vlaneseq
    %v4013 = vshrl.u32 %v4012, 7
    %v4014 = vsub.s32 %v4011, %v4013
    %v4015 = vrot.slane %v4008, %v4014
    %v4017 = vunpack.c.l.s4 1966171168
    %v4018 = vunpack.c.0.s8 %v4017
    %v4019 = vlaneseq
    %v4020 = vshrl.u32 %v4019, 7
    %v4021 = vsub.s32 %v4018, %v4020
    %v4022 = vrot.slane %v2572, %v4021
    %v4024 = vunpack.c.l.s4 1966171168
    %v4025 = vunpack.c.0.s8 %v4024
    %v4026 = vlaneseq
    %v4027 = vshrl.u32 %v4026, 7
    %v4028 = vsub.s32 %v4025, %v4027
    %v4029 = vrot.slane %v4022, %v4028
    %v4031 = vunpack.c.l.s4 1966171168
    %v4032 = vunpack.c.0.s8 %v4031
    %v4033 = vlaneseq
    %v4034 = vshrl.u32 %v4033, 7
    %v4035 = vsub.s32 %v4032, %v4034
    %v4036 = vrot.slane %v2573, %v4035
    %v4038 = vunpack.c.l.s4 1966171168
    %v4039 = vunpack.c.0.s8 %v4038
    %v4040 = vlaneseq
    %v4041 = vshrl.u32 %v4040, 7
    %v4042 = vsub.s32 %v4039, %v4041
    %v4043 = vrot.slane %v4036, %v4042
    %v4045 = vunpack.c.l.s4 1966171168
    %v4046 = vunpack.c.0.s8 %v4045
    %v4047 = vlaneseq
    %v4048 = vshrl.u32 %v4047, 7
    %v4049 = vsub.s32 %v4046, %v4048
    %v4050 = vrot.slane %v2574, %v4049
    %v4052 = vunpack.c.l.s4 1966171168
    %v4053 = vunpack.c.0.s8 %v4052
    %v4054 = vlaneseq
    %v4055 = vshrl.u32 %v4054, 7
    %v4056 = vsub.s32 %v4053, %v4055
    %v4057 = vrot.slane %v4050, %v4056
    %v4059 = vunpack.c.l.s4 1966171168
    %v4060 = vunpack.c.0.s8 %v4059
    %v4061 = vlaneseq
    %v4062 = vshrl.u32 %v4061, 7
    %v4063 = vsub.s32 %v4060, %v4062
    %v4064 = vrot.slane %v2575, %v4063
    %v4066 = vunpack.c.l.s4 1966171168
    %v4067 = vunpack.c.0.s8 %v4066
    %v4068 = vlaneseq
    %v4069 = vshrl.u32 %v4068, 7
    %v4070 = vsub.s32 %v4067, %v4069
    %v4071 = vrot.slane %v4064, %v4070
    %v4073 = vunpack.c.l.s4 1966171168
    %v4074 = vunpack.c.0.s8 %v4073
    %v4075 = vlaneseq
    %v4076 = vshrl.u32 %v4075, 7
    %v4077 = vsub.s32 %v4074, %v4076
    %v4078 = vrot.slane %v2576, %v4077
    %v4080 = vunpack.c.l.s4 1966171168
    %v4081 = vunpack.c.0.s8 %v4080
    %v4082 = vlaneseq
    %v4083 = vshrl.u32 %v4082, 7
    %v4084 = vsub.s32 %v4081, %v4083
    %v4085 = vrot.slane %v4078, %v4084
    %v4087 = vunpack.c.l.s4 1966171168
    %v4088 = vunpack.c.0.s8 %v4087
    %v4089 = vlaneseq
    %v4090 = vshrl.u32 %v4089, 7
    %v4091 = vsub.s32 %v4088, %v4090
    %v4092 = vrot.slane %v2577, %v4091
    %v4094 = vunpack.c.l.s4 1966171168
    %v4095 = vunpack.c.0.s8 %v4094
    %v4096 = vlaneseq
    %v4097 = vshrl.u32 %v4096, 7
    %v4098 = vsub.s32 %v4095, %v4097
    %v4099 = vrot.slane %v4092, %v4098
    %v4101 = vunpack.c.l.s4 1966171168
    %v4102 = vunpack.c.0.s8 %v4101
    %v4103 = vlaneseq
    %v4104 = vshrl.u32 %v4103, 7
    %v4105 = vsub.s32 %v4102, %v4104
    %v4106 = vrot.slane %v2578, %v4105
    %v4108 = vunpack.c.l.s4 1966171168
    %v4109 = vunpack.c.0.s8 %v4108
    %v4110 = vlaneseq
    %v4111 = vshrl.u32 %v4110, 7
    %v4112 = vsub.s32 %v4109, %v4111
    %v4113 = vrot.slane %v4106, %v4112
    %v4115 = vunpack.c.l.s4 1966171168
    %v4116 = vunpack.c.0.s8 %v4115
    %v4117 = vlaneseq
    %v4118 = vshrl.u32 %v4117, 7
    %v4119 = vsub.s32 %v4116, %v4118
    %v4120 = vrot.slane %v2579, %v4119
    %v4122 = vunpack.c.l.s4 1966171168
    %v4123 = vunpack.c.0.s8 %v4122
    %v4124 = vlaneseq
    %v4125 = vshrl.u32 %v4124, 7
    %v4126 = vsub.s32 %v4123, %v4125
    %v4127 = vrot.slane %v4120, %v4126
    %v4129 = vunpack.c.l.s4 1966171168
    %v4130 = vunpack.c.0.s8 %v4129
    %v4131 = vlaneseq
    %v4132 = vshrl.u32 %v4131, 7
    %v4133 = vsub.s32 %v4130, %v4132
    %v4134 = vrot.slane %v2580, %v4133
    %v4136 = vunpack.c.l.s4 1966171168
    %v4137 = vunpack.c.0.s8 %v4136
    %v4138 = vlaneseq
    %v4139 = vshrl.u32 %v4138, 7
    %v4140 = vsub.s32 %v4137, %v4139
    %v4141 = vrot.slane %v4134, %v4140
    %v4143 = vunpack.c.l.s4 1966171168
    %v4144 = vunpack.c.0.s8 %v4143
    %v4145 = vlaneseq
    %v4146 = vshrl.u32 %v4145, 7
    %v4147 = vsub.s32 %v4144, %v4146
    %v4148 = vrot.slane %v2581, %v4147
    %v4150 = vunpack.c.l.s4 1966171168
    %v4151 = vunpack.c.0.s8 %v4150
    %v4152 = vlaneseq
    %v4153 = vshrl.u32 %v4152, 7
    %v4154 = vsub.s32 %v4151, %v4153
    %v4155 = vrot.slane %v4148, %v4154
    %v4157 = vunpack.c.l.s4 1966171168
    %v4158 = vunpack.c.0.s8 %v4157
    %v4159 = vlaneseq
    %v4160 = vshrl.u32 %v4159, 7
    %v4161 = vsub.s32 %v4158, %v4160
    %v4162 = vrot.slane %v2582, %v4161
    %v4164 = vunpack.c.l.s4 1966171168
    %v4165 = vunpack.c.0.s8 %v4164
    %v4166 = vlaneseq
    %v4167 = vshrl.u32 %v4166, 7
    %v4168 = vsub.s32 %v4165, %v4167
    %v4169 = vrot.slane %v4162, %v4168
    %v4171 = vunpack.c.l.s4 1966171168
    %v4172 = vunpack.c.0.s8 %v4171
    %v4173 = vlaneseq
    %v4174 = vshrl.u32 %v4173, 7
    %v4175 = vsub.s32 %v4172, %v4174
    %v4176 = vrot.slane %v2583, %v4175
    %v4178 = vunpack.c.l.s4 1966171168
    %v4179 = vunpack.c.0.s8 %v4178
    %v4180 = vlaneseq
    %v4181 = vshrl.u32 %v4180, 7
    %v4182 = vsub.s32 %v4179, %v4181
    %v4183 = vrot.slane %v4176, %v4182
    %v4185 = vunpack.c.l.s4 1966171168
    %v4186 = vunpack.c.0.s8 %v4185
    %v4187 = vlaneseq
    %v4188 = vshrl.u32 %v4187, 7
    %v4189 = vsub.s32 %v4186, %v4188
    %v4190 = vrot.slane %v2584, %v4189
    %v4192 = vunpack.c.l.s4 1966171168
    %v4193 = vunpack.c.0.s8 %v4192
    %v4194 = vlaneseq
    %v4195 = vshrl.u32 %v4194, 7
    %v4196 = vsub.s32 %v4193, %v4195
    %v4197 = vrot.slane %v4190, %v4196
    %v4199 = vunpack.c.l.s4 1966171168
    %v4200 = vunpack.c.0.s8 %v4199
    %v4201 = vlaneseq
    %v4202 = vshrl.u32 %v4201, 7
    %v4203 = vsub.s32 %v4200, %v4202
    %v4204 = vrot.slane %v2585, %v4203
    %v4206 = vunpack.c.l.s4 1966171168
    %v4207 = vunpack.c.0.s8 %v4206
    %v4208 = vlaneseq
    %v4209 = vshrl.u32 %v4208, 7
    %v4210 = vsub.s32 %v4207, %v4209
    %v4211 = vrot.slane %v4204, %v4210
    %v4213 = vunpack.c.l.s4 1966171168
    %v4214 = vunpack.c.0.s8 %v4213
    %v4215 = vlaneseq
    %v4216 = vshrl.u32 %v4215, 7
    %v4217 = vsub.s32 %v4214, %v4216
    %v4218 = vrot.slane %v2586, %v4217
    %v4220 = vunpack.c.l.s4 1966171168
    %v4221 = vunpack.c.0.s8 %v4220
    %v4222 = vlaneseq
    %v4223 = vshrl.u32 %v4222, 7
    %v4224 = vsub.s32 %v4221, %v4223
    %v4225 = vrot.slane %v4218, %v4224
    %v4227 = vunpack.c.l.s4 1966171168
    %v4228 = vunpack.c.0.s8 %v4227
    %v4229 = vlaneseq
    %v4230 = vshrl.u32 %v4229, 7
    %v4231 = vsub.s32 %v4228, %v4230
    %v4232 = vrot.slane %v2587, %v4231
    %v4234 = vunpack.c.l.s4 1966171168
    %v4235 = vunpack.c.0.s8 %v4234
    %v4236 = vlaneseq
    %v4237 = vshrl.u32 %v4236, 7
    %v4238 = vsub.s32 %v4235, %v4237
    %v4239 = vrot.slane %v4232, %v4238
    %v4241 = vunpack.c.l.s4 1966171168
    %v4242 = vunpack.c.0.s8 %v4241
    %v4243 = vlaneseq
    %v4244 = vshrl.u32 %v4243, 7
    %v4245 = vsub.s32 %v4242, %v4244
    %v4246 = vrot.slane %v2588, %v4245
    %v4248 = vunpack.c.l.s4 1966171168
    %v4249 = vunpack.c.0.s8 %v4248
    %v4250 = vlaneseq
    %v4251 = vshrl.u32 %v4250, 7
    %v4252 = vsub.s32 %v4249, %v4251
    %v4253 = vrot.slane %v4246, %v4252
    %v4255 = vunpack.c.l.s4 1966171168
    %v4256 = vunpack.c.0.s8 %v4255
    %v4257 = vlaneseq
    %v4258 = vshrl.u32 %v4257, 7
    %v4259 = vsub.s32 %v4256, %v4258
    %v4260 = vrot.slane %v2589, %v4259
    %v4262 = vunpack.c.l.s4 1966171168
    %v4263 = vunpack.c.0.s8 %v4262
    %v4264 = vlaneseq
    %v4265 = vshrl.u32 %v4264, 7
    %v4266 = vsub.s32 %v4263, %v4265
    %v4267 = vrot.slane %v4260, %v4266
    %v4269 = vunpack.c.l.s4 1966171168
    %v4270 = vunpack.c.0.s8 %v4269
    %v4271 = vlaneseq
    %v4272 = vshrl.u32 %v4271, 7
    %v4273 = vsub.s32 %v4270, %v4272
    %v4274 = vrot.slane %v2590, %v4273
    %v4276 = vunpack.c.l.s4 1966171168
    %v4277 = vunpack.c.0.s8 %v4276
    %v4278 = vlaneseq
    %v4279 = vshrl.u32 %v4278, 7
    %v4280 = vsub.s32 %v4277, %v4279
    %v4281 = vrot.slane %v4274, %v4280
    %v4283 = vunpack.c.l.s4 1966171168
    %v4284 = vunpack.c.0.s8 %v4283
    %v4285 = vlaneseq
    %v4286 = vshrl.u32 %v4285, 7
    %v4287 = vsub.s32 %v4284, %v4286
    %v4288 = vrot.slane %v2591, %v4287
    %v4290 = vunpack.c.l.s4 1966171168
    %v4291 = vunpack.c.0.s8 %v4290
    %v4292 = vlaneseq
    %v4293 = vshrl.u32 %v4292, 7
    %v4294 = vsub.s32 %v4291, %v4293
    %v4295 = vrot.slane %v4288, %v4294
    %v4297 = vunpack.c.l.s4 1966171168
    %v4298 = vunpack.c.0.s8 %v4297
    %v4299 = vlaneseq
    %v4300 = vshrl.u32 %v4299, 7
    %v4301 = vsub.s32 %v4298, %v4300
    %v4302 = vrot.slane %v2592, %v4301
    %v4304 = vunpack.c.l.s4 1966171168
    %v4305 = vunpack.c.0.s8 %v4304
    %v4306 = vlaneseq
    %v4307 = vshrl.u32 %v4306, 7
    %v4308 = vsub.s32 %v4305, %v4307
    %v4309 = vrot.slane %v4302, %v4308
    %v4311 = vunpack.c.l.s4 1966171168
    %v4312 = vunpack.c.0.s8 %v4311
    %v4313 = vlaneseq
    %v4314 = vshrl.u32 %v4313, 7
    %v4315 = vsub.s32 %v4312, %v4314
    %v4316 = vrot.slane %v2593, %v4315
    %v4318 = vunpack.c.l.s4 1966171168
    %v4319 = vunpack.c.0.s8 %v4318
    %v4320 = vlaneseq
    %v4321 = vshrl.u32 %v4320, 7
    %v4322 = vsub.s32 %v4319, %v4321
    %v4323 = vrot.slane %v4316, %v4322
    %v4325 = vunpack.c.l.s4 1966171168
    %v4326 = vunpack.c.0.s8 %v4325
    %v4327 = vlaneseq
    %v4328 = vshrl.u32 %v4327, 7
    %v4329 = vsub.s32 %v4326, %v4328
    %v4330 = vrot.slane %v2594, %v4329
    %v4332 = vunpack.c.l.s4 1966171168
    %v4333 = vunpack.c.0.s8 %v4332
    %v4334 = vlaneseq
    %v4335 = vshrl.u32 %v4334, 7
    %v4336 = vsub.s32 %v4333, %v4335
    %v4337 = vrot.slane %v4330, %v4336
    %v4339 = vunpack.c.l.s4 1966171168
    %v4340 = vunpack.c.0.s8 %v4339
    %v4341 = vlaneseq
    %v4342 = vshrl.u32 %v4341, 7
    %v4343 = vsub.s32 %v4340, %v4342
    %v4344 = vrot.slane %v2595, %v4343
    %v4346 = vunpack.c.l.s4 1966171168
    %v4347 = vunpack.c.0.s8 %v4346
    %v4348 = vlaneseq
    %v4349 = vshrl.u32 %v4348, 7
    %v4350 = vsub.s32 %v4347, %v4349
    %v4351 = vrot.slane %v4344, %v4350
    %v4353 = vunpack.c.l.s4 1966171168
    %v4354 = vunpack.c.0.s8 %v4353
    %v4355 = vlaneseq
    %v4356 = vshrl.u32 %v4355, 7
    %v4357 = vsub.s32 %v4354, %v4356
    %v4358 = vrot.slane %v2596, %v4357
    %v4360 = vunpack.c.l.s4 1966171168
    %v4361 = vunpack.c.0.s8 %v4360
    %v4362 = vlaneseq
    %v4363 = vshrl.u32 %v4362, 7
    %v4364 = vsub.s32 %v4361, %v4363
    %v4365 = vrot.slane %v4358, %v4364
    %v4367 = vunpack.c.l.s4 1966171168
    %v4368 = vunpack.c.0.s8 %v4367
    %v4369 = vlaneseq
    %v4370 = vshrl.u32 %v4369, 7
    %v4371 = vsub.s32 %v4368, %v4370
    %v4372 = vrot.slane %v2597, %v4371
    %v4374 = vunpack.c.l.s4 1966171168
    %v4375 = vunpack.c.0.s8 %v4374
    %v4376 = vlaneseq
    %v4377 = vshrl.u32 %v4376, 7
    %v4378 = vsub.s32 %v4375, %v4377
    %v4379 = vrot.slane %v4372, %v4378
    %v4381 = vunpack.c.l.s4 1966171168
    %v4382 = vunpack.c.0.s8 %v4381
    %v4383 = vlaneseq
    %v4384 = vshrl.u32 %v4383, 7
    %v4385 = vsub.s32 %v4382, %v4384
    %v4386 = vrot.slane %v2598, %v4385
    %v4388 = vunpack.c.l.s4 1966171168
    %v4389 = vunpack.c.0.s8 %v4388
    %v4390 = vlaneseq
    %v4391 = vshrl.u32 %v4390, 7
    %v4392 = vsub.s32 %v4389, %v4391
    %v4393 = vrot.slane %v4386, %v4392
    %v4395 = vunpack.c.l.s4 1966171168
    %v4396 = vunpack.c.0.s8 %v4395
    %v4397 = vlaneseq
    %v4398 = vshrl.u32 %v4397, 7
    %v4399 = vsub.s32 %v4396, %v4398
    %v4400 = vrot.slane %v2599, %v4399
    %v4402 = vunpack.c.l.s4 1966171168
    %v4403 = vunpack.c.0.s8 %v4402
    %v4404 = vlaneseq
    %v4405 = vshrl.u32 %v4404, 7
    %v4406 = vsub.s32 %v4403, %v4405
    %v4407 = vrot.slane %v4400, %v4406
    %v4409 = vunpack.c.l.s4 1966171168
    %v4410 = vunpack.c.0.s8 %v4409
    %v4411 = vlaneseq
    %v4412 = vshrl.u32 %v4411, 7
    %v4413 = vsub.s32 %v4410, %v4412
    %v4414 = vrot.slane %v2600, %v4413
    %v4416 = vunpack.c.l.s4 1966171168
    %v4417 = vunpack.c.0.s8 %v4416
    %v4418 = vlaneseq
    %v4419 = vshrl.u32 %v4418, 7
    %v4420 = vsub.s32 %v4417, %v4419
    %v4421 = vrot.slane %v4414, %v4420
    %v4423 = vunpack.c.l.s4 1966171168
    %v4424 = vunpack.c.0.s8 %v4423
    %v4425 = vlaneseq
    %v4426 = vshrl.u32 %v4425, 7
    %v4427 = vsub.s32 %v4424, %v4426
    %v4428 = vrot.slane %v2601, %v4427
    %v4430 = vunpack.c.l.s4 1966171168
    %v4431 = vunpack.c.0.s8 %v4430
    %v4432 = vlaneseq
    %v4433 = vshrl.u32 %v4432, 7
    %v4434 = vsub.s32 %v4431, %v4433
    %v4435 = vrot.slane %v4428, %v4434
    %v4437 = vunpack.c.l.s4 1966171168
    %v4438 = vunpack.c.0.s8 %v4437
    %v4439 = vlaneseq
    %v4440 = vshrl.u32 %v4439, 7
    %v4441 = vsub.s32 %v4438, %v4440
    %v4442 = vrot.slane %v2602, %v4441
    %v4444 = vunpack.c.l.s4 1966171168
    %v4445 = vunpack.c.0.s8 %v4444
    %v4446 = vlaneseq
    %v4447 = vshrl.u32 %v4446, 7
    %v4448 = vsub.s32 %v4445, %v4447
    %v4449 = vrot.slane %v4442, %v4448
    %v4451 = vunpack.c.l.s4 1966171168
    %v4452 = vunpack.c.0.s8 %v4451
    %v4453 = vlaneseq
    %v4454 = vshrl.u32 %v4453, 7
    %v4455 = vsub.s32 %v4452, %v4454
    %v4456 = vrot.slane %v2603, %v4455
    %v4458 = vunpack.c.l.s4 1966171168
    %v4459 = vunpack.c.0.s8 %v4458
    %v4460 = vlaneseq
    %v4461 = vshrl.u32 %v4460, 7
    %v4462 = vsub.s32 %v4459, %v4461
    %v4463 = vrot.slane %v4456, %v4462
    %v4465 = vunpack.c.l.s4 1966171168
    %v4466 = vunpack.c.0.s8 %v4465
    %v4467 = vlaneseq
    %v4468 = vshrl.u32 %v4467, 7
    %v4469 = vsub.s32 %v4466, %v4468
    %v4470 = vrot.slane %v2604, %v4469
    %v4472 = vunpack.c.l.s4 1966171168
    %v4473 = vunpack.c.0.s8 %v4472
    %v4474 = vlaneseq
    %v4475 = vshrl.u32 %v4474, 7
    %v4476 = vsub.s32 %v4473, %v4475
    %v4477 = vrot.slane %v4470, %v4476
    %v4479 = vunpack.c.l.s4 1966171168
    %v4480 = vunpack.c.0.s8 %v4479
    %v4481 = vlaneseq
    %v4482 = vshrl.u32 %v4481, 7
    %v4483 = vsub.s32 %v4480, %v4482
    %v4484 = vrot.slane %v2605, %v4483
    %v4486 = vunpack.c.l.s4 1966171168
    %v4487 = vunpack.c.0.s8 %v4486
    %v4488 = vlaneseq
    %v4489 = vshrl.u32 %v4488, 7
    %v4490 = vsub.s32 %v4487, %v4489
    %v4491 = vrot.slane %v4484, %v4490
    %v4493 = vunpack.c.l.s4 1966171168
    %v4494 = vunpack.c.0.s8 %v4493
    %v4495 = vlaneseq
    %v4496 = vshrl.u32 %v4495, 7
    %v4497 = vsub.s32 %v4494, %v4496
    %v4498 = vrot.slane %v2606, %v4497
    %v4500 = vunpack.c.l.s4 1966171168
    %v4501 = vunpack.c.0.s8 %v4500
    %v4502 = vlaneseq
    %v4503 = vshrl.u32 %v4502, 7
    %v4504 = vsub.s32 %v4501, %v4503
    %v4505 = vrot.slane %v4498, %v4504
    %v4507 = vunpack.c.l.s4 1966171168
    %v4508 = vunpack.c.0.s8 %v4507
    %v4509 = vlaneseq
    %v4510 = vshrl.u32 %v4509, 7
    %v4511 = vsub.s32 %v4508, %v4510
    %v4512 = vrot.slane %v2607, %v4511
    %v4514 = vunpack.c.l.s4 1966171168
    %v4515 = vunpack.c.0.s8 %v4514
    %v4516 = vlaneseq
    %v4517 = vshrl.u32 %v4516, 7
    %v4518 = vsub.s32 %v4515, %v4517
    %v4519 = vrot.slane %v4512, %v4518
    %v4521 = vunpack.c.l.s4 1966171168
    %v4522 = vunpack.c.0.s8 %v4521
    %v4523 = vlaneseq
    %v4524 = vshrl.u32 %v4523, 7
    %v4525 = vsub.s32 %v4522, %v4524
    %v4526 = vrot.slane %v2608, %v4525
    %v4528 = vunpack.c.l.s4 1966171168
    %v4529 = vunpack.c.0.s8 %v4528
    %v4530 = vlaneseq
    %v4531 = vshrl.u32 %v4530, 7
    %v4532 = vsub.s32 %v4529, %v4531
    %v4533 = vrot.slane %v4526, %v4532
    %v4535 = vunpack.c.l.s4 1966171168
    %v4536 = vunpack.c.0.s8 %v4535
    %v4537 = vlaneseq
    %v4538 = vshrl.u32 %v4537, 7
    %v4539 = vsub.s32 %v4536, %v4538
    %v4540 = vrot.slane %v2609, %v4539
    %v4542 = vunpack.c.l.s4 1966171168
    %v4543 = vunpack.c.0.s8 %v4542
    %v4544 = vlaneseq
    %v4545 = vshrl.u32 %v4544, 7
    %v4546 = vsub.s32 %v4543, %v4545
    %v4547 = vrot.slane %v4540, %v4546
    %v4549 = vunpack.c.l.s4 1966171168
    %v4550 = vunpack.c.0.s8 %v4549
    %v4551 = vlaneseq
    %v4552 = vshrl.u32 %v4551, 7
    %v4553 = vsub.s32 %v4550, %v4552
    %v4554 = vrot.slane %v2610, %v4553
    %v4556 = vunpack.c.l.s4 1966171168
    %v4557 = vunpack.c.0.s8 %v4556
    %v4558 = vlaneseq
    %v4559 = vshrl.u32 %v4558, 7
    %v4560 = vsub.s32 %v4557, %v4559
    %v4561 = vrot.slane %v4554, %v4560
    %v4563 = vunpack.c.l.s4 1966171168
    %v4564 = vunpack.c.0.s8 %v4563
    %v4565 = vlaneseq
    %v4566 = vshrl.u32 %v4565, 7
    %v4567 = vsub.s32 %v4564, %v4566
    %v4568 = vrot.slane %v2611, %v4567
    %v4570 = vunpack.c.l.s4 1966171168
    %v4571 = vunpack.c.0.s8 %v4570
    %v4572 = vlaneseq
    %v4573 = vshrl.u32 %v4572, 7
    %v4574 = vsub.s32 %v4571, %v4573
    %v4575 = vrot.slane %v4568, %v4574
    %v4577 = vunpack.c.l.s4 1966171168
    %v4578 = vunpack.c.0.s8 %v4577
    %v4579 = vlaneseq
    %v4580 = vshrl.u32 %v4579, 7
    %v4581 = vsub.s32 %v4578, %v4580
    %v4582 = vrot.slane %v2612, %v4581
    %v4584 = vunpack.c.l.s4 1966171168
    %v4585 = vunpack.c.0.s8 %v4584
    %v4586 = vlaneseq
    %v4587 = vshrl.u32 %v4586, 7
    %v4588 = vsub.s32 %v4585, %v4587
    %v4589 = vrot.slane %v4582, %v4588
    %v4591 = vunpack.c.l.s4 1966171168
    %v4592 = vunpack.c.0.s8 %v4591
    %v4593 = vlaneseq
    %v4594 = vshrl.u32 %v4593, 7
    %v4595 = vsub.s32 %v4592, %v4594
    %v4596 = vrot.slane %v2613, %v4595
    %v4598 = vunpack.c.l.s4 1966171168
    %v4599 = vunpack.c.0.s8 %v4598
    %v4600 = vlaneseq
    %v4601 = vshrl.u32 %v4600, 7
    %v4602 = vsub.s32 %v4599, %v4601
    %v4603 = vrot.slane %v4596, %v4602
    %v4605 = vunpack.c.l.s4 1966171168
    %v4606 = vunpack.c.0.s8 %v4605
    %v4607 = vlaneseq
    %v4608 = vshrl.u32 %v4607, 7
    %v4609 = vsub.s32 %v4606, %v4608
    %v4610 = vrot.slane %v2614, %v4609
    %v4612 = vunpack.c.l.s4 1966171168
    %v4613 = vunpack.c.0.s8 %v4612
    %v4614 = vlaneseq
    %v4615 = vshrl.u32 %v4614, 7
    %v4616 = vsub.s32 %v4613, %v4615
    %v4617 = vrot.slane %v4610, %v4616
    %v4619 = vunpack.c.l.s4 1966171168
    %v4620 = vunpack.c.0.s8 %v4619
    %v4621 = vlaneseq
    %v4622 = vshrl.u32 %v4621, 7
    %v4623 = vsub.s32 %v4620, %v4622
    %v4624 = vrot.slane %v2615, %v4623
    %v4626 = vunpack.c.l.s4 1966171168
    %v4627 = vunpack.c.0.s8 %v4626
    %v4628 = vlaneseq
    %v4629 = vshrl.u32 %v4628, 7
    %v4630 = vsub.s32 %v4627, %v4629
    %v4631 = vrot.slane %v4624, %v4630
    %v4633 = vunpack.c.l.s4 1966171168
    %v4634 = vunpack.c.0.s8 %v4633
    %v4635 = vlaneseq
    %v4636 = vshrl.u32 %v4635, 7
    %v4637 = vsub.s32 %v4634, %v4636
    %v4638 = vrot.slane %v2616, %v4637
    %v4640 = vunpack.c.l.s4 1966171168
    %v4641 = vunpack.c.0.s8 %v4640
    %v4642 = vlaneseq
    %v4643 = vshrl.u32 %v4642, 7
    %v4644 = vsub.s32 %v4641, %v4643
    %v4645 = vrot.slane %v4638, %v4644
    %v4646 = vunpack.c.l.b16 %v2867
    %v4647 = vunpack.c.l.b16 %v2881
    %v4648 = vunpack.c.l.b16 %v2895
    %v4649 = vunpack.c.l.b16 %v2909
    %v4650 = vunpack.c.l.b16 %v2923
    %v4651 = vunpack.c.l.b16 %v2937
    %v4652 = vunpack.c.l.b16 %v2951
    %v4653 = vunpack.c.l.b16 %v2965
    %v4654 = vunpack.c.l.b16 %v2979
    %v4655 = vunpack.c.l.b16 %v2993
    %v4656 = vunpack.c.l.b16 %v3007
    %v4657 = vunpack.c.l.b16 %v3021
    %v4658 = vunpack.c.l.b16 %v3035
    %v4659 = vunpack.c.l.b16 %v3049
    %v4660 = vunpack.c.l.b16 %v3063
    %v4661 = vunpack.c.l.b16 %v3077
    %v4662 = vunpack.c.l.b16 %v3091
    %v4663 = vunpack.c.l.b16 %v3105
    %v4664 = vunpack.c.l.b16 %v3119
    %v4665 = vunpack.c.l.b16 %v3133
    %v4666 = vunpack.c.l.b16 %v3147
    %v4667 = vunpack.c.l.b16 %v3161
    %v4668 = vunpack.c.l.b16 %v3175
    %v4669 = vunpack.c.l.b16 %v3189
    %v4670 = vunpack.c.l.b16 %v3203
    %v4671 = vunpack.c.l.b16 %v3217
    %v4672 = vunpack.c.l.b16 %v3231
    %v4673 = vunpack.c.l.b16 %v3245
    %v4674 = vunpack.c.l.b16 %v3259
    %v4675 = vunpack.c.l.b16 %v3273
    %v4676 = vunpack.c.l.b16 %v3287
    %v4677 = vunpack.c.l.b16 %v3301
    %v4678 = vunpack.c.l.b16 %v3315
    %v4679 = vunpack.c.l.b16 %v3329
    %v4680 = vunpack.c.l.b16 %v3343
    %v4681 = vunpack.c.l.b16 %v3357
    %v4682 = vunpack.c.l.b16 %v3371
    %v4683 = vunpack.c.l.b16 %v3385
    %v4684 = vunpack.c.l.b16 %v3399
    %v4685 = vunpack.c.l.b16 %v3413
    %v4686 = vunpack.c.l.b16 %v3427
    %v4687 = vunpack.c.l.b16 %v3441
    %v4688 = vunpack.c.l.b16 %v3455
    %v4689 = vunpack.c.l.b16 %v3469
    %v4690 = vunpack.c.l.b16 %v3483
    %v4691 = vunpack.c.l.b16 %v3497
    %v4692 = vunpack.c.l.b16 %v3511
    %v4693 = vunpack.c.l.b16 %v3525
    %v4694 = vunpack.c.l.b16 %v3539
    %v4695 = vunpack.c.l.b16 %v3553
    %v4696 = vunpack.c.l.b16 %v3567
    %v4697 = vunpack.c.l.b16 %v3581
    %v4698 = vunpack.c.l.b16 %v3595
    %v4699 = vunpack.c.l.b16 %v3609
    %v4700 = vunpack.c.l.b16 %v3623
    %v4701 = vunpack.c.l.b16 %v3637
    %v4702 = vunpack.c.l.b16 %v3651
    %v4703 = vunpack.c.l.b16 %v3665
    %v4704 = vunpack.c.l.b16 %v3679
    %v4705 = vunpack.c.l.b16 %v3693
    %v4706 = vunpack.c.l.b16 %v3707
    %v4707 = vunpack.c.l.b16 %v3721
    %v4708 = vunpack.c.l.b16 %v3735
    %v4709 = vunpack.c.l.b16 %v3749
    %v4710 = vunpack.c.l.b16 %v3763
    %v4711 = vunpack.c.l.b16 %v3777
    %v4712 = vunpack.c.l.b16 %v3791
    %v4713 = vunpack.c.l.b16 %v3805
    %v4714 = vunpack.c.l.b16 %v3819
    %v4715 = vunpack.c.l.b16 %v3833
    %v4716 = vunpack.c.l.b16 %v3847
    %v4717 = vunpack.c.l.b16 %v3861
    %v4718 = vunpack.c.l.b16 %v3875
    %v4719 = vunpack.c.l.b16 %v3889
    %v4720 = vunpack.c.l.b16 %v3903
    %v4721 = vunpack.c.l.b16 %v3917
    %v4722 = vunpack.c.l.b16 %v3931
    %v4723 = vunpack.c.l.b16 %v3945
    %v4724 = vunpack.c.l.b16 %v3959
    %v4725 = vunpack.c.l.b16 %v3973
    %v4726 = vunpack.c.l.b16 %v3987
    %v4727 = vunpack.c.l.b16 %v4001
    %v4728 = vunpack.c.l.b16 %v4015
    %v4729 = vunpack.c.l.b16 %v4029
    %v4730 = vunpack.c.l.b16 %v4043
    %v4731 = vunpack.c.l.b16 %v4057
    %v4732 = vunpack.c.l.b16 %v4071
    %v4733 = vunpack.c.l.b16 %v4085
    %v4734 = vunpack.c.l.b16 %v4099
    %v4735 = vunpack.c.l.b16 %v4113
    %v4736 = vunpack.c.l.b16 %v4127
    %v4737 = vunpack.c.l.b16 %v4141
    %v4738 = vunpack.c.l.b16 %v4155
    %v4739 = vunpack.c.l.b16 %v4169
    %v4740 = vunpack.c.l.b16 %v4183
    %v4741 = vunpack.c.l.b16 %v4197
    %v4742 = vunpack.c.l.b16 %v4211
    %v4743 = vunpack.c.l.b16 %v4225
    %v4744 = vunpack.c.l.b16 %v4239
    %v4745 = vunpack.c.l.b16 %v4253
    %v4746 = vunpack.c.l.b16 %v4267
    %v4747 = vunpack.c.l.b16 %v4281
    %v4748 = vunpack.c.l.b16 %v4295
    %v4749 = vunpack.c.l.b16 %v4309
    %v4750 = vunpack.c.l.b16 %v4323
    %v4751 = vunpack.c.l.b16 %v4337
    %v4752 = vunpack.c.l.b16 %v4351
    %v4753 = vunpack.c.l.b16 %v4365
    %v4754 = vunpack.c.l.b16 %v4379
    %v4755 = vunpack.c.l.b16 %v4393
    %v4756 = vunpack.c.l.b16 %v4407
    %v4757 = vunpack.c.l.b16 %v4421
    %v4758 = vunpack.c.l.b16 %v4435
    %v4759 = vunpack.c.l.b16 %v4449
    %v4760 = vunpack.c.l.b16 %v4463
    %v4761 = vunpack.c.l.b16 %v4477
    %v4762 = vunpack.c.l.b16 %v4491
    %v4763 = vunpack.c.l.b16 %v4505
    %v4764 = vunpack.c.l.b16 %v4519
    %v4765 = vunpack.c.l.b16 %v4533
    %v4766 = vunpack.c.l.b16 %v4547
    %v4767 = vunpack.c.l.b16 %v4561
    %v4768 = vunpack.c.l.b16 %v4575
    %v4769 = vunpack.c.l.b16 %v4589
    %v4770 = vunpack.c.l.b16 %v4603
    %v4771 = vunpack.c.l.b16 %v4617
    %v4772 = vunpack.c.l.b16 %v4631
    %v4773 = vunpack.c.l.b16 %v4645
    %v4774 = vrot.slane %v4646, 7
    %v4775 = vrot.slane %v4647, 6
    %vm4776 = vcmask 1042434
    %v4777 = vsel %vm4776, %v4775, %v4774
    %v4778 = vrot.slane %v4648, 5
    %vm4779 = vcmask 1043459
    %v4780 = vsel %vm4779, %v4778, %v4777
    %v4781 = vrot.slane %v4649, 4
    %vm4782 = vcmask 1044484
    %v4783 = vsel %vm4782, %v4781, %v4780
    %v4784 = vrot.slane %v4650, 3
    %vm4785 = vcmask 1045509
    %v4786 = vsel %vm4785, %v4784, %v4783
    %v4787 = vrot.slane %v4651, 2
    %vm4788 = vcmask 1046534
    %v4789 = vsel %vm4788, %v4787, %v4786
    %v4790 = vrot.slane %v4652, 1
    %vm4791 = vcmask 1047559
    %v4792 = vsel %vm4791, %v4790, %v4789
    %v4793 = vrot.slane %v4654, 7
    %v4794 = vrot.slane %v4655, 6
    %v4795 = vsel %vm4776, %v4794, %v4793
    %v4796 = vrot.slane %v4656, 5
    %v4797 = vsel %vm4779, %v4796, %v4795
    %v4798 = vrot.slane %v4657, 4
    %v4799 = vsel %vm4782, %v4798, %v4797
    %v4800 = vrot.slane %v4658, 3
    %v4801 = vsel %vm4785, %v4800, %v4799
    %v4802 = vrot.slane %v4659, 2
    %v4803 = vsel %vm4788, %v4802, %v4801
    %v4804 = vrot.slane %v4660, 1
    %v4805 = vsel %vm4791, %v4804, %v4803
    %v4806 = vrot.slane %v4662, 7
    %v4807 = vrot.slane %v4663, 6
    %v4808 = vsel %vm4776, %v4807, %v4806
    %v4809 = vrot.slane %v4664, 5
    %v4810 = vsel %vm4779, %v4809, %v4808
    %v4811 = vrot.slane %v4665, 4
    %v4812 = vsel %vm4782, %v4811, %v4810
    %v4813 = vrot.slane %v4666, 3
    %v4814 = vsel %vm4785, %v4813, %v4812
    %v4815 = vrot.slane %v4667, 2
    %v4816 = vsel %vm4788, %v4815, %v4814
    %v4817 = vrot.slane %v4668, 1
    %v4818 = vsel %vm4791, %v4817, %v4816
    %v4819 = vrot.slane %v4670, 7
    %v4820 = vrot.slane %v4671, 6
    %v4821 = vsel %vm4776, %v4820, %v4819
    %v4822 = vrot.slane %v4672, 5
    %v4823 = vsel %vm4779, %v4822, %v4821
    %v4824 = vrot.slane %v4673, 4
    %v4825 = vsel %vm4782, %v4824, %v4823
    %v4826 = vrot.slane %v4674, 3
    %v4827 = vsel %vm4785, %v4826, %v4825
    %v4828 = vrot.slane %v4675, 2
    %v4829 = vsel %vm4788, %v4828, %v4827
    %v4830 = vrot.slane %v4676, 1
    %v4831 = vsel %vm4791, %v4830, %v4829
    %v4832 = vrot.slane %v4678, 7
    %v4833 = vrot.slane %v4679, 6
    %v4834 = vsel %vm4776, %v4833, %v4832
    %v4835 = vrot.slane %v4680, 5
    %v4836 = vsel %vm4779, %v4835, %v4834
    %v4837 = vrot.slane %v4681, 4
    %v4838 = vsel %vm4782, %v4837, %v4836
    %v4839 = vrot.slane %v4682, 3
    %v4840 = vsel %vm4785, %v4839, %v4838
    %v4841 = vrot.slane %v4683, 2
    %v4842 = vsel %vm4788, %v4841, %v4840
    %v4843 = vrot.slane %v4684, 1
    %v4844 = vsel %vm4791, %v4843, %v4842
    %v4845 = vrot.slane %v4686, 7
    %v4846 = vrot.slane %v4687, 6
    %v4847 = vsel %vm4776, %v4846, %v4845
    %v4848 = vrot.slane %v4688, 5
    %v4849 = vsel %vm4779, %v4848, %v4847
    %v4850 = vrot.slane %v4689, 4
    %v4851 = vsel %vm4782, %v4850, %v4849
    %v4852 = vrot.slane %v4690, 3
    %v4853 = vsel %vm4785, %v4852, %v4851
    %v4854 = vrot.slane %v4691, 2
    %v4855 = vsel %vm4788, %v4854, %v4853
    %v4856 = vrot.slane %v4692, 1
    %v4857 = vsel %vm4791, %v4856, %v4855
    %v4858 = vrot.slane %v4694, 7
    %v4859 = vrot.slane %v4695, 6
    %v4860 = vsel %vm4776, %v4859, %v4858
    %v4861 = vrot.slane %v4696, 5
    %v4862 = vsel %vm4779, %v4861, %v4860
    %v4863 = vrot.slane %v4697, 4
    %v4864 = vsel %vm4782, %v4863, %v4862
    %v4865 = vrot.slane %v4698, 3
    %v4866 = vsel %vm4785, %v4865, %v4864
    %v4867 = vrot.slane %v4699, 2
    %v4868 = vsel %vm4788, %v4867, %v4866
    %v4869 = vrot.slane %v4700, 1
    %v4870 = vsel %vm4791, %v4869, %v4868
    %v4871 = vrot.slane %v4702, 7
    %v4872 = vrot.slane %v4703, 6
    %v4873 = vsel %vm4776, %v4872, %v4871
    %v4874 = vrot.slane %v4704, 5
    %v4875 = vsel %vm4779, %v4874, %v4873
    %v4876 = vrot.slane %v4705, 4
    %v4877 = vsel %vm4782, %v4876, %v4875
    %v4878 = vrot.slane %v4706, 3
    %v4879 = vsel %vm4785, %v4878, %v4877
    %v4880 = vrot.slane %v4707, 2
    %v4881 = vsel %vm4788, %v4880, %v4879
    %v4882 = vrot.slane %v4708, 1
    %v4883 = vsel %vm4791, %v4882, %v4881
    %v4884 = vrot.slane %v4710, 7
    %v4885 = vrot.slane %v4711, 6
    %v4886 = vsel %vm4776, %v4885, %v4884
    %v4887 = vrot.slane %v4712, 5
    %v4888 = vsel %vm4779, %v4887, %v4886
    %v4889 = vrot.slane %v4713, 4
    %v4890 = vsel %vm4782, %v4889, %v4888
    %v4891 = vrot.slane %v4714, 3
    %v4892 = vsel %vm4785, %v4891, %v4890
    %v4893 = vrot.slane %v4715, 2
    %v4894 = vsel %vm4788, %v4893, %v4892
    %v4895 = vrot.slane %v4716, 1
    %v4896 = vsel %vm4791, %v4895, %v4894
    %v4897 = vrot.slane %v4718, 7
    %v4898 = vrot.slane %v4719, 6
    %v4899 = vsel %vm4776, %v4898, %v4897
    %v4900 = vrot.slane %v4720, 5
    %v4901 = vsel %vm4779, %v4900, %v4899
    %v4902 = vrot.slane %v4721, 4
    %v4903 = vsel %vm4782, %v4902, %v4901
    %v4904 = vrot.slane %v4722, 3
    %v4905 = vsel %vm4785, %v4904, %v4903
    %v4906 = vrot.slane %v4723, 2
    %v4907 = vsel %vm4788, %v4906, %v4905
    %v4908 = vrot.slane %v4724, 1
    %v4909 = vsel %vm4791, %v4908, %v4907
    %v4910 = vrot.slane %v4726, 7
    %v4911 = vrot.slane %v4727, 6
    %v4912 = vsel %vm4776, %v4911, %v4910
    %v4913 = vrot.slane %v4728, 5
    %v4914 = vsel %vm4779, %v4913, %v4912
    %v4915 = vrot.slane %v4729, 4
    %v4916 = vsel %vm4782, %v4915, %v4914
    %v4917 = vrot.slane %v4730, 3
    %v4918 = vsel %vm4785, %v4917, %v4916
    %v4919 = vrot.slane %v4731, 2
    %v4920 = vsel %vm4788, %v4919, %v4918
    %v4921 = vrot.slane %v4732, 1
    %v4922 = vsel %vm4791, %v4921, %v4920
    %v4923 = vrot.slane %v4734, 7
    %v4924 = vrot.slane %v4735, 6
    %v4925 = vsel %vm4776, %v4924, %v4923
    %v4926 = vrot.slane %v4736, 5
    %v4927 = vsel %vm4779, %v4926, %v4925
    %v4928 = vrot.slane %v4737, 4
    %v4929 = vsel %vm4782, %v4928, %v4927
    %v4930 = vrot.slane %v4738, 3
    %v4931 = vsel %vm4785, %v4930, %v4929
    %v4932 = vrot.slane %v4739, 2
    %v4933 = vsel %vm4788, %v4932, %v4931
    %v4934 = vrot.slane %v4740, 1
    %v4935 = vsel %vm4791, %v4934, %v4933
    %v4936 = vrot.slane %v4742, 7
    %v4937 = vrot.slane %v4743, 6
    %v4938 = vsel %vm4776, %v4937, %v4936
    %v4939 = vrot.slane %v4744, 5
    %v4940 = vsel %vm4779, %v4939, %v4938
    %v4941 = vrot.slane %v4745, 4
    %v4942 = vsel %vm4782, %v4941, %v4940
    %v4943 = vrot.slane %v4746, 3
    %v4944 = vsel %vm4785, %v4943, %v4942
    %v4945 = vrot.slane %v4747, 2
    %v4946 = vsel %vm4788, %v4945, %v4944
    %v4947 = vrot.slane %v4748, 1
    %v4948 = vsel %vm4791, %v4947, %v4946
    %v4949 = vrot.slane %v4750, 7
    %v4950 = vrot.slane %v4751, 6
    %v4951 = vsel %vm4776, %v4950, %v4949
    %v4952 = vrot.slane %v4752, 5
    %v4953 = vsel %vm4779, %v4952, %v4951
    %v4954 = vrot.slane %v4753, 4
    %v4955 = vsel %vm4782, %v4954, %v4953
    %v4956 = vrot.slane %v4754, 3
    %v4957 = vsel %vm4785, %v4956, %v4955
    %v4958 = vrot.slane %v4755, 2
    %v4959 = vsel %vm4788, %v4958, %v4957
    %v4960 = vrot.slane %v4756, 1
    %v4961 = vsel %vm4791, %v4960, %v4959
    %v4962 = vrot.slane %v4758, 7
    %v4963 = vrot.slane %v4759, 6
    %v4964 = vsel %vm4776, %v4963, %v4962
    %v4965 = vrot.slane %v4760, 5
    %v4966 = vsel %vm4779, %v4965, %v4964
    %v4967 = vrot.slane %v4761, 4
    %v4968 = vsel %vm4782, %v4967, %v4966
    %v4969 = vrot.slane %v4762, 3
    %v4970 = vsel %vm4785, %v4969, %v4968
    %v4971 = vrot.slane %v4763, 2
    %v4972 = vsel %vm4788, %v4971, %v4970
    %v4973 = vrot.slane %v4764, 1
    %v4974 = vsel %vm4791, %v4973, %v4972
    %v4975 = vrot.slane %v4766, 7
    %v4976 = vrot.slane %v4767, 6
    %v4977 = vsel %vm4776, %v4976, %v4975
    %v4978 = vrot.slane %v4768, 5
    %v4979 = vsel %vm4779, %v4978, %v4977
    %v4980 = vrot.slane %v4769, 4
    %v4981 = vsel %vm4782, %v4980, %v4979
    %v4982 = vrot.slane %v4770, 3
    %v4983 = vsel %vm4785, %v4982, %v4981
    %v4984 = vrot.slane %v4771, 2
    %v4985 = vsel %vm4788, %v4984, %v4983
    %v4986 = vrot.slane %v4772, 1
    %v4987 = vsel %vm4791, %v4986, %v4985
    %v4988 = vpack.c.b16 %v4653, %v4792
    %v4989 = vpack.c.b16 %v4661, %v4805
    %v4990 = vpack.c.b16 %v4669, %v4818
    %v4991 = vpack.c.b16 %v4677, %v4831
    %v4992 = vpack.c.b16 %v4685, %v4844
    %v4993 = vpack.c.b16 %v4693, %v4857
    %v4994 = vpack.c.b16 %v4701, %v4870
    %v4995 = vpack.c.b16 %v4709, %v4883
    %v4996 = vpack.c.b16 %v4717, %v4896
    %v4997 = vpack.c.b16 %v4725, %v4909
    %v4998 = vpack.c.b16 %v4733, %v4922
    %v4999 = vpack.c.b16 %v4741, %v4935
    %v5000 = vpack.c.b16 %v4749, %v4948
    %v5001 = vpack.c.b16 %v4757, %v4961
    %v5002 = vpack.c.b16 %v4765, %v4974
    %v5003 = vpack.c.b16 %v4773, %v4987
    %vm5020 = vcmask 258048
    %vm5021 = vsmask.f32 4354
    %vm5022 = vmand %vm5020, %vm5021
    %v5023 = vld [vmem:[%s2623] sm:$0x1f]
    %v5024 = vsel %vm5022, %v4988, %v5023
    %5025 = vst [vmem:[%s2623] sm:$0x1f] %v5024
    %v5026 = vld [vmem:[%s2623 + $0x8] sm:$0x1f]
    %v5027 = vsel %vm5022, %v4989, %v5026
    %5028 = vst [vmem:[%s2623 + $0x8] sm:$0x1f] %v5027
    %v5029 = vld [vmem:[%s2623 + $0x10] sm:$0x1f]
    %v5030 = vsel %vm5022, %v4990, %v5029
    %5031 = vst [vmem:[%s2623 + $0x10] sm:$0x1f] %v5030
    %v5032 = vld [vmem:[%s2623 + $0x18] sm:$0x1f]
    %v5033 = vsel %vm5022, %v4991, %v5032
    %5034 = vst [vmem:[%s2623 + $0x18] sm:$0x1f] %v5033
    %v5035 = vld [vmem:[%s2623 + $0x20] sm:$0x1f]
    %v5036 = vsel %vm5022, %v4992, %v5035
    %5037 = vst [vmem:[%s2623 + $0x20] sm:$0x1f] %v5036
    %v5038 = vld [vmem:[%s2623 + $0x28] sm:$0x1f]
    %v5039 = vsel %vm5022, %v4993, %v5038
    %5040 = vst [vmem:[%s2623 + $0x28] sm:$0x1f] %v5039
    %v5041 = vld [vmem:[%s2623 + $0x30] sm:$0x1f]
    %v5042 = vsel %vm5022, %v4994, %v5041
    %5043 = vst [vmem:[%s2623 + $0x30] sm:$0x1f] %v5042
    %v5044 = vld [vmem:[%s2623 + $0x38] sm:$0x1f]
    %v5045 = vsel %vm5022, %v4995, %v5044
    %5046 = vst [vmem:[%s2623 + $0x38] sm:$0x1f] %v5045
    %v5047 = vld [vmem:[%s2623 + $0x50] sm:$0x1f]
    %v5048 = vsel %vm5022, %v4996, %v5047
    %5049 = vst [vmem:[%s2623 + $0x50] sm:$0x1f] %v5048
    %v5050 = vld [vmem:[%s2623 + $0x58] sm:$0x1f]
    %v5051 = vsel %vm5022, %v4997, %v5050
    %5052 = vst [vmem:[%s2623 + $0x58] sm:$0x1f] %v5051
    %v5053 = vld [vmem:[%s2623 + $0x60] sm:$0x1f]
    %v5054 = vsel %vm5022, %v4998, %v5053
    %5055 = vst [vmem:[%s2623 + $0x60] sm:$0x1f] %v5054
    %v5056 = vld [vmem:[%s2623 + $0x68] sm:$0x1f]
    %v5057 = vsel %vm5022, %v4999, %v5056
    %5058 = vst [vmem:[%s2623 + $0x68] sm:$0x1f] %v5057
    %v5059 = vld [vmem:[%s2623 + $0x70] sm:$0x1f]
    %v5060 = vsel %vm5022, %v5000, %v5059
    %5061 = vst [vmem:[%s2623 + $0x70] sm:$0x1f] %v5060
    %v5062 = vld [vmem:[%s2623 + $0x78] sm:$0x1f]
    %v5063 = vsel %vm5022, %v5001, %v5062
    %5064 = vst [vmem:[%s2623 + $0x78] sm:$0x1f] %v5063
    %v5065 = vld [vmem:[%s2623 + $0x80] sm:$0x1f]
    %v5066 = vsel %vm5022, %v5002, %v5065
    %5067 = vst [vmem:[%s2623 + $0x80] sm:$0x1f] %v5066
    %v5068 = vld [vmem:[%s2623 + $0x88] sm:$0x1f]
    %v5069 = vsel %vm5022, %v5003, %v5068
    %5070 = vst [vmem:[%s2623 + $0x88] sm:$0x1f] %v5069
    %v5071 = vld [vmem:[#allocation2] sm:$0xf]
    %v5072 = vld [vmem:[#allocation2 + $0x8] sm:$0xf]
    %v5073 = vld [vmem:[#allocation2 + $0x10] sm:$0xf]
    %v5074 = vld [vmem:[#allocation2 + $0x18] sm:$0xf]
    %v5075 = vld [vmem:[#allocation2 + $0x20] sm:$0xf]
    %v5076 = vld [vmem:[#allocation2 + $0x28] sm:$0xf]
    %v5077 = vld [vmem:[#allocation2 + $0x30] sm:$0xf]
    %v5078 = vld [vmem:[#allocation2 + $0x38] sm:$0xf]
    %v5079 = vld [vmem:[#allocation2 + $0x50] sm:$0xf]
    %v5080 = vld [vmem:[#allocation2 + $0x58] sm:$0xf]
    %v5081 = vld [vmem:[#allocation2 + $0x60] sm:$0xf]
    %v5082 = vld [vmem:[#allocation2 + $0x68] sm:$0xf]
    %v5083 = vld [vmem:[#allocation2 + $0x70] sm:$0xf]
    %v5084 = vld [vmem:[#allocation2 + $0x78] sm:$0xf]
    %v5085 = vld [vmem:[#allocation2 + $0x80] sm:$0xf]
    %v5086 = vld [vmem:[#allocation2 + $0x88] sm:$0xf]
    %v5087 = vld [vmem:[#allocation2] sm:$0x1f]
    %v5088 = vld [vmem:[#allocation2 + $0x8] sm:$0x1f]
    %v5089 = vld [vmem:[#allocation2 + $0x10] sm:$0x1f]
    %v5090 = vld [vmem:[#allocation2 + $0x18] sm:$0x1f]
    %v5091 = vld [vmem:[#allocation2 + $0x20] sm:$0x1f]
    %v5092 = vld [vmem:[#allocation2 + $0x28] sm:$0x1f]
    %v5093 = vld [vmem:[#allocation2 + $0x30] sm:$0x1f]
    %v5094 = vld [vmem:[#allocation2 + $0x38] sm:$0x1f]
    %v5095 = vld [vmem:[#allocation2 + $0x50] sm:$0x1f]
    %v5096 = vld [vmem:[#allocation2 + $0x58] sm:$0x1f]
    %v5097 = vld [vmem:[#allocation2 + $0x60] sm:$0x1f]
    %v5098 = vld [vmem:[#allocation2 + $0x68] sm:$0x1f]
    %v5099 = vld [vmem:[#allocation2 + $0x70] sm:$0x1f]
    %v5100 = vld [vmem:[#allocation2 + $0x78] sm:$0x1f]
    %v5101 = vld [vmem:[#allocation2 + $0x80] sm:$0x1f]
    %v5102 = vld [vmem:[#allocation2 + $0x88] sm:$0x1f]
    %v5119 = vunpack.c.l.b16 %v5087
    %v5120 = vunpack.c.h.b16 %v5087
    %v5121 = vunpack.c.l.b16 %v5088
    %v5122 = vunpack.c.h.b16 %v5088
    %v5123 = vunpack.c.l.b16 %v5089
    %v5124 = vunpack.c.h.b16 %v5089
    %v5125 = vunpack.c.l.b16 %v5090
    %v5126 = vunpack.c.h.b16 %v5090
    %v5127 = vunpack.c.l.b16 %v5091
    %v5128 = vunpack.c.h.b16 %v5091
    %v5129 = vunpack.c.l.b16 %v5092
    %v5130 = vunpack.c.h.b16 %v5092
    %v5131 = vunpack.c.l.b16 %v5093
    %v5132 = vunpack.c.h.b16 %v5093
    %v5133 = vunpack.c.l.b16 %v5094
    %v5134 = vunpack.c.h.b16 %v5094
    %v5135 = vunpack.c.l.b16 %v5095
    %v5136 = vunpack.c.h.b16 %v5095
    %v5137 = vunpack.c.l.b16 %v5096
    %v5138 = vunpack.c.h.b16 %v5096
    %v5139 = vunpack.c.l.b16 %v5097
    %v5140 = vunpack.c.h.b16 %v5097
    %v5141 = vunpack.c.l.b16 %v5098
    %v5142 = vunpack.c.h.b16 %v5098
    %v5143 = vunpack.c.l.b16 %v5099
    %v5144 = vunpack.c.h.b16 %v5099
    %v5145 = vunpack.c.l.b16 %v5100
    %v5146 = vunpack.c.h.b16 %v5100
    %v5147 = vunpack.c.l.b16 %v5101
    %v5148 = vunpack.c.h.b16 %v5101
    %v5149 = vunpack.c.l.b16 %v5102
    %v5150 = vunpack.c.h.b16 %v5102
    %v5151 = vpack.c.b16 %v5119, %v5119
    %v5152 = vpack.c.b16 %v5120, %v5120
    %v5153 = vpack.c.b16 %v5121, %v5121
    %v5154 = vpack.c.b16 %v5122, %v5122
    %v5155 = vpack.c.b16 %v5123, %v5123
    %v5156 = vpack.c.b16 %v5124, %v5124
    %v5157 = vpack.c.b16 %v5125, %v5125
    %v5158 = vpack.c.b16 %v5126, %v5126
    %v5159 = vpack.c.b16 %v5127, %v5127
    %v5160 = vpack.c.b16 %v5128, %v5128
    %v5161 = vpack.c.b16 %v5129, %v5129
    %v5162 = vpack.c.b16 %v5130, %v5130
    %v5163 = vpack.c.b16 %v5131, %v5131
    %v5164 = vpack.c.b16 %v5132, %v5132
    %v5165 = vpack.c.b16 %v5133, %v5133
    %v5166 = vpack.c.b16 %v5134, %v5134
    %v5167 = vpack.c.b16 %v5135, %v5135
    %v5168 = vpack.c.b16 %v5136, %v5136
    %v5169 = vpack.c.b16 %v5137, %v5137
    %v5170 = vpack.c.b16 %v5138, %v5138
    %v5171 = vpack.c.b16 %v5139, %v5139
    %v5172 = vpack.c.b16 %v5140, %v5140
    %v5173 = vpack.c.b16 %v5141, %v5141
    %v5174 = vpack.c.b16 %v5142, %v5142
    %v5175 = vpack.c.b16 %v5143, %v5143
    %v5176 = vpack.c.b16 %v5144, %v5144
    %v5177 = vpack.c.b16 %v5145, %v5145
    %v5178 = vpack.c.b16 %v5146, %v5146
    %v5179 = vpack.c.b16 %v5147, %v5147
    %v5180 = vpack.c.b16 %v5148, %v5148
    %v5181 = vpack.c.b16 %v5149, %v5149
    %v5182 = vpack.c.b16 %v5150, %v5150
    %vm5183 = vsmask.f32 3328
    %vm5184 = vsmask.f32 7440
    %vm5185 = vmor %vm5183, %vm5184
    %v5187 = vshrl.u32 %v5151, 16
    %v5189 = vrot.slane %v5187, 4
    %v5190 = vshll.u32 %v5151, 16
    %v5192 = vrot.slane %v5190, 5
    %v5193 = vor.u32 %v5189, %v5192
    %v5194 = vrot.slane %v5193, 4
    %v5196 = vshll.u32 %v5152, 16
    %v5198 = vrot.slane %v5196, 5
    %v5199 = vsel %vm5185, %v5194, %v5198
    %v5201 = vshrl.u32 %v5153, 16
    %v5203 = vrot.slane %v5201, 4
    %v5204 = vshll.u32 %v5153, 16
    %v5206 = vrot.slane %v5204, 5
    %v5207 = vor.u32 %v5203, %v5206
    %v5208 = vrot.slane %v5207, 4
    %v5210 = vshll.u32 %v5154, 16
    %v5212 = vrot.slane %v5210, 5
    %v5213 = vsel %vm5185, %v5208, %v5212
    %v5215 = vshrl.u32 %v5155, 16
    %v5217 = vrot.slane %v5215, 4
    %v5218 = vshll.u32 %v5155, 16
    %v5220 = vrot.slane %v5218, 5
    %v5221 = vor.u32 %v5217, %v5220
    %v5222 = vrot.slane %v5221, 4
    %v5224 = vshll.u32 %v5156, 16
    %v5226 = vrot.slane %v5224, 5
    %v5227 = vsel %vm5185, %v5222, %v5226
    %v5229 = vshrl.u32 %v5157, 16
    %v5231 = vrot.slane %v5229, 4
    %v5232 = vshll.u32 %v5157, 16
    %v5234 = vrot.slane %v5232, 5
    %v5235 = vor.u32 %v5231, %v5234
    %v5236 = vrot.slane %v5235, 4
    %v5238 = vshll.u32 %v5158, 16
    %v5240 = vrot.slane %v5238, 5
    %v5241 = vsel %vm5185, %v5236, %v5240
    %v5243 = vshrl.u32 %v5159, 16
    %v5245 = vrot.slane %v5243, 4
    %v5246 = vshll.u32 %v5159, 16
    %v5248 = vrot.slane %v5246, 5
    %v5249 = vor.u32 %v5245, %v5248
    %v5250 = vrot.slane %v5249, 4
    %v5252 = vshll.u32 %v5160, 16
    %v5254 = vrot.slane %v5252, 5
    %v5255 = vsel %vm5185, %v5250, %v5254
    %v5257 = vshrl.u32 %v5161, 16
    %v5259 = vrot.slane %v5257, 4
    %v5260 = vshll.u32 %v5161, 16
    %v5262 = vrot.slane %v5260, 5
    %v5263 = vor.u32 %v5259, %v5262
    %v5264 = vrot.slane %v5263, 4
    %v5266 = vshll.u32 %v5162, 16
    %v5268 = vrot.slane %v5266, 5
    %v5269 = vsel %vm5185, %v5264, %v5268
    %v5271 = vshrl.u32 %v5163, 16
    %v5273 = vrot.slane %v5271, 4
    %v5274 = vshll.u32 %v5163, 16
    %v5276 = vrot.slane %v5274, 5
    %v5277 = vor.u32 %v5273, %v5276
    %v5278 = vrot.slane %v5277, 4
    %v5280 = vshll.u32 %v5164, 16
    %v5282 = vrot.slane %v5280, 5
    %v5283 = vsel %vm5185, %v5278, %v5282
    %v5285 = vshrl.u32 %v5165, 16
    %v5287 = vrot.slane %v5285, 4
    %v5288 = vshll.u32 %v5165, 16
    %v5290 = vrot.slane %v5288, 5
    %v5291 = vor.u32 %v5287, %v5290
    %v5292 = vrot.slane %v5291, 4
    %v5294 = vshll.u32 %v5166, 16
    %v5296 = vrot.slane %v5294, 5
    %v5297 = vsel %vm5185, %v5292, %v5296
    %v5299 = vshrl.u32 %v5167, 16
    %v5301 = vrot.slane %v5299, 4
    %v5302 = vshll.u32 %v5167, 16
    %v5304 = vrot.slane %v5302, 5
    %v5305 = vor.u32 %v5301, %v5304
    %v5306 = vrot.slane %v5305, 4
    %v5308 = vshll.u32 %v5168, 16
    %v5310 = vrot.slane %v5308, 5
    %v5311 = vsel %vm5185, %v5306, %v5310
    %v5313 = vshrl.u32 %v5169, 16
    %v5315 = vrot.slane %v5313, 4
    %v5316 = vshll.u32 %v5169, 16
    %v5318 = vrot.slane %v5316, 5
    %v5319 = vor.u32 %v5315, %v5318
    %v5320 = vrot.slane %v5319, 4
    %v5322 = vshll.u32 %v5170, 16
    %v5324 = vrot.slane %v5322, 5
    %v5325 = vsel %vm5185, %v5320, %v5324
    %v5327 = vshrl.u32 %v5171, 16
    %v5329 = vrot.slane %v5327, 4
    %v5330 = vshll.u32 %v5171, 16
    %v5332 = vrot.slane %v5330, 5
    %v5333 = vor.u32 %v5329, %v5332
    %v5334 = vrot.slane %v5333, 4
    %v5336 = vshll.u32 %v5172, 16
    %v5338 = vrot.slane %v5336, 5
    %v5339 = vsel %vm5185, %v5334, %v5338
    %v5341 = vshrl.u32 %v5173, 16
    %v5343 = vrot.slane %v5341, 4
    %v5344 = vshll.u32 %v5173, 16
    %v5346 = vrot.slane %v5344, 5
    %v5347 = vor.u32 %v5343, %v5346
    %v5348 = vrot.slane %v5347, 4
    %v5350 = vshll.u32 %v5174, 16
    %v5352 = vrot.slane %v5350, 5
    %v5353 = vsel %vm5185, %v5348, %v5352
    %v5355 = vshrl.u32 %v5175, 16
    %v5357 = vrot.slane %v5355, 4
    %v5358 = vshll.u32 %v5175, 16
    %v5360 = vrot.slane %v5358, 5
    %v5361 = vor.u32 %v5357, %v5360
    %v5362 = vrot.slane %v5361, 4
    %v5364 = vshll.u32 %v5176, 16
    %v5366 = vrot.slane %v5364, 5
    %v5367 = vsel %vm5185, %v5362, %v5366
    %v5369 = vshrl.u32 %v5177, 16
    %v5371 = vrot.slane %v5369, 4
    %v5372 = vshll.u32 %v5177, 16
    %v5374 = vrot.slane %v5372, 5
    %v5375 = vor.u32 %v5371, %v5374
    %v5376 = vrot.slane %v5375, 4
    %v5378 = vshll.u32 %v5178, 16
    %v5380 = vrot.slane %v5378, 5
    %v5381 = vsel %vm5185, %v5376, %v5380
    %v5383 = vshrl.u32 %v5179, 16
    %v5385 = vrot.slane %v5383, 4
    %v5386 = vshll.u32 %v5179, 16
    %v5388 = vrot.slane %v5386, 5
    %v5389 = vor.u32 %v5385, %v5388
    %v5390 = vrot.slane %v5389, 4
    %v5392 = vshll.u32 %v5180, 16
    %v5394 = vrot.slane %v5392, 5
    %v5395 = vsel %vm5185, %v5390, %v5394
    %v5397 = vshrl.u32 %v5181, 16
    %v5399 = vrot.slane %v5397, 4
    %v5400 = vshll.u32 %v5181, 16
    %v5402 = vrot.slane %v5400, 5
    %v5403 = vor.u32 %v5399, %v5402
    %v5404 = vrot.slane %v5403, 4
    %v5406 = vshll.u32 %v5182, 16
    %v5408 = vrot.slane %v5406, 5
    %v5409 = vsel %vm5185, %v5404, %v5408
    %v5410 = vld [vmem:[#allocation2] sm:$0x1e]
    %v5411 = vld [vmem:[#allocation2 + $0x8] sm:$0x1e]
    %v5412 = vld [vmem:[#allocation2 + $0x10] sm:$0x1e]
    %v5413 = vld [vmem:[#allocation2 + $0x18] sm:$0x1e]
    %v5414 = vld [vmem:[#allocation2 + $0x20] sm:$0x1e]
    %v5415 = vld [vmem:[#allocation2 + $0x28] sm:$0x1e]
    %v5416 = vld [vmem:[#allocation2 + $0x30] sm:$0x1e]
    %v5417 = vld [vmem:[#allocation2 + $0x38] sm:$0x1e]
    %v5418 = vld [vmem:[#allocation2 + $0x50] sm:$0x1e]
    %v5419 = vld [vmem:[#allocation2 + $0x58] sm:$0x1e]
    %v5420 = vld [vmem:[#allocation2 + $0x60] sm:$0x1e]
    %v5421 = vld [vmem:[#allocation2 + $0x68] sm:$0x1e]
    %v5422 = vld [vmem:[#allocation2 + $0x70] sm:$0x1e]
    %v5423 = vld [vmem:[#allocation2 + $0x78] sm:$0x1e]
    %v5424 = vld [vmem:[#allocation2 + $0x80] sm:$0x1e]
    %v5425 = vld [vmem:[#allocation2 + $0x88] sm:$0x1e]
    %v5442 = vunpack.c.l.b16 %v5410
    %v5443 = vunpack.c.h.b16 %v5410
    %v5444 = vunpack.c.l.b16 %v5411
    %v5445 = vunpack.c.h.b16 %v5411
    %v5446 = vunpack.c.l.b16 %v5412
    %v5447 = vunpack.c.h.b16 %v5412
    %v5448 = vunpack.c.l.b16 %v5413
    %v5449 = vunpack.c.h.b16 %v5413
    %v5450 = vunpack.c.l.b16 %v5414
    %v5451 = vunpack.c.h.b16 %v5414
    %v5452 = vunpack.c.l.b16 %v5415
    %v5453 = vunpack.c.h.b16 %v5415
    %v5454 = vunpack.c.l.b16 %v5416
    %v5455 = vunpack.c.h.b16 %v5416
    %v5456 = vunpack.c.l.b16 %v5417
    %v5457 = vunpack.c.h.b16 %v5417
    %v5458 = vunpack.c.l.b16 %v5418
    %v5459 = vunpack.c.h.b16 %v5418
    %v5460 = vunpack.c.l.b16 %v5419
    %v5461 = vunpack.c.h.b16 %v5419
    %v5462 = vunpack.c.l.b16 %v5420
    %v5463 = vunpack.c.h.b16 %v5420
    %v5464 = vunpack.c.l.b16 %v5421
    %v5465 = vunpack.c.h.b16 %v5421
    %v5466 = vunpack.c.l.b16 %v5422
    %v5467 = vunpack.c.h.b16 %v5422
    %v5468 = vunpack.c.l.b16 %v5423
    %v5469 = vunpack.c.h.b16 %v5423
    %v5470 = vunpack.c.l.b16 %v5424
    %v5471 = vunpack.c.h.b16 %v5424
    %v5472 = vunpack.c.l.b16 %v5425
    %v5473 = vunpack.c.h.b16 %v5425
    %v5474 = vpack.c.b16 %v5442, %v5442
    %v5475 = vpack.c.b16 %v5443, %v5443
    %v5476 = vpack.c.b16 %v5444, %v5444
    %v5477 = vpack.c.b16 %v5445, %v5445
    %v5478 = vpack.c.b16 %v5446, %v5446
    %v5479 = vpack.c.b16 %v5447, %v5447
    %v5480 = vpack.c.b16 %v5448, %v5448
    %v5481 = vpack.c.b16 %v5449, %v5449
    %v5482 = vpack.c.b16 %v5450, %v5450
    %v5483 = vpack.c.b16 %v5451, %v5451
    %v5484 = vpack.c.b16 %v5452, %v5452
    %v5485 = vpack.c.b16 %v5453, %v5453
    %v5486 = vpack.c.b16 %v5454, %v5454
    %v5487 = vpack.c.b16 %v5455, %v5455
    %v5488 = vpack.c.b16 %v5456, %v5456
    %v5489 = vpack.c.b16 %v5457, %v5457
    %v5490 = vpack.c.b16 %v5458, %v5458
    %v5491 = vpack.c.b16 %v5459, %v5459
    %v5492 = vpack.c.b16 %v5460, %v5460
    %v5493 = vpack.c.b16 %v5461, %v5461
    %v5494 = vpack.c.b16 %v5462, %v5462
    %v5495 = vpack.c.b16 %v5463, %v5463
    %v5496 = vpack.c.b16 %v5464, %v5464
    %v5497 = vpack.c.b16 %v5465, %v5465
    %v5498 = vpack.c.b16 %v5466, %v5466
    %v5499 = vpack.c.b16 %v5467, %v5467
    %v5500 = vpack.c.b16 %v5468, %v5468
    %v5501 = vpack.c.b16 %v5469, %v5469
    %v5502 = vpack.c.b16 %v5470, %v5470
    %v5503 = vpack.c.b16 %v5471, %v5471
    %v5504 = vpack.c.b16 %v5472, %v5472
    %v5505 = vpack.c.b16 %v5473, %v5473
    %vm5506 = vcmask 1042432
    %vm5507 = vcmask 1046532
    %vm5508 = vmor %vm5506, %vm5507
    %v5509 = vrot.slane %v5474, 5
    %v5510 = vrot.slane %v5509, 4
    %v5511 = vrot.slane %v5475, 5
    %v5512 = vsel %vm5508, %v5510, %v5511
    %v5513 = vrot.slane %v5476, 5
    %v5514 = vrot.slane %v5513, 4
    %v5515 = vrot.slane %v5477, 5
    %v5516 = vsel %vm5508, %v5514, %v5515
    %v5517 = vrot.slane %v5478, 5
    %v5518 = vrot.slane %v5517, 4
    %v5519 = vrot.slane %v5479, 5
    %v5520 = vsel %vm5508, %v5518, %v5519
    %v5521 = vrot.slane %v5480, 5
    %v5522 = vrot.slane %v5521, 4
    %v5523 = vrot.slane %v5481, 5
    %v5524 = vsel %vm5508, %v5522, %v5523
    %v5525 = vrot.slane %v5482, 5
    %v5526 = vrot.slane %v5525, 4
    %v5527 = vrot.slane %v5483, 5
    %v5528 = vsel %vm5508, %v5526, %v5527
    %v5529 = vrot.slane %v5484, 5
    %v5530 = vrot.slane %v5529, 4
    %v5531 = vrot.slane %v5485, 5
    %v5532 = vsel %vm5508, %v5530, %v5531
    %v5533 = vrot.slane %v5486, 5
    %v5534 = vrot.slane %v5533, 4
    %v5535 = vrot.slane %v5487, 5
    %v5536 = vsel %vm5508, %v5534, %v5535
    %v5537 = vrot.slane %v5488, 5
    %v5538 = vrot.slane %v5537, 4
    %v5539 = vrot.slane %v5489, 5
    %v5540 = vsel %vm5508, %v5538, %v5539
    %v5541 = vrot.slane %v5490, 5
    %v5542 = vrot.slane %v5541, 4
    %v5543 = vrot.slane %v5491, 5
    %v5544 = vsel %vm5508, %v5542, %v5543
    %v5545 = vrot.slane %v5492, 5
    %v5546 = vrot.slane %v5545, 4
    %v5547 = vrot.slane %v5493, 5
    %v5548 = vsel %vm5508, %v5546, %v5547
    %v5549 = vrot.slane %v5494, 5
    %v5550 = vrot.slane %v5549, 4
    %v5551 = vrot.slane %v5495, 5
    %v5552 = vsel %vm5508, %v5550, %v5551
    %v5553 = vrot.slane %v5496, 5
    %v5554 = vrot.slane %v5553, 4
    %v5555 = vrot.slane %v5497, 5
    %v5556 = vsel %vm5508, %v5554, %v5555
    %v5557 = vrot.slane %v5498, 5
    %v5558 = vrot.slane %v5557, 4
    %v5559 = vrot.slane %v5499, 5
    %v5560 = vsel %vm5508, %v5558, %v5559
    %v5561 = vrot.slane %v5500, 5
    %v5562 = vrot.slane %v5561, 4
    %v5563 = vrot.slane %v5501, 5
    %v5564 = vsel %vm5508, %v5562, %v5563
    %v5565 = vrot.slane %v5502, 5
    %v5566 = vrot.slane %v5565, 4
    %v5567 = vrot.slane %v5503, 5
    %v5568 = vsel %vm5508, %v5566, %v5567
    %v5569 = vrot.slane %v5504, 5
    %v5570 = vrot.slane %v5569, 4
    %v5571 = vrot.slane %v5505, 5
    %v5572 = vsel %vm5508, %v5570, %v5571
    %v5573 = vld [vmem:[%s2623] sm:$0xf]
    %v5574 = vld [vmem:[%s2623 + $0x8] sm:$0xf]
    %v5575 = vld [vmem:[%s2623 + $0x10] sm:$0xf]
    %v5576 = vld [vmem:[%s2623 + $0x18] sm:$0xf]
    %v5577 = vld [vmem:[%s2623 + $0x20] sm:$0xf]
    %v5578 = vld [vmem:[%s2623 + $0x28] sm:$0xf]
    %v5579 = vld [vmem:[%s2623 + $0x30] sm:$0xf]
    %v5580 = vld [vmem:[%s2623 + $0x38] sm:$0xf]
    %v5581 = vld [vmem:[%s2623 + $0x50] sm:$0xf]
    %v5582 = vld [vmem:[%s2623 + $0x58] sm:$0xf]
    %v5583 = vld [vmem:[%s2623 + $0x60] sm:$0xf]
    %v5584 = vld [vmem:[%s2623 + $0x68] sm:$0xf]
    %v5585 = vld [vmem:[%s2623 + $0x70] sm:$0xf]
    %v5586 = vld [vmem:[%s2623 + $0x78] sm:$0xf]
    %v5587 = vld [vmem:[%s2623 + $0x80] sm:$0xf]
    %v5588 = vld [vmem:[%s2623 + $0x88] sm:$0xf]
    %v5589 = vld [vmem:[%s2623] sm:$0x1f]
    %v5590 = vld [vmem:[%s2623 + $0x8] sm:$0x1f]
    %v5591 = vld [vmem:[%s2623 + $0x10] sm:$0x1f]
    %v5592 = vld [vmem:[%s2623 + $0x18] sm:$0x1f]
    %v5593 = vld [vmem:[%s2623 + $0x20] sm:$0x1f]
    %v5594 = vld [vmem:[%s2623 + $0x28] sm:$0x1f]
    %v5595 = vld [vmem:[%s2623 + $0x30] sm:$0x1f]
    %v5596 = vld [vmem:[%s2623 + $0x38] sm:$0x1f]
    %v5597 = vld [vmem:[%s2623 + $0x50] sm:$0x1f]
    %v5598 = vld [vmem:[%s2623 + $0x58] sm:$0x1f]
    %v5599 = vld [vmem:[%s2623 + $0x60] sm:$0x1f]
    %v5600 = vld [vmem:[%s2623 + $0x68] sm:$0x1f]
    %v5601 = vld [vmem:[%s2623 + $0x70] sm:$0x1f]
    %v5602 = vld [vmem:[%s2623 + $0x78] sm:$0x1f]
    %v5603 = vld [vmem:[%s2623 + $0x80] sm:$0x1f]
    %v5604 = vld [vmem:[%s2623 + $0x88] sm:$0x1f]
    %v5621 = vunpack.c.l.b16 %v5589
    %v5622 = vunpack.c.h.b16 %v5589
    %v5623 = vunpack.c.l.b16 %v5590
    %v5624 = vunpack.c.h.b16 %v5590
    %v5625 = vunpack.c.l.b16 %v5591
    %v5626 = vunpack.c.h.b16 %v5591
    %v5627 = vunpack.c.l.b16 %v5592
    %v5628 = vunpack.c.h.b16 %v5592
    %v5629 = vunpack.c.l.b16 %v5593
    %v5630 = vunpack.c.h.b16 %v5593
    %v5631 = vunpack.c.l.b16 %v5594
    %v5632 = vunpack.c.h.b16 %v5594
    %v5633 = vunpack.c.l.b16 %v5595
    %v5634 = vunpack.c.h.b16 %v5595
    %v5635 = vunpack.c.l.b16 %v5596
    %v5636 = vunpack.c.h.b16 %v5596
    %v5637 = vunpack.c.l.b16 %v5597
    %v5638 = vunpack.c.h.b16 %v5597
    %v5639 = vunpack.c.l.b16 %v5598
    %v5640 = vunpack.c.h.b16 %v5598
    %v5641 = vunpack.c.l.b16 %v5599
    %v5642 = vunpack.c.h.b16 %v5599
    %v5643 = vunpack.c.l.b16 %v5600
    %v5644 = vunpack.c.h.b16 %v5600
    %v5645 = vunpack.c.l.b16 %v5601
    %v5646 = vunpack.c.h.b16 %v5601
    %v5647 = vunpack.c.l.b16 %v5602
    %v5648 = vunpack.c.h.b16 %v5602
    %v5649 = vunpack.c.l.b16 %v5603
    %v5650 = vunpack.c.h.b16 %v5603
    %v5651 = vunpack.c.l.b16 %v5604
    %v5652 = vunpack.c.h.b16 %v5604
    %v5653 = vpack.c.b16 %v5621, %v5621
    %v5654 = vpack.c.b16 %v5622, %v5622
    %v5655 = vpack.c.b16 %v5623, %v5623
    %v5656 = vpack.c.b16 %v5624, %v5624
    %v5657 = vpack.c.b16 %v5625, %v5625
    %v5658 = vpack.c.b16 %v5626, %v5626
    %v5659 = vpack.c.b16 %v5627, %v5627
    %v5660 = vpack.c.b16 %v5628, %v5628
    %v5661 = vpack.c.b16 %v5629, %v5629
    %v5662 = vpack.c.b16 %v5630, %v5630
    %v5663 = vpack.c.b16 %v5631, %v5631
    %v5664 = vpack.c.b16 %v5632, %v5632
    %v5665 = vpack.c.b16 %v5633, %v5633
    %v5666 = vpack.c.b16 %v5634, %v5634
    %v5667 = vpack.c.b16 %v5635, %v5635
    %v5668 = vpack.c.b16 %v5636, %v5636
    %v5669 = vpack.c.b16 %v5637, %v5637
    %v5670 = vpack.c.b16 %v5638, %v5638
    %v5671 = vpack.c.b16 %v5639, %v5639
    %v5672 = vpack.c.b16 %v5640, %v5640
    %v5673 = vpack.c.b16 %v5641, %v5641
    %v5674 = vpack.c.b16 %v5642, %v5642
    %v5675 = vpack.c.b16 %v5643, %v5643
    %v5676 = vpack.c.b16 %v5644, %v5644
    %v5677 = vpack.c.b16 %v5645, %v5645
    %v5678 = vpack.c.b16 %v5646, %v5646
    %v5679 = vpack.c.b16 %v5647, %v5647
    %v5680 = vpack.c.b16 %v5648, %v5648
    %v5681 = vpack.c.b16 %v5649, %v5649
    %v5682 = vpack.c.b16 %v5650, %v5650
    %v5683 = vpack.c.b16 %v5651, %v5651
    %v5684 = vpack.c.b16 %v5652, %v5652
    %v5686 = vshrl.u32 %v5653, 16
    %v5688 = vrot.slane %v5686, 4
    %v5689 = vshll.u32 %v5653, 16
    %v5691 = vrot.slane %v5689, 5
    %v5692 = vor.u32 %v5688, %v5691
    %v5693 = vrot.slane %v5692, 4
    %v5695 = vshll.u32 %v5654, 16
    %v5697 = vrot.slane %v5695, 5
    %v5698 = vsel %vm5185, %v5693, %v5697
    %v5700 = vshrl.u32 %v5655, 16
    %v5702 = vrot.slane %v5700, 4
    %v5703 = vshll.u32 %v5655, 16
    %v5705 = vrot.slane %v5703, 5
    %v5706 = vor.u32 %v5702, %v5705
    %v5707 = vrot.slane %v5706, 4
    %v5709 = vshll.u32 %v5656, 16
    %v5711 = vrot.slane %v5709, 5
    %v5712 = vsel %vm5185, %v5707, %v5711
    %v5714 = vshrl.u32 %v5657, 16
    %v5716 = vrot.slane %v5714, 4
    %v5717 = vshll.u32 %v5657, 16
    %v5719 = vrot.slane %v5717, 5
    %v5720 = vor.u32 %v5716, %v5719
    %v5721 = vrot.slane %v5720, 4
    %v5723 = vshll.u32 %v5658, 16
    %v5725 = vrot.slane %v5723, 5
    %v5726 = vsel %vm5185, %v5721, %v5725
    %v5728 = vshrl.u32 %v5659, 16
    %v5730 = vrot.slane %v5728, 4
    %v5731 = vshll.u32 %v5659, 16
    %v5733 = vrot.slane %v5731, 5
    %v5734 = vor.u32 %v5730, %v5733
    %v5735 = vrot.slane %v5734, 4
    %v5737 = vshll.u32 %v5660, 16
    %v5739 = vrot.slane %v5737, 5
    %v5740 = vsel %vm5185, %v5735, %v5739
    %v5742 = vshrl.u32 %v5661, 16
    %v5744 = vrot.slane %v5742, 4
    %v5745 = vshll.u32 %v5661, 16
    %v5747 = vrot.slane %v5745, 5
    %v5748 = vor.u32 %v5744, %v5747
    %v5749 = vrot.slane %v5748, 4
    %v5751 = vshll.u32 %v5662, 16
    %v5753 = vrot.slane %v5751, 5
    %v5754 = vsel %vm5185, %v5749, %v5753
    %v5756 = vshrl.u32 %v5663, 16
    %v5758 = vrot.slane %v5756, 4
    %v5759 = vshll.u32 %v5663, 16
    %v5761 = vrot.slane %v5759, 5
    %v5762 = vor.u32 %v5758, %v5761
    %v5763 = vrot.slane %v5762, 4
    %v5765 = vshll.u32 %v5664, 16
    %v5767 = vrot.slane %v5765, 5
    %v5768 = vsel %vm5185, %v5763, %v5767
    %v5770 = vshrl.u32 %v5665, 16
    %v5772 = vrot.slane %v5770, 4
    %v5773 = vshll.u32 %v5665, 16
    %v5775 = vrot.slane %v5773, 5
    %v5776 = vor.u32 %v5772, %v5775
    %v5777 = vrot.slane %v5776, 4
    %v5779 = vshll.u32 %v5666, 16
    %v5781 = vrot.slane %v5779, 5
    %v5782 = vsel %vm5185, %v5777, %v5781
    %v5784 = vshrl.u32 %v5667, 16
    %v5786 = vrot.slane %v5784, 4
    %v5787 = vshll.u32 %v5667, 16
    %v5789 = vrot.slane %v5787, 5
    %v5790 = vor.u32 %v5786, %v5789
    %v5791 = vrot.slane %v5790, 4
    %v5793 = vshll.u32 %v5668, 16
    %v5795 = vrot.slane %v5793, 5
    %v5796 = vsel %vm5185, %v5791, %v5795
    %v5798 = vshrl.u32 %v5669, 16
    %v5800 = vrot.slane %v5798, 4
    %v5801 = vshll.u32 %v5669, 16
    %v5803 = vrot.slane %v5801, 5
    %v5804 = vor.u32 %v5800, %v5803
    %v5805 = vrot.slane %v5804, 4
    %v5807 = vshll.u32 %v5670, 16
    %v5809 = vrot.slane %v5807, 5
    %v5810 = vsel %vm5185, %v5805, %v5809
    %v5812 = vshrl.u32 %v5671, 16
    %v5814 = vrot.slane %v5812, 4
    %v5815 = vshll.u32 %v5671, 16
    %v5817 = vrot.slane %v5815, 5
    %v5818 = vor.u32 %v5814, %v5817
    %v5819 = vrot.slane %v5818, 4
    %v5821 = vshll.u32 %v5672, 16
    %v5823 = vrot.slane %v5821, 5
    %v5824 = vsel %vm5185, %v5819, %v5823
    %v5826 = vshrl.u32 %v5673, 16
    %v5828 = vrot.slane %v5826, 4
    %v5829 = vshll.u32 %v5673, 16
    %v5831 = vrot.slane %v5829, 5
    %v5832 = vor.u32 %v5828, %v5831
    %v5833 = vrot.slane %v5832, 4
    %v5835 = vshll.u32 %v5674, 16
    %v5837 = vrot.slane %v5835, 5
    %v5838 = vsel %vm5185, %v5833, %v5837
    %v5840 = vshrl.u32 %v5675, 16
    %v5842 = vrot.slane %v5840, 4
    %v5843 = vshll.u32 %v5675, 16
    %v5845 = vrot.slane %v5843, 5
    %v5846 = vor.u32 %v5842, %v5845
    %v5847 = vrot.slane %v5846, 4
    %v5849 = vshll.u32 %v5676, 16
    %v5851 = vrot.slane %v5849, 5
    %v5852 = vsel %vm5185, %v5847, %v5851
    %v5854 = vshrl.u32 %v5677, 16
    %v5856 = vrot.slane %v5854, 4
    %v5857 = vshll.u32 %v5677, 16
    %v5859 = vrot.slane %v5857, 5
    %v5860 = vor.u32 %v5856, %v5859
    %v5861 = vrot.slane %v5860, 4
    %v5863 = vshll.u32 %v5678, 16
    %v5865 = vrot.slane %v5863, 5
    %v5866 = vsel %vm5185, %v5861, %v5865
    %v5868 = vshrl.u32 %v5679, 16
    %v5870 = vrot.slane %v5868, 4
    %v5871 = vshll.u32 %v5679, 16
    %v5873 = vrot.slane %v5871, 5
    %v5874 = vor.u32 %v5870, %v5873
    %v5875 = vrot.slane %v5874, 4
    %v5877 = vshll.u32 %v5680, 16
    %v5879 = vrot.slane %v5877, 5
    %v5880 = vsel %vm5185, %v5875, %v5879
    %v5882 = vshrl.u32 %v5681, 16
    %v5884 = vrot.slane %v5882, 4
    %v5885 = vshll.u32 %v5681, 16
    %v5887 = vrot.slane %v5885, 5
    %v5888 = vor.u32 %v5884, %v5887
    %v5889 = vrot.slane %v5888, 4
    %v5891 = vshll.u32 %v5682, 16
    %v5893 = vrot.slane %v5891, 5
    %v5894 = vsel %vm5185, %v5889, %v5893
    %v5896 = vshrl.u32 %v5683, 16
    %v5898 = vrot.slane %v5896, 4
    %v5899 = vshll.u32 %v5683, 16
    %v5901 = vrot.slane %v5899, 5
    %v5902 = vor.u32 %v5898, %v5901
    %v5903 = vrot.slane %v5902, 4
    %v5905 = vshll.u32 %v5684, 16
    %v5907 = vrot.slane %v5905, 5
    %v5908 = vsel %vm5185, %v5903, %v5907
    %v5909 = vld [vmem:[%s2623] sm:$0x1e]
    %v5910 = vld [vmem:[%s2623 + $0x8] sm:$0x1e]
    %v5911 = vld [vmem:[%s2623 + $0x10] sm:$0x1e]
    %v5912 = vld [vmem:[%s2623 + $0x18] sm:$0x1e]
    %v5913 = vld [vmem:[%s2623 + $0x20] sm:$0x1e]
    %v5914 = vld [vmem:[%s2623 + $0x28] sm:$0x1e]
    %v5915 = vld [vmem:[%s2623 + $0x30] sm:$0x1e]
    %v5916 = vld [vmem:[%s2623 + $0x38] sm:$0x1e]
    %v5917 = vld [vmem:[%s2623 + $0x50] sm:$0x1e]
    %v5918 = vld [vmem:[%s2623 + $0x58] sm:$0x1e]
    %v5919 = vld [vmem:[%s2623 + $0x60] sm:$0x1e]
    %v5920 = vld [vmem:[%s2623 + $0x68] sm:$0x1e]
    %v5921 = vld [vmem:[%s2623 + $0x70] sm:$0x1e]
    %v5922 = vld [vmem:[%s2623 + $0x78] sm:$0x1e]
    %v5923 = vld [vmem:[%s2623 + $0x80] sm:$0x1e]
    %v5924 = vld [vmem:[%s2623 + $0x88] sm:$0x1e]
    %v5941 = vunpack.c.l.b16 %v5909
    %v5942 = vunpack.c.h.b16 %v5909
    %v5943 = vunpack.c.l.b16 %v5910
    %v5944 = vunpack.c.h.b16 %v5910
    %v5945 = vunpack.c.l.b16 %v5911
    %v5946 = vunpack.c.h.b16 %v5911
    %v5947 = vunpack.c.l.b16 %v5912
    %v5948 = vunpack.c.h.b16 %v5912
    %v5949 = vunpack.c.l.b16 %v5913
    %v5950 = vunpack.c.h.b16 %v5913
    %v5951 = vunpack.c.l.b16 %v5914
    %v5952 = vunpack.c.h.b16 %v5914
    %v5953 = vunpack.c.l.b16 %v5915
    %v5954 = vunpack.c.h.b16 %v5915
    %v5955 = vunpack.c.l.b16 %v5916
    %v5956 = vunpack.c.h.b16 %v5916
    %v5957 = vunpack.c.l.b16 %v5917
    %v5958 = vunpack.c.h.b16 %v5917
    %v5959 = vunpack.c.l.b16 %v5918
    %v5960 = vunpack.c.h.b16 %v5918
    %v5961 = vunpack.c.l.b16 %v5919
    %v5962 = vunpack.c.h.b16 %v5919
    %v5963 = vunpack.c.l.b16 %v5920
    %v5964 = vunpack.c.h.b16 %v5920
    %v5965 = vunpack.c.l.b16 %v5921
    %v5966 = vunpack.c.h.b16 %v5921
    %v5967 = vunpack.c.l.b16 %v5922
    %v5968 = vunpack.c.h.b16 %v5922
    %v5969 = vunpack.c.l.b16 %v5923
    %v5970 = vunpack.c.h.b16 %v5923
    %v5971 = vunpack.c.l.b16 %v5924
    %v5972 = vunpack.c.h.b16 %v5924
    %v5973 = vpack.c.b16 %v5941, %v5941
    %v5974 = vpack.c.b16 %v5942, %v5942
    %v5975 = vpack.c.b16 %v5943, %v5943
    %v5976 = vpack.c.b16 %v5944, %v5944
    %v5977 = vpack.c.b16 %v5945, %v5945
    %v5978 = vpack.c.b16 %v5946, %v5946
    %v5979 = vpack.c.b16 %v5947, %v5947
    %v5980 = vpack.c.b16 %v5948, %v5948
    %v5981 = vpack.c.b16 %v5949, %v5949
    %v5982 = vpack.c.b16 %v5950, %v5950
    %v5983 = vpack.c.b16 %v5951, %v5951
    %v5984 = vpack.c.b16 %v5952, %v5952
    %v5985 = vpack.c.b16 %v5953, %v5953
    %v5986 = vpack.c.b16 %v5954, %v5954
    %v5987 = vpack.c.b16 %v5955, %v5955
    %v5988 = vpack.c.b16 %v5956, %v5956
    %v5989 = vpack.c.b16 %v5957, %v5957
    %v5990 = vpack.c.b16 %v5958, %v5958
    %v5991 = vpack.c.b16 %v5959, %v5959
    %v5992 = vpack.c.b16 %v5960, %v5960
    %v5993 = vpack.c.b16 %v5961, %v5961
    %v5994 = vpack.c.b16 %v5962, %v5962
    %v5995 = vpack.c.b16 %v5963, %v5963
    %v5996 = vpack.c.b16 %v5964, %v5964
    %v5997 = vpack.c.b16 %v5965, %v5965
    %v5998 = vpack.c.b16 %v5966, %v5966
    %v5999 = vpack.c.b16 %v5967, %v5967
    %v6000 = vpack.c.b16 %v5968, %v5968
    %v6001 = vpack.c.b16 %v5969, %v5969
    %v6002 = vpack.c.b16 %v5970, %v5970
    %v6003 = vpack.c.b16 %v5971, %v5971
    %v6004 = vpack.c.b16 %v5972, %v5972
    %v6005 = vrot.slane %v5973, 5
    %v6006 = vrot.slane %v6005, 4
    %v6007 = vrot.slane %v5974, 5
    %v6008 = vsel %vm5508, %v6006, %v6007
    %v6009 = vrot.slane %v5975, 5
    %v6010 = vrot.slane %v6009, 4
    %v6011 = vrot.slane %v5976, 5
    %v6012 = vsel %vm5508, %v6010, %v6011
    %v6013 = vrot.slane %v5977, 5
    %v6014 = vrot.slane %v6013, 4
    %v6015 = vrot.slane %v5978, 5
    %v6016 = vsel %vm5508, %v6014, %v6015
    %v6017 = vrot.slane %v5979, 5
    %v6018 = vrot.slane %v6017, 4
    %v6019 = vrot.slane %v5980, 5
    %v6020 = vsel %vm5508, %v6018, %v6019
    %v6021 = vrot.slane %v5981, 5
    %v6022 = vrot.slane %v6021, 4
    %v6023 = vrot.slane %v5982, 5
    %v6024 = vsel %vm5508, %v6022, %v6023
    %v6025 = vrot.slane %v5983, 5
    %v6026 = vrot.slane %v6025, 4
    %v6027 = vrot.slane %v5984, 5
    %v6028 = vsel %vm5508, %v6026, %v6027
    %v6029 = vrot.slane %v5985, 5
    %v6030 = vrot.slane %v6029, 4
    %v6031 = vrot.slane %v5986, 5
    %v6032 = vsel %vm5508, %v6030, %v6031
    %v6033 = vrot.slane %v5987, 5
    %v6034 = vrot.slane %v6033, 4
    %v6035 = vrot.slane %v5988, 5
    %v6036 = vsel %vm5508, %v6034, %v6035
    %v6037 = vrot.slane %v5989, 5
    %v6038 = vrot.slane %v6037, 4
    %v6039 = vrot.slane %v5990, 5
    %v6040 = vsel %vm5508, %v6038, %v6039
    %v6041 = vrot.slane %v5991, 5
    %v6042 = vrot.slane %v6041, 4
    %v6043 = vrot.slane %v5992, 5
    %v6044 = vsel %vm5508, %v6042, %v6043
    %v6045 = vrot.slane %v5993, 5
    %v6046 = vrot.slane %v6045, 4
    %v6047 = vrot.slane %v5994, 5
    %v6048 = vsel %vm5508, %v6046, %v6047
    %v6049 = vrot.slane %v5995, 5
    %v6050 = vrot.slane %v6049, 4
    %v6051 = vrot.slane %v5996, 5
    %v6052 = vsel %vm5508, %v6050, %v6051
    %v6053 = vrot.slane %v5997, 5
    %v6054 = vrot.slane %v6053, 4
    %v6055 = vrot.slane %v5998, 5
    %v6056 = vsel %vm5508, %v6054, %v6055
    %v6057 = vrot.slane %v5999, 5
    %v6058 = vrot.slane %v6057, 4
    %v6059 = vrot.slane %v6000, 5
    %v6060 = vsel %vm5508, %v6058, %v6059
    %v6061 = vrot.slane %v6001, 5
    %v6062 = vrot.slane %v6061, 4
    %v6063 = vrot.slane %v6002, 5
    %v6064 = vsel %vm5508, %v6062, %v6063
    %v6065 = vrot.slane %v6003, 5
    %v6066 = vrot.slane %v6065, 4
    %v6067 = vrot.slane %v6004, 5
    %v6068 = vsel %vm5508, %v6066, %v6067
    %s6069 = scalar_lea.vmem [#allocation2], 16
    %v6070 = vld [vmem:[%s6069] sm:$0xf]
    %v6071 = vld [vmem:[%s6069 + $0x8] sm:$0xf]
    %v6072 = vld [vmem:[%s6069 + $0x10] sm:$0xf]
    %v6073 = vld [vmem:[%s6069 + $0x18] sm:$0xf]
    %v6074 = vld [vmem:[%s6069 + $0x20] sm:$0xf]
    %v6075 = vld [vmem:[%s6069 + $0x28] sm:$0xf]
    %v6076 = vld [vmem:[%s6069 + $0x30] sm:$0xf]
    %v6077 = vld [vmem:[%s6069 + $0x38] sm:$0xf]
    %v6078 = vld [vmem:[%s6069 + $0x50] sm:$0xf]
    %v6079 = vld [vmem:[%s6069 + $0x58] sm:$0xf]
    %v6080 = vld [vmem:[%s6069 + $0x60] sm:$0xf]
    %v6081 = vld [vmem:[%s6069 + $0x68] sm:$0xf]
    %v6082 = vld [vmem:[%s6069 + $0x70] sm:$0xf]
    %v6083 = vld [vmem:[%s6069 + $0x78] sm:$0xf]
    %v6084 = vld [vmem:[%s6069 + $0x80] sm:$0xf]
    %v6085 = vld [vmem:[%s6069 + $0x88] sm:$0xf]
    %v6086 = vld [vmem:[%s6069] sm:$0x1f]
    %v6087 = vld [vmem:[%s6069 + $0x8] sm:$0x1f]
    %v6088 = vld [vmem:[%s6069 + $0x10] sm:$0x1f]
    %v6089 = vld [vmem:[%s6069 + $0x18] sm:$0x1f]
    %v6090 = vld [vmem:[%s6069 + $0x20] sm:$0x1f]
    %v6091 = vld [vmem:[%s6069 + $0x28] sm:$0x1f]
    %v6092 = vld [vmem:[%s6069 + $0x30] sm:$0x1f]
    %v6093 = vld [vmem:[%s6069 + $0x38] sm:$0x1f]
    %v6094 = vld [vmem:[%s6069 + $0x50] sm:$0x1f]
    %v6095 = vld [vmem:[%s6069 + $0x58] sm:$0x1f]
    %v6096 = vld [vmem:[%s6069 + $0x60] sm:$0x1f]
    %v6097 = vld [vmem:[%s6069 + $0x68] sm:$0x1f]
    %v6098 = vld [vmem:[%s6069 + $0x70] sm:$0x1f]
    %v6099 = vld [vmem:[%s6069 + $0x78] sm:$0x1f]
    %v6100 = vld [vmem:[%s6069 + $0x80] sm:$0x1f]
    %v6101 = vld [vmem:[%s6069 + $0x88] sm:$0x1f]
    %v6118 = vunpack.c.l.b16 %v6086
    %v6119 = vunpack.c.h.b16 %v6086
    %v6120 = vunpack.c.l.b16 %v6087
    %v6121 = vunpack.c.h.b16 %v6087
    %v6122 = vunpack.c.l.b16 %v6088
    %v6123 = vunpack.c.h.b16 %v6088
    %v6124 = vunpack.c.l.b16 %v6089
    %v6125 = vunpack.c.h.b16 %v6089
    %v6126 = vunpack.c.l.b16 %v6090
    %v6127 = vunpack.c.h.b16 %v6090
    %v6128 = vunpack.c.l.b16 %v6091
    %v6129 = vunpack.c.h.b16 %v6091
    %v6130 = vunpack.c.l.b16 %v6092
    %v6131 = vunpack.c.h.b16 %v6092
    %v6132 = vunpack.c.l.b16 %v6093
    %v6133 = vunpack.c.h.b16 %v6093
    %v6134 = vunpack.c.l.b16 %v6094
    %v6135 = vunpack.c.h.b16 %v6094
    %v6136 = vunpack.c.l.b16 %v6095
    %v6137 = vunpack.c.h.b16 %v6095
    %v6138 = vunpack.c.l.b16 %v6096
    %v6139 = vunpack.c.h.b16 %v6096
    %v6140 = vunpack.c.l.b16 %v6097
    %v6141 = vunpack.c.h.b16 %v6097
    %v6142 = vunpack.c.l.b16 %v6098
    %v6143 = vunpack.c.h.b16 %v6098
    %v6144 = vunpack.c.l.b16 %v6099
    %v6145 = vunpack.c.h.b16 %v6099
    %v6146 = vunpack.c.l.b16 %v6100
    %v6147 = vunpack.c.h.b16 %v6100
    %v6148 = vunpack.c.l.b16 %v6101
    %v6149 = vunpack.c.h.b16 %v6101
    %v6150 = vpack.c.b16 %v6118, %v6118
    %v6151 = vpack.c.b16 %v6119, %v6119
    %v6152 = vpack.c.b16 %v6120, %v6120
    %v6153 = vpack.c.b16 %v6121, %v6121
    %v6154 = vpack.c.b16 %v6122, %v6122
    %v6155 = vpack.c.b16 %v6123, %v6123
    %v6156 = vpack.c.b16 %v6124, %v6124
    %v6157 = vpack.c.b16 %v6125, %v6125
    %v6158 = vpack.c.b16 %v6126, %v6126
    %v6159 = vpack.c.b16 %v6127, %v6127
    %v6160 = vpack.c.b16 %v6128, %v6128
    %v6161 = vpack.c.b16 %v6129, %v6129
    %v6162 = vpack.c.b16 %v6130, %v6130
    %v6163 = vpack.c.b16 %v6131, %v6131
    %v6164 = vpack.c.b16 %v6132, %v6132
    %v6165 = vpack.c.b16 %v6133, %v6133
    %v6166 = vpack.c.b16 %v6134, %v6134
    %v6167 = vpack.c.b16 %v6135, %v6135
    %v6168 = vpack.c.b16 %v6136, %v6136
    %v6169 = vpack.c.b16 %v6137, %v6137
    %v6170 = vpack.c.b16 %v6138, %v6138
    %v6171 = vpack.c.b16 %v6139, %v6139
    %v6172 = vpack.c.b16 %v6140, %v6140
    %v6173 = vpack.c.b16 %v6141, %v6141
    %v6174 = vpack.c.b16 %v6142, %v6142
    %v6175 = vpack.c.b16 %v6143, %v6143
    %v6176 = vpack.c.b16 %v6144, %v6144
    %v6177 = vpack.c.b16 %v6145, %v6145
    %v6178 = vpack.c.b16 %v6146, %v6146
    %v6179 = vpack.c.b16 %v6147, %v6147
    %v6180 = vpack.c.b16 %v6148, %v6148
    %v6181 = vpack.c.b16 %v6149, %v6149
    %v6183 = vshrl.u32 %v6150, 16
    %v6185 = vrot.slane %v6183, 4
    %v6186 = vshll.u32 %v6150, 16
    %v6188 = vrot.slane %v6186, 5
    %v6189 = vor.u32 %v6185, %v6188
    %v6190 = vrot.slane %v6189, 4
    %v6192 = vshll.u32 %v6151, 16
    %v6194 = vrot.slane %v6192, 5
    %v6195 = vsel %vm5185, %v6190, %v6194
    %v6197 = vshrl.u32 %v6152, 16
    %v6199 = vrot.slane %v6197, 4
    %v6200 = vshll.u32 %v6152, 16
    %v6202 = vrot.slane %v6200, 5
    %v6203 = vor.u32 %v6199, %v6202
    %v6204 = vrot.slane %v6203, 4
    %v6206 = vshll.u32 %v6153, 16
    %v6208 = vrot.slane %v6206, 5
    %v6209 = vsel %vm5185, %v6204, %v6208
    %v6211 = vshrl.u32 %v6154, 16
    %v6213 = vrot.slane %v6211, 4
    %v6214 = vshll.u32 %v6154, 16
    %v6216 = vrot.slane %v6214, 5
    %v6217 = vor.u32 %v6213, %v6216
    %v6218 = vrot.slane %v6217, 4
    %v6220 = vshll.u32 %v6155, 16
    %v6222 = vrot.slane %v6220, 5
    %v6223 = vsel %vm5185, %v6218, %v6222
    %v6225 = vshrl.u32 %v6156, 16
    %v6227 = vrot.slane %v6225, 4
    %v6228 = vshll.u32 %v6156, 16
    %v6230 = vrot.slane %v6228, 5
    %v6231 = vor.u32 %v6227, %v6230
    %v6232 = vrot.slane %v6231, 4
    %v6234 = vshll.u32 %v6157, 16
    %v6236 = vrot.slane %v6234, 5
    %v6237 = vsel %vm5185, %v6232, %v6236
    %v6239 = vshrl.u32 %v6158, 16
    %v6241 = vrot.slane %v6239, 4
    %v6242 = vshll.u32 %v6158, 16
    %v6244 = vrot.slane %v6242, 5
    %v6245 = vor.u32 %v6241, %v6244
    %v6246 = vrot.slane %v6245, 4
    %v6248 = vshll.u32 %v6159, 16
    %v6250 = vrot.slane %v6248, 5
    %v6251 = vsel %vm5185, %v6246, %v6250
    %v6253 = vshrl.u32 %v6160, 16
    %v6255 = vrot.slane %v6253, 4
    %v6256 = vshll.u32 %v6160, 16
    %v6258 = vrot.slane %v6256, 5
    %v6259 = vor.u32 %v6255, %v6258
    %v6260 = vrot.slane %v6259, 4
    %v6262 = vshll.u32 %v6161, 16
    %v6264 = vrot.slane %v6262, 5
    %v6265 = vsel %vm5185, %v6260, %v6264
    %v6267 = vshrl.u32 %v6162, 16
    %v6269 = vrot.slane %v6267, 4
    %v6270 = vshll.u32 %v6162, 16
    %v6272 = vrot.slane %v6270, 5
    %v6273 = vor.u32 %v6269, %v6272
    %v6274 = vrot.slane %v6273, 4
    %v6276 = vshll.u32 %v6163, 16
    %v6278 = vrot.slane %v6276, 5
    %v6279 = vsel %vm5185, %v6274, %v6278
    %v6281 = vshrl.u32 %v6164, 16
    %v6283 = vrot.slane %v6281, 4
    %v6284 = vshll.u32 %v6164, 16
    %v6286 = vrot.slane %v6284, 5
    %v6287 = vor.u32 %v6283, %v6286
    %v6288 = vrot.slane %v6287, 4
    %v6290 = vshll.u32 %v6165, 16
    %v6292 = vrot.slane %v6290, 5
    %v6293 = vsel %vm5185, %v6288, %v6292
    %v6295 = vshrl.u32 %v6166, 16
    %v6297 = vrot.slane %v6295, 4
    %v6298 = vshll.u32 %v6166, 16
    %v6300 = vrot.slane %v6298, 5
    %v6301 = vor.u32 %v6297, %v6300
    %v6302 = vrot.slane %v6301, 4
    %v6304 = vshll.u32 %v6167, 16
    %v6306 = vrot.slane %v6304, 5
    %v6307 = vsel %vm5185, %v6302, %v6306
    %v6309 = vshrl.u32 %v6168, 16
    %v6311 = vrot.slane %v6309, 4
    %v6312 = vshll.u32 %v6168, 16
    %v6314 = vrot.slane %v6312, 5
    %v6315 = vor.u32 %v6311, %v6314
    %v6316 = vrot.slane %v6315, 4
    %v6318 = vshll.u32 %v6169, 16
    %v6320 = vrot.slane %v6318, 5
    %v6321 = vsel %vm5185, %v6316, %v6320
    %v6323 = vshrl.u32 %v6170, 16
    %v6325 = vrot.slane %v6323, 4
    %v6326 = vshll.u32 %v6170, 16
    %v6328 = vrot.slane %v6326, 5
    %v6329 = vor.u32 %v6325, %v6328
    %v6330 = vrot.slane %v6329, 4
    %v6332 = vshll.u32 %v6171, 16
    %v6334 = vrot.slane %v6332, 5
    %v6335 = vsel %vm5185, %v6330, %v6334
    %v6337 = vshrl.u32 %v6172, 16
    %v6339 = vrot.slane %v6337, 4
    %v6340 = vshll.u32 %v6172, 16
    %v6342 = vrot.slane %v6340, 5
    %v6343 = vor.u32 %v6339, %v6342
    %v6344 = vrot.slane %v6343, 4
    %v6346 = vshll.u32 %v6173, 16
    %v6348 = vrot.slane %v6346, 5
    %v6349 = vsel %vm5185, %v6344, %v6348
    %v6351 = vshrl.u32 %v6174, 16
    %v6353 = vrot.slane %v6351, 4
    %v6354 = vshll.u32 %v6174, 16
    %v6356 = vrot.slane %v6354, 5
    %v6357 = vor.u32 %v6353, %v6356
    %v6358 = vrot.slane %v6357, 4
    %v6360 = vshll.u32 %v6175, 16
    %v6362 = vrot.slane %v6360, 5
    %v6363 = vsel %vm5185, %v6358, %v6362
    %v6365 = vshrl.u32 %v6176, 16
    %v6367 = vrot.slane %v6365, 4
    %v6368 = vshll.u32 %v6176, 16
    %v6370 = vrot.slane %v6368, 5
    %v6371 = vor.u32 %v6367, %v6370
    %v6372 = vrot.slane %v6371, 4
    %v6374 = vshll.u32 %v6177, 16
    %v6376 = vrot.slane %v6374, 5
    %v6377 = vsel %vm5185, %v6372, %v6376
    %v6379 = vshrl.u32 %v6178, 16
    %v6381 = vrot.slane %v6379, 4
    %v6382 = vshll.u32 %v6178, 16
    %v6384 = vrot.slane %v6382, 5
    %v6385 = vor.u32 %v6381, %v6384
    %v6386 = vrot.slane %v6385, 4
    %v6388 = vshll.u32 %v6179, 16
    %v6390 = vrot.slane %v6388, 5
    %v6391 = vsel %vm5185, %v6386, %v6390
    %v6393 = vshrl.u32 %v6180, 16
    %v6395 = vrot.slane %v6393, 4
    %v6396 = vshll.u32 %v6180, 16
    %v6398 = vrot.slane %v6396, 5
    %v6399 = vor.u32 %v6395, %v6398
    %v6400 = vrot.slane %v6399, 4
    %v6402 = vshll.u32 %v6181, 16
    %v6404 = vrot.slane %v6402, 5
    %v6405 = vsel %vm5185, %v6400, %v6404
    %v6406 = vld [vmem:[%s6069] sm:$0x1e]
    %v6407 = vld [vmem:[%s6069 + $0x8] sm:$0x1e]
    %v6408 = vld [vmem:[%s6069 + $0x10] sm:$0x1e]
    %v6409 = vld [vmem:[%s6069 + $0x18] sm:$0x1e]
    %v6410 = vld [vmem:[%s6069 + $0x20] sm:$0x1e]
    %v6411 = vld [vmem:[%s6069 + $0x28] sm:$0x1e]
    %v6412 = vld [vmem:[%s6069 + $0x30] sm:$0x1e]
    %v6413 = vld [vmem:[%s6069 + $0x38] sm:$0x1e]
    %v6414 = vld [vmem:[%s6069 + $0x50] sm:$0x1e]
    %v6415 = vld [vmem:[%s6069 + $0x58] sm:$0x1e]
    %v6416 = vld [vmem:[%s6069 + $0x60] sm:$0x1e]
    %v6417 = vld [vmem:[%s6069 + $0x68] sm:$0x1e]
    %v6418 = vld [vmem:[%s6069 + $0x70] sm:$0x1e]
    %v6419 = vld [vmem:[%s6069 + $0x78] sm:$0x1e]
    %v6420 = vld [vmem:[%s6069 + $0x80] sm:$0x1e]
    %v6421 = vld [vmem:[%s6069 + $0x88] sm:$0x1e]
    %v6438 = vunpack.c.l.b16 %v6406
    %v6439 = vunpack.c.h.b16 %v6406
    %v6440 = vunpack.c.l.b16 %v6407
    %v6441 = vunpack.c.h.b16 %v6407
    %v6442 = vunpack.c.l.b16 %v6408
    %v6443 = vunpack.c.h.b16 %v6408
    %v6444 = vunpack.c.l.b16 %v6409
    %v6445 = vunpack.c.h.b16 %v6409
    %v6446 = vunpack.c.l.b16 %v6410
    %v6447 = vunpack.c.h.b16 %v6410
    %v6448 = vunpack.c.l.b16 %v6411
    %v6449 = vunpack.c.h.b16 %v6411
    %v6450 = vunpack.c.l.b16 %v6412
    %v6451 = vunpack.c.h.b16 %v6412
    %v6452 = vunpack.c.l.b16 %v6413
    %v6453 = vunpack.c.h.b16 %v6413
    %v6454 = vunpack.c.l.b16 %v6414
    %v6455 = vunpack.c.h.b16 %v6414
    %v6456 = vunpack.c.l.b16 %v6415
    %v6457 = vunpack.c.h.b16 %v6415
    %v6458 = vunpack.c.l.b16 %v6416
    %v6459 = vunpack.c.h.b16 %v6416
    %v6460 = vunpack.c.l.b16 %v6417
    %v6461 = vunpack.c.h.b16 %v6417
    %v6462 = vunpack.c.l.b16 %v6418
    %v6463 = vunpack.c.h.b16 %v6418
    %v6464 = vunpack.c.l.b16 %v6419
    %v6465 = vunpack.c.h.b16 %v6419
    %v6466 = vunpack.c.l.b16 %v6420
    %v6467 = vunpack.c.h.b16 %v6420
    %v6468 = vunpack.c.l.b16 %v6421
    %v6469 = vunpack.c.h.b16 %v6421
    %v6470 = vpack.c.b16 %v6438, %v6438
    %v6471 = vpack.c.b16 %v6439, %v6439
    %v6472 = vpack.c.b16 %v6440, %v6440
    %v6473 = vpack.c.b16 %v6441, %v6441
    %v6474 = vpack.c.b16 %v6442, %v6442
    %v6475 = vpack.c.b16 %v6443, %v6443
    %v6476 = vpack.c.b16 %v6444, %v6444
    %v6477 = vpack.c.b16 %v6445, %v6445
    %v6478 = vpack.c.b16 %v6446, %v6446
    %v6479 = vpack.c.b16 %v6447, %v6447
    %v6480 = vpack.c.b16 %v6448, %v6448
    %v6481 = vpack.c.b16 %v6449, %v6449
    %v6482 = vpack.c.b16 %v6450, %v6450
    %v6483 = vpack.c.b16 %v6451, %v6451
    %v6484 = vpack.c.b16 %v6452, %v6452
    %v6485 = vpack.c.b16 %v6453, %v6453
    %v6486 = vpack.c.b16 %v6454, %v6454
    %v6487 = vpack.c.b16 %v6455, %v6455
    %v6488 = vpack.c.b16 %v6456, %v6456
    %v6489 = vpack.c.b16 %v6457, %v6457
    %v6490 = vpack.c.b16 %v6458, %v6458
    %v6491 = vpack.c.b16 %v6459, %v6459
    %v6492 = vpack.c.b16 %v6460, %v6460
    %v6493 = vpack.c.b16 %v6461, %v6461
    %v6494 = vpack.c.b16 %v6462, %v6462
    %v6495 = vpack.c.b16 %v6463, %v6463
    %v6496 = vpack.c.b16 %v6464, %v6464
    %v6497 = vpack.c.b16 %v6465, %v6465
    %v6498 = vpack.c.b16 %v6466, %v6466
    %v6499 = vpack.c.b16 %v6467, %v6467
    %v6500 = vpack.c.b16 %v6468, %v6468
    %v6501 = vpack.c.b16 %v6469, %v6469
    %v6502 = vrot.slane %v6470, 5
    %v6503 = vrot.slane %v6502, 4
    %v6504 = vrot.slane %v6471, 5
    %v6505 = vsel %vm5508, %v6503, %v6504
    %v6506 = vrot.slane %v6472, 5
    %v6507 = vrot.slane %v6506, 4
    %v6508 = vrot.slane %v6473, 5
    %v6509 = vsel %vm5508, %v6507, %v6508
    %v6510 = vrot.slane %v6474, 5
    %v6511 = vrot.slane %v6510, 4
    %v6512 = vrot.slane %v6475, 5
    %v6513 = vsel %vm5508, %v6511, %v6512
    %v6514 = vrot.slane %v6476, 5
    %v6515 = vrot.slane %v6514, 4
    %v6516 = vrot.slane %v6477, 5
    %v6517 = vsel %vm5508, %v6515, %v6516
    %v6518 = vrot.slane %v6478, 5
    %v6519 = vrot.slane %v6518, 4
    %v6520 = vrot.slane %v6479, 5
    %v6521 = vsel %vm5508, %v6519, %v6520
    %v6522 = vrot.slane %v6480, 5
    %v6523 = vrot.slane %v6522, 4
    %v6524 = vrot.slane %v6481, 5
    %v6525 = vsel %vm5508, %v6523, %v6524
    %v6526 = vrot.slane %v6482, 5
    %v6527 = vrot.slane %v6526, 4
    %v6528 = vrot.slane %v6483, 5
    %v6529 = vsel %vm5508, %v6527, %v6528
    %v6530 = vrot.slane %v6484, 5
    %v6531 = vrot.slane %v6530, 4
    %v6532 = vrot.slane %v6485, 5
    %v6533 = vsel %vm5508, %v6531, %v6532
    %v6534 = vrot.slane %v6486, 5
    %v6535 = vrot.slane %v6534, 4
    %v6536 = vrot.slane %v6487, 5
    %v6537 = vsel %vm5508, %v6535, %v6536
    %v6538 = vrot.slane %v6488, 5
    %v6539 = vrot.slane %v6538, 4
    %v6540 = vrot.slane %v6489, 5
    %v6541 = vsel %vm5508, %v6539, %v6540
    %v6542 = vrot.slane %v6490, 5
    %v6543 = vrot.slane %v6542, 4
    %v6544 = vrot.slane %v6491, 5
    %v6545 = vsel %vm5508, %v6543, %v6544
    %v6546 = vrot.slane %v6492, 5
    %v6547 = vrot.slane %v6546, 4
    %v6548 = vrot.slane %v6493, 5
    %v6549 = vsel %vm5508, %v6547, %v6548
    %v6550 = vrot.slane %v6494, 5
    %v6551 = vrot.slane %v6550, 4
    %v6552 = vrot.slane %v6495, 5
    %v6553 = vsel %vm5508, %v6551, %v6552
    %v6554 = vrot.slane %v6496, 5
    %v6555 = vrot.slane %v6554, 4
    %v6556 = vrot.slane %v6497, 5
    %v6557 = vsel %vm5508, %v6555, %v6556
    %v6558 = vrot.slane %v6498, 5
    %v6559 = vrot.slane %v6558, 4
    %v6560 = vrot.slane %v6499, 5
    %v6561 = vsel %vm5508, %v6559, %v6560
    %v6562 = vrot.slane %v6500, 5
    %v6563 = vrot.slane %v6562, 4
    %v6564 = vrot.slane %v6501, 5
    %v6565 = vsel %vm5508, %v6563, %v6564
    %v6582 = vunpack.c.l.b16 %v5071
    %v6583 = vunpack.c.l.b16 %v5072
    %v6584 = vunpack.c.l.b16 %v5073
    %v6585 = vunpack.c.l.b16 %v5074
    %v6586 = vunpack.c.l.b16 %v5075
    %v6587 = vunpack.c.l.b16 %v5076
    %v6588 = vunpack.c.l.b16 %v5077
    %v6589 = vunpack.c.l.b16 %v5078
    %v6590 = vunpack.c.l.b16 %v5079
    %v6591 = vunpack.c.l.b16 %v5080
    %v6592 = vunpack.c.l.b16 %v5081
    %v6593 = vunpack.c.l.b16 %v5082
    %v6594 = vunpack.c.l.b16 %v5083
    %v6595 = vunpack.c.l.b16 %v5084
    %v6596 = vunpack.c.l.b16 %v5085
    %v6597 = vunpack.c.l.b16 %v5086
    %v6598 = vpack.c.b16 %v6583, %v6582
    %v6599 = vpack.c.b16 %v6585, %v6584
    %v6600 = vpack.c.b16 %v6587, %v6586
    %v6601 = vpack.c.b16 %v6589, %v6588
    %v6602 = vpack.c.b16 %v6591, %v6590
    %v6603 = vpack.c.b16 %v6593, %v6592
    %v6604 = vpack.c.b16 %v6595, %v6594
    %v6605 = vpack.c.b16 %v6597, %v6596
    %v6606 = vunpack.c.l.b16 %v5199
    %v6607 = vunpack.c.l.b16 %v5213
    %v6608 = vunpack.c.l.b16 %v5227
    %v6609 = vunpack.c.l.b16 %v5241
    %v6610 = vunpack.c.l.b16 %v5255
    %v6611 = vunpack.c.l.b16 %v5269
    %v6612 = vunpack.c.l.b16 %v5283
    %v6613 = vunpack.c.l.b16 %v5297
    %v6614 = vunpack.c.l.b16 %v5311
    %v6615 = vunpack.c.l.b16 %v5325
    %v6616 = vunpack.c.l.b16 %v5339
    %v6617 = vunpack.c.l.b16 %v5353
    %v6618 = vunpack.c.l.b16 %v5367
    %v6619 = vunpack.c.l.b16 %v5381
    %v6620 = vunpack.c.l.b16 %v5395
    %v6621 = vunpack.c.l.b16 %v5409
    %v6622 = vpack.c.b16 %v6607, %v6606
    %v6623 = vpack.c.b16 %v6609, %v6608
    %v6624 = vpack.c.b16 %v6611, %v6610
    %v6625 = vpack.c.b16 %v6613, %v6612
    %v6626 = vpack.c.b16 %v6615, %v6614
    %v6627 = vpack.c.b16 %v6617, %v6616
    %v6628 = vpack.c.b16 %v6619, %v6618
    %v6629 = vpack.c.b16 %v6621, %v6620
    %6630 = vrot.lane.b32.xlu0 %v6622, 32
    %v6631 = vpop.permute.xlu0 %6630
    %6632 = vrot.lane.b32.xlu0 %v6623, 32
    %v6633 = vpop.permute.xlu0 %6632
    %6634 = vrot.lane.b32.xlu0 %v6624, 32
    %v6635 = vpop.permute.xlu0 %6634
    %6636 = vrot.lane.b32.xlu0 %v6625, 32
    %v6637 = vpop.permute.xlu0 %6636
    %6638 = vrot.lane.b32.xlu0 %v6626, 32
    %v6639 = vpop.permute.xlu0 %6638
    %6640 = vrot.lane.b32.xlu0 %v6627, 32
    %v6641 = vpop.permute.xlu0 %6640
    %6642 = vrot.lane.b32.xlu0 %v6628, 32
    %v6643 = vpop.permute.xlu0 %6642
    %6644 = vrot.lane.b32.xlu0 %v6629, 32
    %v6645 = vpop.permute.xlu0 %6644
    %v6646 = vunpack.c.l.b16 %v5512
    %v6647 = vunpack.c.l.b16 %v5516
    %v6648 = vunpack.c.l.b16 %v5520
    %v6649 = vunpack.c.l.b16 %v5524
    %v6650 = vunpack.c.l.b16 %v5528
    %v6651 = vunpack.c.l.b16 %v5532
    %v6652 = vunpack.c.l.b16 %v5536
    %v6653 = vunpack.c.l.b16 %v5540
    %v6654 = vunpack.c.l.b16 %v5544
    %v6655 = vunpack.c.l.b16 %v5548
    %v6656 = vunpack.c.l.b16 %v5552
    %v6657 = vunpack.c.l.b16 %v5556
    %v6658 = vunpack.c.l.b16 %v5560
    %v6659 = vunpack.c.l.b16 %v5564
    %v6660 = vunpack.c.l.b16 %v5568
    %v6661 = vunpack.c.l.b16 %v5572
    %v6662 = vpack.c.b16 %v6647, %v6646
    %v6663 = vpack.c.b16 %v6649, %v6648
    %v6664 = vpack.c.b16 %v6651, %v6650
    %v6665 = vpack.c.b16 %v6653, %v6652
    %v6666 = vpack.c.b16 %v6655, %v6654
    %v6667 = vpack.c.b16 %v6657, %v6656
    %v6668 = vpack.c.b16 %v6659, %v6658
    %v6669 = vpack.c.b16 %v6661, %v6660
    %6670 = vrot.lane.b32.xlu0 %v6662, 64
    %v6671 = vpop.permute.xlu0 %6670
    %6672 = vrot.lane.b32.xlu0 %v6663, 64
    %v6673 = vpop.permute.xlu0 %6672
    %6674 = vrot.lane.b32.xlu0 %v6664, 64
    %v6675 = vpop.permute.xlu0 %6674
    %6676 = vrot.lane.b32.xlu0 %v6665, 64
    %v6677 = vpop.permute.xlu0 %6676
    %6678 = vrot.lane.b32.xlu0 %v6666, 64
    %v6679 = vpop.permute.xlu0 %6678
    %6680 = vrot.lane.b32.xlu0 %v6667, 64
    %v6681 = vpop.permute.xlu0 %6680
    %6682 = vrot.lane.b32.xlu0 %v6668, 64
    %v6683 = vpop.permute.xlu0 %6682
    %6684 = vrot.lane.b32.xlu0 %v6669, 64
    %v6685 = vpop.permute.xlu0 %6684
    %v6702 = vunpack.c.l.b16 %v5573
    %v6703 = vunpack.c.l.b16 %v5574
    %v6704 = vunpack.c.l.b16 %v5575
    %v6705 = vunpack.c.l.b16 %v5576
    %v6706 = vunpack.c.l.b16 %v5577
    %v6707 = vunpack.c.l.b16 %v5578
    %v6708 = vunpack.c.l.b16 %v5579
    %v6709 = vunpack.c.l.b16 %v5580
    %v6710 = vunpack.c.l.b16 %v5581
    %v6711 = vunpack.c.l.b16 %v5582
    %v6712 = vunpack.c.l.b16 %v5583
    %v6713 = vunpack.c.l.b16 %v5584
    %v6714 = vunpack.c.l.b16 %v5585
    %v6715 = vunpack.c.l.b16 %v5586
    %v6716 = vunpack.c.l.b16 %v5587
    %v6717 = vunpack.c.l.b16 %v5588
    %v6718 = vpack.c.b16 %v6703, %v6702
    %v6719 = vpack.c.b16 %v6705, %v6704
    %v6720 = vpack.c.b16 %v6707, %v6706
    %v6721 = vpack.c.b16 %v6709, %v6708
    %v6722 = vpack.c.b16 %v6711, %v6710
    %v6723 = vpack.c.b16 %v6713, %v6712
    %v6724 = vpack.c.b16 %v6715, %v6714
    %v6725 = vpack.c.b16 %v6717, %v6716
    %6726 = vrot.lane.b32.xlu0 %v6718, 96
    %v6727 = vpop.permute.xlu0 %6726
    %6728 = vrot.lane.b32.xlu0 %v6719, 96
    %v6729 = vpop.permute.xlu0 %6728
    %6730 = vrot.lane.b32.xlu0 %v6720, 96
    %v6731 = vpop.permute.xlu0 %6730
    %6732 = vrot.lane.b32.xlu0 %v6721, 96
    %v6733 = vpop.permute.xlu0 %6732
    %6734 = vrot.lane.b32.xlu0 %v6722, 96
    %v6735 = vpop.permute.xlu0 %6734
    %6736 = vrot.lane.b32.xlu0 %v6723, 96
    %v6737 = vpop.permute.xlu0 %6736
    %6738 = vrot.lane.b32.xlu0 %v6724, 96
    %v6739 = vpop.permute.xlu0 %6738
    %6740 = vrot.lane.b32.xlu0 %v6725, 96
    %v6741 = vpop.permute.xlu0 %6740
    %v6742 = vunpack.c.l.b16 %v5698
    %v6743 = vunpack.c.l.b16 %v5712
    %v6744 = vunpack.c.l.b16 %v5726
    %v6745 = vunpack.c.l.b16 %v5740
    %v6746 = vunpack.c.l.b16 %v5754
    %v6747 = vunpack.c.l.b16 %v5768
    %v6748 = vunpack.c.l.b16 %v5782
    %v6749 = vunpack.c.l.b16 %v5796
    %v6750 = vunpack.c.l.b16 %v5810
    %v6751 = vunpack.c.l.b16 %v5824
    %v6752 = vunpack.c.l.b16 %v5838
    %v6753 = vunpack.c.l.b16 %v5852
    %v6754 = vunpack.c.l.b16 %v5866
    %v6755 = vunpack.c.l.b16 %v5880
    %v6756 = vunpack.c.l.b16 %v5894
    %v6757 = vunpack.c.l.b16 %v5908
    %v6758 = vpack.c.b16 %v6743, %v6742
    %v6759 = vpack.c.b16 %v6745, %v6744
    %v6760 = vpack.c.b16 %v6747, %v6746
    %v6761 = vpack.c.b16 %v6749, %v6748
    %v6762 = vpack.c.b16 %v6751, %v6750
    %v6763 = vpack.c.b16 %v6753, %v6752
    %v6764 = vpack.c.b16 %v6755, %v6754
    %v6765 = vpack.c.b16 %v6757, %v6756
    %v6766 = vunpack.c.l.b16 %v6008
    %v6767 = vunpack.c.l.b16 %v6012
    %v6768 = vunpack.c.l.b16 %v6016
    %v6769 = vunpack.c.l.b16 %v6020
    %v6770 = vunpack.c.l.b16 %v6024
    %v6771 = vunpack.c.l.b16 %v6028
    %v6772 = vunpack.c.l.b16 %v6032
    %v6773 = vunpack.c.l.b16 %v6036
    %v6774 = vunpack.c.l.b16 %v6040
    %v6775 = vunpack.c.l.b16 %v6044
    %v6776 = vunpack.c.l.b16 %v6048
    %v6777 = vunpack.c.l.b16 %v6052
    %v6778 = vunpack.c.l.b16 %v6056
    %v6779 = vunpack.c.l.b16 %v6060
    %v6780 = vunpack.c.l.b16 %v6064
    %v6781 = vunpack.c.l.b16 %v6068
    %v6782 = vpack.c.b16 %v6767, %v6766
    %v6783 = vpack.c.b16 %v6769, %v6768
    %v6784 = vpack.c.b16 %v6771, %v6770
    %v6785 = vpack.c.b16 %v6773, %v6772
    %v6786 = vpack.c.b16 %v6775, %v6774
    %v6787 = vpack.c.b16 %v6777, %v6776
    %v6788 = vpack.c.b16 %v6779, %v6778
    %v6789 = vpack.c.b16 %v6781, %v6780
    %6790 = vrot.lane.b32.xlu0 %v6782, 32
    %v6791 = vpop.permute.xlu0 %6790
    %6792 = vrot.lane.b32.xlu0 %v6783, 32
    %v6793 = vpop.permute.xlu0 %6792
    %6794 = vrot.lane.b32.xlu0 %v6784, 32
    %v6795 = vpop.permute.xlu0 %6794
    %6796 = vrot.lane.b32.xlu0 %v6785, 32
    %v6797 = vpop.permute.xlu0 %6796
    %6798 = vrot.lane.b32.xlu0 %v6786, 32
    %v6799 = vpop.permute.xlu0 %6798
    %6800 = vrot.lane.b32.xlu0 %v6787, 32
    %v6801 = vpop.permute.xlu0 %6800
    %6802 = vrot.lane.b32.xlu0 %v6788, 32
    %v6803 = vpop.permute.xlu0 %6802
    %6804 = vrot.lane.b32.xlu0 %v6789, 32
    %v6805 = vpop.permute.xlu0 %6804
    %v6822 = vunpack.c.l.b16 %v6070
    %v6823 = vunpack.c.l.b16 %v6071
    %v6824 = vunpack.c.l.b16 %v6072
    %v6825 = vunpack.c.l.b16 %v6073
    %v6826 = vunpack.c.l.b16 %v6074
    %v6827 = vunpack.c.l.b16 %v6075
    %v6828 = vunpack.c.l.b16 %v6076
    %v6829 = vunpack.c.l.b16 %v6077
    %v6830 = vunpack.c.l.b16 %v6078
    %v6831 = vunpack.c.l.b16 %v6079
    %v6832 = vunpack.c.l.b16 %v6080
    %v6833 = vunpack.c.l.b16 %v6081
    %v6834 = vunpack.c.l.b16 %v6082
    %v6835 = vunpack.c.l.b16 %v6083
    %v6836 = vunpack.c.l.b16 %v6084
    %v6837 = vunpack.c.l.b16 %v6085
    %v6838 = vpack.c.b16 %v6823, %v6822
    %v6839 = vpack.c.b16 %v6825, %v6824
    %v6840 = vpack.c.b16 %v6827, %v6826
    %v6841 = vpack.c.b16 %v6829, %v6828
    %v6842 = vpack.c.b16 %v6831, %v6830
    %v6843 = vpack.c.b16 %v6833, %v6832
    %v6844 = vpack.c.b16 %v6835, %v6834
    %v6845 = vpack.c.b16 %v6837, %v6836
    %6846 = vrot.lane.b32.xlu0 %v6838, 64
    %v6847 = vpop.permute.xlu0 %6846
    %6848 = vrot.lane.b32.xlu0 %v6839, 64
    %v6849 = vpop.permute.xlu0 %6848
    %6850 = vrot.lane.b32.xlu0 %v6840, 64
    %v6851 = vpop.permute.xlu0 %6850
    %6852 = vrot.lane.b32.xlu0 %v6841, 64
    %v6853 = vpop.permute.xlu0 %6852
    %6854 = vrot.lane.b32.xlu0 %v6842, 64
    %v6855 = vpop.permute.xlu0 %6854
    %6856 = vrot.lane.b32.xlu0 %v6843, 64
    %v6857 = vpop.permute.xlu0 %6856
    %6858 = vrot.lane.b32.xlu0 %v6844, 64
    %v6859 = vpop.permute.xlu0 %6858
    %6860 = vrot.lane.b32.xlu0 %v6845, 64
    %v6861 = vpop.permute.xlu0 %6860
    %v6862 = vunpack.c.l.b16 %v6195
    %v6863 = vunpack.c.l.b16 %v6209
    %v6864 = vunpack.c.l.b16 %v6223
    %v6865 = vunpack.c.l.b16 %v6237
    %v6866 = vunpack.c.l.b16 %v6251
    %v6867 = vunpack.c.l.b16 %v6265
    %v6868 = vunpack.c.l.b16 %v6279
    %v6869 = vunpack.c.l.b16 %v6293
    %v6870 = vunpack.c.l.b16 %v6307
    %v6871 = vunpack.c.l.b16 %v6321
    %v6872 = vunpack.c.l.b16 %v6335
    %v6873 = vunpack.c.l.b16 %v6349
    %v6874 = vunpack.c.l.b16 %v6363
    %v6875 = vunpack.c.l.b16 %v6377
    %v6876 = vunpack.c.l.b16 %v6391
    %v6877 = vunpack.c.l.b16 %v6405
    %v6878 = vpack.c.b16 %v6863, %v6862
    %v6879 = vpack.c.b16 %v6865, %v6864
    %v6880 = vpack.c.b16 %v6867, %v6866
    %v6881 = vpack.c.b16 %v6869, %v6868
    %v6882 = vpack.c.b16 %v6871, %v6870
    %v6883 = vpack.c.b16 %v6873, %v6872
    %v6884 = vpack.c.b16 %v6875, %v6874
    %v6885 = vpack.c.b16 %v6877, %v6876
    %6886 = vrot.lane.b32.xlu0 %v6878, 96
    %v6887 = vpop.permute.xlu0 %6886
    %6888 = vrot.lane.b32.xlu0 %v6879, 96
    %v6889 = vpop.permute.xlu0 %6888
    %6890 = vrot.lane.b32.xlu0 %v6880, 96
    %v6891 = vpop.permute.xlu0 %6890
    %6892 = vrot.lane.b32.xlu0 %v6881, 96
    %v6893 = vpop.permute.xlu0 %6892
    %6894 = vrot.lane.b32.xlu0 %v6882, 96
    %v6895 = vpop.permute.xlu0 %6894
    %6896 = vrot.lane.b32.xlu0 %v6883, 96
    %v6897 = vpop.permute.xlu0 %6896
    %6898 = vrot.lane.b32.xlu0 %v6884, 96
    %v6899 = vpop.permute.xlu0 %6898
    %6900 = vrot.lane.b32.xlu0 %v6885, 96
    %v6901 = vpop.permute.xlu0 %6900
    %v6902 = vunpack.c.l.b16 %v6505
    %v6903 = vunpack.c.l.b16 %v6509
    %v6904 = vunpack.c.l.b16 %v6513
    %v6905 = vunpack.c.l.b16 %v6517
    %v6906 = vunpack.c.l.b16 %v6521
    %v6907 = vunpack.c.l.b16 %v6525
    %v6908 = vunpack.c.l.b16 %v6529
    %v6909 = vunpack.c.l.b16 %v6533
    %v6910 = vunpack.c.l.b16 %v6537
    %v6911 = vunpack.c.l.b16 %v6541
    %v6912 = vunpack.c.l.b16 %v6545
    %v6913 = vunpack.c.l.b16 %v6549
    %v6914 = vunpack.c.l.b16 %v6553
    %v6915 = vunpack.c.l.b16 %v6557
    %v6916 = vunpack.c.l.b16 %v6561
    %v6917 = vunpack.c.l.b16 %v6565
    %v6918 = vpack.c.b16 %v6903, %v6902
    %v6919 = vpack.c.b16 %v6905, %v6904
    %v6920 = vpack.c.b16 %v6907, %v6906
    %v6921 = vpack.c.b16 %v6909, %v6908
    %v6922 = vpack.c.b16 %v6911, %v6910
    %v6923 = vpack.c.b16 %v6913, %v6912
    %v6924 = vpack.c.b16 %v6915, %v6914
    %v6925 = vpack.c.b16 %v6917, %v6916
    %v6928 = vsel %vm2617, %v6598, %v6631
    %v6931 = vsel %vm2617, %v6599, %v6633
    %v6934 = vsel %vm2617, %v6600, %v6635
    %v6937 = vsel %vm2617, %v6601, %v6637
    %v6940 = vsel %vm2617, %v6602, %v6639
    %v6943 = vsel %vm2617, %v6603, %v6641
    %v6946 = vsel %vm2617, %v6604, %v6643
    %v6949 = vsel %vm2617, %v6605, %v6645
    %vm6950 = vcmask 523264
    %v6952 = vsel %vm6950, %v6928, %v6671
    %v6954 = vsel %vm6950, %v6931, %v6673
    %v6956 = vsel %vm6950, %v6934, %v6675
    %v6958 = vsel %vm6950, %v6937, %v6677
    %v6960 = vsel %vm6950, %v6940, %v6679
    %v6962 = vsel %vm6950, %v6943, %v6681
    %v6964 = vsel %vm6950, %v6946, %v6683
    %v6966 = vsel %vm6950, %v6949, %v6685
    %vm6967 = vcmask 785408
    %v6969 = vsel %vm6967, %v6952, %v6727
    %v6972 = vsel %vm6967, %v6954, %v6729
    %v6975 = vsel %vm6967, %v6956, %v6731
    %v6978 = vsel %vm6967, %v6958, %v6733
    %v6981 = vsel %vm6967, %v6960, %v6735
    %v6984 = vsel %vm6967, %v6962, %v6737
    %v6987 = vsel %vm6967, %v6964, %v6739
    %v6990 = vsel %vm6967, %v6966, %v6741
    %v6994 = vsel %vm2617, %v6758, %v6791
    %v6997 = vsel %vm2617, %v6759, %v6793
    %v7000 = vsel %vm2617, %v6760, %v6795
    %v7003 = vsel %vm2617, %v6761, %v6797
    %v7006 = vsel %vm2617, %v6762, %v6799
    %v7009 = vsel %vm2617, %v6763, %v6801
    %v7012 = vsel %vm2617, %v6764, %v6803
    %v7015 = vsel %vm2617, %v6765, %v6805
    %v7017 = vsel %vm6950, %v6994, %v6847
    %v7019 = vsel %vm6950, %v6997, %v6849
    %v7021 = vsel %vm6950, %v7000, %v6851
    %v7023 = vsel %vm6950, %v7003, %v6853
    %v7025 = vsel %vm6950, %v7006, %v6855
    %v7027 = vsel %vm6950, %v7009, %v6857
    %v7029 = vsel %vm6950, %v7012, %v6859
    %v7031 = vsel %vm6950, %v7015, %v6861
    %v7033 = vsel %vm6967, %v7017, %v6887
    %v7036 = vsel %vm6967, %v7019, %v6889
    %v7039 = vsel %vm6967, %v7021, %v6891
    %v7042 = vsel %vm6967, %v7023, %v6893
    %v7045 = vsel %vm6967, %v7025, %v6895
    %v7048 = vsel %vm6967, %v7027, %v6897
    %v7051 = vsel %vm6967, %v7029, %v6899
    %v7054 = vsel %vm6967, %v7031, %v6901
    %v7056 = vld [vmem:[%s3] sm:$0xff]
    %v7057 = vld [vmem:[%s3 + $0x8] sm:$0xff]
    %v7058 = vld [vmem:[%s3 + $0x10] sm:$0xff]
    %v7059 = vld [vmem:[%s3 + $0x18] sm:$0xff]
    %v7060 = vld [vmem:[%s3 + $0x20] sm:$0xff]
    %v7061 = vld [vmem:[%s3 + $0x28] sm:$0xff]
    %v7062 = vld [vmem:[%s3 + $0x30] sm:$0xff]
    %v7063 = vld [vmem:[%s3 + $0x38] sm:$0xff]
    %v7064 = vld [vmem:[%s3 + $0x40] sm:$0xff]
    %v7065 = vld [vmem:[%s3 + $0x48] sm:$0xff]
    %v7066 = vld [vmem:[%s3 + $0x50] sm:$0xff]
    %v7067 = vld [vmem:[%s3 + $0x58] sm:$0xff]
    %v7068 = vld [vmem:[%s3 + $0x60] sm:$0xff]
    %v7069 = vld [vmem:[%s3 + $0x68] sm:$0xff]
    %v7070 = vld [vmem:[%s3 + $0x70] sm:$0xff]
    %v7071 = vld [vmem:[%s3 + $0x78] sm:$0xff]
    %v7072 = vld [vmem:[%s3 + $0x80] sm:$0xff]
    %v7073 = vld [vmem:[%s3 + $0x88] sm:$0xff]
    %v7074 = vld [vmem:[%s3 + $0x90] sm:$0xff]
    %v7075 = vld [vmem:[%s3 + $0x98] sm:$0xff]
    %v7076 = vld [vmem:[%s3 + $0xa0] sm:$0xff]
    %v7077 = vld [vmem:[%s3 + $0xa8] sm:$0xff]
    %v7078 = vld [vmem:[%s3 + $0xb0] sm:$0xff]
    %v7079 = vld [vmem:[%s3 + $0xb8] sm:$0xff]
    %v7080 = vld [vmem:[%s3 + $0xc0] sm:$0xff]
    %v7081 = vld [vmem:[%s3 + $0xc8] sm:$0xff]
    %v7082 = vld [vmem:[%s3 + $0xd0] sm:$0xff]
    %v7083 = vld [vmem:[%s3 + $0xd8] sm:$0xff]
    %v7084 = vld [vmem:[%s3 + $0xe0] sm:$0xff]
    %v7085 = vld [vmem:[%s3 + $0xe8] sm:$0xff]
    %v7086 = vld [vmem:[%s3 + $0xf0] sm:$0xff]
    %v7087 = vld [vmem:[%s3 + $0xf8] sm:$0xff]
    %v7088 = vld [vmem:[%s3 + $0x100] sm:$0xff]
    %v7089 = vld [vmem:[%s3 + $0x108] sm:$0xff]
    %v7090 = vld [vmem:[%s3 + $0x110] sm:$0xff]
    %v7091 = vld [vmem:[%s3 + $0x118] sm:$0xff]
    %v7092 = vld [vmem:[%s4] sm:$0x3]
    %v7094 = vlaneseq
    %v7095 = vshrl.u32 %v7094, 7
    %v7096 = vsub.s32 0, %v7095
    %v7097 = vrot.slane %v7092, %v7096
    %v7098 = vlaneseq
    %v7099 = vshrl.u32 %v7098, 7
    %v7100 = vsub.s32 1, %v7099
    %v7101 = vrot.slane %v7092, %v7100
    %v7140 = vunpack.c.l.b16 %v7056
    %v7141 = vunpack.c.h.b16 %v7056
    %v7142 = vunpack.c.l.b16 %v7057
    %v7143 = vunpack.c.h.b16 %v7057
    %v7144 = vunpack.c.l.b16 %v7058
    %v7145 = vunpack.c.h.b16 %v7058
    %v7146 = vunpack.c.l.b16 %v7059
    %v7147 = vunpack.c.h.b16 %v7059
    %v7148 = vunpack.c.l.b16 %v7060
    %v7149 = vunpack.c.h.b16 %v7060
    %v7150 = vunpack.c.l.b16 %v7061
    %v7151 = vunpack.c.h.b16 %v7061
    %v7152 = vunpack.c.l.b16 %v7062
    %v7153 = vunpack.c.h.b16 %v7062
    %v7154 = vunpack.c.l.b16 %v7063
    %v7155 = vunpack.c.h.b16 %v7063
    %v7156 = vunpack.c.l.b16 %v7064
    %v7157 = vunpack.c.h.b16 %v7064
    %v7158 = vunpack.c.l.b16 %v7065
    %v7159 = vunpack.c.h.b16 %v7065
    %v7160 = vunpack.c.l.b16 %v7066
    %v7161 = vunpack.c.h.b16 %v7066
    %v7162 = vunpack.c.l.b16 %v7067
    %v7163 = vunpack.c.h.b16 %v7067
    %v7164 = vunpack.c.l.b16 %v7068
    %v7165 = vunpack.c.h.b16 %v7068
    %v7166 = vunpack.c.l.b16 %v7069
    %v7167 = vunpack.c.h.b16 %v7069
    %v7168 = vunpack.c.l.b16 %v7070
    %v7169 = vunpack.c.h.b16 %v7070
    %v7170 = vunpack.c.l.b16 %v7071
    %v7171 = vunpack.c.h.b16 %v7071
    %v7172 = vunpack.c.l.b16 %v7072
    %v7173 = vunpack.c.h.b16 %v7072
    %v7174 = vunpack.c.l.b16 %v7073
    %v7175 = vunpack.c.h.b16 %v7073
    %v7176 = vunpack.c.l.b16 %v7074
    %v7177 = vunpack.c.h.b16 %v7074
    %v7178 = vunpack.c.l.b16 %v7075
    %v7179 = vunpack.c.h.b16 %v7075
    %v7180 = vunpack.c.l.b16 %v7076
    %v7181 = vunpack.c.h.b16 %v7076
    %v7182 = vunpack.c.l.b16 %v7077
    %v7183 = vunpack.c.h.b16 %v7077
    %v7184 = vunpack.c.l.b16 %v7078
    %v7185 = vunpack.c.h.b16 %v7078
    %v7186 = vunpack.c.l.b16 %v7079
    %v7187 = vunpack.c.h.b16 %v7079
    %v7188 = vunpack.c.l.b16 %v7080
    %v7189 = vunpack.c.h.b16 %v7080
    %v7190 = vunpack.c.l.b16 %v7081
    %v7191 = vunpack.c.h.b16 %v7081
    %v7192 = vunpack.c.l.b16 %v7082
    %v7193 = vunpack.c.h.b16 %v7082
    %v7194 = vunpack.c.l.b16 %v7083
    %v7195 = vunpack.c.h.b16 %v7083
    %v7196 = vunpack.c.l.b16 %v7084
    %v7197 = vunpack.c.h.b16 %v7084
    %v7198 = vunpack.c.l.b16 %v7085
    %v7199 = vunpack.c.h.b16 %v7085
    %v7200 = vunpack.c.l.b16 %v7086
    %v7201 = vunpack.c.h.b16 %v7086
    %v7202 = vunpack.c.l.b16 %v7087
    %v7203 = vunpack.c.h.b16 %v7087
    %v7204 = vunpack.c.l.b16 %v7088
    %v7205 = vunpack.c.h.b16 %v7088
    %v7206 = vunpack.c.l.b16 %v7089
    %v7207 = vunpack.c.h.b16 %v7089
    %v7208 = vunpack.c.l.b16 %v7090
    %v7209 = vunpack.c.h.b16 %v7090
    %v7210 = vunpack.c.l.b16 %v7091
    %v7211 = vunpack.c.h.b16 %v7091
    %v7212 = vpack.c.b16 %v7142, %v7140
    %v7213 = vpack.c.b16 %v7143, %v7141
    %v7214 = vpack.c.b16 %v7146, %v7144
    %v7215 = vpack.c.b16 %v7147, %v7145
    %v7216 = vpack.c.b16 %v7150, %v7148
    %v7217 = vpack.c.b16 %v7151, %v7149
    %v7218 = vpack.c.b16 %v7154, %v7152
    %v7219 = vpack.c.b16 %v7155, %v7153
    %v7220 = vpack.c.b16 %v7158, %v7156
    %v7221 = vpack.c.b16 %v7159, %v7157
    %v7222 = vpack.c.b16 %v7162, %v7160
    %v7223 = vpack.c.b16 %v7163, %v7161
    %v7224 = vpack.c.b16 %v7166, %v7164
    %v7225 = vpack.c.b16 %v7167, %v7165
    %v7226 = vpack.c.b16 %v7170, %v7168
    %v7227 = vpack.c.b16 %v7171, %v7169
    %v7228 = vpack.c.b16 %v7174, %v7172
    %v7229 = vpack.c.b16 %v7175, %v7173
    %v7230 = vpack.c.b16 %v7178, %v7176
    %v7231 = vpack.c.b16 %v7179, %v7177
    %v7232 = vpack.c.b16 %v7182, %v7180
    %v7233 = vpack.c.b16 %v7183, %v7181
    %v7234 = vpack.c.b16 %v7186, %v7184
    %v7235 = vpack.c.b16 %v7187, %v7185
    %v7236 = vpack.c.b16 %v7190, %v7188
    %v7237 = vpack.c.b16 %v7191, %v7189
    %v7238 = vpack.c.b16 %v7194, %v7192
    %v7239 = vpack.c.b16 %v7195, %v7193
    %v7240 = vpack.c.b16 %v7198, %v7196
    %v7241 = vpack.c.b16 %v7199, %v7197
    %v7242 = vpack.c.b16 %v7202, %v7200
    %v7243 = vpack.c.b16 %v7203, %v7201
    %v7244 = vpack.c.b16 %v7206, %v7204
    %v7245 = vpack.c.b16 %v7207, %v7205
    %v7246 = vpack.c.b16 %v7210, %v7208
    %v7247 = vpack.c.b16 %v7211, %v7209
    %v7285 = vsel %vm2617, %v6918, 0
    %v7288 = vsel %vm2617, %v6919, 0
    %v7291 = vsel %vm2617, %v6920, 0
    %v7294 = vsel %vm2617, %v6921, 0
    %v7297 = vsel %vm2617, %v6922, 0
    %v7300 = vsel %vm2617, %v6923, 0
    %v7303 = vsel %vm2617, %v6924, 0
    %v7306 = vsel %vm2617, %v6925, 0
    %7308 = vmatprep.subr.bf16.mxu0 %v7213
    %7309 = vmatpush1.bf16.msra.mxu0 %v7212
    %7310 = vmatprep.subr.bf16.mxu0 %v7215
    %7311 = vmatpush1.bf16.msra.mxu0 %v7214
    %7312 = vmatprep.subr.bf16.mxu0 %v7217
    %7313 = vmatpush1.bf16.msra.mxu0 %v7216
    %7314 = vmatprep.subr.bf16.mxu0 %v7219
    %7315 = vmatpush1.bf16.msra.mxu0 %v7218
    %7316 = vmatprep.subr.bf16.mxu0 %v7221
    %7317 = vmatpush1.bf16.msra.mxu0 %v7220
    %7318 = vmatprep.subr.bf16.mxu0 %v7223
    %7319 = vmatpush1.bf16.msra.mxu0 %v7222
    %7320 = vmatprep.subr.bf16.mxu0 %v7225
    %7321 = vmatpush1.bf16.msra.mxu0 %v7224
    %7322 = vmatprep.subr.bf16.mxu0 %v7227
    %7323 = vmatpush1.bf16.msra.mxu0 %v7226
    %7324 = vmatprep.subr.bf16.mxu0 %v7229
    %7325 = vmatpush1.bf16.msra.mxu0 %v7228
    %7326 = vmatprep.subr.bf16.mxu0 %v7231
    %7327 = vmatpush1.bf16.msra.mxu0 %v7230
    %7328 = vmatprep.subr.bf16.mxu0 %v7233
    %7329 = vmatpush1.bf16.msra.mxu0 %v7232
    %7330 = vmatprep.subr.bf16.mxu0 %v7235
    %7331 = vmatpush1.bf16.msra.mxu0 %v7234
    %7332 = vmatprep.subr.bf16.mxu0 %v7237
    %7333 = vmatpush1.bf16.msra.mxu0 %v7236
    %7334 = vmatprep.subr.bf16.mxu0 %v7239
    %7335 = vmatpush1.bf16.msra.mxu0 %v7238
    %7336 = vmatprep.subr.bf16.mxu0 %v7241
    %7337 = vmatpush1.bf16.msra.mxu0 %v7240
    %7338 = vmatprep.subr.bf16.mxu0 %v7243
    %7339 = vmatpush1.bf16.msra.mxu0 %v7242
    %7340 = vmatprep.mubr.bf16.mxu0 %v7033
    %7341 = vmatmul.mubr.bf16.gmra.mrb[0].mxu0 %v6969
    %v7342 = vpop.f32.mrb[0].mxu0
    %v7343 = vadd.f32 %v7097, %v7342
    %v7344 = vpop.f32.mrb[0].mxu0
    %v7345 = vadd.f32 %v7101, %v7344
    %v7346 = vpop.f32.mrb[0].mxu0
    %v7347 = vadd.f32 %v7097, %v7346
    %v7348 = vpop.f32.mrb[0].mxu0
    %v7349 = vadd.f32 %v7101, %v7348
    %7350 = vmatprep.mubr.bf16.mxu0 %v7036
    %7351 = vmatmul.mubr.bf16.gmra.mrb[0].mxu0 %v6972
    %v7352 = vpop.f32.mrb[0].mxu0
    %v7353 = vadd.f32 %v7097, %v7352
    %v7354 = vpop.f32.mrb[0].mxu0
    %v7355 = vadd.f32 %v7101, %v7354
    %v7356 = vpop.f32.mrb[0].mxu0
    %v7357 = vadd.f32 %v7097, %v7356
    %v7358 = vpop.f32.mrb[0].mxu0
    %v7359 = vadd.f32 %v7101, %v7358
    %7360 = vmatprep.mubr.bf16.mxu0 %v7039
    %7361 = vmatmul.mubr.bf16.gmra.mrb[0].mxu0 %v6975
    %v7362 = vpop.f32.mrb[0].mxu0
    %v7363 = vadd.f32 %v7097, %v7362
    %v7364 = vpop.f32.mrb[0].mxu0
    %v7365 = vadd.f32 %v7101, %v7364
    %v7366 = vpop.f32.mrb[0].mxu0
    %v7367 = vadd.f32 %v7097, %v7366
    %v7368 = vpop.f32.mrb[0].mxu0
    %v7369 = vadd.f32 %v7101, %v7368
    %7370 = vmatprep.mubr.bf16.mxu0 %v7042
    %7371 = vmatmul.mubr.bf16.gmra.mrb[0].mxu0 %v6978
    %v7372 = vpop.f32.mrb[0].mxu0
    %v7373 = vadd.f32 %v7097, %v7372
    %v7374 = vpop.f32.mrb[0].mxu0
    %v7375 = vadd.f32 %v7101, %v7374
    %v7376 = vpop.f32.mrb[0].mxu0
    %v7377 = vadd.f32 %v7097, %v7376
    %v7378 = vpop.f32.mrb[0].mxu0
    %v7379 = vadd.f32 %v7101, %v7378
    %7380 = vmatprep.mubr.bf16.mxu0 %v7045
    %7381 = vmatmul.mubr.bf16.gmra.mrb[0].mxu0 %v6981
    %v7382 = vpop.f32.mrb[0].mxu0
    %v7383 = vadd.f32 %v7097, %v7382
    %v7384 = vpop.f32.mrb[0].mxu0
    %v7385 = vadd.f32 %v7101, %v7384
    %v7386 = vpop.f32.mrb[0].mxu0
    %v7387 = vadd.f32 %v7097, %v7386
    %v7388 = vpop.f32.mrb[0].mxu0
    %v7389 = vadd.f32 %v7101, %v7388
    %7390 = vmatprep.mubr.bf16.mxu0 %v7048
    %7391 = vmatmul.mubr.bf16.gmra.mrb[0].mxu0 %v6984
    %v7392 = vpop.f32.mrb[0].mxu0
    %v7393 = vadd.f32 %v7097, %v7392
    %v7394 = vpop.f32.mrb[0].mxu0
    %v7395 = vadd.f32 %v7101, %v7394
    %v7396 = vpop.f32.mrb[0].mxu0
    %v7397 = vadd.f32 %v7097, %v7396
    %v7398 = vpop.f32.mrb[0].mxu0
    %v7399 = vadd.f32 %v7101, %v7398
    %7400 = vmatprep.mubr.bf16.mxu0 %v7051
    %7401 = vmatmul.mubr.bf16.gmra.mrb[0].mxu0 %v6987
    %v7402 = vpop.f32.mrb[0].mxu0
    %v7403 = vadd.f32 %v7097, %v7402
    %v7404 = vpop.f32.mrb[0].mxu0
    %v7405 = vadd.f32 %v7101, %v7404
    %v7406 = vpop.f32.mrb[0].mxu0
    %v7407 = vadd.f32 %v7097, %v7406
    %v7408 = vpop.f32.mrb[0].mxu0
    %v7409 = vadd.f32 %v7101, %v7408
    %7410 = vmatprep.mubr.bf16.mxu0 %v7054
    %7411 = vmatmul.mubr.bf16.gmra.mrb[0].mxu0 %v6990
    %v7412 = vpop.f32.mrb[0].mxu0
    %v7413 = vadd.f32 %v7097, %v7412
    %v7414 = vpop.f32.mrb[0].mxu0
    %v7415 = vadd.f32 %v7101, %v7414
    %v7416 = vpop.f32.mrb[0].mxu0
    %v7417 = vadd.f32 %v7097, %v7416
    %v7418 = vpop.f32.mrb[0].mxu0
    %v7419 = vadd.f32 %v7101, %v7418
    %7420 = vdwg.mxu0
    %7421 = vmatprep.subr.bf16.mxu0 %v7245
    %7422 = vmatpush1.bf16.msra.mxu0 %v7244
    %7423 = vmatprep.subr.bf16.mxu0 %v7247
    %7424 = vmatpush1.bf16.msra.mxu0 %v7246
    %7425 = vmatprep.subr.bf16.mxu0 0
    %7426 = vmatpush1.bf16.msra.mxu0 0
    %7427 = vmatprep.subr.bf16.mxu0 0
    %7428 = vmatpush1.bf16.msra.mxu0 0
    %7429 = vmatprep.subr.bf16.mxu0 0
    %7430 = vmatpush1.bf16.msra.mxu0 0
    %7431 = vmatprep.subr.bf16.mxu0 0
    %7432 = vmatpush1.bf16.msra.mxu0 0
    %7433 = vmatprep.subr.bf16.mxu0 0
    %7434 = vmatpush1.bf16.msra.mxu0 0
    %7435 = vmatprep.subr.bf16.mxu0 0
    %7436 = vmatpush1.bf16.msra.mxu0 0
    %7437 = vmatprep.subr.bf16.mxu0 0
    %7438 = vmatpush1.bf16.msra.mxu0 0
    %7439 = vmatprep.subr.bf16.mxu0 0
    %7440 = vmatpush1.bf16.msra.mxu0 0
    %7441 = vmatprep.subr.bf16.mxu0 0
    %7442 = vmatpush1.bf16.msra.mxu0 0
    %7443 = vmatprep.subr.bf16.mxu0 0
    %7444 = vmatpush1.bf16.msra.mxu0 0
    %7445 = vmatprep.subr.bf16.mxu0 0
    %7446 = vmatpush1.bf16.msra.mxu0 0
    %7447 = vmatprep.subr.bf16.mxu0 0
    %7448 = vmatpush1.bf16.msra.mxu0 0
    %7449 = vmatprep.subr.bf16.mxu0 0
    %7450 = vmatpush1.bf16.msra.mxu0 0
    %7451 = vmatprep.subr.bf16.mxu0 0
    %7452 = vmatpush1.bf16.msra.mxu0 0
    %7453 = vmatprep.mubr.bf16.mxu0 0
    %7454 = vmatmul.mubr.bf16.gmra.mrb[0].mxu0 %v7285
    %v7455 = vpop.f32.mrb[0].mxu0
    %v7456 = vadd.f32 %v7343, %v7455
    %v7457 = vpop.f32.mrb[0].mxu0
    %v7458 = vadd.f32 %v7345, %v7457
    %v7459 = vpop.f32.mrb[0].mxu0
    %v7460 = vadd.f32 %v7347, %v7459
    %v7461 = vpop.f32.mrb[0].mxu0
    %v7462 = vadd.f32 %v7349, %v7461
    %7463 = vmatprep.mubr.bf16.mxu0 0
    %7464 = vmatmul.mubr.bf16.gmra.mrb[0].mxu0 %v7288
    %v7465 = vpop.f32.mrb[0].mxu0
    %v7466 = vadd.f32 %v7353, %v7465
    %v7467 = vpop.f32.mrb[0].mxu0
    %v7468 = vadd.f32 %v7355, %v7467
    %v7469 = vpop.f32.mrb[0].mxu0
    %v7470 = vadd.f32 %v7357, %v7469
    %v7471 = vpop.f32.mrb[0].mxu0
    %v7472 = vadd.f32 %v7359, %v7471
    %7473 = vmatprep.mubr.bf16.mxu0 0
    %7474 = vmatmul.mubr.bf16.gmra.mrb[0].mxu0 %v7291
    %v7475 = vpop.f32.mrb[0].mxu0
    %v7476 = vadd.f32 %v7363, %v7475
    %v7477 = vpop.f32.mrb[0].mxu0
    %v7478 = vadd.f32 %v7365, %v7477
    %v7479 = vpop.f32.mrb[0].mxu0
    %v7480 = vadd.f32 %v7367, %v7479
    %v7481 = vpop.f32.mrb[0].mxu0
    %v7482 = vadd.f32 %v7369, %v7481
    %7483 = vmatprep.mubr.bf16.mxu0 0
    %7484 = vmatmul.mubr.bf16.gmra.mrb[0].mxu0 %v7294
    %v7485 = vpop.f32.mrb[0].mxu0
    %v7486 = vadd.f32 %v7373, %v7485
    %v7487 = vpop.f32.mrb[0].mxu0
    %v7488 = vadd.f32 %v7375, %v7487
    %v7489 = vpop.f32.mrb[0].mxu0
    %v7490 = vadd.f32 %v7377, %v7489
    %v7491 = vpop.f32.mrb[0].mxu0
    %v7492 = vadd.f32 %v7379, %v7491
    %7493 = vmatprep.mubr.bf16.mxu0 0
    %7494 = vmatmul.mubr.bf16.gmra.mrb[0].mxu0 %v7297
    %v7495 = vpop.f32.mrb[0].mxu0
    %v7496 = vadd.f32 %v7383, %v7495
    %v7497 = vpop.f32.mrb[0].mxu0
    %v7498 = vadd.f32 %v7385, %v7497
    %v7499 = vpop.f32.mrb[0].mxu0
    %v7500 = vadd.f32 %v7387, %v7499
    %v7501 = vpop.f32.mrb[0].mxu0
    %v7502 = vadd.f32 %v7389, %v7501
    %7503 = vmatprep.mubr.bf16.mxu0 0
    %7504 = vmatmul.mubr.bf16.gmra.mrb[0].mxu0 %v7300
    %v7505 = vpop.f32.mrb[0].mxu0
    %v7506 = vadd.f32 %v7393, %v7505
    %v7507 = vpop.f32.mrb[0].mxu0
    %v7508 = vadd.f32 %v7395, %v7507
    %v7509 = vpop.f32.mrb[0].mxu0
    %v7510 = vadd.f32 %v7397, %v7509
    %v7511 = vpop.f32.mrb[0].mxu0
    %v7512 = vadd.f32 %v7399, %v7511
    %7513 = vmatprep.mubr.bf16.mxu0 0
    %7514 = vmatmul.mubr.bf16.gmra.mrb[0].mxu0 %v7303
    %v7515 = vpop.f32.mrb[0].mxu0
    %v7516 = vadd.f32 %v7403, %v7515
    %v7517 = vpop.f32.mrb[0].mxu0
    %v7518 = vadd.f32 %v7405, %v7517
    %v7519 = vpop.f32.mrb[0].mxu0
    %v7520 = vadd.f32 %v7407, %v7519
    %v7521 = vpop.f32.mrb[0].mxu0
    %v7522 = vadd.f32 %v7409, %v7521
    %7523 = vmatprep.mubr.bf16.mxu0 0
    %7524 = vmatmul.mubr.bf16.gmra.mrb[0].mxu0 %v7306
    %v7525 = vpop.f32.mrb[0].mxu0
    %v7526 = vadd.f32 %v7413, %v7525
    %v7527 = vpop.f32.mrb[0].mxu0
    %v7528 = vadd.f32 %v7415, %v7527
    %v7529 = vpop.f32.mrb[0].mxu0
    %v7530 = vadd.f32 %v7417, %v7529
    %v7531 = vpop.f32.mrb[0].mxu0
    %v7532 = vadd.f32 %v7419, %v7531
    %7533 = vdwg.mxu0
    %v7534 = vmax.f32 %v7456, 0.0
    %v7535 = vmax.f32 %v7458, 0.0
    %v7536 = vmax.f32 %v7460, 0.0
    %v7537 = vmax.f32 %v7462, 0.0
    %v7538 = vmax.f32 %v7466, 0.0
    %v7539 = vmax.f32 %v7468, 0.0
    %v7540 = vmax.f32 %v7470, 0.0
    %v7541 = vmax.f32 %v7472, 0.0
    %v7542 = vmax.f32 %v7476, 0.0
    %v7543 = vmax.f32 %v7478, 0.0
    %v7544 = vmax.f32 %v7480, 0.0
    %v7545 = vmax.f32 %v7482, 0.0
    %v7546 = vmax.f32 %v7486, 0.0
    %v7547 = vmax.f32 %v7488, 0.0
    %v7548 = vmax.f32 %v7490, 0.0
    %v7549 = vmax.f32 %v7492, 0.0
    %v7550 = vmax.f32 %v7496, 0.0
    %v7551 = vmax.f32 %v7498, 0.0
    %v7552 = vmax.f32 %v7500, 0.0
    %v7553 = vmax.f32 %v7502, 0.0
    %v7554 = vmax.f32 %v7506, 0.0
    %v7555 = vmax.f32 %v7508, 0.0
    %v7556 = vmax.f32 %v7510, 0.0
    %v7557 = vmax.f32 %v7512, 0.0
    %v7558 = vmax.f32 %v7516, 0.0
    %v7559 = vmax.f32 %v7518, 0.0
    %v7560 = vmax.f32 %v7520, 0.0
    %v7561 = vmax.f32 %v7522, 0.0
    %v7562 = vmax.f32 %v7526, 0.0
    %v7563 = vmax.f32 %v7528, 0.0
    %v7564 = vmax.f32 %v7530, 0.0
    %v7565 = vmax.f32 %v7532, 0.0
    %v7566 = vmax.f32 %v7534, %v7536
    %v7567 = vmax.f32 %v7535, %v7537
    %v7568 = vmax.f32 %v7538, %v7540
    %v7569 = vmax.f32 %v7539, %v7541
    %v7570 = vmax.f32 %v7542, %v7544
    %v7571 = vmax.f32 %v7543, %v7545
    %v7572 = vmax.f32 %v7546, %v7548
    %v7573 = vmax.f32 %v7547, %v7549
    %v7574 = vmax.f32 %v7550, %v7552
    %v7575 = vmax.f32 %v7551, %v7553
    %v7576 = vmax.f32 %v7554, %v7556
    %v7577 = vmax.f32 %v7555, %v7557
    %v7578 = vmax.f32 %v7558, %v7560
    %v7579 = vmax.f32 %v7559, %v7561
    %v7580 = vmax.f32 %v7562, %v7564
    %v7581 = vmax.f32 %v7563, %v7565
    %v7598 = vcombine.low %v7566, %v7567
    %v7599 = vcombine.high %v7566, %v7567
    %v7601 = vunpack.c.l.s4 1983009808
    %v7602 = vunpack.c.0.s8 %v7601
    %v7603 = vlaneseq
    %v7604 = vshrl.u32 %v7603, 7
    %v7605 = vsub.s32 %v7602, %v7604
    %v7606 = vrot.slane %v7598, %v7605
    %v7608 = vunpack.c.l.s4 1983009808
    %v7609 = vunpack.c.0.s8 %v7608
    %v7610 = vlaneseq
    %v7611 = vshrl.u32 %v7610, 7
    %v7612 = vsub.s32 %v7609, %v7611
    %v7613 = vrot.slane %v7599, %v7612
    %v7614 = vcombine.high %v7606, %v7606
    %v7615 = vcombine.high %v7613, %v7613
    %v7616 = vcombine.low %v7568, %v7569
    %v7617 = vcombine.high %v7568, %v7569
    %v7619 = vunpack.c.l.s4 1983009808
    %v7620 = vunpack.c.0.s8 %v7619
    %v7621 = vlaneseq
    %v7622 = vshrl.u32 %v7621, 7
    %v7623 = vsub.s32 %v7620, %v7622
    %v7624 = vrot.slane %v7616, %v7623
    %v7626 = vunpack.c.l.s4 1983009808
    %v7627 = vunpack.c.0.s8 %v7626
    %v7628 = vlaneseq
    %v7629 = vshrl.u32 %v7628, 7
    %v7630 = vsub.s32 %v7627, %v7629
    %v7631 = vrot.slane %v7617, %v7630
    %v7632 = vcombine.high %v7624, %v7624
    %v7633 = vcombine.high %v7631, %v7631
    %v7634 = vcombine.low %v7570, %v7571
    %v7635 = vcombine.high %v7570, %v7571
    %v7637 = vunpack.c.l.s4 1983009808
    %v7638 = vunpack.c.0.s8 %v7637
    %v7639 = vlaneseq
    %v7640 = vshrl.u32 %v7639, 7
    %v7641 = vsub.s32 %v7638, %v7640
    %v7642 = vrot.slane %v7634, %v7641
    %v7644 = vunpack.c.l.s4 1983009808
    %v7645 = vunpack.c.0.s8 %v7644
    %v7646 = vlaneseq
    %v7647 = vshrl.u32 %v7646, 7
    %v7648 = vsub.s32 %v7645, %v7647
    %v7649 = vrot.slane %v7635, %v7648
    %v7650 = vcombine.high %v7642, %v7642
    %v7651 = vcombine.high %v7649, %v7649
    %v7652 = vcombine.low %v7572, %v7573
    %v7653 = vcombine.high %v7572, %v7573
    %v7655 = vunpack.c.l.s4 1983009808
    %v7656 = vunpack.c.0.s8 %v7655
    %v7657 = vlaneseq
    %v7658 = vshrl.u32 %v7657, 7
    %v7659 = vsub.s32 %v7656, %v7658
    %v7660 = vrot.slane %v7652, %v7659
    %v7662 = vunpack.c.l.s4 1983009808
    %v7663 = vunpack.c.0.s8 %v7662
    %v7664 = vlaneseq
    %v7665 = vshrl.u32 %v7664, 7
    %v7666 = vsub.s32 %v7663, %v7665
    %v7667 = vrot.slane %v7653, %v7666
    %v7668 = vcombine.high %v7660, %v7660
    %v7669 = vcombine.high %v7667, %v7667
    %v7670 = vcombine.low %v7574, %v7575
    %v7671 = vcombine.high %v7574, %v7575
    %v7673 = vunpack.c.l.s4 1983009808
    %v7674 = vunpack.c.0.s8 %v7673
    %v7675 = vlaneseq
    %v7676 = vshrl.u32 %v7675, 7
    %v7677 = vsub.s32 %v7674, %v7676
    %v7678 = vrot.slane %v7670, %v7677
    %v7680 = vunpack.c.l.s4 1983009808
    %v7681 = vunpack.c.0.s8 %v7680
    %v7682 = vlaneseq
    %v7683 = vshrl.u32 %v7682, 7
    %v7684 = vsub.s32 %v7681, %v7683
    %v7685 = vrot.slane %v7671, %v7684
    %v7686 = vcombine.high %v7678, %v7678
    %v7687 = vcombine.high %v7685, %v7685
    %v7688 = vcombine.low %v7576, %v7577
    %v7689 = vcombine.high %v7576, %v7577
    %v7691 = vunpack.c.l.s4 1983009808
    %v7692 = vunpack.c.0.s8 %v7691
    %v7693 = vlaneseq
    %v7694 = vshrl.u32 %v7693, 7
    %v7695 = vsub.s32 %v7692, %v7694
    %v7696 = vrot.slane %v7688, %v7695
    %v7698 = vunpack.c.l.s4 1983009808
    %v7699 = vunpack.c.0.s8 %v7698
    %v7700 = vlaneseq
    %v7701 = vshrl.u32 %v7700, 7
    %v7702 = vsub.s32 %v7699, %v7701
    %v7703 = vrot.slane %v7689, %v7702
    %v7704 = vcombine.high %v7696, %v7696
    %v7705 = vcombine.high %v7703, %v7703
    %v7706 = vcombine.low %v7578, %v7579
    %v7707 = vcombine.high %v7578, %v7579
    %v7709 = vunpack.c.l.s4 1983009808
    %v7710 = vunpack.c.0.s8 %v7709
    %v7711 = vlaneseq
    %v7712 = vshrl.u32 %v7711, 7
    %v7713 = vsub.s32 %v7710, %v7712
    %v7714 = vrot.slane %v7706, %v7713
    %v7716 = vunpack.c.l.s4 1983009808
    %v7717 = vunpack.c.0.s8 %v7716
    %v7718 = vlaneseq
    %v7719 = vshrl.u32 %v7718, 7
    %v7720 = vsub.s32 %v7717, %v7719
    %v7721 = vrot.slane %v7707, %v7720
    %v7722 = vcombine.high %v7714, %v7714
    %v7723 = vcombine.high %v7721, %v7721
    %v7724 = vcombine.low %v7580, %v7581
    %v7725 = vcombine.high %v7580, %v7581
    %v7727 = vunpack.c.l.s4 1983009808
    %v7728 = vunpack.c.0.s8 %v7727
    %v7729 = vlaneseq
    %v7730 = vshrl.u32 %v7729, 7
    %v7731 = vsub.s32 %v7728, %v7730
    %v7732 = vrot.slane %v7724, %v7731
    %v7734 = vunpack.c.l.s4 1983009808
    %v7735 = vunpack.c.0.s8 %v7734
    %v7736 = vlaneseq
    %v7737 = vshrl.u32 %v7736, 7
    %v7738 = vsub.s32 %v7735, %v7737
    %v7739 = vrot.slane %v7725, %v7738
    %v7740 = vcombine.high %v7732, %v7732
    %v7741 = vcombine.high %v7739, %v7739
    %v7774 = vrot.slane %v7606, 7
    %v7775 = vrot.slane %v7774, 2
    %v7776 = vrot.slane %v7614, 7
    %v7777 = vrot.slane %v7776, 2
    %v7778 = vrot.slane %v7613, 7
    %v7779 = vrot.slane %v7778, 2
    %v7780 = vrot.slane %v7615, 7
    %v7781 = vrot.slane %v7780, 2
    %v7782 = vrot.slane %v7624, 7
    %v7783 = vrot.slane %v7782, 2
    %v7784 = vrot.slane %v7632, 7
    %v7785 = vrot.slane %v7784, 2
    %v7786 = vrot.slane %v7631, 7
    %v7787 = vrot.slane %v7786, 2
    %v7788 = vrot.slane %v7633, 7
    %v7789 = vrot.slane %v7788, 2
    %v7790 = vrot.slane %v7642, 7
    %v7791 = vrot.slane %v7790, 2
    %v7792 = vrot.slane %v7650, 7
    %v7793 = vrot.slane %v7792, 2
    %v7794 = vrot.slane %v7649, 7
    %v7795 = vrot.slane %v7794, 2
    %v7796 = vrot.slane %v7651, 7
    %v7797 = vrot.slane %v7796, 2
    %v7798 = vrot.slane %v7660, 7
    %v7799 = vrot.slane %v7798, 2
    %v7800 = vrot.slane %v7668, 7
    %v7801 = vrot.slane %v7800, 2
    %v7802 = vrot.slane %v7667, 7
    %v7803 = vrot.slane %v7802, 2
    %v7804 = vrot.slane %v7669, 7
    %v7805 = vrot.slane %v7804, 2
    %v7806 = vrot.slane %v7678, 7
    %v7807 = vrot.slane %v7806, 2
    %v7808 = vrot.slane %v7686, 7
    %v7809 = vrot.slane %v7808, 2
    %v7810 = vrot.slane %v7685, 7
    %v7811 = vrot.slane %v7810, 2
    %v7812 = vrot.slane %v7687, 7
    %v7813 = vrot.slane %v7812, 2
    %v7814 = vrot.slane %v7696, 7
    %v7815 = vrot.slane %v7814, 2
    %v7816 = vrot.slane %v7704, 7
    %v7817 = vrot.slane %v7816, 2
    %v7818 = vrot.slane %v7703, 7
    %v7819 = vrot.slane %v7818, 2
    %v7820 = vrot.slane %v7705, 7
    %v7821 = vrot.slane %v7820, 2
    %v7822 = vrot.slane %v7714, 7
    %v7823 = vrot.slane %v7822, 2
    %v7824 = vrot.slane %v7722, 7
    %v7825 = vrot.slane %v7824, 2
    %v7826 = vrot.slane %v7721, 7
    %v7827 = vrot.slane %v7826, 2
    %v7828 = vrot.slane %v7723, 7
    %v7829 = vrot.slane %v7828, 2
    %v7830 = vrot.slane %v7732, 7
    %v7831 = vrot.slane %v7830, 2
    %v7832 = vrot.slane %v7740, 7
    %v7833 = vrot.slane %v7832, 2
    %v7834 = vrot.slane %v7739, 7
    %v7835 = vrot.slane %v7834, 2
    %v7836 = vrot.slane %v7741, 7
    %v7837 = vrot.slane %v7836, 2
    %v7870 = vmax.f32 %v7606, %v7775
    %v7871 = vmax.f32 %v7614, %v7777
    %v7872 = vmax.f32 %v7613, %v7779
    %v7873 = vmax.f32 %v7615, %v7781
    %v7874 = vmax.f32 %v7624, %v7783
    %v7875 = vmax.f32 %v7632, %v7785
    %v7876 = vmax.f32 %v7631, %v7787
    %v7877 = vmax.f32 %v7633, %v7789
    %v7878 = vmax.f32 %v7642, %v7791
    %v7879 = vmax.f32 %v7650, %v7793
    %v7880 = vmax.f32 %v7649, %v7795
    %v7881 = vmax.f32 %v7651, %v7797
    %v7882 = vmax.f32 %v7660, %v7799
    %v7883 = vmax.f32 %v7668, %v7801
    %v7884 = vmax.f32 %v7667, %v7803
    %v7885 = vmax.f32 %v7669, %v7805
    %v7886 = vmax.f32 %v7678, %v7807
    %v7887 = vmax.f32 %v7686, %v7809
    %v7888 = vmax.f32 %v7685, %v7811
    %v7889 = vmax.f32 %v7687, %v7813
    %v7890 = vmax.f32 %v7696, %v7815
    %v7891 = vmax.f32 %v7704, %v7817
    %v7892 = vmax.f32 %v7703, %v7819
    %v7893 = vmax.f32 %v7705, %v7821
    %v7894 = vmax.f32 %v7714, %v7823
    %v7895 = vmax.f32 %v7722, %v7825
    %v7896 = vmax.f32 %v7721, %v7827
    %v7897 = vmax.f32 %v7723, %v7829
    %v7898 = vmax.f32 %v7732, %v7831
    %v7899 = vmax.f32 %v7740, %v7833
    %v7900 = vmax.f32 %v7739, %v7835
    %v7901 = vmax.f32 %v7741, %v7837
    %vm7902 = vcmask 1040384
    %vm7903 = vmor %vm4776, %vm7902
    %v7904 = vsel %vm7903, %v7870, -inf
    %v7905 = vsel %vm7903, %v7871, -inf
    %v7906 = vmax.f32 %v7904, %v7905
    %v7907 = vsel %vm7903, %v7872, -inf
    %v7908 = vmax.f32 %v7906, %v7907
    %v7909 = vsel %vm7903, %v7873, -inf
    %v7910 = vmax.f32 %v7908, %v7909
    %v7911 = vsel %vm7903, %v7874, -inf
    %v7912 = vsel %vm7903, %v7875, -inf
    %v7913 = vmax.f32 %v7911, %v7912
    %v7914 = vsel %vm7903, %v7876, -inf
    %v7915 = vmax.f32 %v7913, %v7914
    %v7916 = vsel %vm7903, %v7877, -inf
    %v7917 = vmax.f32 %v7915, %v7916
    %v7918 = vsel %vm7903, %v7878, -inf
    %v7919 = vsel %vm7903, %v7879, -inf
    %v7920 = vmax.f32 %v7918, %v7919
    %v7921 = vsel %vm7903, %v7880, -inf
    %v7922 = vmax.f32 %v7920, %v7921
    %v7923 = vsel %vm7903, %v7881, -inf
    %v7924 = vmax.f32 %v7922, %v7923
    %v7925 = vsel %vm7903, %v7882, -inf
    %v7926 = vsel %vm7903, %v7883, -inf
    %v7927 = vmax.f32 %v7925, %v7926
    %v7928 = vsel %vm7903, %v7884, -inf
    %v7929 = vmax.f32 %v7927, %v7928
    %v7930 = vsel %vm7903, %v7885, -inf
    %v7931 = vmax.f32 %v7929, %v7930
    %v7932 = vsel %vm7903, %v7886, -inf
    %v7933 = vsel %vm7903, %v7887, -inf
    %v7934 = vmax.f32 %v7932, %v7933
    %v7935 = vsel %vm7903, %v7888, -inf
    %v7936 = vmax.f32 %v7934, %v7935
    %v7937 = vsel %vm7903, %v7889, -inf
    %v7938 = vmax.f32 %v7936, %v7937
    %v7939 = vsel %vm7903, %v7890, -inf
    %v7940 = vsel %vm7903, %v7891, -inf
    %v7941 = vmax.f32 %v7939, %v7940
    %v7942 = vsel %vm7903, %v7892, -inf
    %v7943 = vmax.f32 %v7941, %v7942
    %v7944 = vsel %vm7903, %v7893, -inf
    %v7945 = vmax.f32 %v7943, %v7944
    %v7946 = vsel %vm7903, %v7894, -inf
    %v7947 = vsel %vm7903, %v7895, -inf
    %v7948 = vmax.f32 %v7946, %v7947
    %v7949 = vsel %vm7903, %v7896, -inf
    %v7950 = vmax.f32 %v7948, %v7949
    %v7951 = vsel %vm7903, %v7897, -inf
    %v7952 = vmax.f32 %v7950, %v7951
    %v7953 = vsel %vm7903, %v7898, -inf
    %v7954 = vsel %vm7903, %v7899, -inf
    %v7955 = vmax.f32 %v7953, %v7954
    %v7956 = vsel %vm7903, %v7900, -inf
    %v7957 = vmax.f32 %v7955, %v7956
    %v7958 = vsel %vm7903, %v7901, -inf
    %v7959 = vmax.f32 %v7957, %v7958
    %v7960 = vsel %vm7903, %v7910, -inf
    %v7961 = vsel %vm7903, %v7917, -inf
    %v7962 = vsel %vm7903, %v7924, -inf
    %v7963 = vmax.f32 %v7960, %v7962
    %v7964 = vsel %vm7903, %v7931, -inf
    %v7965 = vmax.f32 %v7961, %v7964
    %v7966 = vmax.f32 %v7963, %v7965
    %v7967 = vsel %vm7903, %v7938, -inf
    %v7968 = vsel %vm7903, %v7945, -inf
    %v7969 = vsel %vm7903, %v7952, -inf
    %v7970 = vmax.f32 %v7967, %v7969
    %v7971 = vsel %vm7903, %v7959, -inf
    %v7972 = vmax.f32 %v7968, %v7971
    %v7973 = vmax.f32 %v7970, %v7972
    %v8006 = vlaneseq
    %v8007 = vshrl.u32 %v8006, 7
    %v8008 = vsub.s32 0, %v8007
    %v8009 = vrot.slane %v7870, %v8008
    %v8010 = vlaneseq
    %v8011 = vshrl.u32 %v8010, 7
    %v8012 = vsub.s32 2, %v8011
    %v8013 = vrot.slane %v7870, %v8012
    %v8014 = vlaneseq
    %v8015 = vshrl.u32 %v8014, 7
    %v8016 = vsub.s32 0, %v8015
    %v8017 = vrot.slane %v7871, %v8016
    %v8018 = vlaneseq
    %v8019 = vshrl.u32 %v8018, 7
    %v8020 = vsub.s32 2, %v8019
    %v8021 = vrot.slane %v7871, %v8020
    %v8022 = vlaneseq
    %v8023 = vshrl.u32 %v8022, 7
    %v8024 = vsub.s32 0, %v8023
    %v8025 = vrot.slane %v7872, %v8024
    %v8026 = vlaneseq
    %v8027 = vshrl.u32 %v8026, 7
    %v8028 = vsub.s32 2, %v8027
    %v8029 = vrot.slane %v7872, %v8028
    %v8030 = vlaneseq
    %v8031 = vshrl.u32 %v8030, 7
    %v8032 = vsub.s32 0, %v8031
    %v8033 = vrot.slane %v7873, %v8032
    %v8034 = vlaneseq
    %v8035 = vshrl.u32 %v8034, 7
    %v8036 = vsub.s32 2, %v8035
    %v8037 = vrot.slane %v7873, %v8036
    %v8038 = vlaneseq
    %v8039 = vshrl.u32 %v8038, 7
    %v8040 = vsub.s32 0, %v8039
    %v8041 = vrot.slane %v7874, %v8040
    %v8042 = vlaneseq
    %v8043 = vshrl.u32 %v8042, 7
    %v8044 = vsub.s32 2, %v8043
    %v8045 = vrot.slane %v7874, %v8044
    %v8046 = vlaneseq
    %v8047 = vshrl.u32 %v8046, 7
    %v8048 = vsub.s32 0, %v8047
    %v8049 = vrot.slane %v7875, %v8048
    %v8050 = vlaneseq
    %v8051 = vshrl.u32 %v8050, 7
    %v8052 = vsub.s32 2, %v8051
    %v8053 = vrot.slane %v7875, %v8052
    %v8054 = vlaneseq
    %v8055 = vshrl.u32 %v8054, 7
    %v8056 = vsub.s32 0, %v8055
    %v8057 = vrot.slane %v7876, %v8056
    %v8058 = vlaneseq
    %v8059 = vshrl.u32 %v8058, 7
    %v8060 = vsub.s32 2, %v8059
    %v8061 = vrot.slane %v7876, %v8060
    %v8062 = vlaneseq
    %v8063 = vshrl.u32 %v8062, 7
    %v8064 = vsub.s32 0, %v8063
    %v8065 = vrot.slane %v7877, %v8064
    %v8066 = vlaneseq
    %v8067 = vshrl.u32 %v8066, 7
    %v8068 = vsub.s32 2, %v8067
    %v8069 = vrot.slane %v7877, %v8068
    %v8070 = vlaneseq
    %v8071 = vshrl.u32 %v8070, 7
    %v8072 = vsub.s32 0, %v8071
    %v8073 = vrot.slane %v7878, %v8072
    %v8074 = vlaneseq
    %v8075 = vshrl.u32 %v8074, 7
    %v8076 = vsub.s32 2, %v8075
    %v8077 = vrot.slane %v7878, %v8076
    %v8078 = vlaneseq
    %v8079 = vshrl.u32 %v8078, 7
    %v8080 = vsub.s32 0, %v8079
    %v8081 = vrot.slane %v7879, %v8080
    %v8082 = vlaneseq
    %v8083 = vshrl.u32 %v8082, 7
    %v8084 = vsub.s32 2, %v8083
    %v8085 = vrot.slane %v7879, %v8084
    %v8086 = vlaneseq
    %v8087 = vshrl.u32 %v8086, 7
    %v8088 = vsub.s32 0, %v8087
    %v8089 = vrot.slane %v7880, %v8088
    %v8090 = vlaneseq
    %v8091 = vshrl.u32 %v8090, 7
    %v8092 = vsub.s32 2, %v8091
    %v8093 = vrot.slane %v7880, %v8092
    %v8094 = vlaneseq
    %v8095 = vshrl.u32 %v8094, 7
    %v8096 = vsub.s32 0, %v8095
    %v8097 = vrot.slane %v7881, %v8096
    %v8098 = vlaneseq
    %v8099 = vshrl.u32 %v8098, 7
    %v8100 = vsub.s32 2, %v8099
    %v8101 = vrot.slane %v7881, %v8100
    %v8102 = vlaneseq
    %v8103 = vshrl.u32 %v8102, 7
    %v8104 = vsub.s32 0, %v8103
    %v8105 = vrot.slane %v7882, %v8104
    %v8106 = vlaneseq
    %v8107 = vshrl.u32 %v8106, 7
    %v8108 = vsub.s32 2, %v8107
    %v8109 = vrot.slane %v7882, %v8108
    %v8110 = vlaneseq
    %v8111 = vshrl.u32 %v8110, 7
    %v8112 = vsub.s32 0, %v8111
    %v8113 = vrot.slane %v7883, %v8112
    %v8114 = vlaneseq
    %v8115 = vshrl.u32 %v8114, 7
    %v8116 = vsub.s32 2, %v8115
    %v8117 = vrot.slane %v7883, %v8116
    %v8118 = vlaneseq
    %v8119 = vshrl.u32 %v8118, 7
    %v8120 = vsub.s32 0, %v8119
    %v8121 = vrot.slane %v7884, %v8120
    %v8122 = vlaneseq
    %v8123 = vshrl.u32 %v8122, 7
    %v8124 = vsub.s32 2, %v8123
    %v8125 = vrot.slane %v7884, %v8124
    %v8126 = vlaneseq
    %v8127 = vshrl.u32 %v8126, 7
    %v8128 = vsub.s32 0, %v8127
    %v8129 = vrot.slane %v7885, %v8128
    %v8130 = vlaneseq
    %v8131 = vshrl.u32 %v8130, 7
    %v8132 = vsub.s32 2, %v8131
    %v8133 = vrot.slane %v7885, %v8132
    %v8134 = vlaneseq
    %v8135 = vshrl.u32 %v8134, 7
    %v8136 = vsub.s32 0, %v8135
    %v8137 = vrot.slane %v7886, %v8136
    %v8138 = vlaneseq
    %v8139 = vshrl.u32 %v8138, 7
    %v8140 = vsub.s32 2, %v8139
    %v8141 = vrot.slane %v7886, %v8140
    %v8142 = vlaneseq
    %v8143 = vshrl.u32 %v8142, 7
    %v8144 = vsub.s32 0, %v8143
    %v8145 = vrot.slane %v7887, %v8144
    %v8146 = vlaneseq
    %v8147 = vshrl.u32 %v8146, 7
    %v8148 = vsub.s32 2, %v8147
    %v8149 = vrot.slane %v7887, %v8148
    %v8150 = vlaneseq
    %v8151 = vshrl.u32 %v8150, 7
    %v8152 = vsub.s32 0, %v8151
    %v8153 = vrot.slane %v7888, %v8152
    %v8154 = vlaneseq
    %v8155 = vshrl.u32 %v8154, 7
    %v8156 = vsub.s32 2, %v8155
    %v8157 = vrot.slane %v7888, %v8156
    %v8158 = vlaneseq
    %v8159 = vshrl.u32 %v8158, 7
    %v8160 = vsub.s32 0, %v8159
    %v8161 = vrot.slane %v7889, %v8160
    %v8162 = vlaneseq
    %v8163 = vshrl.u32 %v8162, 7
    %v8164 = vsub.s32 2, %v8163
    %v8165 = vrot.slane %v7889, %v8164
    %v8166 = vlaneseq
    %v8167 = vshrl.u32 %v8166, 7
    %v8168 = vsub.s32 0, %v8167
    %v8169 = vrot.slane %v7890, %v8168
    %v8170 = vlaneseq
    %v8171 = vshrl.u32 %v8170, 7
    %v8172 = vsub.s32 2, %v8171
    %v8173 = vrot.slane %v7890, %v8172
    %v8174 = vlaneseq
    %v8175 = vshrl.u32 %v8174, 7
    %v8176 = vsub.s32 0, %v8175
    %v8177 = vrot.slane %v7891, %v8176
    %v8178 = vlaneseq
    %v8179 = vshrl.u32 %v8178, 7
    %v8180 = vsub.s32 2, %v8179
    %v8181 = vrot.slane %v7891, %v8180
    %v8182 = vlaneseq
    %v8183 = vshrl.u32 %v8182, 7
    %v8184 = vsub.s32 0, %v8183
    %v8185 = vrot.slane %v7892, %v8184
    %v8186 = vlaneseq
    %v8187 = vshrl.u32 %v8186, 7
    %v8188 = vsub.s32 2, %v8187
    %v8189 = vrot.slane %v7892, %v8188
    %v8190 = vlaneseq
    %v8191 = vshrl.u32 %v8190, 7
    %v8192 = vsub.s32 0, %v8191
    %v8193 = vrot.slane %v7893, %v8192
    %v8194 = vlaneseq
    %v8195 = vshrl.u32 %v8194, 7
    %v8196 = vsub.s32 2, %v8195
    %v8197 = vrot.slane %v7893, %v8196
    %v8198 = vlaneseq
    %v8199 = vshrl.u32 %v8198, 7
    %v8200 = vsub.s32 0, %v8199
    %v8201 = vrot.slane %v7894, %v8200
    %v8202 = vlaneseq
    %v8203 = vshrl.u32 %v8202, 7
    %v8204 = vsub.s32 2, %v8203
    %v8205 = vrot.slane %v7894, %v8204
    %v8206 = vlaneseq
    %v8207 = vshrl.u32 %v8206, 7
    %v8208 = vsub.s32 0, %v8207
    %v8209 = vrot.slane %v7895, %v8208
    %v8210 = vlaneseq
    %v8211 = vshrl.u32 %v8210, 7
    %v8212 = vsub.s32 2, %v8211
    %v8213 = vrot.slane %v7895, %v8212
    %v8214 = vlaneseq
    %v8215 = vshrl.u32 %v8214, 7
    %v8216 = vsub.s32 0, %v8215
    %v8217 = vrot.slane %v7896, %v8216
    %v8218 = vlaneseq
    %v8219 = vshrl.u32 %v8218, 7
    %v8220 = vsub.s32 2, %v8219
    %v8221 = vrot.slane %v7896, %v8220
    %v8222 = vlaneseq
    %v8223 = vshrl.u32 %v8222, 7
    %v8224 = vsub.s32 0, %v8223
    %v8225 = vrot.slane %v7897, %v8224
    %v8226 = vlaneseq
    %v8227 = vshrl.u32 %v8226, 7
    %v8228 = vsub.s32 2, %v8227
    %v8229 = vrot.slane %v7897, %v8228
    %v8230 = vlaneseq
    %v8231 = vshrl.u32 %v8230, 7
    %v8232 = vsub.s32 0, %v8231
    %v8233 = vrot.slane %v7898, %v8232
    %v8234 = vlaneseq
    %v8235 = vshrl.u32 %v8234, 7
    %v8236 = vsub.s32 2, %v8235
    %v8237 = vrot.slane %v7898, %v8236
    %v8238 = vlaneseq
    %v8239 = vshrl.u32 %v8238, 7
    %v8240 = vsub.s32 0, %v8239
    %v8241 = vrot.slane %v7899, %v8240
    %v8242 = vlaneseq
    %v8243 = vshrl.u32 %v8242, 7
    %v8244 = vsub.s32 2, %v8243
    %v8245 = vrot.slane %v7899, %v8244
    %v8246 = vlaneseq
    %v8247 = vshrl.u32 %v8246, 7
    %v8248 = vsub.s32 0, %v8247
    %v8249 = vrot.slane %v7900, %v8248
    %v8250 = vlaneseq
    %v8251 = vshrl.u32 %v8250, 7
    %v8252 = vsub.s32 2, %v8251
    %v8253 = vrot.slane %v7900, %v8252
    %v8254 = vlaneseq
    %v8255 = vshrl.u32 %v8254, 7
    %v8256 = vsub.s32 0, %v8255
    %v8257 = vrot.slane %v7901, %v8256
    %v8258 = vlaneseq
    %v8259 = vshrl.u32 %v8258, 7
    %v8260 = vsub.s32 2, %v8259
    %v8261 = vrot.slane %v7901, %v8260
    %vm8262 = vcmask 1041409
    %v8263 = vsel %vm8262, %v8017, %v8009
    %v8264 = vsel %vm4776, %v8025, %v8263
    %v8265 = vsel %vm4779, %v8033, %v8264
    %v8266 = vsel %vm8262, %v8021, %v8013
    %v8267 = vsel %vm4776, %v8029, %v8266
    %v8268 = vsel %vm4779, %v8037, %v8267
    %v8269 = vsel %vm8262, %v8049, %v8041
    %v8270 = vsel %vm4776, %v8057, %v8269
    %v8271 = vsel %vm4779, %v8065, %v8270
    %v8272 = vsel %vm8262, %v8053, %v8045
    %v8273 = vsel %vm4776, %v8061, %v8272
    %v8274 = vsel %vm4779, %v8069, %v8273
    %v8275 = vsel %vm8262, %v8081, %v8073
    %v8276 = vsel %vm4776, %v8089, %v8275
    %v8277 = vsel %vm4779, %v8097, %v8276
    %v8278 = vsel %vm8262, %v8085, %v8077
    %v8279 = vsel %vm4776, %v8093, %v8278
    %v8280 = vsel %vm4779, %v8101, %v8279
    %v8281 = vsel %vm8262, %v8113, %v8105
    %v8282 = vsel %vm4776, %v8121, %v8281
    %v8283 = vsel %vm4779, %v8129, %v8282
    %v8284 = vsel %vm8262, %v8117, %v8109
    %v8285 = vsel %vm4776, %v8125, %v8284
    %v8286 = vsel %vm4779, %v8133, %v8285
    %v8287 = vsel %vm8262, %v8145, %v8137
    %v8288 = vsel %vm4776, %v8153, %v8287
    %v8289 = vsel %vm4779, %v8161, %v8288
    %v8290 = vsel %vm8262, %v8149, %v8141
    %v8291 = vsel %vm4776, %v8157, %v8290
    %v8292 = vsel %vm4779, %v8165, %v8291
    %v8293 = vsel %vm8262, %v8177, %v8169
    %v8294 = vsel %vm4776, %v8185, %v8293
    %v8295 = vsel %vm4779, %v8193, %v8294
    %v8296 = vsel %vm8262, %v8181, %v8173
    %v8297 = vsel %vm4776, %v8189, %v8296
    %v8298 = vsel %vm4779, %v8197, %v8297
    %v8299 = vsel %vm8262, %v8209, %v8201
    %v8300 = vsel %vm4776, %v8217, %v8299
    %v8301 = vsel %vm4779, %v8225, %v8300
    %v8302 = vsel %vm8262, %v8213, %v8205
    %v8303 = vsel %vm4776, %v8221, %v8302
    %v8304 = vsel %vm4779, %v8229, %v8303
    %v8305 = vsel %vm8262, %v8241, %v8233
    %v8306 = vsel %vm4776, %v8249, %v8305
    %v8307 = vsel %vm4779, %v8257, %v8306
    %v8308 = vsel %vm8262, %v8245, %v8237
    %v8309 = vsel %vm4776, %v8253, %v8308
    %v8310 = vsel %vm4779, %v8261, %v8309
    %vm8327 = vcmask 1043456
    %v8328 = vsel %vm8327, %v8265, 0.0
    %v8329 = vrot.slane %v8328, 4
    %v8330 = vadd.f32 %v8328, %v8329
    %v8331 = vrot.slane %v8330, 2
    %v8332 = vadd.f32 %v8330, %v8331
    %v8333 = vrot.slane %v8332, 1
    %v8334 = vadd.f32 %v8332, %v8333
    %v8335 = vsel %vm8327, %v8268, 0.0
    %v8336 = vrot.slane %v8335, 4
    %v8337 = vadd.f32 %v8335, %v8336
    %v8338 = vrot.slane %v8337, 2
    %v8339 = vadd.f32 %v8337, %v8338
    %v8340 = vrot.slane %v8339, 1
    %v8341 = vadd.f32 %v8339, %v8340
    %v8342 = vsel %vm8327, %v8271, 0.0
    %v8343 = vrot.slane %v8342, 4
    %v8344 = vadd.f32 %v8342, %v8343
    %v8345 = vrot.slane %v8344, 2
    %v8346 = vadd.f32 %v8344, %v8345
    %v8347 = vrot.slane %v8346, 1
    %v8348 = vadd.f32 %v8346, %v8347
    %v8349 = vsel %vm8327, %v8274, 0.0
    %v8350 = vrot.slane %v8349, 4
    %v8351 = vadd.f32 %v8349, %v8350
    %v8352 = vrot.slane %v8351, 2
    %v8353 = vadd.f32 %v8351, %v8352
    %v8354 = vrot.slane %v8353, 1
    %v8355 = vadd.f32 %v8353, %v8354
    %v8356 = vsel %vm8327, %v8277, 0.0
    %v8357 = vrot.slane %v8356, 4
    %v8358 = vadd.f32 %v8356, %v8357
    %v8359 = vrot.slane %v8358, 2
    %v8360 = vadd.f32 %v8358, %v8359
    %v8361 = vrot.slane %v8360, 1
    %v8362 = vadd.f32 %v8360, %v8361
    %v8363 = vsel %vm8327, %v8280, 0.0
    %v8364 = vrot.slane %v8363, 4
    %v8365 = vadd.f32 %v8363, %v8364
    %v8366 = vrot.slane %v8365, 2
    %v8367 = vadd.f32 %v8365, %v8366
    %v8368 = vrot.slane %v8367, 1
    %v8369 = vadd.f32 %v8367, %v8368
    %v8370 = vsel %vm8327, %v8283, 0.0
    %v8371 = vrot.slane %v8370, 4
    %v8372 = vadd.f32 %v8370, %v8371
    %v8373 = vrot.slane %v8372, 2
    %v8374 = vadd.f32 %v8372, %v8373
    %v8375 = vrot.slane %v8374, 1
    %v8376 = vadd.f32 %v8374, %v8375
    %v8377 = vsel %vm8327, %v8286, 0.0
    %v8378 = vrot.slane %v8377, 4
    %v8379 = vadd.f32 %v8377, %v8378
    %v8380 = vrot.slane %v8379, 2
    %v8381 = vadd.f32 %v8379, %v8380
    %v8382 = vrot.slane %v8381, 1
    %v8383 = vadd.f32 %v8381, %v8382
    %v8384 = vsel %vm8327, %v8289, 0.0
    %v8385 = vrot.slane %v8384, 4
    %v8386 = vadd.f32 %v8384, %v8385
    %v8387 = vrot.slane %v8386, 2
    %v8388 = vadd.f32 %v8386, %v8387
    %v8389 = vrot.slane %v8388, 1
    %v8390 = vadd.f32 %v8388, %v8389
    %v8391 = vsel %vm8327, %v8292, 0.0
    %v8392 = vrot.slane %v8391, 4
    %v8393 = vadd.f32 %v8391, %v8392
    %v8394 = vrot.slane %v8393, 2
    %v8395 = vadd.f32 %v8393, %v8394
    %v8396 = vrot.slane %v8395, 1
    %v8397 = vadd.f32 %v8395, %v8396
    %v8398 = vsel %vm8327, %v8295, 0.0
    %v8399 = vrot.slane %v8398, 4
    %v8400 = vadd.f32 %v8398, %v8399
    %v8401 = vrot.slane %v8400, 2
    %v8402 = vadd.f32 %v8400, %v8401
    %v8403 = vrot.slane %v8402, 1
    %v8404 = vadd.f32 %v8402, %v8403
    %v8405 = vsel %vm8327, %v8298, 0.0
    %v8406 = vrot.slane %v8405, 4
    %v8407 = vadd.f32 %v8405, %v8406
    %v8408 = vrot.slane %v8407, 2
    %v8409 = vadd.f32 %v8407, %v8408
    %v8410 = vrot.slane %v8409, 1
    %v8411 = vadd.f32 %v8409, %v8410
    %v8412 = vsel %vm8327, %v8301, 0.0
    %v8413 = vrot.slane %v8412, 4
    %v8414 = vadd.f32 %v8412, %v8413
    %v8415 = vrot.slane %v8414, 2
    %v8416 = vadd.f32 %v8414, %v8415
    %v8417 = vrot.slane %v8416, 1
    %v8418 = vadd.f32 %v8416, %v8417
    %v8419 = vsel %vm8327, %v8304, 0.0
    %v8420 = vrot.slane %v8419, 4
    %v8421 = vadd.f32 %v8419, %v8420
    %v8422 = vrot.slane %v8421, 2
    %v8423 = vadd.f32 %v8421, %v8422
    %v8424 = vrot.slane %v8423, 1
    %v8425 = vadd.f32 %v8423, %v8424
    %v8426 = vsel %vm8327, %v8307, 0.0
    %v8427 = vrot.slane %v8426, 4
    %v8428 = vadd.f32 %v8426, %v8427
    %v8429 = vrot.slane %v8428, 2
    %v8430 = vadd.f32 %v8428, %v8429
    %v8431 = vrot.slane %v8430, 1
    %v8432 = vadd.f32 %v8430, %v8431
    %v8433 = vsel %vm8327, %v8310, 0.0
    %v8434 = vrot.slane %v8433, 4
    %v8435 = vadd.f32 %v8433, %v8434
    %v8436 = vrot.slane %v8435, 2
    %v8437 = vadd.f32 %v8435, %v8436
    %v8438 = vrot.slane %v8437, 1
    %v8439 = vadd.f32 %v8437, %v8438
    %v8440 = vrcp.pop 4.0
    %v8441 = vmul.f32 %v8334, %v8440
    %v8442 = vmul.f32 %v8341, %v8440
    %v8443 = vmul.f32 %v8348, %v8440
    %v8444 = vmul.f32 %v8355, %v8440
    %v8445 = vmul.f32 %v8362, %v8440
    %v8446 = vmul.f32 %v8369, %v8440
    %v8447 = vmul.f32 %v8376, %v8440
    %v8448 = vmul.f32 %v8383, %v8440
    %v8449 = vmul.f32 %v8390, %v8440
    %v8450 = vmul.f32 %v8397, %v8440
    %v8451 = vmul.f32 %v8404, %v8440
    %v8452 = vmul.f32 %v8411, %v8440
    %v8453 = vmul.f32 %v8418, %v8440
    %v8454 = vmul.f32 %v8425, %v8440
    %v8455 = vmul.f32 %v8432, %v8440
    %v8456 = vmul.f32 %v8439, %v8440
    %v8473 = vrot.slane %v8443, 7
    %v8474 = vsel %vm8262, %v8473, %v8441
    %v8475 = vrot.slane %v8445, 6
    %v8476 = vsel %vm4776, %v8475, %v8474
    %v8477 = vrot.slane %v8447, 5
    %v8478 = vsel %vm4779, %v8477, %v8476
    %v8479 = vrot.slane %v8444, 7
    %v8480 = vsel %vm8262, %v8479, %v8442
    %v8481 = vrot.slane %v8446, 6
    %v8482 = vsel %vm4776, %v8481, %v8480
    %v8483 = vrot.slane %v8448, 5
    %v8484 = vsel %vm4779, %v8483, %v8482
    %v8485 = vrot.slane %v8451, 7
    %v8486 = vsel %vm8262, %v8485, %v8449
    %v8487 = vrot.slane %v8453, 6
    %v8488 = vsel %vm4776, %v8487, %v8486
    %v8489 = vrot.slane %v8455, 5
    %v8490 = vsel %vm4779, %v8489, %v8488
    %v8491 = vrot.slane %v8452, 7
    %v8492 = vsel %vm8262, %v8491, %v8450
    %v8493 = vrot.slane %v8454, 6
    %v8494 = vsel %vm4776, %v8493, %v8492
    %v8495 = vrot.slane %v8456, 5
    %v8496 = vsel %vm4779, %v8495, %v8494
    %v8501 = vsel %vm8327, %v8478, 0.0
    %v8502 = vrot.slane %v8501, 4
    %v8503 = vadd.f32 %v8501, %v8502
    %v8504 = vrot.slane %v8503, 2
    %v8505 = vadd.f32 %v8503, %v8504
    %v8506 = vrot.slane %v8505, 1
    %v8507 = vadd.f32 %v8505, %v8506
    %v8508 = vsel %vm8327, %v8484, 0.0
    %v8509 = vrot.slane %v8508, 4
    %v8510 = vadd.f32 %v8508, %v8509
    %v8511 = vrot.slane %v8510, 2
    %v8512 = vadd.f32 %v8510, %v8511
    %v8513 = vrot.slane %v8512, 1
    %v8514 = vadd.f32 %v8512, %v8513
    %v8515 = vsel %vm8327, %v8490, 0.0
    %v8516 = vrot.slane %v8515, 4
    %v8517 = vadd.f32 %v8515, %v8516
    %v8518 = vrot.slane %v8517, 2
    %v8519 = vadd.f32 %v8517, %v8518
    %v8520 = vrot.slane %v8519, 1
    %v8521 = vadd.f32 %v8519, %v8520
    %v8522 = vsel %vm8327, %v8496, 0.0
    %v8523 = vrot.slane %v8522, 4
    %v8524 = vadd.f32 %v8522, %v8523
    %v8525 = vrot.slane %v8524, 2
    %v8526 = vadd.f32 %v8524, %v8525
    %v8527 = vrot.slane %v8526, 1
    %v8528 = vadd.f32 %v8526, %v8527
    %v8529 = vmul.f32 %v8507, %v8440
    %v8530 = vmul.f32 %v8514, %v8440
    %v8531 = vmul.f32 %v8521, %v8440
    %v8532 = vmul.f32 %v8528, %v8440
    %v8535 = vlaneseq
    %v8536 = vshrl.u32 %v8535, 7
    %v8537 = vsub.s32 0, %v8536
    %v8538 = vrot.slane %v7966, %v8537
    %v8539 = vlaneseq
    %v8540 = vshrl.u32 %v8539, 7
    %v8541 = vsub.s32 2, %v8540
    %v8542 = vrot.slane %v7966, %v8541
    %v8543 = vlaneseq
    %v8544 = vshrl.u32 %v8543, 7
    %v8545 = vsub.s32 0, %v8544
    %v8546 = vrot.slane %v7973, %v8545
    %v8547 = vlaneseq
    %v8548 = vshrl.u32 %v8547, 7
    %v8549 = vsub.s32 2, %v8548
    %v8550 = vrot.slane %v7973, %v8549
    %v8551 = vsel %vm8262, %v8546, %v8538
    %v8552 = vsel %vm8262, %v8550, %v8542
    %v8559 = vrot.slane %v8531, 7
    %v8560 = vsel %vm8262, %v8559, %v8529
    %v8561 = vrot.slane %v8532, 7
    %v8562 = vsel %vm8262, %v8561, %v8530
    %v8565 = vpack.c.bf16 %v8551, %v8551
    %v8566 = vpack.c.bf16 %v8552, %v8552
    %v8567 = vpack.c.bf16 %v8560, %v8560
    %v8568 = vpack.c.bf16 %v8562, %v8562
    %v8569 = vld [vmem:[%s5] sm:$0xff]
    %v8570 = vld [vmem:[%s5 + $0x8] sm:$0xff]
    %v8571 = vld [vmem:[%s5 + $0x10] sm:$0xff]
    %v8572 = vld [vmem:[%s5 + $0x18] sm:$0xff]
    %v8573 = vld [vmem:[%s5 + $0x20] sm:$0xff]
    %v8574 = vld [vmem:[%s5 + $0x28] sm:$0xff]
    %v8575 = vld [vmem:[%s5 + $0x30] sm:$0xff]
    %v8576 = vld [vmem:[%s5 + $0x38] sm:$0xff]
    %v8577 = vld [vmem:[%s5 + $0x40] sm:$0xff]
    %v8578 = vld [vmem:[%s5 + $0x48] sm:$0xff]
    %v8579 = vld [vmem:[%s5 + $0x50] sm:$0xff]
    %v8580 = vld [vmem:[%s5 + $0x58] sm:$0xff]
    %v8581 = vld [vmem:[%s5 + $0x60] sm:$0xff]
    %v8582 = vld [vmem:[%s5 + $0x68] sm:$0xff]
    %v8583 = vld [vmem:[%s5 + $0x70] sm:$0xff]
    %v8584 = vld [vmem:[%s5 + $0x78] sm:$0xff]
    %v8585 = vld [vmem:[%s5 + $0x80] sm:$0xff]
    %v8586 = vld [vmem:[%s5 + $0x88] sm:$0xff]
    %v8587 = vld [vmem:[%s5 + $0x90] sm:$0xff]
    %v8588 = vld [vmem:[%s5 + $0x98] sm:$0xff]
    %v8589 = vld [vmem:[%s5 + $0xa0] sm:$0xff]
    %v8590 = vld [vmem:[%s5 + $0xa8] sm:$0xff]
    %v8591 = vld [vmem:[%s5 + $0xb0] sm:$0xff]
    %v8592 = vld [vmem:[%s5 + $0xb8] sm:$0xff]
    %v8593 = vld [vmem:[%s5 + $0xc0] sm:$0xff]
    %v8594 = vld [vmem:[%s5 + $0xc8] sm:$0xff]
    %v8595 = vld [vmem:[%s5 + $0xd0] sm:$0xff]
    %v8596 = vld [vmem:[%s5 + $0xd8] sm:$0xff]
    %v8597 = vld [vmem:[%s5 + $0xe0] sm:$0xff]
    %v8598 = vld [vmem:[%s5 + $0xe8] sm:$0xff]
    %v8599 = vld [vmem:[%s5 + $0xf0] sm:$0xff]
    %v8600 = vld [vmem:[%s5 + $0xf8] sm:$0xff]
    %v8601 = vld [vmem:[%s5 + $0x100] sm:$0xff]
    %v8602 = vld [vmem:[%s5 + $0x108] sm:$0xff]
    %v8603 = vld [vmem:[%s5 + $0x110] sm:$0xff]
    %v8604 = vld [vmem:[%s5 + $0x118] sm:$0xff]
    %v8605 = vld [vmem:[%s5 + $0x120] sm:$0xff]
    %v8606 = vld [vmem:[%s5 + $0x128] sm:$0xff]
    %v8607 = vld [vmem:[%s5 + $0x130] sm:$0xff]
    %v8608 = vld [vmem:[%s5 + $0x138] sm:$0xff]
    %v8609 = vld [vmem:[%s5 + $0x140] sm:$0xff]
    %v8610 = vld [vmem:[%s5 + $0x148] sm:$0xff]
    %v8611 = vld [vmem:[%s5 + $0x150] sm:$0xff]
    %v8612 = vld [vmem:[%s5 + $0x158] sm:$0xff]
    %v8613 = vld [vmem:[%s5 + $0x160] sm:$0xff]
    %v8614 = vld [vmem:[%s5 + $0x168] sm:$0xff]
    %v8615 = vld [vmem:[%s5 + $0x170] sm:$0xff]
    %v8616 = vld [vmem:[%s5 + $0x178] sm:$0xff]
    %v8617 = vld [vmem:[%s5 + $0x180] sm:$0xff]
    %v8618 = vld [vmem:[%s5 + $0x188] sm:$0xff]
    %v8619 = vld [vmem:[%s5 + $0x190] sm:$0xff]
    %v8620 = vld [vmem:[%s5 + $0x198] sm:$0xff]
    %v8621 = vld [vmem:[%s5 + $0x1a0] sm:$0xff]
    %v8622 = vld [vmem:[%s5 + $0x1a8] sm:$0xff]
    %v8623 = vld [vmem:[%s5 + $0x1b0] sm:$0xff]
    %v8624 = vld [vmem:[%s5 + $0x1b8] sm:$0xff]
    %v8625 = vld [vmem:[%s5 + $0x1c0] sm:$0xff]
    %v8626 = vld [vmem:[%s5 + $0x1c8] sm:$0xff]
    %v8627 = vld [vmem:[%s5 + $0x1d0] sm:$0xff]
    %v8628 = vld [vmem:[%s5 + $0x1d8] sm:$0xff]
    %v8629 = vld [vmem:[%s5 + $0x1e0] sm:$0xff]
    %v8630 = vld [vmem:[%s5 + $0x1e8] sm:$0xff]
    %v8631 = vld [vmem:[%s5 + $0x1f0] sm:$0xff]
    %v8632 = vld [vmem:[%s5 + $0x1f8] sm:$0xff]
    %v8633 = vld [vmem:[%s5 + $0x200] sm:$0xff]
    %v8634 = vld [vmem:[%s5 + $0x208] sm:$0xff]
    %v8635 = vld [vmem:[%s5 + $0x210] sm:$0xff]
    %v8636 = vld [vmem:[%s5 + $0x218] sm:$0xff]
    %v8637 = vld [vmem:[%s5 + $0x220] sm:$0xff]
    %v8638 = vld [vmem:[%s5 + $0x228] sm:$0xff]
    %v8639 = vld [vmem:[%s5 + $0x230] sm:$0xff]
    %v8640 = vld [vmem:[%s5 + $0x238] sm:$0xff]
    %v8641 = vld [vmem:[%s5 + $0x240] sm:$0xff]
    %v8642 = vld [vmem:[%s5 + $0x248] sm:$0xff]
    %v8643 = vld [vmem:[%s5 + $0x250] sm:$0xff]
    %v8644 = vld [vmem:[%s5 + $0x258] sm:$0xff]
    %v8645 = vld [vmem:[%s5 + $0x260] sm:$0xff]
    %v8646 = vld [vmem:[%s5 + $0x268] sm:$0xff]
    %v8647 = vld [vmem:[%s5 + $0x270] sm:$0xff]
    %v8648 = vld [vmem:[%s5 + $0x278] sm:$0xff]
    %v8649 = vld [vmem:[%s5 + $0x280] sm:$0xff]
    %v8650 = vld [vmem:[%s5 + $0x288] sm:$0xff]
    %v8651 = vld [vmem:[%s5 + $0x290] sm:$0xff]
    %v8652 = vld [vmem:[%s5 + $0x298] sm:$0xff]
    %v8653 = vld [vmem:[%s5 + $0x2a0] sm:$0xff]
    %v8654 = vld [vmem:[%s5 + $0x2a8] sm:$0xff]
    %v8655 = vld [vmem:[%s5 + $0x2b0] sm:$0xff]
    %v8656 = vld [vmem:[%s5 + $0x2b8] sm:$0xff]
    %v8657 = vld [vmem:[%s5 + $0x2c0] sm:$0xff]
    %v8658 = vld [vmem:[%s5 + $0x2c8] sm:$0xff]
    %v8659 = vld [vmem:[%s5 + $0x2d0] sm:$0xff]
    %v8660 = vld [vmem:[%s5 + $0x2d8] sm:$0xff]
    %v8661 = vld [vmem:[%s5 + $0x2e0] sm:$0xff]
    %v8662 = vld [vmem:[%s5 + $0x2e8] sm:$0xff]
    %v8663 = vld [vmem:[%s5 + $0x2f0] sm:$0xff]
    %v8664 = vld [vmem:[%s5 + $0x2f8] sm:$0xff]
    %v8665 = vld [vmem:[%s5 + $0x300] sm:$0xff]
    %v8666 = vld [vmem:[%s5 + $0x308] sm:$0xff]
    %v8667 = vld [vmem:[%s5 + $0x310] sm:$0xff]
    %v8668 = vld [vmem:[%s5 + $0x318] sm:$0xff]
    %v8669 = vld [vmem:[%s5 + $0x320] sm:$0xff]
    %v8670 = vld [vmem:[%s5 + $0x328] sm:$0xff]
    %v8671 = vld [vmem:[%s5 + $0x330] sm:$0xff]
    %v8672 = vld [vmem:[%s5 + $0x338] sm:$0xff]
    %v8673 = vld [vmem:[%s5 + $0x340] sm:$0xff]
    %v8674 = vld [vmem:[%s5 + $0x348] sm:$0xff]
    %v8675 = vld [vmem:[%s5 + $0x350] sm:$0xff]
    %v8676 = vld [vmem:[%s5 + $0x358] sm:$0xff]
    %v8677 = vld [vmem:[%s5 + $0x360] sm:$0xff]
    %v8678 = vld [vmem:[%s5 + $0x368] sm:$0xff]
    %v8679 = vld [vmem:[%s5 + $0x370] sm:$0xff]
    %v8680 = vld [vmem:[%s5 + $0x378] sm:$0xff]
    %v8681 = vld [vmem:[%s5 + $0x380] sm:$0xff]
    %v8682 = vld [vmem:[%s5 + $0x388] sm:$0xff]
    %v8683 = vld [vmem:[%s5 + $0x390] sm:$0xff]
    %v8684 = vld [vmem:[%s5 + $0x398] sm:$0xff]
    %v8685 = vld [vmem:[%s5 + $0x3a0] sm:$0xff]
    %v8686 = vld [vmem:[%s5 + $0x3a8] sm:$0xff]
    %v8687 = vld [vmem:[%s5 + $0x3b0] sm:$0xff]
    %v8688 = vld [vmem:[%s5 + $0x3b8] sm:$0xff]
    %v8689 = vld [vmem:[%s5 + $0x3c0] sm:$0xff]
    %v8690 = vld [vmem:[%s5 + $0x3c8] sm:$0xff]
    %v8691 = vld [vmem:[%s5 + $0x3d0] sm:$0xff]
    %v8692 = vld [vmem:[%s5 + $0x3d8] sm:$0xff]
    %v8693 = vld [vmem:[%s5 + $0x3e0] sm:$0xff]
    %v8694 = vld [vmem:[%s5 + $0x3e8] sm:$0xff]
    %v8695 = vld [vmem:[%s5 + $0x3f0] sm:$0xff]
    %v8696 = vld [vmem:[%s5 + $0x3f8] sm:$0xff]
    %v8697 = vld [vmem:[%s5 + $0x400] sm:$0xff]
    %v8698 = vld [vmem:[%s5 + $0x408] sm:$0xff]
    %v8699 = vld [vmem:[%s5 + $0x410] sm:$0xff]
    %v8700 = vld [vmem:[%s5 + $0x418] sm:$0xff]
    %v8701 = vld [vmem:[%s5 + $0x420] sm:$0xff]
    %v8702 = vld [vmem:[%s5 + $0x428] sm:$0xff]
    %v8703 = vld [vmem:[%s5 + $0x430] sm:$0xff]
    %v8704 = vld [vmem:[%s5 + $0x438] sm:$0xff]
    %v8705 = vld [vmem:[%s5 + $0x440] sm:$0xff]
    %v8706 = vld [vmem:[%s5 + $0x448] sm:$0xff]
    %v8707 = vld [vmem:[%s5 + $0x450] sm:$0xff]
    %v8708 = vld [vmem:[%s5 + $0x458] sm:$0xff]
    %v8709 = vld [vmem:[%s5 + $0x460] sm:$0xff]
    %v8710 = vld [vmem:[%s5 + $0x468] sm:$0xff]
    %v8711 = vld [vmem:[%s5 + $0x470] sm:$0xff]
    %v8712 = vld [vmem:[%s5 + $0x478] sm:$0xff]
    %v8713 = vld [vmem:[%s5 + $0x480] sm:$0xff]
    %v8714 = vld [vmem:[%s5 + $0x488] sm:$0xff]
    %v8715 = vld [vmem:[%s5 + $0x490] sm:$0xff]
    %v8716 = vld [vmem:[%s5 + $0x498] sm:$0xff]
    %v8717 = vld [vmem:[%s5 + $0x4a0] sm:$0xff]
    %v8718 = vld [vmem:[%s5 + $0x4a8] sm:$0xff]
    %v8719 = vld [vmem:[%s5 + $0x4b0] sm:$0xff]
    %v8720 = vld [vmem:[%s5 + $0x4b8] sm:$0xff]
    %v8721 = vld [vmem:[%s5 + $0x4c0] sm:$0xff]
    %v8722 = vld [vmem:[%s5 + $0x4c8] sm:$0xff]
    %v8723 = vld [vmem:[%s5 + $0x4d0] sm:$0xff]
    %v8724 = vld [vmem:[%s5 + $0x4d8] sm:$0xff]
    %v8725 = vld [vmem:[%s5 + $0x4e0] sm:$0xff]
    %v8726 = vld [vmem:[%s5 + $0x4e8] sm:$0xff]
    %v8727 = vld [vmem:[%s5 + $0x4f0] sm:$0xff]
    %v8728 = vld [vmem:[%s5 + $0x4f8] sm:$0xff]
    %v8729 = vld [vmem:[%s5 + $0x500] sm:$0xff]
    %v8730 = vld [vmem:[%s5 + $0x508] sm:$0xff]
    %v8731 = vld [vmem:[%s5 + $0x510] sm:$0xff]
    %v8732 = vld [vmem:[%s5 + $0x518] sm:$0xff]
    %v8733 = vld [vmem:[%s5 + $0x520] sm:$0xff]
    %v8734 = vld [vmem:[%s5 + $0x528] sm:$0xff]
    %v8735 = vld [vmem:[%s5 + $0x530] sm:$0xff]
    %v8736 = vld [vmem:[%s5 + $0x538] sm:$0xff]
    %v8737 = vld [vmem:[%s5 + $0x540] sm:$0xff]
    %v8738 = vld [vmem:[%s5 + $0x548] sm:$0xff]
    %v8739 = vld [vmem:[%s5 + $0x550] sm:$0xff]
    %v8740 = vld [vmem:[%s5 + $0x558] sm:$0xff]
    %v8741 = vld [vmem:[%s5 + $0x560] sm:$0xff]
    %v8742 = vld [vmem:[%s5 + $0x568] sm:$0xff]
    %v8743 = vld [vmem:[%s5 + $0x570] sm:$0xff]
    %v8744 = vld [vmem:[%s5 + $0x578] sm:$0xff]
    %v8745 = vld [vmem:[%s5 + $0x580] sm:$0xff]
    %v8746 = vld [vmem:[%s5 + $0x588] sm:$0xff]
    %v8747 = vld [vmem:[%s5 + $0x590] sm:$0xff]
    %v8748 = vld [vmem:[%s5 + $0x598] sm:$0xff]
    %v8749 = vld [vmem:[%s5 + $0x5a0] sm:$0xff]
    %v8750 = vld [vmem:[%s5 + $0x5a8] sm:$0xff]
    %v8751 = vld [vmem:[%s5 + $0x5b0] sm:$0xff]
    %v8752 = vld [vmem:[%s5 + $0x5b8] sm:$0xff]
    %v8753 = vld [vmem:[%s5 + $0x5c0] sm:$0xff]
    %v8754 = vld [vmem:[%s5 + $0x5c8] sm:$0xff]
    %v8755 = vld [vmem:[%s5 + $0x5d0] sm:$0xff]
    %v8756 = vld [vmem:[%s5 + $0x5d8] sm:$0xff]
    %v8757 = vld [vmem:[%s5 + $0x5e0] sm:$0xff]
    %v8758 = vld [vmem:[%s5 + $0x5e8] sm:$0xff]
    %v8759 = vld [vmem:[%s5 + $0x5f0] sm:$0xff]
    %v8760 = vld [vmem:[%s5 + $0x5f8] sm:$0xff]
    %v8761 = vld [vmem:[%s5 + $0x600] sm:$0xff]
    %v8762 = vld [vmem:[%s5 + $0x608] sm:$0xff]
    %v8763 = vld [vmem:[%s5 + $0x610] sm:$0xff]
    %v8764 = vld [vmem:[%s5 + $0x618] sm:$0xff]
    %v8765 = vld [vmem:[%s5 + $0x620] sm:$0xff]
    %v8766 = vld [vmem:[%s5 + $0x628] sm:$0xff]
    %v8767 = vld [vmem:[%s5 + $0x630] sm:$0xff]
    %v8768 = vld [vmem:[%s5 + $0x638] sm:$0xff]
    %v8769 = vld [vmem:[%s5 + $0x640] sm:$0xff]
    %v8770 = vld [vmem:[%s5 + $0x648] sm:$0xff]
    %v8771 = vld [vmem:[%s5 + $0x650] sm:$0xff]
    %v8772 = vld [vmem:[%s5 + $0x658] sm:$0xff]
    %v8773 = vld [vmem:[%s5 + $0x660] sm:$0xff]
    %v8774 = vld [vmem:[%s5 + $0x668] sm:$0xff]
    %v8775 = vld [vmem:[%s5 + $0x670] sm:$0xff]
    %v8776 = vld [vmem:[%s5 + $0x678] sm:$0xff]
    %v8777 = vld [vmem:[%s5 + $0x680] sm:$0xff]
    %v8778 = vld [vmem:[%s5 + $0x688] sm:$0xff]
    %v8779 = vld [vmem:[%s5 + $0x690] sm:$0xff]
    %v8780 = vld [vmem:[%s5 + $0x698] sm:$0xff]
    %v8781 = vld [vmem:[%s5 + $0x6a0] sm:$0xff]
    %v8782 = vld [vmem:[%s5 + $0x6a8] sm:$0xff]
    %v8783 = vld [vmem:[%s5 + $0x6b0] sm:$0xff]
    %v8784 = vld [vmem:[%s5 + $0x6b8] sm:$0xff]
    %v8785 = vld [vmem:[%s5 + $0x6c0] sm:$0xff]
    %v8786 = vld [vmem:[%s5 + $0x6c8] sm:$0xff]
    %v8787 = vld [vmem:[%s5 + $0x6d0] sm:$0xff]
    %v8788 = vld [vmem:[%s5 + $0x6d8] sm:$0xff]
    %v8789 = vld [vmem:[%s5 + $0x6e0] sm:$0xff]
    %v8790 = vld [vmem:[%s5 + $0x6e8] sm:$0xff]
    %v8791 = vld [vmem:[%s5 + $0x6f0] sm:$0xff]
    %v8792 = vld [vmem:[%s5 + $0x6f8] sm:$0xff]
    %v8793 = vld [vmem:[%s5 + $0x700] sm:$0xff]
    %v8794 = vld [vmem:[%s5 + $0x708] sm:$0xff]
    %v8795 = vld [vmem:[%s5 + $0x710] sm:$0xff]
    %v8796 = vld [vmem:[%s5 + $0x718] sm:$0xff]
    %v8797 = vld [vmem:[%s5 + $0x720] sm:$0xff]
    %v8798 = vld [vmem:[%s5 + $0x728] sm:$0xff]
    %v8799 = vld [vmem:[%s5 + $0x730] sm:$0xff]
    %v8800 = vld [vmem:[%s5 + $0x738] sm:$0xff]
    %v8801 = vld [vmem:[%s5 + $0x740] sm:$0xff]
    %v8802 = vld [vmem:[%s5 + $0x748] sm:$0xff]
    %v8803 = vld [vmem:[%s5 + $0x750] sm:$0xff]
    %v8804 = vld [vmem:[%s5 + $0x758] sm:$0xff]
    %v8805 = vld [vmem:[%s5 + $0x760] sm:$0xff]
    %v8806 = vld [vmem:[%s5 + $0x768] sm:$0xff]
    %v8807 = vld [vmem:[%s5 + $0x770] sm:$0xff]
    %v8808 = vld [vmem:[%s5 + $0x778] sm:$0xff]
    %v8809 = vld [vmem:[%s5 + $0x780] sm:$0xff]
    %v8810 = vld [vmem:[%s5 + $0x788] sm:$0xff]
    %v8811 = vld [vmem:[%s5 + $0x790] sm:$0xff]
    %v8812 = vld [vmem:[%s5 + $0x798] sm:$0xff]
    %v8813 = vld [vmem:[%s5 + $0x7a0] sm:$0xff]
    %v8814 = vld [vmem:[%s5 + $0x7a8] sm:$0xff]
    %v8815 = vld [vmem:[%s5 + $0x7b0] sm:$0xff]
    %v8816 = vld [vmem:[%s5 + $0x7b8] sm:$0xff]
    %v8817 = vld [vmem:[%s5 + $0x7c0] sm:$0xff]
    %v8818 = vld [vmem:[%s5 + $0x7c8] sm:$0xff]
    %v8819 = vld [vmem:[%s5 + $0x7d0] sm:$0xff]
    %v8820 = vld [vmem:[%s5 + $0x7d8] sm:$0xff]
    %v8821 = vld [vmem:[%s5 + $0x7e0] sm:$0xff]
    %v8822 = vld [vmem:[%s5 + $0x7e8] sm:$0xff]
    %v8823 = vld [vmem:[%s5 + $0x7f0] sm:$0xff]
    %v8824 = vld [vmem:[%s5 + $0x7f8] sm:$0xff]
    %v8825 = vld [vmem:[%s6] sm:$0xff]
    %v8827 = vlaneseq
    %v8828 = vshrl.u32 %v8827, 7
    %v8829 = vsub.s32 0, %v8828
    %v8830 = vrot.slane %v8825, %v8829
    %v8831 = vlaneseq
    %v8832 = vshrl.u32 %v8831, 7
    %v8833 = vsub.s32 1, %v8832
    %v8834 = vrot.slane %v8825, %v8833
    %v8835 = vlaneseq
    %v8836 = vshrl.u32 %v8835, 7
    %v8837 = vsub.s32 2, %v8836
    %v8838 = vrot.slane %v8825, %v8837
    %v8839 = vlaneseq
    %v8840 = vshrl.u32 %v8839, 7
    %v8841 = vsub.s32 3, %v8840
    %v8842 = vrot.slane %v8825, %v8841
    %v8843 = vlaneseq
    %v8844 = vshrl.u32 %v8843, 7
    %v8845 = vsub.s32 4, %v8844
    %v8846 = vrot.slane %v8825, %v8845
    %v8847 = vlaneseq
    %v8848 = vshrl.u32 %v8847, 7
    %v8849 = vsub.s32 5, %v8848
    %v8850 = vrot.slane %v8825, %v8849
    %v8851 = vlaneseq
    %v8852 = vshrl.u32 %v8851, 7
    %v8853 = vsub.s32 6, %v8852
    %v8854 = vrot.slane %v8825, %v8853
    %v8855 = vlaneseq
    %v8856 = vshrl.u32 %v8855, 7
    %v8857 = vsub.s32 7, %v8856
    %v8858 = vrot.slane %v8825, %v8857
    %v9123 = vunpack.c.l.b16 %v8569
    %v9124 = vunpack.c.h.b16 %v8569
    %v9125 = vunpack.c.l.b16 %v8570
    %v9126 = vunpack.c.h.b16 %v8570
    %v9127 = vunpack.c.l.b16 %v8571
    %v9128 = vunpack.c.h.b16 %v8571
    %v9129 = vunpack.c.l.b16 %v8572
    %v9130 = vunpack.c.h.b16 %v8572
    %v9131 = vunpack.c.l.b16 %v8573
    %v9132 = vunpack.c.h.b16 %v8573
    %v9133 = vunpack.c.l.b16 %v8574
    %v9134 = vunpack.c.h.b16 %v8574
    %v9135 = vunpack.c.l.b16 %v8575
    %v9136 = vunpack.c.h.b16 %v8575
    %v9137 = vunpack.c.l.b16 %v8576
    %v9138 = vunpack.c.h.b16 %v8576
    %v9139 = vunpack.c.l.b16 %v8577
    %v9140 = vunpack.c.h.b16 %v8577
    %v9141 = vunpack.c.l.b16 %v8578
    %v9142 = vunpack.c.h.b16 %v8578
    %v9143 = vunpack.c.l.b16 %v8579
    %v9144 = vunpack.c.h.b16 %v8579
    %v9145 = vunpack.c.l.b16 %v8580
    %v9146 = vunpack.c.h.b16 %v8580
    %v9147 = vunpack.c.l.b16 %v8581
    %v9148 = vunpack.c.h.b16 %v8581
    %v9149 = vunpack.c.l.b16 %v8582
    %v9150 = vunpack.c.h.b16 %v8582
    %v9151 = vunpack.c.l.b16 %v8583
    %v9152 = vunpack.c.h.b16 %v8583
    %v9153 = vunpack.c.l.b16 %v8584
    %v9154 = vunpack.c.h.b16 %v8584
    %v9155 = vunpack.c.l.b16 %v8585
    %v9156 = vunpack.c.h.b16 %v8585
    %v9157 = vunpack.c.l.b16 %v8586
    %v9158 = vunpack.c.h.b16 %v8586
    %v9159 = vunpack.c.l.b16 %v8587
    %v9160 = vunpack.c.h.b16 %v8587
    %v9161 = vunpack.c.l.b16 %v8588
    %v9162 = vunpack.c.h.b16 %v8588
    %v9163 = vunpack.c.l.b16 %v8589
    %v9164 = vunpack.c.h.b16 %v8589
    %v9165 = vunpack.c.l.b16 %v8590
    %v9166 = vunpack.c.h.b16 %v8590
    %v9167 = vunpack.c.l.b16 %v8591
    %v9168 = vunpack.c.h.b16 %v8591
    %v9169 = vunpack.c.l.b16 %v8592
    %v9170 = vunpack.c.h.b16 %v8592
    %v9171 = vunpack.c.l.b16 %v8593
    %v9172 = vunpack.c.h.b16 %v8593
    %v9173 = vunpack.c.l.b16 %v8594
    %v9174 = vunpack.c.h.b16 %v8594
    %v9175 = vunpack.c.l.b16 %v8595
    %v9176 = vunpack.c.h.b16 %v8595
    %v9177 = vunpack.c.l.b16 %v8596
    %v9178 = vunpack.c.h.b16 %v8596
    %v9179 = vunpack.c.l.b16 %v8597
    %v9180 = vunpack.c.h.b16 %v8597
    %v9181 = vunpack.c.l.b16 %v8598
    %v9182 = vunpack.c.h.b16 %v8598
    %v9183 = vunpack.c.l.b16 %v8599
    %v9184 = vunpack.c.h.b16 %v8599
    %v9185 = vunpack.c.l.b16 %v8600
    %v9186 = vunpack.c.h.b16 %v8600
    %v9187 = vunpack.c.l.b16 %v8601
    %v9188 = vunpack.c.h.b16 %v8601
    %v9189 = vunpack.c.l.b16 %v8602
    %v9190 = vunpack.c.h.b16 %v8602
    %v9191 = vunpack.c.l.b16 %v8603
    %v9192 = vunpack.c.h.b16 %v8603
    %v9193 = vunpack.c.l.b16 %v8604
    %v9194 = vunpack.c.h.b16 %v8604
    %v9195 = vunpack.c.l.b16 %v8605
    %v9196 = vunpack.c.h.b16 %v8605
    %v9197 = vunpack.c.l.b16 %v8606
    %v9198 = vunpack.c.h.b16 %v8606
    %v9199 = vunpack.c.l.b16 %v8607
    %v9200 = vunpack.c.h.b16 %v8607
    %v9201 = vunpack.c.l.b16 %v8608
    %v9202 = vunpack.c.h.b16 %v8608
    %v9203 = vunpack.c.l.b16 %v8609
    %v9204 = vunpack.c.h.b16 %v8609
    %v9205 = vunpack.c.l.b16 %v8610
    %v9206 = vunpack.c.h.b16 %v8610
    %v9207 = vunpack.c.l.b16 %v8611
    %v9208 = vunpack.c.h.b16 %v8611
    %v9209 = vunpack.c.l.b16 %v8612
    %v9210 = vunpack.c.h.b16 %v8612
    %v9211 = vunpack.c.l.b16 %v8613
    %v9212 = vunpack.c.h.b16 %v8613
    %v9213 = vunpack.c.l.b16 %v8614
    %v9214 = vunpack.c.h.b16 %v8614
    %v9215 = vunpack.c.l.b16 %v8615
    %v9216 = vunpack.c.h.b16 %v8615
    %v9217 = vunpack.c.l.b16 %v8616
    %v9218 = vunpack.c.h.b16 %v8616
    %v9219 = vunpack.c.l.b16 %v8617
    %v9220 = vunpack.c.h.b16 %v8617
    %v9221 = vunpack.c.l.b16 %v8618
    %v9222 = vunpack.c.h.b16 %v8618
    %v9223 = vunpack.c.l.b16 %v8619
    %v9224 = vunpack.c.h.b16 %v8619
    %v9225 = vunpack.c.l.b16 %v8620
    %v9226 = vunpack.c.h.b16 %v8620
    %v9227 = vunpack.c.l.b16 %v8621
    %v9228 = vunpack.c.h.b16 %v8621
    %v9229 = vunpack.c.l.b16 %v8622
    %v9230 = vunpack.c.h.b16 %v8622
    %v9231 = vunpack.c.l.b16 %v8623
    %v9232 = vunpack.c.h.b16 %v8623
    %v9233 = vunpack.c.l.b16 %v8624
    %v9234 = vunpack.c.h.b16 %v8624
    %v9235 = vunpack.c.l.b16 %v8625
    %v9236 = vunpack.c.h.b16 %v8625
    %v9237 = vunpack.c.l.b16 %v8626
    %v9238 = vunpack.c.h.b16 %v8626
    %v9239 = vunpack.c.l.b16 %v8627
    %v9240 = vunpack.c.h.b16 %v8627
    %v9241 = vunpack.c.l.b16 %v8628
    %v9242 = vunpack.c.h.b16 %v8628
    %v9243 = vunpack.c.l.b16 %v8629
    %v9244 = vunpack.c.h.b16 %v8629
    %v9245 = vunpack.c.l.b16 %v8630
    %v9246 = vunpack.c.h.b16 %v8630
    %v9247 = vunpack.c.l.b16 %v8631
    %v9248 = vunpack.c.h.b16 %v8631
    %v9249 = vunpack.c.l.b16 %v8632
    %v9250 = vunpack.c.h.b16 %v8632
    %v9251 = vunpack.c.l.b16 %v8633
    %v9252 = vunpack.c.h.b16 %v8633
    %v9253 = vunpack.c.l.b16 %v8634
    %v9254 = vunpack.c.h.b16 %v8634
    %v9255 = vunpack.c.l.b16 %v8635
    %v9256 = vunpack.c.h.b16 %v8635
    %v9257 = vunpack.c.l.b16 %v8636
    %v9258 = vunpack.c.h.b16 %v8636
    %v9259 = vunpack.c.l.b16 %v8637
    %v9260 = vunpack.c.h.b16 %v8637
    %v9261 = vunpack.c.l.b16 %v8638
    %v9262 = vunpack.c.h.b16 %v8638
    %v9263 = vunpack.c.l.b16 %v8639
    %v9264 = vunpack.c.h.b16 %v8639
    %v9265 = vunpack.c.l.b16 %v8640
    %v9266 = vunpack.c.h.b16 %v8640
    %v9267 = vunpack.c.l.b16 %v8641
    %v9268 = vunpack.c.h.b16 %v8641
    %v9269 = vunpack.c.l.b16 %v8642
    %v9270 = vunpack.c.h.b16 %v8642
    %v9271 = vunpack.c.l.b16 %v8643
    %v9272 = vunpack.c.h.b16 %v8643
    %v9273 = vunpack.c.l.b16 %v8644
    %v9274 = vunpack.c.h.b16 %v8644
    %v9275 = vunpack.c.l.b16 %v8645
    %v9276 = vunpack.c.h.b16 %v8645
    %v9277 = vunpack.c.l.b16 %v8646
    %v9278 = vunpack.c.h.b16 %v8646
    %v9279 = vunpack.c.l.b16 %v8647
    %v9280 = vunpack.c.h.b16 %v8647
    %v9281 = vunpack.c.l.b16 %v8648
    %v9282 = vunpack.c.h.b16 %v8648
    %v9283 = vunpack.c.l.b16 %v8649
    %v9284 = vunpack.c.h.b16 %v8649
    %v9285 = vunpack.c.l.b16 %v8650
    %v9286 = vunpack.c.h.b16 %v8650
    %v9287 = vunpack.c.l.b16 %v8651
    %v9288 = vunpack.c.h.b16 %v8651
    %v9289 = vunpack.c.l.b16 %v8652
    %v9290 = vunpack.c.h.b16 %v8652
    %v9291 = vunpack.c.l.b16 %v8653
    %v9292 = vunpack.c.h.b16 %v8653
    %v9293 = vunpack.c.l.b16 %v8654
    %v9294 = vunpack.c.h.b16 %v8654
    %v9295 = vunpack.c.l.b16 %v8655
    %v9296 = vunpack.c.h.b16 %v8655
    %v9297 = vunpack.c.l.b16 %v8656
    %v9298 = vunpack.c.h.b16 %v8656
    %v9299 = vunpack.c.l.b16 %v8657
    %v9300 = vunpack.c.h.b16 %v8657
    %v9301 = vunpack.c.l.b16 %v8658
    %v9302 = vunpack.c.h.b16 %v8658
    %v9303 = vunpack.c.l.b16 %v8659
    %v9304 = vunpack.c.h.b16 %v8659
    %v9305 = vunpack.c.l.b16 %v8660
    %v9306 = vunpack.c.h.b16 %v8660
    %v9307 = vunpack.c.l.b16 %v8661
    %v9308 = vunpack.c.h.b16 %v8661
    %v9309 = vunpack.c.l.b16 %v8662
    %v9310 = vunpack.c.h.b16 %v8662
    %v9311 = vunpack.c.l.b16 %v8663
    %v9312 = vunpack.c.h.b16 %v8663
    %v9313 = vunpack.c.l.b16 %v8664
    %v9314 = vunpack.c.h.b16 %v8664
    %v9315 = vunpack.c.l.b16 %v8665
    %v9316 = vunpack.c.h.b16 %v8665
    %v9317 = vunpack.c.l.b16 %v8666
    %v9318 = vunpack.c.h.b16 %v8666
    %v9319 = vunpack.c.l.b16 %v8667
    %v9320 = vunpack.c.h.b16 %v8667
    %v9321 = vunpack.c.l.b16 %v8668
    %v9322 = vunpack.c.h.b16 %v8668
    %v9323 = vunpack.c.l.b16 %v8669
    %v9324 = vunpack.c.h.b16 %v8669
    %v9325 = vunpack.c.l.b16 %v8670
    %v9326 = vunpack.c.h.b16 %v8670
    %v9327 = vunpack.c.l.b16 %v8671
    %v9328 = vunpack.c.h.b16 %v8671
    %v9329 = vunpack.c.l.b16 %v8672
    %v9330 = vunpack.c.h.b16 %v8672
    %v9331 = vunpack.c.l.b16 %v8673
    %v9332 = vunpack.c.h.b16 %v8673
    %v9333 = vunpack.c.l.b16 %v8674
    %v9334 = vunpack.c.h.b16 %v8674
    %v9335 = vunpack.c.l.b16 %v8675
    %v9336 = vunpack.c.h.b16 %v8675
    %v9337 = vunpack.c.l.b16 %v8676
    %v9338 = vunpack.c.h.b16 %v8676
    %v9339 = vunpack.c.l.b16 %v8677
    %v9340 = vunpack.c.h.b16 %v8677
    %v9341 = vunpack.c.l.b16 %v8678
    %v9342 = vunpack.c.h.b16 %v8678
    %v9343 = vunpack.c.l.b16 %v8679
    %v9344 = vunpack.c.h.b16 %v8679
    %v9345 = vunpack.c.l.b16 %v8680
    %v9346 = vunpack.c.h.b16 %v8680
    %v9347 = vunpack.c.l.b16 %v8681
    %v9348 = vunpack.c.h.b16 %v8681
    %v9349 = vunpack.c.l.b16 %v8682
    %v9350 = vunpack.c.h.b16 %v8682
    %v9351 = vunpack.c.l.b16 %v8683
    %v9352 = vunpack.c.h.b16 %v8683
    %v9353 = vunpack.c.l.b16 %v8684
    %v9354 = vunpack.c.h.b16 %v8684
    %v9355 = vunpack.c.l.b16 %v8685
    %v9356 = vunpack.c.h.b16 %v8685
    %v9357 = vunpack.c.l.b16 %v8686
    %v9358 = vunpack.c.h.b16 %v8686
    %v9359 = vunpack.c.l.b16 %v8687
    %v9360 = vunpack.c.h.b16 %v8687
    %v9361 = vunpack.c.l.b16 %v8688
    %v9362 = vunpack.c.h.b16 %v8688
    %v9363 = vunpack.c.l.b16 %v8689
    %v9364 = vunpack.c.h.b16 %v8689
    %v9365 = vunpack.c.l.b16 %v8690
    %v9366 = vunpack.c.h.b16 %v8690
    %v9367 = vunpack.c.l.b16 %v8691
    %v9368 = vunpack.c.h.b16 %v8691
    %v9369 = vunpack.c.l.b16 %v8692
    %v9370 = vunpack.c.h.b16 %v8692
    %v9371 = vunpack.c.l.b16 %v8693
    %v9372 = vunpack.c.h.b16 %v8693
    %v9373 = vunpack.c.l.b16 %v8694
    %v9374 = vunpack.c.h.b16 %v8694
    %v9375 = vunpack.c.l.b16 %v8695
    %v9376 = vunpack.c.h.b16 %v8695
    %v9377 = vunpack.c.l.b16 %v8696
    %v9378 = vunpack.c.h.b16 %v8696
    %v9379 = vunpack.c.l.b16 %v8697
    %v9380 = vunpack.c.h.b16 %v8697
    %v9381 = vunpack.c.l.b16 %v8698
    %v9382 = vunpack.c.h.b16 %v8698
    %v9383 = vunpack.c.l.b16 %v8699
    %v9384 = vunpack.c.h.b16 %v8699
    %v9385 = vunpack.c.l.b16 %v8700
    %v9386 = vunpack.c.h.b16 %v8700
    %v9387 = vunpack.c.l.b16 %v8701
    %v9388 = vunpack.c.h.b16 %v8701
    %v9389 = vunpack.c.l.b16 %v8702
    %v9390 = vunpack.c.h.b16 %v8702
    %v9391 = vunpack.c.l.b16 %v8703
    %v9392 = vunpack.c.h.b16 %v8703
    %v9393 = vunpack.c.l.b16 %v8704
    %v9394 = vunpack.c.h.b16 %v8704
    %v9395 = vunpack.c.l.b16 %v8705
    %v9396 = vunpack.c.h.b16 %v8705
    %v9397 = vunpack.c.l.b16 %v8706
    %v9398 = vunpack.c.h.b16 %v8706
    %v9399 = vunpack.c.l.b16 %v8707
    %v9400 = vunpack.c.h.b16 %v8707
    %v9401 = vunpack.c.l.b16 %v8708
    %v9402 = vunpack.c.h.b16 %v8708
    %v9403 = vunpack.c.l.b16 %v8709
    %v9404 = vunpack.c.h.b16 %v8709
    %v9405 = vunpack.c.l.b16 %v8710
    %v9406 = vunpack.c.h.b16 %v8710
    %v9407 = vunpack.c.l.b16 %v8711
    %v9408 = vunpack.c.h.b16 %v8711
    %v9409 = vunpack.c.l.b16 %v8712
    %v9410 = vunpack.c.h.b16 %v8712
    %v9411 = vunpack.c.l.b16 %v8713
    %v9412 = vunpack.c.h.b16 %v8713
    %v9413 = vunpack.c.l.b16 %v8714
    %v9414 = vunpack.c.h.b16 %v8714
    %v9415 = vunpack.c.l.b16 %v8715
    %v9416 = vunpack.c.h.b16 %v8715
    %v9417 = vunpack.c.l.b16 %v8716
    %v9418 = vunpack.c.h.b16 %v8716
    %v9419 = vunpack.c.l.b16 %v8717
    %v9420 = vunpack.c.h.b16 %v8717
    %v9421 = vunpack.c.l.b16 %v8718
    %v9422 = vunpack.c.h.b16 %v8718
    %v9423 = vunpack.c.l.b16 %v8719
    %v9424 = vunpack.c.h.b16 %v8719
    %v9425 = vunpack.c.l.b16 %v8720
    %v9426 = vunpack.c.h.b16 %v8720
    %v9427 = vunpack.c.l.b16 %v8721
    %v9428 = vunpack.c.h.b16 %v8721
    %v9429 = vunpack.c.l.b16 %v8722
    %v9430 = vunpack.c.h.b16 %v8722
    %v9431 = vunpack.c.l.b16 %v8723
    %v9432 = vunpack.c.h.b16 %v8723
    %v9433 = vunpack.c.l.b16 %v8724
    %v9434 = vunpack.c.h.b16 %v8724
    %v9435 = vunpack.c.l.b16 %v8725
    %v9436 = vunpack.c.h.b16 %v8725
    %v9437 = vunpack.c.l.b16 %v8726
    %v9438 = vunpack.c.h.b16 %v8726
    %v9439 = vunpack.c.l.b16 %v8727
    %v9440 = vunpack.c.h.b16 %v8727
    %v9441 = vunpack.c.l.b16 %v8728
    %v9442 = vunpack.c.h.b16 %v8728
    %v9443 = vunpack.c.l.b16 %v8729
    %v9444 = vunpack.c.h.b16 %v8729
    %v9445 = vunpack.c.l.b16 %v8730
    %v9446 = vunpack.c.h.b16 %v8730
    %v9447 = vunpack.c.l.b16 %v8731
    %v9448 = vunpack.c.h.b16 %v8731
    %v9449 = vunpack.c.l.b16 %v8732
    %v9450 = vunpack.c.h.b16 %v8732
    %v9451 = vunpack.c.l.b16 %v8733
    %v9452 = vunpack.c.h.b16 %v8733
    %v9453 = vunpack.c.l.b16 %v8734
    %v9454 = vunpack.c.h.b16 %v8734
    %v9455 = vunpack.c.l.b16 %v8735
    %v9456 = vunpack.c.h.b16 %v8735
    %v9457 = vunpack.c.l.b16 %v8736
    %v9458 = vunpack.c.h.b16 %v8736
    %v9459 = vunpack.c.l.b16 %v8737
    %v9460 = vunpack.c.h.b16 %v8737
    %v9461 = vunpack.c.l.b16 %v8738
    %v9462 = vunpack.c.h.b16 %v8738
    %v9463 = vunpack.c.l.b16 %v8739
    %v9464 = vunpack.c.h.b16 %v8739
    %v9465 = vunpack.c.l.b16 %v8740
    %v9466 = vunpack.c.h.b16 %v8740
    %v9467 = vunpack.c.l.b16 %v8741
    %v9468 = vunpack.c.h.b16 %v8741
    %v9469 = vunpack.c.l.b16 %v8742
    %v9470 = vunpack.c.h.b16 %v8742
    %v9471 = vunpack.c.l.b16 %v8743
    %v9472 = vunpack.c.h.b16 %v8743
    %v9473 = vunpack.c.l.b16 %v8744
    %v9474 = vunpack.c.h.b16 %v8744
    %v9475 = vunpack.c.l.b16 %v8745
    %v9476 = vunpack.c.h.b16 %v8745
    %v9477 = vunpack.c.l.b16 %v8746
    %v9478 = vunpack.c.h.b16 %v8746
    %v9479 = vunpack.c.l.b16 %v8747
    %v9480 = vunpack.c.h.b16 %v8747
    %v9481 = vunpack.c.l.b16 %v8748
    %v9482 = vunpack.c.h.b16 %v8748
    %v9483 = vunpack.c.l.b16 %v8749
    %v9484 = vunpack.c.h.b16 %v8749
    %v9485 = vunpack.c.l.b16 %v8750
    %v9486 = vunpack.c.h.b16 %v8750
    %v9487 = vunpack.c.l.b16 %v8751
    %v9488 = vunpack.c.h.b16 %v8751
    %v9489 = vunpack.c.l.b16 %v8752
    %v9490 = vunpack.c.h.b16 %v8752
    %v9491 = vunpack.c.l.b16 %v8753
    %v9492 = vunpack.c.h.b16 %v8753
    %v9493 = vunpack.c.l.b16 %v8754
    %v9494 = vunpack.c.h.b16 %v8754
    %v9495 = vunpack.c.l.b16 %v8755
    %v9496 = vunpack.c.h.b16 %v8755
    %v9497 = vunpack.c.l.b16 %v8756
    %v9498 = vunpack.c.h.b16 %v8756
    %v9499 = vunpack.c.l.b16 %v8757
    %v9500 = vunpack.c.h.b16 %v8757
    %v9501 = vunpack.c.l.b16 %v8758
    %v9502 = vunpack.c.h.b16 %v8758
    %v9503 = vunpack.c.l.b16 %v8759
    %v9504 = vunpack.c.h.b16 %v8759
    %v9505 = vunpack.c.l.b16 %v8760
    %v9506 = vunpack.c.h.b16 %v8760
    %v9507 = vunpack.c.l.b16 %v8761
    %v9508 = vunpack.c.h.b16 %v8761
    %v9509 = vunpack.c.l.b16 %v8762
    %v9510 = vunpack.c.h.b16 %v8762
    %v9511 = vunpack.c.l.b16 %v8763
    %v9512 = vunpack.c.h.b16 %v8763
    %v9513 = vunpack.c.l.b16 %v8764
    %v9514 = vunpack.c.h.b16 %v8764
    %v9515 = vunpack.c.l.b16 %v8765
    %v9516 = vunpack.c.h.b16 %v8765
    %v9517 = vunpack.c.l.b16 %v8766
    %v9518 = vunpack.c.h.b16 %v8766
    %v9519 = vunpack.c.l.b16 %v8767
    %v9520 = vunpack.c.h.b16 %v8767
    %v9521 = vunpack.c.l.b16 %v8768
    %v9522 = vunpack.c.h.b16 %v8768
    %v9523 = vunpack.c.l.b16 %v8769
    %v9524 = vunpack.c.h.b16 %v8769
    %v9525 = vunpack.c.l.b16 %v8770
    %v9526 = vunpack.c.h.b16 %v8770
    %v9527 = vunpack.c.l.b16 %v8771
    %v9528 = vunpack.c.h.b16 %v8771
    %v9529 = vunpack.c.l.b16 %v8772
    %v9530 = vunpack.c.h.b16 %v8772
    %v9531 = vunpack.c.l.b16 %v8773
    %v9532 = vunpack.c.h.b16 %v8773
    %v9533 = vunpack.c.l.b16 %v8774
    %v9534 = vunpack.c.h.b16 %v8774
    %v9535 = vunpack.c.l.b16 %v8775
    %v9536 = vunpack.c.h.b16 %v8775
    %v9537 = vunpack.c.l.b16 %v8776
    %v9538 = vunpack.c.h.b16 %v8776
    %v9539 = vunpack.c.l.b16 %v8777
    %v9540 = vunpack.c.h.b16 %v8777
    %v9541 = vunpack.c.l.b16 %v8778
    %v9542 = vunpack.c.h.b16 %v8778
    %v9543 = vunpack.c.l.b16 %v8779
    %v9544 = vunpack.c.h.b16 %v8779
    %v9545 = vunpack.c.l.b16 %v8780
    %v9546 = vunpack.c.h.b16 %v8780
    %v9547 = vunpack.c.l.b16 %v8781
    %v9548 = vunpack.c.h.b16 %v8781
    %v9549 = vunpack.c.l.b16 %v8782
    %v9550 = vunpack.c.h.b16 %v8782
    %v9551 = vunpack.c.l.b16 %v8783
    %v9552 = vunpack.c.h.b16 %v8783
    %v9553 = vunpack.c.l.b16 %v8784
    %v9554 = vunpack.c.h.b16 %v8784
    %v9555 = vunpack.c.l.b16 %v8785
    %v9556 = vunpack.c.h.b16 %v8785
    %v9557 = vunpack.c.l.b16 %v8786
    %v9558 = vunpack.c.h.b16 %v8786
    %v9559 = vunpack.c.l.b16 %v8787
    %v9560 = vunpack.c.h.b16 %v8787
    %v9561 = vunpack.c.l.b16 %v8788
    %v9562 = vunpack.c.h.b16 %v8788
    %v9563 = vunpack.c.l.b16 %v8789
    %v9564 = vunpack.c.h.b16 %v8789
    %v9565 = vunpack.c.l.b16 %v8790
    %v9566 = vunpack.c.h.b16 %v8790
    %v9567 = vunpack.c.l.b16 %v8791
    %v9568 = vunpack.c.h.b16 %v8791
    %v9569 = vunpack.c.l.b16 %v8792
    %v9570 = vunpack.c.h.b16 %v8792
    %v9571 = vunpack.c.l.b16 %v8793
    %v9572 = vunpack.c.h.b16 %v8793
    %v9573 = vunpack.c.l.b16 %v8794
    %v9574 = vunpack.c.h.b16 %v8794
    %v9575 = vunpack.c.l.b16 %v8795
    %v9576 = vunpack.c.h.b16 %v8795
    %v9577 = vunpack.c.l.b16 %v8796
    %v9578 = vunpack.c.h.b16 %v8796
    %v9579 = vunpack.c.l.b16 %v8797
    %v9580 = vunpack.c.h.b16 %v8797
    %v9581 = vunpack.c.l.b16 %v8798
    %v9582 = vunpack.c.h.b16 %v8798
    %v9583 = vunpack.c.l.b16 %v8799
    %v9584 = vunpack.c.h.b16 %v8799
    %v9585 = vunpack.c.l.b16 %v8800
    %v9586 = vunpack.c.h.b16 %v8800
    %v9587 = vunpack.c.l.b16 %v8801
    %v9588 = vunpack.c.h.b16 %v8801
    %v9589 = vunpack.c.l.b16 %v8802
    %v9590 = vunpack.c.h.b16 %v8802
    %v9591 = vunpack.c.l.b16 %v8803
    %v9592 = vunpack.c.h.b16 %v8803
    %v9593 = vunpack.c.l.b16 %v8804
    %v9594 = vunpack.c.h.b16 %v8804
    %v9595 = vunpack.c.l.b16 %v8805
    %v9596 = vunpack.c.h.b16 %v8805
    %v9597 = vunpack.c.l.b16 %v8806
    %v9598 = vunpack.c.h.b16 %v8806
    %v9599 = vunpack.c.l.b16 %v8807
    %v9600 = vunpack.c.h.b16 %v8807
    %v9601 = vunpack.c.l.b16 %v8808
    %v9602 = vunpack.c.h.b16 %v8808
    %v9603 = vunpack.c.l.b16 %v8809
    %v9604 = vunpack.c.h.b16 %v8809
    %v9605 = vunpack.c.l.b16 %v8810
    %v9606 = vunpack.c.h.b16 %v8810
    %v9607 = vunpack.c.l.b16 %v8811
    %v9608 = vunpack.c.h.b16 %v8811
    %v9609 = vunpack.c.l.b16 %v8812
    %v9610 = vunpack.c.h.b16 %v8812
    %v9611 = vunpack.c.l.b16 %v8813
    %v9612 = vunpack.c.h.b16 %v8813
    %v9613 = vunpack.c.l.b16 %v8814
    %v9614 = vunpack.c.h.b16 %v8814
    %v9615 = vunpack.c.l.b16 %v8815
    %v9616 = vunpack.c.h.b16 %v8815
    %v9617 = vunpack.c.l.b16 %v8816
    %v9618 = vunpack.c.h.b16 %v8816
    %v9619 = vunpack.c.l.b16 %v8817
    %v9620 = vunpack.c.h.b16 %v8817
    %v9621 = vunpack.c.l.b16 %v8818
    %v9622 = vunpack.c.h.b16 %v8818
    %v9623 = vunpack.c.l.b16 %v8819
    %v9624 = vunpack.c.h.b16 %v8819
    %v9625 = vunpack.c.l.b16 %v8820
    %v9626 = vunpack.c.h.b16 %v8820
    %v9627 = vunpack.c.l.b16 %v8821
    %v9628 = vunpack.c.h.b16 %v8821
    %v9629 = vunpack.c.l.b16 %v8822
    %v9630 = vunpack.c.h.b16 %v8822
    %v9631 = vunpack.c.l.b16 %v8823
    %v9632 = vunpack.c.h.b16 %v8823
    %v9633 = vunpack.c.l.b16 %v8824
    %v9634 = vunpack.c.h.b16 %v8824
    %v9635 = vpack.c.b16 %v9131, %v9123
    %v9636 = vpack.c.b16 %v9132, %v9124
    %v9637 = vpack.c.b16 %v9133, %v9125
    %v9638 = vpack.c.b16 %v9134, %v9126
    %v9639 = vpack.c.b16 %v9135, %v9127
    %v9640 = vpack.c.b16 %v9136, %v9128
    %v9641 = vpack.c.b16 %v9137, %v9129
    %v9642 = vpack.c.b16 %v9138, %v9130
    %v9643 = vpack.c.b16 %v9147, %v9139
    %v9644 = vpack.c.b16 %v9148, %v9140
    %v9645 = vpack.c.b16 %v9149, %v9141
    %v9646 = vpack.c.b16 %v9150, %v9142
    %v9647 = vpack.c.b16 %v9151, %v9143
    %v9648 = vpack.c.b16 %v9152, %v9144
    %v9649 = vpack.c.b16 %v9153, %v9145
    %v9650 = vpack.c.b16 %v9154, %v9146
    %v9651 = vpack.c.b16 %v9163, %v9155
    %v9652 = vpack.c.b16 %v9164, %v9156
    %v9653 = vpack.c.b16 %v9165, %v9157
    %v9654 = vpack.c.b16 %v9166, %v9158
    %v9655 = vpack.c.b16 %v9167, %v9159
    %v9656 = vpack.c.b16 %v9168, %v9160
    %v9657 = vpack.c.b16 %v9169, %v9161
    %v9658 = vpack.c.b16 %v9170, %v9162
    %v9659 = vpack.c.b16 %v9179, %v9171
    %v9660 = vpack.c.b16 %v9180, %v9172
    %v9661 = vpack.c.b16 %v9181, %v9173
    %v9662 = vpack.c.b16 %v9182, %v9174
    %v9663 = vpack.c.b16 %v9183, %v9175
    %v9664 = vpack.c.b16 %v9184, %v9176
    %v9665 = vpack.c.b16 %v9185, %v9177
    %v9666 = vpack.c.b16 %v9186, %v9178
    %v9667 = vpack.c.b16 %v9195, %v9187
    %v9668 = vpack.c.b16 %v9196, %v9188
    %v9669 = vpack.c.b16 %v9197, %v9189
    %v9670 = vpack.c.b16 %v9198, %v9190
    %v9671 = vpack.c.b16 %v9199, %v9191
    %v9672 = vpack.c.b16 %v9200, %v9192
    %v9673 = vpack.c.b16 %v9201, %v9193
    %v9674 = vpack.c.b16 %v9202, %v9194
    %v9675 = vpack.c.b16 %v9211, %v9203
    %v9676 = vpack.c.b16 %v9212, %v9204
    %v9677 = vpack.c.b16 %v9213, %v9205
    %v9678 = vpack.c.b16 %v9214, %v9206
    %v9679 = vpack.c.b16 %v9215, %v9207
    %v9680 = vpack.c.b16 %v9216, %v9208
    %v9681 = vpack.c.b16 %v9217, %v9209
    %v9682 = vpack.c.b16 %v9218, %v9210
    %v9683 = vpack.c.b16 %v9227, %v9219
    %v9684 = vpack.c.b16 %v9228, %v9220
    %v9685 = vpack.c.b16 %v9229, %v9221
    %v9686 = vpack.c.b16 %v9230, %v9222
    %v9687 = vpack.c.b16 %v9231, %v9223
    %v9688 = vpack.c.b16 %v9232, %v9224
    %v9689 = vpack.c.b16 %v9233, %v9225
    %v9690 = vpack.c.b16 %v9234, %v9226
    %v9691 = vpack.c.b16 %v9243, %v9235
    %v9692 = vpack.c.b16 %v9244, %v9236
    %v9693 = vpack.c.b16 %v9245, %v9237
    %v9694 = vpack.c.b16 %v9246, %v9238
    %v9695 = vpack.c.b16 %v9247, %v9239
    %v9696 = vpack.c.b16 %v9248, %v9240
    %v9697 = vpack.c.b16 %v9249, %v9241
    %v9698 = vpack.c.b16 %v9250, %v9242
    %v9699 = vpack.c.b16 %v9259, %v9251
    %v9700 = vpack.c.b16 %v9260, %v9252
    %v9701 = vpack.c.b16 %v9261, %v9253
    %v9702 = vpack.c.b16 %v9262, %v9254
    %v9703 = vpack.c.b16 %v9263, %v9255
    %v9704 = vpack.c.b16 %v9264, %v9256
    %v9705 = vpack.c.b16 %v9265, %v9257
    %v9706 = vpack.c.b16 %v9266, %v9258
    %v9707 = vpack.c.b16 %v9275, %v9267
    %v9708 = vpack.c.b16 %v9276, %v9268
    %v9709 = vpack.c.b16 %v9277, %v9269
    %v9710 = vpack.c.b16 %v9278, %v9270
    %v9711 = vpack.c.b16 %v9279, %v9271
    %v9712 = vpack.c.b16 %v9280, %v9272
    %v9713 = vpack.c.b16 %v9281, %v9273
    %v9714 = vpack.c.b16 %v9282, %v9274
    %v9715 = vpack.c.b16 %v9291, %v9283
    %v9716 = vpack.c.b16 %v9292, %v9284
    %v9717 = vpack.c.b16 %v9293, %v9285
    %v9718 = vpack.c.b16 %v9294, %v9286
    %v9719 = vpack.c.b16 %v9295, %v9287
    %v9720 = vpack.c.b16 %v9296, %v9288
    %v9721 = vpack.c.b16 %v9297, %v9289
    %v9722 = vpack.c.b16 %v9298, %v9290
    %v9723 = vpack.c.b16 %v9307, %v9299
    %v9724 = vpack.c.b16 %v9308, %v9300
    %v9725 = vpack.c.b16 %v9309, %v9301
    %v9726 = vpack.c.b16 %v9310, %v9302
    %v9727 = vpack.c.b16 %v9311, %v9303
    %v9728 = vpack.c.b16 %v9312, %v9304
    %v9729 = vpack.c.b16 %v9313, %v9305
    %v9730 = vpack.c.b16 %v9314, %v9306
    %v9731 = vpack.c.b16 %v9323, %v9315
    %v9732 = vpack.c.b16 %v9324, %v9316
    %v9733 = vpack.c.b16 %v9325, %v9317
    %v9734 = vpack.c.b16 %v9326, %v9318
    %v9735 = vpack.c.b16 %v9327, %v9319
    %v9736 = vpack.c.b16 %v9328, %v9320
    %v9737 = vpack.c.b16 %v9329, %v9321
    %v9738 = vpack.c.b16 %v9330, %v9322
    %v9739 = vpack.c.b16 %v9339, %v9331
    %v9740 = vpack.c.b16 %v9340, %v9332
    %v9741 = vpack.c.b16 %v9341, %v9333
    %v9742 = vpack.c.b16 %v9342, %v9334
    %v9743 = vpack.c.b16 %v9343, %v9335
    %v9744 = vpack.c.b16 %v9344, %v9336
    %v9745 = vpack.c.b16 %v9345, %v9337
    %v9746 = vpack.c.b16 %v9346, %v9338
    %v9747 = vpack.c.b16 %v9355, %v9347
    %v9748 = vpack.c.b16 %v9356, %v9348
    %v9749 = vpack.c.b16 %v9357, %v9349
    %v9750 = vpack.c.b16 %v9358, %v9350
    %v9751 = vpack.c.b16 %v9359, %v9351
    %v9752 = vpack.c.b16 %v9360, %v9352
    %v9753 = vpack.c.b16 %v9361, %v9353
    %v9754 = vpack.c.b16 %v9362, %v9354
    %v9755 = vpack.c.b16 %v9371, %v9363
    %v9756 = vpack.c.b16 %v9372, %v9364
    %v9757 = vpack.c.b16 %v9373, %v9365
    %v9758 = vpack.c.b16 %v9374, %v9366
    %v9759 = vpack.c.b16 %v9375, %v9367
    %v9760 = vpack.c.b16 %v9376, %v9368
    %v9761 = vpack.c.b16 %v9377, %v9369
    %v9762 = vpack.c.b16 %v9378, %v9370
    %v9763 = vpack.c.b16 %v9387, %v9379
    %v9764 = vpack.c.b16 %v9388, %v9380
    %v9765 = vpack.c.b16 %v9389, %v9381
    %v9766 = vpack.c.b16 %v9390, %v9382
    %v9767 = vpack.c.b16 %v9391, %v9383
    %v9768 = vpack.c.b16 %v9392, %v9384
    %v9769 = vpack.c.b16 %v9393, %v9385
    %v9770 = vpack.c.b16 %v9394, %v9386
    %v9771 = vpack.c.b16 %v9403, %v9395
    %v9772 = vpack.c.b16 %v9404, %v9396
    %v9773 = vpack.c.b16 %v9405, %v9397
    %v9774 = vpack.c.b16 %v9406, %v9398
    %v9775 = vpack.c.b16 %v9407, %v9399
    %v9776 = vpack.c.b16 %v9408, %v9400
    %v9777 = vpack.c.b16 %v9409, %v9401
    %v9778 = vpack.c.b16 %v9410, %v9402
    %v9779 = vpack.c.b16 %v9419, %v9411
    %v9780 = vpack.c.b16 %v9420, %v9412
    %v9781 = vpack.c.b16 %v9421, %v9413
    %v9782 = vpack.c.b16 %v9422, %v9414
    %v9783 = vpack.c.b16 %v9423, %v9415
    %v9784 = vpack.c.b16 %v9424, %v9416
    %v9785 = vpack.c.b16 %v9425, %v9417
    %v9786 = vpack.c.b16 %v9426, %v9418
    %v9787 = vpack.c.b16 %v9435, %v9427
    %v9788 = vpack.c.b16 %v9436, %v9428
    %v9789 = vpack.c.b16 %v9437, %v9429
    %v9790 = vpack.c.b16 %v9438, %v9430
    %v9791 = vpack.c.b16 %v9439, %v9431
    %v9792 = vpack.c.b16 %v9440, %v9432
    %v9793 = vpack.c.b16 %v9441, %v9433
    %v9794 = vpack.c.b16 %v9442, %v9434
    %v9795 = vpack.c.b16 %v9451, %v9443
    %v9796 = vpack.c.b16 %v9452, %v9444
    %v9797 = vpack.c.b16 %v9453, %v9445
    %v9798 = vpack.c.b16 %v9454, %v9446
    %v9799 = vpack.c.b16 %v9455, %v9447
    %v9800 = vpack.c.b16 %v9456, %v9448
    %v9801 = vpack.c.b16 %v9457, %v9449
    %v9802 = vpack.c.b16 %v9458, %v9450
    %v9803 = vpack.c.b16 %v9467, %v9459
    %v9804 = vpack.c.b16 %v9468, %v9460
    %v9805 = vpack.c.b16 %v9469, %v9461
    %v9806 = vpack.c.b16 %v9470, %v9462
    %v9807 = vpack.c.b16 %v9471, %v9463
    %v9808 = vpack.c.b16 %v9472, %v9464
    %v9809 = vpack.c.b16 %v9473, %v9465
    %v9810 = vpack.c.b16 %v9474, %v9466
    %v9811 = vpack.c.b16 %v9483, %v9475
    %v9812 = vpack.c.b16 %v9484, %v9476
    %v9813 = vpack.c.b16 %v9485, %v9477
    %v9814 = vpack.c.b16 %v9486, %v9478
    %v9815 = vpack.c.b16 %v9487, %v9479
    %v9816 = vpack.c.b16 %v9488, %v9480
    %v9817 = vpack.c.b16 %v9489, %v9481
    %v9818 = vpack.c.b16 %v9490, %v9482
    %v9819 = vpack.c.b16 %v9499, %v9491
    %v9820 = vpack.c.b16 %v9500, %v9492
    %v9821 = vpack.c.b16 %v9501, %v9493
    %v9822 = vpack.c.b16 %v9502, %v9494
    %v9823 = vpack.c.b16 %v9503, %v9495
    %v9824 = vpack.c.b16 %v9504, %v9496
    %v9825 = vpack.c.b16 %v9505, %v9497
    %v9826 = vpack.c.b16 %v9506, %v9498
    %v9827 = vpack.c.b16 %v9515, %v9507
    %v9828 = vpack.c.b16 %v9516, %v9508
    %v9829 = vpack.c.b16 %v9517, %v9509
    %v9830 = vpack.c.b16 %v9518, %v9510
    %v9831 = vpack.c.b16 %v9519, %v9511
    %v9832 = vpack.c.b16 %v9520, %v9512
    %v9833 = vpack.c.b16 %v9521, %v9513
    %v9834 = vpack.c.b16 %v9522, %v9514
    %v9835 = vpack.c.b16 %v9531, %v9523
    %v9836 = vpack.c.b16 %v9532, %v9524
    %v9837 = vpack.c.b16 %v9533, %v9525
    %v9838 = vpack.c.b16 %v9534, %v9526
    %v9839 = vpack.c.b16 %v9535, %v9527
    %v9840 = vpack.c.b16 %v9536, %v9528
    %v9841 = vpack.c.b16 %v9537, %v9529
    %v9842 = vpack.c.b16 %v9538, %v9530
    %v9843 = vpack.c.b16 %v9547, %v9539
    %v9844 = vpack.c.b16 %v9548, %v9540
    %v9845 = vpack.c.b16 %v9549, %v9541
    %v9846 = vpack.c.b16 %v9550, %v9542
    %v9847 = vpack.c.b16 %v9551, %v9543
    %v9848 = vpack.c.b16 %v9552, %v9544
    %v9849 = vpack.c.b16 %v9553, %v9545
    %v9850 = vpack.c.b16 %v9554, %v9546
    %v9851 = vpack.c.b16 %v9563, %v9555
    %v9852 = vpack.c.b16 %v9564, %v9556
    %v9853 = vpack.c.b16 %v9565, %v9557
    %v9854 = vpack.c.b16 %v9566, %v9558
    %v9855 = vpack.c.b16 %v9567, %v9559
    %v9856 = vpack.c.b16 %v9568, %v9560
    %v9857 = vpack.c.b16 %v9569, %v9561
    %v9858 = vpack.c.b16 %v9570, %v9562
    %v9859 = vpack.c.b16 %v9579, %v9571
    %v9860 = vpack.c.b16 %v9580, %v9572
    %v9861 = vpack.c.b16 %v9581, %v9573
    %v9862 = vpack.c.b16 %v9582, %v9574
    %v9863 = vpack.c.b16 %v9583, %v9575
    %v9864 = vpack.c.b16 %v9584, %v9576
    %v9865 = vpack.c.b16 %v9585, %v9577
    %v9866 = vpack.c.b16 %v9586, %v9578
    %v9867 = vpack.c.b16 %v9595, %v9587
    %v9868 = vpack.c.b16 %v9596, %v9588
    %v9869 = vpack.c.b16 %v9597, %v9589
    %v9870 = vpack.c.b16 %v9598, %v9590
    %v9871 = vpack.c.b16 %v9599, %v9591
    %v9872 = vpack.c.b16 %v9600, %v9592
    %v9873 = vpack.c.b16 %v9601, %v9593
    %v9874 = vpack.c.b16 %v9602, %v9594
    %v9875 = vpack.c.b16 %v9611, %v9603
    %v9876 = vpack.c.b16 %v9612, %v9604
    %v9877 = vpack.c.b16 %v9613, %v9605
    %v9878 = vpack.c.b16 %v9614, %v9606
    %v9879 = vpack.c.b16 %v9615, %v9607
    %v9880 = vpack.c.b16 %v9616, %v9608
    %v9881 = vpack.c.b16 %v9617, %v9609
    %v9882 = vpack.c.b16 %v9618, %v9610
    %v9883 = vpack.c.b16 %v9627, %v9619
    %v9884 = vpack.c.b16 %v9628, %v9620
    %v9885 = vpack.c.b16 %v9629, %v9621
    %v9886 = vpack.c.b16 %v9630, %v9622
    %v9887 = vpack.c.b16 %v9631, %v9623
    %v9888 = vpack.c.b16 %v9632, %v9624
    %v9889 = vpack.c.b16 %v9633, %v9625
    %v9890 = vpack.c.b16 %v9634, %v9626
    %10147 = vmatprep.subr.bf16.mxu0 %v9636
    %10148 = vmatpush1.bf16.msra.mxu0 %v9635
    %10149 = vmatprep.subr.bf16.mxu0 %v9644
    %10150 = vmatpush1.bf16.msra.mxu0 %v9643
    %10151 = vmatprep.subr.bf16.mxu0 %v9652
    %10152 = vmatpush1.bf16.msra.mxu0 %v9651
    %10153 = vmatprep.subr.bf16.mxu0 %v9660
    %10154 = vmatpush1.bf16.msra.mxu0 %v9659
    %10155 = vmatprep.subr.bf16.mxu0 %v9668
    %10156 = vmatpush1.bf16.msra.mxu0 %v9667
    %10157 = vmatprep.subr.bf16.mxu0 %v9676
    %10158 = vmatpush1.bf16.msra.mxu0 %v9675
    %10159 = vmatprep.subr.bf16.mxu0 %v9684
    %10160 = vmatpush1.bf16.msra.mxu0 %v9683
    %10161 = vmatprep.subr.bf16.mxu0 %v9692
    %10162 = vmatpush1.bf16.msra.mxu0 %v9691
    %10163 = vmatprep.subr.bf16.mxu0 %v9700
    %10164 = vmatpush1.bf16.msra.mxu0 %v9699
    %10165 = vmatprep.subr.bf16.mxu0 %v9708
    %10166 = vmatpush1.bf16.msra.mxu0 %v9707
    %10167 = vmatprep.subr.bf16.mxu0 %v9716
    %10168 = vmatpush1.bf16.msra.mxu0 %v9715
    %10169 = vmatprep.subr.bf16.mxu0 %v9724
    %10170 = vmatpush1.bf16.msra.mxu0 %v9723
    %10171 = vmatprep.subr.bf16.mxu0 %v9732
    %10172 = vmatpush1.bf16.msra.mxu0 %v9731
    %10173 = vmatprep.subr.bf16.mxu0 %v9740
    %10174 = vmatpush1.bf16.msra.mxu0 %v9739
    %10175 = vmatprep.subr.bf16.mxu0 %v9748
    %10176 = vmatpush1.bf16.msra.mxu0 %v9747
    %10177 = vmatprep.subr.bf16.mxu0 %v9756
    %10178 = vmatpush1.bf16.msra.mxu0 %v9755
    %10179 = vmatprep.mubr.bf16.mxu0 %v8566
    %10180 = vmatmul.mubr.bf16.gmra.mrb[0].mxu0 %v8565
    %v10181 = vpop.f32.mrb[0].mxu0
    %v10182 = vadd.f32 %v8830, %v10181
    %v10183 = vpop.f32.mrb[0].mxu0
    %v10184 = vadd.f32 %v8834, %v10183
    %v10185 = vpop.f32.mrb[0].mxu0
    %v10186 = vpop.f32.mrb[0].mxu0
    %10187 = vdwg.mxu0
    %10188 = vmatprep.subr.bf16.mxu0 %v9764
    %10189 = vmatpush1.bf16.msra.mxu0 %v9763
    %10190 = vmatprep.subr.bf16.mxu0 %v9772
    %10191 = vmatpush1.bf16.msra.mxu0 %v9771
    %10192 = vmatprep.subr.bf16.mxu0 %v9780
    %10193 = vmatpush1.bf16.msra.mxu0 %v9779
    %10194 = vmatprep.subr.bf16.mxu0 %v9788
    %10195 = vmatpush1.bf16.msra.mxu0 %v9787
    %10196 = vmatprep.subr.bf16.mxu0 %v9796
    %10197 = vmatpush1.bf16.msra.mxu0 %v9795
    %10198 = vmatprep.subr.bf16.mxu0 %v9804
    %10199 = vmatpush1.bf16.msra.mxu0 %v9803
    %10200 = vmatprep.subr.bf16.mxu0 %v9812
    %10201 = vmatpush1.bf16.msra.mxu0 %v9811
    %10202 = vmatprep.subr.bf16.mxu0 %v9820
    %10203 = vmatpush1.bf16.msra.mxu0 %v9819
    %10204 = vmatprep.subr.bf16.mxu0 %v9828
    %10205 = vmatpush1.bf16.msra.mxu0 %v9827
    %10206 = vmatprep.subr.bf16.mxu0 %v9836
    %10207 = vmatpush1.bf16.msra.mxu0 %v9835
    %10208 = vmatprep.subr.bf16.mxu0 %v9844
    %10209 = vmatpush1.bf16.msra.mxu0 %v9843
    %10210 = vmatprep.subr.bf16.mxu0 %v9852
    %10211 = vmatpush1.bf16.msra.mxu0 %v9851
    %10212 = vmatprep.subr.bf16.mxu0 %v9860
    %10213 = vmatpush1.bf16.msra.mxu0 %v9859
    %10214 = vmatprep.subr.bf16.mxu0 %v9868
    %10215 = vmatpush1.bf16.msra.mxu0 %v9867
    %10216 = vmatprep.subr.bf16.mxu0 %v9876
    %10217 = vmatpush1.bf16.msra.mxu0 %v9875
    %10218 = vmatprep.subr.bf16.mxu0 %v9884
    %10219 = vmatpush1.bf16.msra.mxu0 %v9883
    %10220 = vmatprep.mubr.bf16.mxu0 %v8568
    %10221 = vmatmul.mubr.bf16.gmra.mrb[0].mxu0 %v8567
    %v10222 = vpop.f32.mrb[0].mxu0
    %v10223 = vadd.f32 %v10182, %v10222
    %v10224 = vpop.f32.mrb[0].mxu0
    %v10225 = vadd.f32 %v10184, %v10224
    %v10226 = vpop.f32.mrb[0].mxu0
    %v10227 = vpop.f32.mrb[0].mxu0
    %10228 = vdwg.mxu0
    %10229 = vmatprep.subr.bf16.mxu0 %v9638
    %10230 = vmatpush1.bf16.msra.mxu0 %v9637
    %10231 = vmatprep.subr.bf16.mxu0 %v9646
    %10232 = vmatpush1.bf16.msra.mxu0 %v9645
    %10233 = vmatprep.subr.bf16.mxu0 %v9654
    %10234 = vmatpush1.bf16.msra.mxu0 %v9653
    %10235 = vmatprep.subr.bf16.mxu0 %v9662
    %10236 = vmatpush1.bf16.msra.mxu0 %v9661
    %10237 = vmatprep.subr.bf16.mxu0 %v9670
    %10238 = vmatpush1.bf16.msra.mxu0 %v9669
    %10239 = vmatprep.subr.bf16.mxu0 %v9678
    %10240 = vmatpush1.bf16.msra.mxu0 %v9677
    %10241 = vmatprep.subr.bf16.mxu0 %v9686
    %10242 = vmatpush1.bf16.msra.mxu0 %v9685
    %10243 = vmatprep.subr.bf16.mxu0 %v9694
    %10244 = vmatpush1.bf16.msra.mxu0 %v9693
    %10245 = vmatprep.subr.bf16.mxu0 %v9702
    %10246 = vmatpush1.bf16.msra.mxu0 %v9701
    %10247 = vmatprep.subr.bf16.mxu0 %v9710
    %10248 = vmatpush1.bf16.msra.mxu0 %v9709
    %10249 = vmatprep.subr.bf16.mxu0 %v9718
    %10250 = vmatpush1.bf16.msra.mxu0 %v9717
    %10251 = vmatprep.subr.bf16.mxu0 %v9726
    %10252 = vmatpush1.bf16.msra.mxu0 %v9725
    %10253 = vmatprep.subr.bf16.mxu0 %v9734
    %10254 = vmatpush1.bf16.msra.mxu0 %v9733
    %10255 = vmatprep.subr.bf16.mxu0 %v9742
    %10256 = vmatpush1.bf16.msra.mxu0 %v9741
    %10257 = vmatprep.subr.bf16.mxu0 %v9750
    %10258 = vmatpush1.bf16.msra.mxu0 %v9749
    %10259 = vmatprep.subr.bf16.mxu0 %v9758
    %10260 = vmatpush1.bf16.msra.mxu0 %v9757
    %10261 = vmatprep.mubr.bf16.mxu0 %v8566
    %10262 = vmatmul.mubr.bf16.gmra.mrb[0].mxu0 %v8565
    %v10263 = vpop.f32.mrb[0].mxu0
    %v10264 = vadd.f32 %v8838, %v10263
    %v10265 = vpop.f32.mrb[0].mxu0
    %v10266 = vadd.f32 %v8842, %v10265
    %v10267 = vpop.f32.mrb[0].mxu0
    %v10268 = vpop.f32.mrb[0].mxu0
    %10269 = vdwg.mxu0
    %10270 = vmatprep.subr.bf16.mxu0 %v9766
    %10271 = vmatpush1.bf16.msra.mxu0 %v9765
    %10272 = vmatprep.subr.bf16.mxu0 %v9774
    %10273 = vmatpush1.bf16.msra.mxu0 %v9773
    %10274 = vmatprep.subr.bf16.mxu0 %v9782
    %10275 = vmatpush1.bf16.msra.mxu0 %v9781
    %10276 = vmatprep.subr.bf16.mxu0 %v9790
    %10277 = vmatpush1.bf16.msra.mxu0 %v9789
    %10278 = vmatprep.subr.bf16.mxu0 %v9798
    %10279 = vmatpush1.bf16.msra.mxu0 %v9797
    %10280 = vmatprep.subr.bf16.mxu0 %v9806
    %10281 = vmatpush1.bf16.msra.mxu0 %v9805
    %10282 = vmatprep.subr.bf16.mxu0 %v9814
    %10283 = vmatpush1.bf16.msra.mxu0 %v9813
    %10284 = vmatprep.subr.bf16.mxu0 %v9822
    %10285 = vmatpush1.bf16.msra.mxu0 %v9821
    %10286 = vmatprep.subr.bf16.mxu0 %v9830
    %10287 = vmatpush1.bf16.msra.mxu0 %v9829
    %10288 = vmatprep.subr.bf16.mxu0 %v9838
    %10289 = vmatpush1.bf16.msra.mxu0 %v9837
    %10290 = vmatprep.subr.bf16.mxu0 %v9846
    %10291 = vmatpush1.bf16.msra.mxu0 %v9845
    %10292 = vmatprep.subr.bf16.mxu0 %v9854
    %10293 = vmatpush1.bf16.msra.mxu0 %v9853
    %10294 = vmatprep.subr.bf16.mxu0 %v9862
    %10295 = vmatpush1.bf16.msra.mxu0 %v9861
    %10296 = vmatprep.subr.bf16.mxu0 %v9870
    %10297 = vmatpush1.bf16.msra.mxu0 %v9869
    %10298 = vmatprep.subr.bf16.mxu0 %v9878
    %10299 = vmatpush1.bf16.msra.mxu0 %v9877
    %10300 = vmatprep.subr.bf16.mxu0 %v9886
    %10301 = vmatpush1.bf16.msra.mxu0 %v9885
    %10302 = vmatprep.mubr.bf16.mxu0 %v8568
    %10303 = vmatmul.mubr.bf16.gmra.mrb[0].mxu0 %v8567
    %v10304 = vpop.f32.mrb[0].mxu0
    %v10305 = vadd.f32 %v10264, %v10304
    %v10306 = vpop.f32.mrb[0].mxu0
    %v10307 = vadd.f32 %v10266, %v10306
    %v10308 = vpop.f32.mrb[0].mxu0
    %v10309 = vpop.f32.mrb[0].mxu0
    %10310 = vdwg.mxu0
    %10311 = vmatprep.subr.bf16.mxu0 %v9640
    %10312 = vmatpush1.bf16.msra.mxu0 %v9639
    %10313 = vmatprep.subr.bf16.mxu0 %v9648
    %10314 = vmatpush1.bf16.msra.mxu0 %v9647
    %10315 = vmatprep.subr.bf16.mxu0 %v9656
    %10316 = vmatpush1.bf16.msra.mxu0 %v9655
    %10317 = vmatprep.subr.bf16.mxu0 %v9664
    %10318 = vmatpush1.bf16.msra.mxu0 %v9663
    %10319 = vmatprep.subr.bf16.mxu0 %v9672
    %10320 = vmatpush1.bf16.msra.mxu0 %v9671
    %10321 = vmatprep.subr.bf16.mxu0 %v9680
    %10322 = vmatpush1.bf16.msra.mxu0 %v9679
    %10323 = vmatprep.subr.bf16.mxu0 %v9688
    %10324 = vmatpush1.bf16.msra.mxu0 %v9687
    %10325 = vmatprep.subr.bf16.mxu0 %v9696
    %10326 = vmatpush1.bf16.msra.mxu0 %v9695
    %10327 = vmatprep.subr.bf16.mxu0 %v9704
    %10328 = vmatpush1.bf16.msra.mxu0 %v9703
    %10329 = vmatprep.subr.bf16.mxu0 %v9712
    %10330 = vmatpush1.bf16.msra.mxu0 %v9711
    %10331 = vmatprep.subr.bf16.mxu0 %v9720
    %10332 = vmatpush1.bf16.msra.mxu0 %v9719
    %10333 = vmatprep.subr.bf16.mxu0 %v9728
    %10334 = vmatpush1.bf16.msra.mxu0 %v9727
    %10335 = vmatprep.subr.bf16.mxu0 %v9736
    %10336 = vmatpush1.bf16.msra.mxu0 %v9735
    %10337 = vmatprep.subr.bf16.mxu0 %v9744
    %10338 = vmatpush1.bf16.msra.mxu0 %v9743
    %10339 = vmatprep.subr.bf16.mxu0 %v9752
    %10340 = vmatpush1.bf16.msra.mxu0 %v9751
    %10341 = vmatprep.subr.bf16.mxu0 %v9760
    %10342 = vmatpush1.bf16.msra.mxu0 %v9759
    %10343 = vmatprep.mubr.bf16.mxu0 %v8566
    %10344 = vmatmul.mubr.bf16.gmra.mrb[0].mxu0 %v8565
    %v10345 = vpop.f32.mrb[0].mxu0
    %v10346 = vadd.f32 %v8846, %v10345
    %v10347 = vpop.f32.mrb[0].mxu0
    %v10348 = vadd.f32 %v8850, %v10347
    %v10349 = vpop.f32.mrb[0].mxu0
    %v10350 = vpop.f32.mrb[0].mxu0
    %10351 = vdwg.mxu0
    %10352 = vmatprep.subr.bf16.mxu0 %v9768
    %10353 = vmatpush1.bf16.msra.mxu0 %v9767
    %10354 = vmatprep.subr.bf16.mxu0 %v9776
    %10355 = vmatpush1.bf16.msra.mxu0 %v9775
    %10356 = vmatprep.subr.bf16.mxu0 %v9784
    %10357 = vmatpush1.bf16.msra.mxu0 %v9783
    %10358 = vmatprep.subr.bf16.mxu0 %v9792
    %10359 = vmatpush1.bf16.msra.mxu0 %v9791
    %10360 = vmatprep.subr.bf16.mxu0 %v9800
    %10361 = vmatpush1.bf16.msra.mxu0 %v9799
    %10362 = vmatprep.subr.bf16.mxu0 %v9808
    %10363 = vmatpush1.bf16.msra.mxu0 %v9807
    %10364 = vmatprep.subr.bf16.mxu0 %v9816
    %10365 = vmatpush1.bf16.msra.mxu0 %v9815
    %10366 = vmatprep.subr.bf16.mxu0 %v9824
    %10367 = vmatpush1.bf16.msra.mxu0 %v9823
    %10368 = vmatprep.subr.bf16.mxu0 %v9832
    %10369 = vmatpush1.bf16.msra.mxu0 %v9831
    %10370 = vmatprep.subr.bf16.mxu0 %v9840
    %10371 = vmatpush1.bf16.msra.mxu0 %v9839
    %10372 = vmatprep.subr.bf16.mxu0 %v9848
    %10373 = vmatpush1.bf16.msra.mxu0 %v9847
    %10374 = vmatprep.subr.bf16.mxu0 %v9856
    %10375 = vmatpush1.bf16.msra.mxu0 %v9855
    %10376 = vmatprep.subr.bf16.mxu0 %v9864
    %10377 = vmatpush1.bf16.msra.mxu0 %v9863
    %10378 = vmatprep.subr.bf16.mxu0 %v9872
    %10379 = vmatpush1.bf16.msra.mxu0 %v9871
    %10380 = vmatprep.subr.bf16.mxu0 %v9880
    %10381 = vmatpush1.bf16.msra.mxu0 %v9879
    %10382 = vmatprep.subr.bf16.mxu0 %v9888
    %10383 = vmatpush1.bf16.msra.mxu0 %v9887
    %10384 = vmatprep.mubr.bf16.mxu0 %v8568
    %10385 = vmatmul.mubr.bf16.gmra.mrb[0].mxu0 %v8567
    %v10386 = vpop.f32.mrb[0].mxu0
    %v10387 = vadd.f32 %v10346, %v10386
    %v10388 = vpop.f32.mrb[0].mxu0
    %v10389 = vadd.f32 %v10348, %v10388
    %v10390 = vpop.f32.mrb[0].mxu0
    %v10391 = vpop.f32.mrb[0].mxu0
    %10392 = vdwg.mxu0
    %10393 = vmatprep.subr.bf16.mxu0 %v9642
    %10394 = vmatpush1.bf16.msra.mxu0 %v9641
    %10395 = vmatprep.subr.bf16.mxu0 %v9650
    %10396 = vmatpush1.bf16.msra.mxu0 %v9649
    %10397 = vmatprep.subr.bf16.mxu0 %v9658
    %10398 = vmatpush1.bf16.msra.mxu0 %v9657
    %10399 = vmatprep.subr.bf16.mxu0 %v9666
    %10400 = vmatpush1.bf16.msra.mxu0 %v9665
    %10401 = vmatprep.subr.bf16.mxu0 %v9674
    %10402 = vmatpush1.bf16.msra.mxu0 %v9673
    %10403 = vmatprep.subr.bf16.mxu0 %v9682
    %10404 = vmatpush1.bf16.msra.mxu0 %v9681
    %10405 = vmatprep.subr.bf16.mxu0 %v9690
    %10406 = vmatpush1.bf16.msra.mxu0 %v9689
    %10407 = vmatprep.subr.bf16.mxu0 %v9698
    %10408 = vmatpush1.bf16.msra.mxu0 %v9697
    %10409 = vmatprep.subr.bf16.mxu0 %v9706
    %10410 = vmatpush1.bf16.msra.mxu0 %v9705
    %10411 = vmatprep.subr.bf16.mxu0 %v9714
    %10412 = vmatpush1.bf16.msra.mxu0 %v9713
    %10413 = vmatprep.subr.bf16.mxu0 %v9722
    %10414 = vmatpush1.bf16.msra.mxu0 %v9721
    %10415 = vmatprep.subr.bf16.mxu0 %v9730
    %10416 = vmatpush1.bf16.msra.mxu0 %v9729
    %10417 = vmatprep.subr.bf16.mxu0 %v9738
    %10418 = vmatpush1.bf16.msra.mxu0 %v9737
    %10419 = vmatprep.subr.bf16.mxu0 %v9746
    %10420 = vmatpush1.bf16.msra.mxu0 %v9745
    %10421 = vmatprep.subr.bf16.mxu0 %v9754
    %10422 = vmatpush1.bf16.msra.mxu0 %v9753
    %10423 = vmatprep.subr.bf16.mxu0 %v9762
    %10424 = vmatpush1.bf16.msra.mxu0 %v9761
    %10425 = vmatprep.mubr.bf16.mxu0 %v8566
    %10426 = vmatmul.mubr.bf16.gmra.mrb[0].mxu0 %v8565
    %v10427 = vpop.f32.mrb[0].mxu0
    %v10428 = vadd.f32 %v8854, %v10427
    %v10429 = vpop.f32.mrb[0].mxu0
    %v10430 = vadd.f32 %v8858, %v10429
    %v10431 = vpop.f32.mrb[0].mxu0
    %v10432 = vpop.f32.mrb[0].mxu0
    %10433 = vdwg.mxu0
    %10434 = vmatprep.subr.bf16.mxu0 %v9770
    %10435 = vmatpush1.bf16.msra.mxu0 %v9769
    %10436 = vmatprep.subr.bf16.mxu0 %v9778
    %10437 = vmatpush1.bf16.msra.mxu0 %v9777
    %10438 = vmatprep.subr.bf16.mxu0 %v9786
    %10439 = vmatpush1.bf16.msra.mxu0 %v9785
    %10440 = vmatprep.subr.bf16.mxu0 %v9794
    %10441 = vmatpush1.bf16.msra.mxu0 %v9793
    %10442 = vmatprep.subr.bf16.mxu0 %v9802
    %10443 = vmatpush1.bf16.msra.mxu0 %v9801
    %10444 = vmatprep.subr.bf16.mxu0 %v9810
    %10445 = vmatpush1.bf16.msra.mxu0 %v9809
    %10446 = vmatprep.subr.bf16.mxu0 %v9818
    %10447 = vmatpush1.bf16.msra.mxu0 %v9817
    %10448 = vmatprep.subr.bf16.mxu0 %v9826
    %10449 = vmatpush1.bf16.msra.mxu0 %v9825
    %10450 = vmatprep.subr.bf16.mxu0 %v9834
    %10451 = vmatpush1.bf16.msra.mxu0 %v9833
    %10452 = vmatprep.subr.bf16.mxu0 %v9842
    %10453 = vmatpush1.bf16.msra.mxu0 %v9841
    %10454 = vmatprep.subr.bf16.mxu0 %v9850
    %10455 = vmatpush1.bf16.msra.mxu0 %v9849
    %10456 = vmatprep.subr.bf16.mxu0 %v9858
    %10457 = vmatpush1.bf16.msra.mxu0 %v9857
    %10458 = vmatprep.subr.bf16.mxu0 %v9866
    %10459 = vmatpush1.bf16.msra.mxu0 %v9865
    %10460 = vmatprep.subr.bf16.mxu0 %v9874
    %10461 = vmatpush1.bf16.msra.mxu0 %v9873
    %10462 = vmatprep.subr.bf16.mxu0 %v9882
    %10463 = vmatpush1.bf16.msra.mxu0 %v9881
    %10464 = vmatprep.subr.bf16.mxu0 %v9890
    %10465 = vmatpush1.bf16.msra.mxu0 %v9889
    %10466 = vmatprep.mubr.bf16.mxu0 %v8568
    %10467 = vmatmul.mubr.bf16.gmra.mrb[0].mxu0 %v8567
    %v10468 = vpop.f32.mrb[0].mxu0
    %v10469 = vadd.f32 %v10428, %v10468
    %v10470 = vpop.f32.mrb[0].mxu0
    %v10471 = vadd.f32 %v10430, %v10470
    %v10472 = vpop.f32.mrb[0].mxu0
    %v10473 = vpop.f32.mrb[0].mxu0
    %10474 = vdwg.mxu0
    %v10475 = vmax.f32 %v10223, 0.0
    %v10476 = vmax.f32 %v10225, 0.0
    %v10477 = vmax.f32 %v10305, 0.0
    %v10478 = vmax.f32 %v10307, 0.0
    %v10479 = vmax.f32 %v10387, 0.0
    %v10480 = vmax.f32 %v10389, 0.0
    %v10481 = vmax.f32 %v10469, 0.0
    %v10482 = vmax.f32 %v10471, 0.0
    %v10483 = vpack.c.bf16 %v10475, %v10475
    %v10484 = vpack.c.bf16 %v10476, %v10476
    %v10485 = vpack.c.bf16 %v10477, %v10477
    %v10486 = vpack.c.bf16 %v10478, %v10478
    %v10487 = vpack.c.bf16 %v10479, %v10479
    %v10488 = vpack.c.bf16 %v10480, %v10480
    %v10489 = vpack.c.bf16 %v10481, %v10481
    %v10490 = vpack.c.bf16 %v10482, %v10482
    %v10491 = vld [vmem:[%s7] sm:$0xff]
    %v10492 = vld [vmem:[%s7 + $0x8] sm:$0xff]
    %v10493 = vld [vmem:[%s7 + $0x10] sm:$0xff]
    %v10494 = vld [vmem:[%s7 + $0x18] sm:$0xff]
    %v10495 = vld [vmem:[%s7 + $0x20] sm:$0xff]
    %v10496 = vld [vmem:[%s7 + $0x28] sm:$0xff]
    %v10497 = vld [vmem:[%s7 + $0x30] sm:$0xff]
    %v10498 = vld [vmem:[%s7 + $0x38] sm:$0xff]
    %v10499 = vld [vmem:[%s7 + $0x40] sm:$0xff]
    %v10500 = vld [vmem:[%s7 + $0x48] sm:$0xff]
    %v10501 = vld [vmem:[%s7 + $0x50] sm:$0xff]
    %v10502 = vld [vmem:[%s7 + $0x58] sm:$0xff]
    %v10503 = vld [vmem:[%s7 + $0x60] sm:$0xff]
    %v10504 = vld [vmem:[%s7 + $0x68] sm:$0xff]
    %v10505 = vld [vmem:[%s7 + $0x70] sm:$0xff]
    %v10506 = vld [vmem:[%s7 + $0x78] sm:$0xff]
    %v10507 = vld [vmem:[%s7 + $0x80] sm:$0xff]
    %v10508 = vld [vmem:[%s7 + $0x88] sm:$0xff]
    %v10509 = vld [vmem:[%s7 + $0x90] sm:$0xff]
    %v10510 = vld [vmem:[%s7 + $0x98] sm:$0xff]
    %v10511 = vld [vmem:[%s7 + $0xa0] sm:$0xff]
    %v10512 = vld [vmem:[%s7 + $0xa8] sm:$0xff]
    %v10513 = vld [vmem:[%s7 + $0xb0] sm:$0xff]
    %v10514 = vld [vmem:[%s7 + $0xb8] sm:$0xff]
    %v10515 = vld [vmem:[%s7 + $0xc0] sm:$0xff]
    %v10516 = vld [vmem:[%s7 + $0xc8] sm:$0xff]
    %v10517 = vld [vmem:[%s7 + $0xd0] sm:$0xff]
    %v10518 = vld [vmem:[%s7 + $0xd8] sm:$0xff]
    %v10519 = vld [vmem:[%s7 + $0xe0] sm:$0xff]
    %v10520 = vld [vmem:[%s7 + $0xe8] sm:$0xff]
    %v10521 = vld [vmem:[%s7 + $0xf0] sm:$0xff]
    %v10522 = vld [vmem:[%s7 + $0xf8] sm:$0xff]
    %v10523 = vld [vmem:[%s7 + $0x100] sm:$0xff]
    %v10524 = vld [vmem:[%s7 + $0x108] sm:$0xff]
    %v10525 = vld [vmem:[%s7 + $0x110] sm:$0xff]
    %v10526 = vld [vmem:[%s7 + $0x118] sm:$0xff]
    %v10527 = vld [vmem:[%s7 + $0x120] sm:$0xff]
    %v10528 = vld [vmem:[%s7 + $0x128] sm:$0xff]
    %v10529 = vld [vmem:[%s7 + $0x130] sm:$0xff]
    %v10530 = vld [vmem:[%s7 + $0x138] sm:$0xff]
    %v10531 = vld [vmem:[%s7 + $0x140] sm:$0xff]
    %v10532 = vld [vmem:[%s7 + $0x148] sm:$0xff]
    %v10533 = vld [vmem:[%s7 + $0x150] sm:$0xff]
    %v10534 = vld [vmem:[%s7 + $0x158] sm:$0xff]
    %v10535 = vld [vmem:[%s7 + $0x160] sm:$0xff]
    %v10536 = vld [vmem:[%s7 + $0x168] sm:$0xff]
    %v10537 = vld [vmem:[%s7 + $0x170] sm:$0xff]
    %v10538 = vld [vmem:[%s7 + $0x178] sm:$0xff]
    %v10539 = vld [vmem:[%s7 + $0x180] sm:$0xff]
    %v10540 = vld [vmem:[%s7 + $0x188] sm:$0xff]
    %v10541 = vld [vmem:[%s7 + $0x190] sm:$0xff]
    %v10542 = vld [vmem:[%s7 + $0x198] sm:$0xff]
    %v10543 = vld [vmem:[%s7 + $0x1a0] sm:$0xff]
    %v10544 = vld [vmem:[%s7 + $0x1a8] sm:$0xff]
    %v10545 = vld [vmem:[%s7 + $0x1b0] sm:$0xff]
    %v10546 = vld [vmem:[%s7 + $0x1b8] sm:$0xff]
    %v10547 = vld [vmem:[%s7 + $0x1c0] sm:$0xff]
    %v10548 = vld [vmem:[%s7 + $0x1c8] sm:$0xff]
    %v10549 = vld [vmem:[%s7 + $0x1d0] sm:$0xff]
    %v10550 = vld [vmem:[%s7 + $0x1d8] sm:$0xff]
    %v10551 = vld [vmem:[%s7 + $0x1e0] sm:$0xff]
    %v10552 = vld [vmem:[%s7 + $0x1e8] sm:$0xff]
    %v10553 = vld [vmem:[%s7 + $0x1f0] sm:$0xff]
    %v10554 = vld [vmem:[%s7 + $0x1f8] sm:$0xff]
    %v10555 = vld [vmem:[%s7 + $0x200] sm:$0xff]
    %v10556 = vld [vmem:[%s7 + $0x208] sm:$0xff]
    %v10557 = vld [vmem:[%s7 + $0x210] sm:$0xff]
    %v10558 = vld [vmem:[%s7 + $0x218] sm:$0xff]
    %v10559 = vld [vmem:[%s7 + $0x220] sm:$0xff]
    %v10560 = vld [vmem:[%s7 + $0x228] sm:$0xff]
    %v10561 = vld [vmem:[%s7 + $0x230] sm:$0xff]
    %v10562 = vld [vmem:[%s7 + $0x238] sm:$0xff]
    %v10563 = vld [vmem:[%s7 + $0x240] sm:$0xff]
    %v10564 = vld [vmem:[%s7 + $0x248] sm:$0xff]
    %v10565 = vld [vmem:[%s7 + $0x250] sm:$0xff]
    %v10566 = vld [vmem:[%s7 + $0x258] sm:$0xff]
    %v10567 = vld [vmem:[%s7 + $0x260] sm:$0xff]
    %v10568 = vld [vmem:[%s7 + $0x268] sm:$0xff]
    %v10569 = vld [vmem:[%s7 + $0x270] sm:$0xff]
    %v10570 = vld [vmem:[%s7 + $0x278] sm:$0xff]
    %v10571 = vld [vmem:[%s7 + $0x280] sm:$0xff]
    %v10572 = vld [vmem:[%s7 + $0x288] sm:$0xff]
    %v10573 = vld [vmem:[%s7 + $0x290] sm:$0xff]
    %v10574 = vld [vmem:[%s7 + $0x298] sm:$0xff]
    %v10575 = vld [vmem:[%s7 + $0x2a0] sm:$0xff]
    %v10576 = vld [vmem:[%s7 + $0x2a8] sm:$0xff]
    %v10577 = vld [vmem:[%s7 + $0x2b0] sm:$0xff]
    %v10578 = vld [vmem:[%s7 + $0x2b8] sm:$0xff]
    %v10579 = vld [vmem:[%s7 + $0x2c0] sm:$0xff]
    %v10580 = vld [vmem:[%s7 + $0x2c8] sm:$0xff]
    %v10581 = vld [vmem:[%s7 + $0x2d0] sm:$0xff]
    %v10582 = vld [vmem:[%s7 + $0x2d8] sm:$0xff]
    %v10583 = vld [vmem:[%s7 + $0x2e0] sm:$0xff]
    %v10584 = vld [vmem:[%s7 + $0x2e8] sm:$0xff]
    %v10585 = vld [vmem:[%s7 + $0x2f0] sm:$0xff]
    %v10586 = vld [vmem:[%s7 + $0x2f8] sm:$0xff]
    %v10587 = vld [vmem:[%s7 + $0x300] sm:$0xff]
    %v10588 = vld [vmem:[%s7 + $0x308] sm:$0xff]
    %v10589 = vld [vmem:[%s7 + $0x310] sm:$0xff]
    %v10590 = vld [vmem:[%s7 + $0x318] sm:$0xff]
    %v10591 = vld [vmem:[%s7 + $0x320] sm:$0xff]
    %v10592 = vld [vmem:[%s7 + $0x328] sm:$0xff]
    %v10593 = vld [vmem:[%s7 + $0x330] sm:$0xff]
    %v10594 = vld [vmem:[%s7 + $0x338] sm:$0xff]
    %v10595 = vld [vmem:[%s7 + $0x340] sm:$0xff]
    %v10596 = vld [vmem:[%s7 + $0x348] sm:$0xff]
    %v10597 = vld [vmem:[%s7 + $0x350] sm:$0xff]
    %v10598 = vld [vmem:[%s7 + $0x358] sm:$0xff]
    %v10599 = vld [vmem:[%s7 + $0x360] sm:$0xff]
    %v10600 = vld [vmem:[%s7 + $0x368] sm:$0xff]
    %v10601 = vld [vmem:[%s7 + $0x370] sm:$0xff]
    %v10602 = vld [vmem:[%s7 + $0x378] sm:$0xff]
    %v10603 = vld [vmem:[%s7 + $0x380] sm:$0xff]
    %v10604 = vld [vmem:[%s7 + $0x388] sm:$0xff]
    %v10605 = vld [vmem:[%s7 + $0x390] sm:$0xff]
    %v10606 = vld [vmem:[%s7 + $0x398] sm:$0xff]
    %v10607 = vld [vmem:[%s7 + $0x3a0] sm:$0xff]
    %v10608 = vld [vmem:[%s7 + $0x3a8] sm:$0xff]
    %v10609 = vld [vmem:[%s7 + $0x3b0] sm:$0xff]
    %v10610 = vld [vmem:[%s7 + $0x3b8] sm:$0xff]
    %v10611 = vld [vmem:[%s7 + $0x3c0] sm:$0xff]
    %v10612 = vld [vmem:[%s7 + $0x3c8] sm:$0xff]
    %v10613 = vld [vmem:[%s7 + $0x3d0] sm:$0xff]
    %v10614 = vld [vmem:[%s7 + $0x3d8] sm:$0xff]
    %v10615 = vld [vmem:[%s7 + $0x3e0] sm:$0xff]
    %v10616 = vld [vmem:[%s7 + $0x3e8] sm:$0xff]
    %v10617 = vld [vmem:[%s7 + $0x3f0] sm:$0xff]
    %v10618 = vld [vmem:[%s7 + $0x3f8] sm:$0xff]
    %v10619 = vld [vmem:[%s8] sm:$0x3]
    %v10621 = vlaneseq
    %v10622 = vshrl.u32 %v10621, 7
    %v10623 = vsub.s32 0, %v10622
    %v10624 = vrot.slane %v10619, %v10623
    %v10625 = vlaneseq
    %v10626 = vshrl.u32 %v10625, 7
    %v10627 = vsub.s32 1, %v10626
    %v10628 = vrot.slane %v10619, %v10627
    %v10759 = vunpack.c.l.b16 %v10491
    %v10760 = vunpack.c.h.b16 %v10491
    %v10761 = vunpack.c.l.b16 %v10492
    %v10762 = vunpack.c.h.b16 %v10492
    %v10763 = vunpack.c.l.b16 %v10493
    %v10764 = vunpack.c.h.b16 %v10493
    %v10765 = vunpack.c.l.b16 %v10494
    %v10766 = vunpack.c.h.b16 %v10494
    %v10767 = vunpack.c.l.b16 %v10495
    %v10768 = vunpack.c.h.b16 %v10495
    %v10769 = vunpack.c.l.b16 %v10496
    %v10770 = vunpack.c.h.b16 %v10496
    %v10771 = vunpack.c.l.b16 %v10497
    %v10772 = vunpack.c.h.b16 %v10497
    %v10773 = vunpack.c.l.b16 %v10498
    %v10774 = vunpack.c.h.b16 %v10498
    %v10775 = vunpack.c.l.b16 %v10499
    %v10776 = vunpack.c.h.b16 %v10499
    %v10777 = vunpack.c.l.b16 %v10500
    %v10778 = vunpack.c.h.b16 %v10500
    %v10779 = vunpack.c.l.b16 %v10501
    %v10780 = vunpack.c.h.b16 %v10501
    %v10781 = vunpack.c.l.b16 %v10502
    %v10782 = vunpack.c.h.b16 %v10502
    %v10783 = vunpack.c.l.b16 %v10503
    %v10784 = vunpack.c.h.b16 %v10503
    %v10785 = vunpack.c.l.b16 %v10504
    %v10786 = vunpack.c.h.b16 %v10504
    %v10787 = vunpack.c.l.b16 %v10505
    %v10788 = vunpack.c.h.b16 %v10505
    %v10789 = vunpack.c.l.b16 %v10506
    %v10790 = vunpack.c.h.b16 %v10506
    %v10791 = vunpack.c.l.b16 %v10507
    %v10792 = vunpack.c.h.b16 %v10507
    %v10793 = vunpack.c.l.b16 %v10508
    %v10794 = vunpack.c.h.b16 %v10508
    %v10795 = vunpack.c.l.b16 %v10509
    %v10796 = vunpack.c.h.b16 %v10509
    %v10797 = vunpack.c.l.b16 %v10510
    %v10798 = vunpack.c.h.b16 %v10510
    %v10799 = vunpack.c.l.b16 %v10511
    %v10800 = vunpack.c.h.b16 %v10511
    %v10801 = vunpack.c.l.b16 %v10512
    %v10802 = vunpack.c.h.b16 %v10512
    %v10803 = vunpack.c.l.b16 %v10513
    %v10804 = vunpack.c.h.b16 %v10513
    %v10805 = vunpack.c.l.b16 %v10514
    %v10806 = vunpack.c.h.b16 %v10514
    %v10807 = vunpack.c.l.b16 %v10515
    %v10808 = vunpack.c.h.b16 %v10515
    %v10809 = vunpack.c.l.b16 %v10516
    %v10810 = vunpack.c.h.b16 %v10516
    %v10811 = vunpack.c.l.b16 %v10517
    %v10812 = vunpack.c.h.b16 %v10517
    %v10813 = vunpack.c.l.b16 %v10518
    %v10814 = vunpack.c.h.b16 %v10518
    %v10815 = vunpack.c.l.b16 %v10519
    %v10816 = vunpack.c.h.b16 %v10519
    %v10817 = vunpack.c.l.b16 %v10520
    %v10818 = vunpack.c.h.b16 %v10520
    %v10819 = vunpack.c.l.b16 %v10521
    %v10820 = vunpack.c.h.b16 %v10521
    %v10821 = vunpack.c.l.b16 %v10522
    %v10822 = vunpack.c.h.b16 %v10522
    %v10823 = vunpack.c.l.b16 %v10523
    %v10824 = vunpack.c.h.b16 %v10523
    %v10825 = vunpack.c.l.b16 %v10524
    %v10826 = vunpack.c.h.b16 %v10524
    %v10827 = vunpack.c.l.b16 %v10525
    %v10828 = vunpack.c.h.b16 %v10525
    %v10829 = vunpack.c.l.b16 %v10526
    %v10830 = vunpack.c.h.b16 %v10526
    %v10831 = vunpack.c.l.b16 %v10527
    %v10832 = vunpack.c.h.b16 %v10527
    %v10833 = vunpack.c.l.b16 %v10528
    %v10834 = vunpack.c.h.b16 %v10528
    %v10835 = vunpack.c.l.b16 %v10529
    %v10836 = vunpack.c.h.b16 %v10529
    %v10837 = vunpack.c.l.b16 %v10530
    %v10838 = vunpack.c.h.b16 %v10530
    %v10839 = vunpack.c.l.b16 %v10531
    %v10840 = vunpack.c.h.b16 %v10531
    %v10841 = vunpack.c.l.b16 %v10532
    %v10842 = vunpack.c.h.b16 %v10532
    %v10843 = vunpack.c.l.b16 %v10533
    %v10844 = vunpack.c.h.b16 %v10533
    %v10845 = vunpack.c.l.b16 %v10534
    %v10846 = vunpack.c.h.b16 %v10534
    %v10847 = vunpack.c.l.b16 %v10535
    %v10848 = vunpack.c.h.b16 %v10535
    %v10849 = vunpack.c.l.b16 %v10536
    %v10850 = vunpack.c.h.b16 %v10536
    %v10851 = vunpack.c.l.b16 %v10537
    %v10852 = vunpack.c.h.b16 %v10537
    %v10853 = vunpack.c.l.b16 %v10538
    %v10854 = vunpack.c.h.b16 %v10538
    %v10855 = vunpack.c.l.b16 %v10539
    %v10856 = vunpack.c.h.b16 %v10539
    %v10857 = vunpack.c.l.b16 %v10540
    %v10858 = vunpack.c.h.b16 %v10540
    %v10859 = vunpack.c.l.b16 %v10541
    %v10860 = vunpack.c.h.b16 %v10541
    %v10861 = vunpack.c.l.b16 %v10542
    %v10862 = vunpack.c.h.b16 %v10542
    %v10863 = vunpack.c.l.b16 %v10543
    %v10864 = vunpack.c.h.b16 %v10543
    %v10865 = vunpack.c.l.b16 %v10544
    %v10866 = vunpack.c.h.b16 %v10544
    %v10867 = vunpack.c.l.b16 %v10545
    %v10868 = vunpack.c.h.b16 %v10545
    %v10869 = vunpack.c.l.b16 %v10546
    %v10870 = vunpack.c.h.b16 %v10546
    %v10871 = vunpack.c.l.b16 %v10547
    %v10872 = vunpack.c.h.b16 %v10547
    %v10873 = vunpack.c.l.b16 %v10548
    %v10874 = vunpack.c.h.b16 %v10548
    %v10875 = vunpack.c.l.b16 %v10549
    %v10876 = vunpack.c.h.b16 %v10549
    %v10877 = vunpack.c.l.b16 %v10550
    %v10878 = vunpack.c.h.b16 %v10550
    %v10879 = vunpack.c.l.b16 %v10551
    %v10880 = vunpack.c.h.b16 %v10551
    %v10881 = vunpack.c.l.b16 %v10552
    %v10882 = vunpack.c.h.b16 %v10552
    %v10883 = vunpack.c.l.b16 %v10553
    %v10884 = vunpack.c.h.b16 %v10553
    %v10885 = vunpack.c.l.b16 %v10554
    %v10886 = vunpack.c.h.b16 %v10554
    %v10887 = vunpack.c.l.b16 %v10555
    %v10888 = vunpack.c.h.b16 %v10555
    %v10889 = vunpack.c.l.b16 %v10556
    %v10890 = vunpack.c.h.b16 %v10556
    %v10891 = vunpack.c.l.b16 %v10557
    %v10892 = vunpack.c.h.b16 %v10557
    %v10893 = vunpack.c.l.b16 %v10558
    %v10894 = vunpack.c.h.b16 %v10558
    %v10895 = vunpack.c.l.b16 %v10559
    %v10896 = vunpack.c.h.b16 %v10559
    %v10897 = vunpack.c.l.b16 %v10560
    %v10898 = vunpack.c.h.b16 %v10560
    %v10899 = vunpack.c.l.b16 %v10561
    %v10900 = vunpack.c.h.b16 %v10561
    %v10901 = vunpack.c.l.b16 %v10562
    %v10902 = vunpack.c.h.b16 %v10562
    %v10903 = vunpack.c.l.b16 %v10563
    %v10904 = vunpack.c.h.b16 %v10563
    %v10905 = vunpack.c.l.b16 %v10564
    %v10906 = vunpack.c.h.b16 %v10564
    %v10907 = vunpack.c.l.b16 %v10565
    %v10908 = vunpack.c.h.b16 %v10565
    %v10909 = vunpack.c.l.b16 %v10566
    %v10910 = vunpack.c.h.b16 %v10566
    %v10911 = vunpack.c.l.b16 %v10567
    %v10912 = vunpack.c.h.b16 %v10567
    %v10913 = vunpack.c.l.b16 %v10568
    %v10914 = vunpack.c.h.b16 %v10568
    %v10915 = vunpack.c.l.b16 %v10569
    %v10916 = vunpack.c.h.b16 %v10569
    %v10917 = vunpack.c.l.b16 %v10570
    %v10918 = vunpack.c.h.b16 %v10570
    %v10919 = vunpack.c.l.b16 %v10571
    %v10920 = vunpack.c.h.b16 %v10571
    %v10921 = vunpack.c.l.b16 %v10572
    %v10922 = vunpack.c.h.b16 %v10572
    %v10923 = vunpack.c.l.b16 %v10573
    %v10924 = vunpack.c.h.b16 %v10573
    %v10925 = vunpack.c.l.b16 %v10574
    %v10926 = vunpack.c.h.b16 %v10574
    %v10927 = vunpack.c.l.b16 %v10575
    %v10928 = vunpack.c.h.b16 %v10575
    %v10929 = vunpack.c.l.b16 %v10576
    %v10930 = vunpack.c.h.b16 %v10576
    %v10931 = vunpack.c.l.b16 %v10577
    %v10932 = vunpack.c.h.b16 %v10577
    %v10933 = vunpack.c.l.b16 %v10578
    %v10934 = vunpack.c.h.b16 %v10578
    %v10935 = vunpack.c.l.b16 %v10579
    %v10936 = vunpack.c.h.b16 %v10579
    %v10937 = vunpack.c.l.b16 %v10580
    %v10938 = vunpack.c.h.b16 %v10580
    %v10939 = vunpack.c.l.b16 %v10581
    %v10940 = vunpack.c.h.b16 %v10581
    %v10941 = vunpack.c.l.b16 %v10582
    %v10942 = vunpack.c.h.b16 %v10582
    %v10943 = vunpack.c.l.b16 %v10583
    %v10944 = vunpack.c.h.b16 %v10583
    %v10945 = vunpack.c.l.b16 %v10584
    %v10946 = vunpack.c.h.b16 %v10584
    %v10947 = vunpack.c.l.b16 %v10585
    %v10948 = vunpack.c.h.b16 %v10585
    %v10949 = vunpack.c.l.b16 %v10586
    %v10950 = vunpack.c.h.b16 %v10586
    %v10951 = vunpack.c.l.b16 %v10587
    %v10952 = vunpack.c.h.b16 %v10587
    %v10953 = vunpack.c.l.b16 %v10588
    %v10954 = vunpack.c.h.b16 %v10588
    %v10955 = vunpack.c.l.b16 %v10589
    %v10956 = vunpack.c.h.b16 %v10589
    %v10957 = vunpack.c.l.b16 %v10590
    %v10958 = vunpack.c.h.b16 %v10590
    %v10959 = vunpack.c.l.b16 %v10591
    %v10960 = vunpack.c.h.b16 %v10591
    %v10961 = vunpack.c.l.b16 %v10592
    %v10962 = vunpack.c.h.b16 %v10592
    %v10963 = vunpack.c.l.b16 %v10593
    %v10964 = vunpack.c.h.b16 %v10593
    %v10965 = vunpack.c.l.b16 %v10594
    %v10966 = vunpack.c.h.b16 %v10594
    %v10967 = vunpack.c.l.b16 %v10595
    %v10968 = vunpack.c.h.b16 %v10595
    %v10969 = vunpack.c.l.b16 %v10596
    %v10970 = vunpack.c.h.b16 %v10596
    %v10971 = vunpack.c.l.b16 %v10597
    %v10972 = vunpack.c.h.b16 %v10597
    %v10973 = vunpack.c.l.b16 %v10598
    %v10974 = vunpack.c.h.b16 %v10598
    %v10975 = vunpack.c.l.b16 %v10599
    %v10976 = vunpack.c.h.b16 %v10599
    %v10977 = vunpack.c.l.b16 %v10600
    %v10978 = vunpack.c.h.b16 %v10600
    %v10979 = vunpack.c.l.b16 %v10601
    %v10980 = vunpack.c.h.b16 %v10601
    %v10981 = vunpack.c.l.b16 %v10602
    %v10982 = vunpack.c.h.b16 %v10602
    %v10983 = vunpack.c.l.b16 %v10603
    %v10984 = vunpack.c.h.b16 %v10603
    %v10985 = vunpack.c.l.b16 %v10604
    %v10986 = vunpack.c.h.b16 %v10604
    %v10987 = vunpack.c.l.b16 %v10605
    %v10988 = vunpack.c.h.b16 %v10605
    %v10989 = vunpack.c.l.b16 %v10606
    %v10990 = vunpack.c.h.b16 %v10606
    %v10991 = vunpack.c.l.b16 %v10607
    %v10992 = vunpack.c.h.b16 %v10607
    %v10993 = vunpack.c.l.b16 %v10608
    %v10994 = vunpack.c.h.b16 %v10608
    %v10995 = vunpack.c.l.b16 %v10609
    %v10996 = vunpack.c.h.b16 %v10609
    %v10997 = vunpack.c.l.b16 %v10610
    %v10998 = vunpack.c.h.b16 %v10610
    %v10999 = vunpack.c.l.b16 %v10611
    %v11000 = vunpack.c.h.b16 %v10611
    %v11001 = vunpack.c.l.b16 %v10612
    %v11002 = vunpack.c.h.b16 %v10612
    %v11003 = vunpack.c.l.b16 %v10613
    %v11004 = vunpack.c.h.b16 %v10613
    %v11005 = vunpack.c.l.b16 %v10614
    %v11006 = vunpack.c.h.b16 %v10614
    %v11007 = vunpack.c.l.b16 %v10615
    %v11008 = vunpack.c.h.b16 %v10615
    %v11009 = vunpack.c.l.b16 %v10616
    %v11010 = vunpack.c.h.b16 %v10616
    %v11011 = vunpack.c.l.b16 %v10617
    %v11012 = vunpack.c.h.b16 %v10617
    %v11013 = vunpack.c.l.b16 %v10618
    %v11014 = vunpack.c.h.b16 %v10618
    %v11015 = vpack.c.b16 %v10761, %v10759
    %v11016 = vpack.c.b16 %v10762, %v10760
    %v11017 = vpack.c.b16 %v10765, %v10763
    %v11018 = vpack.c.b16 %v10766, %v10764
    %v11019 = vpack.c.b16 %v10769, %v10767
    %v11020 = vpack.c.b16 %v10770, %v10768
    %v11021 = vpack.c.b16 %v10773, %v10771
    %v11022 = vpack.c.b16 %v10774, %v10772
    %v11023 = vpack.c.b16 %v10777, %v10775
    %v11024 = vpack.c.b16 %v10778, %v10776
    %v11025 = vpack.c.b16 %v10781, %v10779
    %v11026 = vpack.c.b16 %v10782, %v10780
    %v11027 = vpack.c.b16 %v10785, %v10783
    %v11028 = vpack.c.b16 %v10786, %v10784
    %v11029 = vpack.c.b16 %v10789, %v10787
    %v11030 = vpack.c.b16 %v10790, %v10788
    %v11031 = vpack.c.b16 %v10793, %v10791
    %v11032 = vpack.c.b16 %v10794, %v10792
    %v11033 = vpack.c.b16 %v10797, %v10795
    %v11034 = vpack.c.b16 %v10798, %v10796
    %v11035 = vpack.c.b16 %v10801, %v10799
    %v11036 = vpack.c.b16 %v10802, %v10800
    %v11037 = vpack.c.b16 %v10805, %v10803
    %v11038 = vpack.c.b16 %v10806, %v10804
    %v11039 = vpack.c.b16 %v10809, %v10807
    %v11040 = vpack.c.b16 %v10810, %v10808
    %v11041 = vpack.c.b16 %v10813, %v10811
    %v11042 = vpack.c.b16 %v10814, %v10812
    %v11043 = vpack.c.b16 %v10817, %v10815
    %v11044 = vpack.c.b16 %v10818, %v10816
    %v11045 = vpack.c.b16 %v10821, %v10819
    %v11046 = vpack.c.b16 %v10822, %v10820
    %v11047 = vpack.c.b16 %v10825, %v10823
    %v11048 = vpack.c.b16 %v10826, %v10824
    %v11049 = vpack.c.b16 %v10829, %v10827
    %v11050 = vpack.c.b16 %v10830, %v10828
    %v11051 = vpack.c.b16 %v10833, %v10831
    %v11052 = vpack.c.b16 %v10834, %v10832
    %v11053 = vpack.c.b16 %v10837, %v10835
    %v11054 = vpack.c.b16 %v10838, %v10836
    %v11055 = vpack.c.b16 %v10841, %v10839
    %v11056 = vpack.c.b16 %v10842, %v10840
    %v11057 = vpack.c.b16 %v10845, %v10843
    %v11058 = vpack.c.b16 %v10846, %v10844
    %v11059 = vpack.c.b16 %v10849, %v10847
    %v11060 = vpack.c.b16 %v10850, %v10848
    %v11061 = vpack.c.b16 %v10853, %v10851
    %v11062 = vpack.c.b16 %v10854, %v10852
    %v11063 = vpack.c.b16 %v10857, %v10855
    %v11064 = vpack.c.b16 %v10858, %v10856
    %v11065 = vpack.c.b16 %v10861, %v10859
    %v11066 = vpack.c.b16 %v10862, %v10860
    %v11067 = vpack.c.b16 %v10865, %v10863
    %v11068 = vpack.c.b16 %v10866, %v10864
    %v11069 = vpack.c.b16 %v10869, %v10867
    %v11070 = vpack.c.b16 %v10870, %v10868
    %v11071 = vpack.c.b16 %v10873, %v10871
    %v11072 = vpack.c.b16 %v10874, %v10872
    %v11073 = vpack.c.b16 %v10877, %v10875
    %v11074 = vpack.c.b16 %v10878, %v10876
    %v11075 = vpack.c.b16 %v10881, %v10879
    %v11076 = vpack.c.b16 %v10882, %v10880
    %v11077 = vpack.c.b16 %v10885, %v10883
    %v11078 = vpack.c.b16 %v10886, %v10884
    %v11079 = vpack.c.b16 %v10889, %v10887
    %v11080 = vpack.c.b16 %v10890, %v10888
    %v11081 = vpack.c.b16 %v10893, %v10891
    %v11082 = vpack.c.b16 %v10894, %v10892
    %v11083 = vpack.c.b16 %v10897, %v10895
    %v11084 = vpack.c.b16 %v10898, %v10896
    %v11085 = vpack.c.b16 %v10901, %v10899
    %v11086 = vpack.c.b16 %v10902, %v10900
    %v11087 = vpack.c.b16 %v10905, %v10903
    %v11088 = vpack.c.b16 %v10906, %v10904
    %v11089 = vpack.c.b16 %v10909, %v10907
    %v11090 = vpack.c.b16 %v10910, %v10908
    %v11091 = vpack.c.b16 %v10913, %v10911
    %v11092 = vpack.c.b16 %v10914, %v10912
    %v11093 = vpack.c.b16 %v10917, %v10915
    %v11094 = vpack.c.b16 %v10918, %v10916
    %v11095 = vpack.c.b16 %v10921, %v10919
    %v11096 = vpack.c.b16 %v10922, %v10920
    %v11097 = vpack.c.b16 %v10925, %v10923
    %v11098 = vpack.c.b16 %v10926, %v10924
    %v11099 = vpack.c.b16 %v10929, %v10927
    %v11100 = vpack.c.b16 %v10930, %v10928
    %v11101 = vpack.c.b16 %v10933, %v10931
    %v11102 = vpack.c.b16 %v10934, %v10932
    %v11103 = vpack.c.b16 %v10937, %v10935
    %v11104 = vpack.c.b16 %v10938, %v10936
    %v11105 = vpack.c.b16 %v10941, %v10939
    %v11106 = vpack.c.b16 %v10942, %v10940
    %v11107 = vpack.c.b16 %v10945, %v10943
    %v11108 = vpack.c.b16 %v10946, %v10944
    %v11109 = vpack.c.b16 %v10949, %v10947
    %v11110 = vpack.c.b16 %v10950, %v10948
    %v11111 = vpack.c.b16 %v10953, %v10951
    %v11112 = vpack.c.b16 %v10954, %v10952
    %v11113 = vpack.c.b16 %v10957, %v10955
    %v11114 = vpack.c.b16 %v10958, %v10956
    %v11115 = vpack.c.b16 %v10961, %v10959
    %v11116 = vpack.c.b16 %v10962, %v10960
    %v11117 = vpack.c.b16 %v10965, %v10963
    %v11118 = vpack.c.b16 %v10966, %v10964
    %v11119 = vpack.c.b16 %v10969, %v10967
    %v11120 = vpack.c.b16 %v10970, %v10968
    %v11121 = vpack.c.b16 %v10973, %v10971
    %v11122 = vpack.c.b16 %v10974, %v10972
    %v11123 = vpack.c.b16 %v10977, %v10975
    %v11124 = vpack.c.b16 %v10978, %v10976
    %v11125 = vpack.c.b16 %v10981, %v10979
    %v11126 = vpack.c.b16 %v10982, %v10980
    %v11127 = vpack.c.b16 %v10985, %v10983
    %v11128 = vpack.c.b16 %v10986, %v10984
    %v11129 = vpack.c.b16 %v10989, %v10987
    %v11130 = vpack.c.b16 %v10990, %v10988
    %v11131 = vpack.c.b16 %v10993, %v10991
    %v11132 = vpack.c.b16 %v10994, %v10992
    %v11133 = vpack.c.b16 %v10997, %v10995
    %v11134 = vpack.c.b16 %v10998, %v10996
    %v11135 = vpack.c.b16 %v11001, %v10999
    %v11136 = vpack.c.b16 %v11002, %v11000
    %v11137 = vpack.c.b16 %v11005, %v11003
    %v11138 = vpack.c.b16 %v11006, %v11004
    %v11139 = vpack.c.b16 %v11009, %v11007
    %v11140 = vpack.c.b16 %v11010, %v11008
    %v11141 = vpack.c.b16 %v11013, %v11011
    %v11142 = vpack.c.b16 %v11014, %v11012
    %11271 = vmatprep.subr.bf16.mxu0 %v11016
    %11272 = vmatpush1.bf16.msra.mxu0 %v11015
    %11273 = vmatprep.subr.bf16.mxu0 %v11018
    %11274 = vmatpush1.bf16.msra.mxu0 %v11017
    %11275 = vmatprep.subr.bf16.mxu0 %v11020
    %11276 = vmatpush1.bf16.msra.mxu0 %v11019
    %11277 = vmatprep.subr.bf16.mxu0 %v11022
    %11278 = vmatpush1.bf16.msra.mxu0 %v11021
    %11279 = vmatprep.subr.bf16.mxu0 %v11024
    %11280 = vmatpush1.bf16.msra.mxu0 %v11023
    %11281 = vmatprep.subr.bf16.mxu0 %v11026
    %11282 = vmatpush1.bf16.msra.mxu0 %v11025
    %11283 = vmatprep.subr.bf16.mxu0 %v11028
    %11284 = vmatpush1.bf16.msra.mxu0 %v11027
    %11285 = vmatprep.subr.bf16.mxu0 %v11030
    %11286 = vmatpush1.bf16.msra.mxu0 %v11029
    %11287 = vmatprep.subr.bf16.mxu0 %v11032
    %11288 = vmatpush1.bf16.msra.mxu0 %v11031
    %11289 = vmatprep.subr.bf16.mxu0 %v11034
    %11290 = vmatpush1.bf16.msra.mxu0 %v11033
    %11291 = vmatprep.subr.bf16.mxu0 %v11036
    %11292 = vmatpush1.bf16.msra.mxu0 %v11035
    %11293 = vmatprep.subr.bf16.mxu0 %v11038
    %11294 = vmatpush1.bf16.msra.mxu0 %v11037
    %11295 = vmatprep.subr.bf16.mxu0 %v11040
    %11296 = vmatpush1.bf16.msra.mxu0 %v11039
    %11297 = vmatprep.subr.bf16.mxu0 %v11042
    %11298 = vmatpush1.bf16.msra.mxu0 %v11041
    %11299 = vmatprep.subr.bf16.mxu0 %v11044
    %11300 = vmatpush1.bf16.msra.mxu0 %v11043
    %11301 = vmatprep.subr.bf16.mxu0 %v11046
    %11302 = vmatpush1.bf16.msra.mxu0 %v11045
    %11303 = vmatprep.mubr.bf16.mxu0 %v10484
    %11304 = vmatmul.mubr.bf16.gmra.mrb[0].mxu0 %v10483
    %v11305 = vpop.f32.mrb[0].mxu0
    %v11306 = vadd.f32 %v10624, %v11305
    %v11307 = vpop.f32.mrb[0].mxu0
    %v11308 = vadd.f32 %v10628, %v11307
    %v11309 = vpop.f32.mrb[0].mxu0
    %v11310 = vpop.f32.mrb[0].mxu0
    %11311 = vdwg.mxu0
    %11312 = vmatprep.subr.bf16.mxu0 %v11048
    %11313 = vmatpush1.bf16.msra.mxu0 %v11047
    %11314 = vmatprep.subr.bf16.mxu0 %v11050
    %11315 = vmatpush1.bf16.msra.mxu0 %v11049
    %11316 = vmatprep.subr.bf16.mxu0 %v11052
    %11317 = vmatpush1.bf16.msra.mxu0 %v11051
    %11318 = vmatprep.subr.bf16.mxu0 %v11054
    %11319 = vmatpush1.bf16.msra.mxu0 %v11053
    %11320 = vmatprep.subr.bf16.mxu0 %v11056
    %11321 = vmatpush1.bf16.msra.mxu0 %v11055
    %11322 = vmatprep.subr.bf16.mxu0 %v11058
    %11323 = vmatpush1.bf16.msra.mxu0 %v11057
    %11324 = vmatprep.subr.bf16.mxu0 %v11060
    %11325 = vmatpush1.bf16.msra.mxu0 %v11059
    %11326 = vmatprep.subr.bf16.mxu0 %v11062
    %11327 = vmatpush1.bf16.msra.mxu0 %v11061
    %11328 = vmatprep.subr.bf16.mxu0 %v11064
    %11329 = vmatpush1.bf16.msra.mxu0 %v11063
    %11330 = vmatprep.subr.bf16.mxu0 %v11066
    %11331 = vmatpush1.bf16.msra.mxu0 %v11065
    %11332 = vmatprep.subr.bf16.mxu0 %v11068
    %11333 = vmatpush1.bf16.msra.mxu0 %v11067
    %11334 = vmatprep.subr.bf16.mxu0 %v11070
    %11335 = vmatpush1.bf16.msra.mxu0 %v11069
    %11336 = vmatprep.subr.bf16.mxu0 %v11072
    %11337 = vmatpush1.bf16.msra.mxu0 %v11071
    %11338 = vmatprep.subr.bf16.mxu0 %v11074
    %11339 = vmatpush1.bf16.msra.mxu0 %v11073
    %11340 = vmatprep.subr.bf16.mxu0 %v11076
    %11341 = vmatpush1.bf16.msra.mxu0 %v11075
    %11342 = vmatprep.subr.bf16.mxu0 %v11078
    %11343 = vmatpush1.bf16.msra.mxu0 %v11077
    %11344 = vmatprep.mubr.bf16.mxu0 %v10486
    %11345 = vmatmul.mubr.bf16.gmra.mrb[0].mxu0 %v10485
    %v11346 = vpop.f32.mrb[0].mxu0
    %v11347 = vadd.f32 %v11306, %v11346
    %v11348 = vpop.f32.mrb[0].mxu0
    %v11349 = vadd.f32 %v11308, %v11348
    %v11350 = vpop.f32.mrb[0].mxu0
    %v11351 = vpop.f32.mrb[0].mxu0
    %11352 = vdwg.mxu0
    %11353 = vmatprep.subr.bf16.mxu0 %v11080
    %11354 = vmatpush1.bf16.msra.mxu0 %v11079
    %11355 = vmatprep.subr.bf16.mxu0 %v11082
    %11356 = vmatpush1.bf16.msra.mxu0 %v11081
    %11357 = vmatprep.subr.bf16.mxu0 %v11084
    %11358 = vmatpush1.bf16.msra.mxu0 %v11083
    %11359 = vmatprep.subr.bf16.mxu0 %v11086
    %11360 = vmatpush1.bf16.msra.mxu0 %v11085
    %11361 = vmatprep.subr.bf16.mxu0 %v11088
    %11362 = vmatpush1.bf16.msra.mxu0 %v11087
    %11363 = vmatprep.subr.bf16.mxu0 %v11090
    %11364 = vmatpush1.bf16.msra.mxu0 %v11089
    %11365 = vmatprep.subr.bf16.mxu0 %v11092
    %11366 = vmatpush1.bf16.msra.mxu0 %v11091
    %11367 = vmatprep.subr.bf16.mxu0 %v11094
    %11368 = vmatpush1.bf16.msra.mxu0 %v11093
    %11369 = vmatprep.subr.bf16.mxu0 %v11096
    %11370 = vmatpush1.bf16.msra.mxu0 %v11095
    %11371 = vmatprep.subr.bf16.mxu0 %v11098
    %11372 = vmatpush1.bf16.msra.mxu0 %v11097
    %11373 = vmatprep.subr.bf16.mxu0 %v11100
    %11374 = vmatpush1.bf16.msra.mxu0 %v11099
    %11375 = vmatprep.subr.bf16.mxu0 %v11102
    %11376 = vmatpush1.bf16.msra.mxu0 %v11101
    %11377 = vmatprep.subr.bf16.mxu0 %v11104
    %11378 = vmatpush1.bf16.msra.mxu0 %v11103
    %11379 = vmatprep.subr.bf16.mxu0 %v11106
    %11380 = vmatpush1.bf16.msra.mxu0 %v11105
    %11381 = vmatprep.subr.bf16.mxu0 %v11108
    %11382 = vmatpush1.bf16.msra.mxu0 %v11107
    %11383 = vmatprep.subr.bf16.mxu0 %v11110
    %11384 = vmatpush1.bf16.msra.mxu0 %v11109
    %11385 = vmatprep.mubr.bf16.mxu0 %v10488
    %11386 = vmatmul.mubr.bf16.gmra.mrb[0].mxu0 %v10487
    %v11387 = vpop.f32.mrb[0].mxu0
    %v11388 = vadd.f32 %v11347, %v11387
    %v11389 = vpop.f32.mrb[0].mxu0
    %v11390 = vadd.f32 %v11349, %v11389
    %v11391 = vpop.f32.mrb[0].mxu0
    %v11392 = vpop.f32.mrb[0].mxu0
    %11393 = vdwg.mxu0
    %11394 = vmatprep.subr.bf16.mxu0 %v11112
    %11395 = vmatpush1.bf16.msra.mxu0 %v11111
    %11396 = vmatprep.subr.bf16.mxu0 %v11114
    %11397 = vmatpush1.bf16.msra.mxu0 %v11113
    %11398 = vmatprep.subr.bf16.mxu0 %v11116
    %11399 = vmatpush1.bf16.msra.mxu0 %v11115
    %11400 = vmatprep.subr.bf16.mxu0 %v11118
    %11401 = vmatpush1.bf16.msra.mxu0 %v11117
    %11402 = vmatprep.subr.bf16.mxu0 %v11120
    %11403 = vmatpush1.bf16.msra.mxu0 %v11119
    %11404 = vmatprep.subr.bf16.mxu0 %v11122
    %11405 = vmatpush1.bf16.msra.mxu0 %v11121
    %11406 = vmatprep.subr.bf16.mxu0 %v11124
    %11407 = vmatpush1.bf16.msra.mxu0 %v11123
    %11408 = vmatprep.subr.bf16.mxu0 %v11126
    %11409 = vmatpush1.bf16.msra.mxu0 %v11125
    %11410 = vmatprep.subr.bf16.mxu0 %v11128
    %11411 = vmatpush1.bf16.msra.mxu0 %v11127
    %11412 = vmatprep.subr.bf16.mxu0 %v11130
    %11413 = vmatpush1.bf16.msra.mxu0 %v11129
    %11414 = vmatprep.subr.bf16.mxu0 %v11132
    %11415 = vmatpush1.bf16.msra.mxu0 %v11131
    %11416 = vmatprep.subr.bf16.mxu0 %v11134
    %11417 = vmatpush1.bf16.msra.mxu0 %v11133
    %11418 = vmatprep.subr.bf16.mxu0 %v11136
    %11419 = vmatpush1.bf16.msra.mxu0 %v11135
    %11420 = vmatprep.subr.bf16.mxu0 %v11138
    %11421 = vmatpush1.bf16.msra.mxu0 %v11137
    %11422 = vmatprep.subr.bf16.mxu0 %v11140
    %11423 = vmatpush1.bf16.msra.mxu0 %v11139
    %11424 = vmatprep.subr.bf16.mxu0 %v11142
    %11425 = vmatpush1.bf16.msra.mxu0 %v11141
    %11426 = vmatprep.mubr.bf16.mxu0 %v10490
    %11427 = vmatmul.mubr.bf16.gmra.mrb[0].mxu0 %v10489
    %v11428 = vpop.f32.mrb[0].mxu0
    %v11429 = vadd.f32 %v11388, %v11428
    %v11430 = vpop.f32.mrb[0].mxu0
    %v11431 = vadd.f32 %v11390, %v11430
    %v11432 = vpop.f32.mrb[0].mxu0
    %v11433 = vpop.f32.mrb[0].mxu0
    %11434 = vdwg.mxu0
    %v11435 = vmax.f32 %v11429, 0.0
    %v11436 = vmax.f32 %v11431, 0.0
    %v11437 = vpack.c.bf16 %v11435, %v11435
    %v11438 = vpack.c.bf16 %v11436, %v11436
    %v11439 = vld [vmem:[%s9] sm:$0xf]
    %v11440 = vld [vmem:[%s9 + $0x4] sm:$0xf]
    %v11441 = vld [vmem:[%s9 + $0x8] sm:$0xf]
    %v11442 = vld [vmem:[%s9 + $0xc] sm:$0xf]
    %v11443 = vld [vmem:[%s9 + $0x10] sm:$0xf]
    %v11444 = vld [vmem:[%s9 + $0x14] sm:$0xf]
    %v11445 = vld [vmem:[%s9 + $0x18] sm:$0xf]
    %v11446 = vld [vmem:[%s9 + $0x1c] sm:$0xf]
    %v11447 = vld [vmem:[%s9 + $0x20] sm:$0xf]
    %v11448 = vld [vmem:[%s9 + $0x24] sm:$0xf]
    %v11449 = vld [vmem:[%s9 + $0x28] sm:$0xf]
    %v11450 = vld [vmem:[%s9 + $0x2c] sm:$0xf]
    %v11451 = vld [vmem:[%s9 + $0x30] sm:$0xf]
    %v11452 = vld [vmem:[%s9 + $0x34] sm:$0xf]
    %v11453 = vld [vmem:[%s9 + $0x38] sm:$0xf]
    %v11454 = vld [vmem:[%s9 + $0x3c] sm:$0xf]
    %v11455 = vld [vmem:[%s9 + $0x40] sm:$0xf]
    %v11456 = vld [vmem:[%s9 + $0x44] sm:$0xf]
    %v11457 = vld [vmem:[%s9 + $0x48] sm:$0xf]
    %v11458 = vld [vmem:[%s9 + $0x4c] sm:$0xf]
    %v11459 = vld [vmem:[%s9 + $0x50] sm:$0xf]
    %v11460 = vld [vmem:[%s9 + $0x54] sm:$0xf]
    %v11461 = vld [vmem:[%s9 + $0x58] sm:$0xf]
    %v11462 = vld [vmem:[%s9 + $0x5c] sm:$0xf]
    %v11463 = vld [vmem:[%s9 + $0x60] sm:$0xf]
    %v11464 = vld [vmem:[%s9 + $0x64] sm:$0xf]
    %v11465 = vld [vmem:[%s9 + $0x68] sm:$0xf]
    %v11466 = vld [vmem:[%s9 + $0x6c] sm:$0xf]
    %v11467 = vld [vmem:[%s9 + $0x70] sm:$0xf]
    %v11468 = vld [vmem:[%s9 + $0x74] sm:$0xf]
    %v11469 = vld [vmem:[%s9 + $0x78] sm:$0xf]
    %v11470 = vld [vmem:[%s9 + $0x7c] sm:$0xf]
    %v11471 = vld [vmem:[%s10] sm:$0x1]
    %v11473 = vlaneseq
    %v11474 = vshrl.u32 %v11473, 7
    %v11475 = vsub.s32 0, %v11474
    %v11476 = vrot.slane %v11471, %v11475
    %v11510 = vunpack.c.l.b16 %v11439
    %v11511 = vunpack.c.l.b16 %v11440
    %v11512 = vunpack.c.l.b16 %v11441
    %v11513 = vunpack.c.l.b16 %v11442
    %v11514 = vunpack.c.l.b16 %v11443
    %v11515 = vunpack.c.l.b16 %v11444
    %v11516 = vunpack.c.l.b16 %v11445
    %v11517 = vunpack.c.l.b16 %v11446
    %v11518 = vunpack.c.l.b16 %v11447
    %v11519 = vunpack.c.l.b16 %v11448
    %v11520 = vunpack.c.l.b16 %v11449
    %v11521 = vunpack.c.l.b16 %v11450
    %v11522 = vunpack.c.l.b16 %v11451
    %v11523 = vunpack.c.l.b16 %v11452
    %v11524 = vunpack.c.l.b16 %v11453
    %v11525 = vunpack.c.l.b16 %v11454
    %v11526 = vunpack.c.l.b16 %v11455
    %v11527 = vunpack.c.l.b16 %v11456
    %v11528 = vunpack.c.l.b16 %v11457
    %v11529 = vunpack.c.l.b16 %v11458
    %v11530 = vunpack.c.l.b16 %v11459
    %v11531 = vunpack.c.l.b16 %v11460
    %v11532 = vunpack.c.l.b16 %v11461
    %v11533 = vunpack.c.l.b16 %v11462
    %v11534 = vunpack.c.l.b16 %v11463
    %v11535 = vunpack.c.l.b16 %v11464
    %v11536 = vunpack.c.l.b16 %v11465
    %v11537 = vunpack.c.l.b16 %v11466
    %v11538 = vunpack.c.l.b16 %v11467
    %v11539 = vunpack.c.l.b16 %v11468
    %v11540 = vunpack.c.l.b16 %v11469
    %v11541 = vunpack.c.l.b16 %v11470
    %v11542 = vpack.c.b16 %v11511, %v11510
    %v11543 = vpack.c.b16 %v11513, %v11512
    %v11544 = vpack.c.b16 %v11515, %v11514
    %v11545 = vpack.c.b16 %v11517, %v11516
    %v11546 = vpack.c.b16 %v11519, %v11518
    %v11547 = vpack.c.b16 %v11521, %v11520
    %v11548 = vpack.c.b16 %v11523, %v11522
    %v11549 = vpack.c.b16 %v11525, %v11524
    %v11550 = vpack.c.b16 %v11527, %v11526
    %v11551 = vpack.c.b16 %v11529, %v11528
    %v11552 = vpack.c.b16 %v11531, %v11530
    %v11553 = vpack.c.b16 %v11533, %v11532
    %v11554 = vpack.c.b16 %v11535, %v11534
    %v11555 = vpack.c.b16 %v11537, %v11536
    %v11556 = vpack.c.b16 %v11539, %v11538
    %v11557 = vpack.c.b16 %v11541, %v11540
    %11574 = vmatprep.subr.bf16.mxu0 0
    %11575 = vmatpush1.bf16.msra.mxu0 %v11542
    %11576 = vmatprep.subr.bf16.mxu0 0
    %11577 = vmatpush1.bf16.msra.mxu0 %v11543
    %11578 = vmatprep.subr.bf16.mxu0 0
    %11579 = vmatpush1.bf16.msra.mxu0 %v11544
    %11580 = vmatprep.subr.bf16.mxu0 0
    %11581 = vmatpush1.bf16.msra.mxu0 %v11545
    %11582 = vmatprep.subr.bf16.mxu0 0
    %11583 = vmatpush1.bf16.msra.mxu0 %v11546
    %11584 = vmatprep.subr.bf16.mxu0 0
    %11585 = vmatpush1.bf16.msra.mxu0 %v11547
    %11586 = vmatprep.subr.bf16.mxu0 0
    %11587 = vmatpush1.bf16.msra.mxu0 %v11548
    %11588 = vmatprep.subr.bf16.mxu0 0
    %11589 = vmatpush1.bf16.msra.mxu0 %v11549
    %11590 = vmatprep.subr.bf16.mxu0 0
    %11591 = vmatpush1.bf16.msra.mxu0 %v11550
    %11592 = vmatprep.subr.bf16.mxu0 0
    %11593 = vmatpush1.bf16.msra.mxu0 %v11551
    %11594 = vmatprep.subr.bf16.mxu0 0
    %11595 = vmatpush1.bf16.msra.mxu0 %v11552
    %11596 = vmatprep.subr.bf16.mxu0 0
    %11597 = vmatpush1.bf16.msra.mxu0 %v11553
    %11598 = vmatprep.subr.bf16.mxu0 0
    %11599 = vmatpush1.bf16.msra.mxu0 %v11554
    %11600 = vmatprep.subr.bf16.mxu0 0
    %11601 = vmatpush1.bf16.msra.mxu0 %v11555
    %11602 = vmatprep.subr.bf16.mxu0 0
    %11603 = vmatpush1.bf16.msra.mxu0 %v11556
    %11604 = vmatprep.subr.bf16.mxu0 0
    %11605 = vmatpush1.bf16.msra.mxu0 %v11557
    %11606 = vmatprep.mubr.bf16.mxu0 %v11438
    %11607 = vmatmul.mubr.bf16.gmra.mrb[0].mxu0 %v11437
    %v11608 = vpop.f32.mrb[0].mxu0
    %v11609 = vadd.f32 %v11476, %v11608
    %v11610 = vpop.f32.mrb[0].mxu0
    %v11611 = vpop.f32.mrb[0].mxu0
    %v11612 = vpop.f32.mrb[0].mxu0
    %11613 = vdwg.mxu0
    %11614 = vst [vmem:[#allocation3] sm:$0x3] %v11609
    // Predicated region
    $region46: #{vgg_forward.1} parent=1 // pred_check
      _
    $region47: #{vgg_forward.1} parent=1 // pred_check_branch
      %11616 = sbr.rel (0) target = $region49
    $region48: #{vgg_forward.1} parent=1 // pred_region
      %s11618 = ssub.s32 32, 32
      %11619 = vsyncadd [#allocation4], %s11618
      %s11621 = sshll.u32 [#allocation3], 4
      %s11622 = int_to_ptr.vmem [resolvable:$true] %s11621
      %11624 = dma.vmem_to_hbm [thread:$0]  %s11622, 32, %s11, [#allocation4]
    $region49: #{vgg_forward.1} parent=1 // pred_fallthru
      _
    // Predicated region
    $region50: #{vgg_forward.1} parent=1 // pred_check
      _
    $region51: #{vgg_forward.1} parent=1 // pred_check_branch
      %11626 = sbr.rel (0) target = $region53
    $region52: #{vgg_forward.1} parent=1 // pred_region
      %11627 = dma.done [#allocation4], 32
    $region53: #{vgg_forward.1} parent=1 // pred_fallthru
      _
    %11628 = vsyncpa [#allocation4], 1

</llo_original>
